<compile_context>
chip_gen: v7x
topology: tpu7x:2x2x1
jax: 0.10.0
libtpu: 0.0.40
codegen_flags: <defaults>
</compile_context>

<pallas_src>
import functools

import jax
import jax.numpy as jnp
from jax.experimental import pallas as pl
from jax.experimental.pallas import tpu as pltpu

EPS = 1e-5      # nn.BatchNorm2d default eps
LANE = 128      # pad channels to a multiple of the 128-wide lane dim


# ----------------------------------------------------------------------------- kernels
def _conv_stats_kernel(x_ref, sc_ref, sh_ref, w_ref, y_ref, s_ref, slab_ref, *,
                       apply_act):
    """3x3 same-padded conv for one (image n, row tile) + partial BN statistics.

    x_ref   : (1, H, W, Ci)   bf16  full image, resident across row tiles
    sc_ref  : (1, Ci)         f32   folded BN scale of the previous stage
    sh_ref  : (1, Ci)         f32   folded BN shift of the previous stage
    w_ref   : (3, 3*Ci, Co)   bf16  taps grouped per kernel row kh, rows = (kw, cin)
    y_ref   : (1, TH, W, Co)  bf16  raw conv output tile
    s_ref   : (1, 1, 2, Co)   f32   per-tile [sum, M2 about the tile mean]
    slab_ref: (TH+2, W+2, Ci) bf16  VMEM scratch: zero-halo activation slab
    apply_act (static): fuse relu(scale*x + shift) of the previous stage.
    """
    _, TH, W, Co = y_ref.shape
    H = x_ref.shape[1]
    Ci = x_ref.shape[3]
    row0 = pl.multiple_of(pl.program_id(1) * TH, TH)

    def act(v):                                   # v: (R, W, Ci) bf16
        if apply_act:
            v = jnp.maximum(v.astype(jnp.float32) * sc_ref[...] + sh_ref[...], 0.0)
        return v.astype(jnp.bfloat16)

    # ---- build the (TH+2, W+2, Ci) zero-halo activation slab --------------------
    zcol = jnp.zeros((TH + 2, 1, Ci), jnp.bfloat16)
    slab_ref[:, 0:1, :] = zcol                               # left halo column
    slab_ref[:, W + 1:W + 2, :] = zcol                       # right halo column
    slab_ref[1:TH + 1, 1:W + 1, :] = act(x_ref[0, pl.ds(row0, TH), :, :])
    zrow = jnp.zeros((1, W, Ci), jnp.bfloat16)
    top = act(x_ref[0, pl.ds(jnp.maximum(row0 - 1, 0), 1), :, :])
    bot = act(x_ref[0, pl.ds(jnp.minimum(row0 + TH, H - 1), 1), :, :])
    slab_ref[0:1, 1:W + 1, :] = jnp.where(row0 > 0, top, zrow)
    slab_ref[TH + 1:TH + 2, 1:W + 1, :] = jnp.where(row0 + TH < H, bot, zrow)

    # ---- conv: 3 MXU calls (one per kernel row), K = 3*Ci, f32 accumulation -----
    M = TH * W

    def taps(kh):                                 # (M, 3*Ci) bf16, lanes = (kw, cin)
        return jnp.concatenate(
            [slab_ref[kh:kh + TH, kw:kw + W, :].reshape(M, Ci) for kw in range(3)],
            axis=-1)

    acc = jnp.dot(taps(0), w_ref[0], preferred_element_type=jnp.float32)
    acc += jnp.dot(taps(1), w_ref[1], preferred_element_type=jnp.float32)
    acc += jnp.dot(taps(2), w_ref[2], preferred_element_type=jnp.float32)

    y_ref[...] = acc.reshape(1, TH, W, Co).astype(y_ref.dtype)

    # ---- per-tile BN partials: sum and M2 about the tile mean (from f32 acc) ----
    s1 = jnp.sum(acc, axis=0, keepdims=True)                 # (1, Co)
    mu = s1 * (1.0 / M)
    d = acc - mu
    m2 = jnp.sum(d * d, axis=0, keepdims=True)               # (1, Co)
    s_ref[...] = jnp.concatenate([s1, m2], axis=0).reshape(1, 1, 2, Co)


def _bn_relu_kernel(y_ref, sc_ref, sh_ref, o_ref):
    """Folded BN (per-channel scale/shift) + ReLU on one row tile."""
    o_ref[...] = jnp.maximum(
        y_ref[...].astype(jnp.float32) * sc_ref[...] + sh_ref[...], 0.0
    ).astype(o_ref.dtype)


# ----------------------------------------------------------------------------- sizing
def _round_up(x, m):
    return (x + m - 1) // m * m


def _pad_channels(v, cp):
    return jnp.pad(v, (0, cp - v.shape[0])).astype(jnp.float32)


def _vmem_budget():
    """Per-generation VMEM budget (~96 MiB on v5e/v6e, ~48 MiB on v7x)."""
    cap = 64 * 1024 * 1024                      # conservative fallback
    try:
        cap = int(pltpu.get_tpu_info().vmem_capacity_bytes)
    except Exception:
        pass
    return min(cap * 3 // 4, 112 * 1024 * 1024)


def _row_tile(h, w, ci, co, budget):
    """Largest row tile TH dividing H whose per-step working set fits the VMEM
    budget, targeting an MXU-friendly M = TH*W (capped to keep buffers bounded)."""
    divs = sorted(d for d in range(1, h + 1) if h % d == 0)
    resident = 2 * h * w * ci * 2               # full-image input block, 2x buffered
    weights = 2 * 9 * ci * co * 2               # grouped weights, 2x buffered

    def step_bytes(th):
        m = th * w
        return (resident + weights
                + 2 * 2 * m * co                 # bf16 y tile, 2x buffered
                + (th + 2) * (w + 2) * ci * 2    # activation slab scratch
                + 2 * m * 3 * ci                 # per-kh im2col operand (bf16)
                + 4 * m * co                     # f32 accumulator
                + 2 * 2 * 2 * co * 4)            # stats tile

    fit = [d for d in divs if step_bytes(d) <= budget]
    if not fit:
        return divs[0]
    capped = [d for d in fit if d * w <= 4096]
    return max(capped) if capped else fit[0]


def _ew_row_tile(h, w, c, budget):
    divs = sorted(d for d in range(1, h + 1) if h % d == 0)
    fit = [d for d in divs if 12 * d * w * c <= budget]
    return max(fit) if fit else divs[0]


# ----------------------------------------------------------------------------- wrappers
def _prep_conv_weight(w_oihw, cpi, cpo):
    """PyTorch OIHW -> (3, 3*Cin_pad, Cout_pad) bf16, grouped by kernel row kh;
    inside a group the rows are ordered (kw, cin) to match the kernel's tap concat."""
    cout, cin = w_oihw.shape[0], w_oihw.shape[1]
    w = jnp.transpose(w_oihw, (2, 3, 1, 0))                  # (3, 3, Cin, Cout)
    w = jnp.pad(w, ((0, 0), (0, 0), (0, cpi - cin), (0, cpo - cout)))
    return w.reshape(3, 3 * cpi, cpo).astype(jnp.bfloat16)


def _fold_bn(gamma_p, beta_p, mean, var):
    scale = gamma_p * jax.lax.rsqrt(var + EPS)
    shift = beta_p - mean * scale
    return scale.reshape(1, -1), shift.reshape(1, -1)


def _conv_pass(x, w_grouped, scale_prev, shift_prev, *, apply_act, budget):
    """One 3x3 conv over the batch; returns (bf16 conv output, BN mean, BN var)."""
    N, H, W, Ci = x.shape
    Co = w_grouped.shape[-1]
    TH = _row_tile(H, W, Ci, Co, budget)
    GH = H // TH

    kernel = functools.partial(_conv_stats_kernel, apply_act=apply_act)
    cost = pl.CostEstimate(
        flops=2 * N * H * W * 9 * Ci * Co,
        transcendentals=0,
        bytes_accessed=(x.size * 2 + w_grouped.size * 2
                        + N * H * W * Co * 2 + N * GH * 2 * Co * 4))

    y, stats = pl.pallas_call(
        kernel,
        grid=(N, GH),
        in_specs=[
            # Full image per n; the block index is constant across row tiles so the
            # pipeline issues one DMA per image.
            # TODO(synk): for very large H*W*C on v7x (64 MiB VMEM), single-buffer
            # this block (pipeline_mode=pl.Buffered(1)) or switch to halo row blocks.
            pl.BlockSpec((1, H, W, Ci), lambda n, h: (n, 0, 0, 0)),
            pl.BlockSpec((1, Ci), lambda n, h: (0, 0)),
            pl.BlockSpec((1, Ci), lambda n, h: (0, 0)),
            pl.BlockSpec((3, 3 * Ci, Co), lambda n, h: (0, 0, 0)),
        ],
        out_specs=[
            pl.BlockSpec((1, TH, W, Co), lambda n, h: (n, h, 0, 0)),
            pl.BlockSpec((1, 1, 2, Co), lambda n, h: (n, h, 0, 0)),
        ],
        out_shape=(jax.ShapeDtypeStruct((N, H, W, Co), jnp.bfloat16),
                   jax.ShapeDtypeStruct((N, GH, 2, Co), jnp.float32)),
        scratch_shapes=[pltpu.VMEM((TH + 2, W + 2, Ci), jnp.bfloat16)],
        compiler_params=pltpu.CompilerParams(
            dimension_semantics=("parallel", "parallel"),
            vmem_limit_bytes=budget),
        cost_estimate=cost,
    )(x, scale_prev, shift_prev, w_grouped)

    # Chan/Welford combine of per-tile (sum, M2) partials -> mean, biased variance.
    n_tile = float(TH * W)
    total = float(N * H * W)
    sums = stats[:, :, 0, :]                                  # (N, GH, Co)
    m2s = stats[:, :, 1, :]
    mean = jnp.sum(sums, axis=(0, 1)) / total
    tile_mean = sums / n_tile
    var = (jnp.sum(m2s, axis=(0, 1))
           + n_tile * jnp.sum((tile_mean - mean) ** 2, axis=(0, 1))) / total
    return y, mean, jnp.maximum(var, 0.0)


def _bn_relu_pass(y, scale, shift, *, budget):
    N, H, W, Co = y.shape
    TH = _ew_row_tile(H, W, Co, budget)
    GH = H // TH
    return pl.pallas_call(
        _bn_relu_kernel,
        grid=(N, GH),
        in_specs=[
            pl.BlockSpec((1, TH, W, Co), lambda n, h: (n, h, 0, 0)),
            pl.BlockSpec((1, Co), lambda n, h: (0, 0)),
            pl.BlockSpec((1, Co), lambda n, h: (0, 0)),
        ],
        out_specs=pl.BlockSpec((1, TH, W, Co), lambda n, h: (n, h, 0, 0)),
        out_shape=jax.ShapeDtypeStruct((N, H, W, Co), jnp.float32),
        compiler_params=pltpu.CompilerParams(
            dimension_semantics=("parallel", "parallel"),
            vmem_limit_bytes=budget),
    )(y, scale, shift)


@jax.jit
def double_conv(x_nchw, params):
    """DoubleConv forward (training-mode batch-stat BN). NCHW in / NCHW out."""
    N, Cin, H, W = x_nchw.shape
    Cout = params["w1"].shape[0]
    Cpi = _round_up(Cin, LANE)
    Cpo = _round_up(Cout, LANE)
    budget = _vmem_budget()

    # NCHW -> NHWC, lane-dense channel padding, bf16 activations for the MXU.
    x = jnp.transpose(x_nchw, (0, 2, 3, 1))
    x = jnp.pad(x, ((0, 0), (0, 0), (0, 0), (0, Cpi - Cin))).astype(jnp.bfloat16)

    # NOTE: conv biases (params["b1"/"b2"]) are intentionally dropped: they are
    # cancelled exactly by the training-mode BatchNorm mean subtraction.  Reinstate
    # them if this is ever reused with eval-mode running statistics.
    w1 = _prep_conv_weight(params["w1"], Cpi, Cpo)
    w2 = _prep_conv_weight(params["w2"], Cpo, Cpo)

    ident = (jnp.ones((1, Cpi), jnp.float32), jnp.zeros((1, Cpi), jnp.float32))
    y1, mean1, var1 = _conv_pass(x, w1, *ident, apply_act=False, budget=budget)
    scale1, shift1 = _fold_bn(_pad_channels(params["g1"], Cpo),
                              _pad_channels(params["beta1"], Cpo), mean1, var1)

    # Stage-1 BN + ReLU (and the zero halo) are fused into the stage-2 conv kernel:
    # no intermediate activation buffer, no pre-padded buffer, one less launch.
    y2, mean2, var2 = _conv_pass(y1, w2, scale1, shift1, apply_act=True,
                                 budget=budget)
    scale2, shift2 = _fold_bn(_pad_channels(params["g2"], Cpo),
                              _pad_channels(params["beta2"], Cpo), mean2, var2)

    out = _bn_relu_pass(y2, scale2, shift2, budget=budget)    # (N, H, W, Cpo) f32

    # Keep NCHW to match the PyTorch module; a consumer that accepts NHWC should use
    # out[..., :Cout] directly and skip this extra HBM round-trip.
    return jnp.transpose(out[..., :Cout], (0, 3, 1, 2))


# ----------------------------------------------------------------------------- reference
def ref_double_conv(x_nchw, params):
    """Pure-JAX (XLA, f32) reference with the same semantics."""
    def stage(x, w, b, g, beta):
        y = jax.lax.conv_general_dilated(
            x, w, window_strides=(1, 1), padding=((1, 1), (1, 1)),
            dimension_numbers=("NCHW", "OIHW", "NCHW"),
            precision=jax.lax.Precision.HIGHEST)
        y = y + b[None, :, None, None]
        mean = jnp.mean(y, axis=(0, 2, 3), keepdims=True)
        var = jnp.mean((y - mean) ** 2, axis=(0, 2, 3), keepdims=True)
        y = (y - mean) * jax.lax.rsqrt(var + EPS)
        y = y * g[None, :, None, None] + beta[None, :, None, None]
        return jnp.maximum(y, 0.0)

    h = stage(x_nchw, params["w1"], params["b1"], params["g1"], params["beta1"])
    return stage(h, params["w2"], params["b2"], params["g2"], params["beta2"])


def init_params(key, in_channels, out_channels):
    """Deterministic init mimicking PyTorch defaults (uniform +-1/sqrt(fan_in))."""
    k = jax.random.split(key, 4)
    fan1 = in_channels * 9
    fan2 = out_channels * 9
    b1 = 1.0 / jnp.sqrt(fan1)
    b2 = 1.0 / jnp.sqrt(fan2)
    return {
        "w1": jax.random.uniform(k[0], (out_channels, in_channels, 3, 3),
                                 jnp.float32, -b1, b1),
        "b1": jax.random.uniform(k[1], (out_channels,), jnp.float32, -b1, b1),
        "g1": jnp.ones((out_channels,), jnp.float32),
        "beta1": jnp.zeros((out_channels,), jnp.float32),
        "w2": jax.random.uniform(k[2], (out_channels, out_channels, 3, 3),
                                 jnp.float32, -b2, b2),
        "b2": jax.random.uniform(k[3], (out_channels,), jnp.float32, -b2, b2),
        "g2": jnp.ones((out_channels,), jnp.float32),
        "beta2": jnp.zeros((out_channels,), jnp.float32),
    }


if __name__ == "__main__":
    key = jax.random.PRNGKey(0)
    kx, kp = jax.random.split(key)

    N, Cin, Cout, H, W = 2, 4, 8, 16, 16
    x = jax.random.normal(kx, (N, Cin, H, W), jnp.float32)   # PyTorch NCHW layout
    params = init_params(kp, Cin, Cout)

    out = jax.block_until_ready(double_conv(x, params))
    assert out.shape == (N, Cout, H, W), out.shape

    ref = ref_double_conv(x, params)
    err = float(jnp.max(jnp.abs(out - ref)))
    # bf16 matmul operands / bf16 intermediates (f32 accumulation + f32 BN stats)
    # vs. the all-f32 HIGHEST-precision reference.
    assert jnp.allclose(out, ref, atol=5e-2, rtol=5e-2), err

    print("KERNEL_OK")
</pallas_src>

<mosaic_0001>
module attributes {stable_mosaic.version = 11 : i64} {
  func.func @_conv_stats_kernel(%arg0: i32, %arg1: i32, %arg2: memref<1x16x16x128xbf16, #tpu.memory_space<vmem>>, %arg3: memref<1x128xf32, #tpu.memory_space<vmem>>, %arg4: memref<1x128xf32, #tpu.memory_space<vmem>>, %arg5: memref<3x384x128xbf16, #tpu.memory_space<vmem>>, %arg6: memref<1x16x16x128xbf16, #tpu.memory_space<vmem>>, %arg7: memref<1x1x2x128xf32, #tpu.memory_space<vmem>>, %arg8: memref<18x18x128xbf16, #tpu.memory_space<vmem>>) attributes {dimension_semantics = [#tpu.dimension_semantics<parallel>, #tpu.dimension_semantics<parallel>], iteration_bounds = array<i64: 2, 1>, scalar_prefetch = 0 : i64, scratch_operands = 1 : i64, tpu.core_type = #tpu.core_type<tc>, window_params = [{transform_indices = @transform_0, window_bounds = array<i64: 1, 16, 16, 128>}, {pipeline_mode = #tpu.pipeline_mode<synchronous>, transform_indices = @transform_1, window_bounds = array<i64: 1, 128>}, {pipeline_mode = #tpu.pipeline_mode<synchronous>, transform_indices = @transform_2, window_bounds = array<i64: 1, 128>}, {pipeline_mode = #tpu.pipeline_mode<synchronous>, transform_indices = @transform_3, window_bounds = array<i64: 3, 384, 128>}, {transform_indices = @transform_4, window_bounds = array<i64: 1, 16, 16, 128>}, {transform_indices = @transform_5, window_bounds = array<i64: 1, 1, 2, 128>}]} {
    %c16_i32 = arith.constant 16 : i32
    %0 = arith.muli %arg1, %c16_i32 : i32
    %1 = tpu.assume_multiple %0, 16 : i32
    %cst = arith.constant 0.000000e+00 : bf16
    %2 = vector.broadcast %cst : bf16 to vector<18x1x128xbf16>
    %c0 = arith.constant 0 : index
    %c0_0 = arith.constant 0 : index
    %c0_1 = arith.constant 0 : index
    %3 = vector.load %arg8[%c0, %c0_0, %c0_1] : memref<18x18x128xbf16, #tpu.memory_space<vmem>>, vector<18x1x128xbf16>
    tpu.vector_store %arg8[%c0, %c0_0, %c0_1], %2 {strides = array<i32>} : memref<18x18x128xbf16, #tpu.memory_space<vmem>>, vector<18x1x128xbf16>,
    %c0_2 = arith.constant 0 : index
    %c17 = arith.constant 17 : index
    %c0_3 = arith.constant 0 : index
    %4 = vector.load %arg8[%c0_2, %c17, %c0_3] : memref<18x18x128xbf16, #tpu.memory_space<vmem>>, vector<18x1x128xbf16>
    tpu.vector_store %arg8[%c0_2, %c17, %c0_3], %2 {strides = array<i32>} : memref<18x18x128xbf16, #tpu.memory_space<vmem>>, vector<18x1x128xbf16>,
    %c0_4 = arith.constant 0 : index
    %5 = arith.index_cast %1 : i32 to index
    %c0_5 = arith.constant 0 : index
    %c0_6 = arith.constant 0 : index
    %6 = vector.load %arg2[%c0_4, %5, %c0_5, %c0_6] : memref<1x16x16x128xbf16, #tpu.memory_space<vmem>>, vector<1x16x16x128xbf16>
    %7 = vector.shape_cast %6 : vector<1x16x16x128xbf16> to vector<16x16x128xbf16>
    %c1 = arith.constant 1 : index
    %c1_7 = arith.constant 1 : index
    %c0_8 = arith.constant 0 : index
    %8 = vector.load %arg8[%c1, %c1_7, %c0_8] : memref<18x18x128xbf16, #tpu.memory_space<vmem>>, vector<16x16x128xbf16>
    tpu.vector_store %arg8[%c1, %c1_7, %c0_8], %7 {strides = array<i32>} : memref<18x18x128xbf16, #tpu.memory_space<vmem>>, vector<16x16x128xbf16>,
    %cst_9 = arith.constant 0.000000e+00 : bf16
    %9 = vector.broadcast %cst_9 : bf16 to vector<1x16x128xbf16>
    %c1_i32 = arith.constant 1 : i32
    %10 = arith.subi %1, %c1_i32 : i32
    %c0_i32 = arith.constant 0 : i32
    %11 = arith.maxsi %10, %c0_i32 : i32
    %c0_10 = arith.constant 0 : index
    %12 = arith.index_cast %11 : i32 to index
    %c0_11 = arith.constant 0 : index
    %c0_12 = arith.constant 0 : index
    %13 = vector.load %arg2[%c0_10, %12, %c0_11, %c0_12] : memref<1x16x16x128xbf16, #tpu.memory_space<vmem>>, vector<1x1x16x128xbf16>
    %14 = vector.shape_cast %13 : vector<1x1x16x128xbf16> to vector<1x16x128xbf16>
    %c16_i32_13 = arith.constant 16 : i32
    %15 = arith.addi %1, %c16_i32_13 : i32
    %c15_i32 = arith.constant 15 : i32
    %16 = arith.minsi %15, %c15_i32 : i32
    %c0_14 = arith.constant 0 : index
    %17 = arith.index_cast %16 : i32 to index
    %c0_15 = arith.constant 0 : index
    %c0_16 = arith.constant 0 : index
    %18 = vector.load %arg2[%c0_14, %17, %c0_15, %c0_16] : memref<1x16x16x128xbf16, #tpu.memory_space<vmem>>, vector<1x1x16x128xbf16>
    %19 = vector.shape_cast %18 : vector<1x1x16x128xbf16> to vector<1x16x128xbf16>
    %c0_i32_17 = arith.constant 0 : i32
    %20 = arith.cmpi sgt, %1, %c0_i32_17 : i32
    %21 = arith.select %20, %14, %9 : vector<1x16x128xbf16>
    %c0_18 = arith.constant 0 : index
    %c1_19 = arith.constant 1 : index
    %c0_20 = arith.constant 0 : index
    %22 = vector.load %arg8[%c0_18, %c1_19, %c0_20] : memref<18x18x128xbf16, #tpu.memory_space<vmem>>, vector<1x16x128xbf16>
    tpu.vector_store %arg8[%c0_18, %c1_19, %c0_20], %21 {strides = array<i32>} : memref<18x18x128xbf16, #tpu.memory_space<vmem>>, vector<1x16x128xbf16>,
    %c16_i32_21 = arith.constant 16 : i32
    %23 = arith.addi %1, %c16_i32_21 : i32
    %c16_i32_22 = arith.constant 16 : i32
    %24 = arith.cmpi slt, %23, %c16_i32_22 : i32
    %25 = arith.select %24, %19, %9 : vector<1x16x128xbf16>
    %c17_23 = arith.constant 17 : index
    %c1_24 = arith.constant 1 : index
    %c0_25 = arith.constant 0 : index
    %26 = vector.load %arg8[%c17_23, %c1_24, %c0_25] : memref<18x18x128xbf16, #tpu.memory_space<vmem>>, vector<1x16x128xbf16>
    tpu.vector_store %arg8[%c17_23, %c1_24, %c0_25], %25 {strides = array<i32>} : memref<18x18x128xbf16, #tpu.memory_space<vmem>>, vector<1x16x128xbf16>,
    %c0_26 = arith.constant 0 : index
    %c0_27 = arith.constant 0 : index
    %c0_28 = arith.constant 0 : index
    %27 = vector.load %arg8[%c0_26, %c0_27, %c0_28] : memref<18x18x128xbf16, #tpu.memory_space<vmem>>, vector<16x16x128xbf16>
    %28 = vector.shape_cast %27 : vector<16x16x128xbf16> to vector<256x128xbf16>
    %c0_29 = arith.constant 0 : index
    %c1_30 = arith.constant 1 : index
    %c0_31 = arith.constant 0 : index
    %29 = vector.load %arg8[%c0_29, %c1_30, %c0_31] : memref<18x18x128xbf16, #tpu.memory_space<vmem>>, vector<16x16x128xbf16>
    %30 = vector.shape_cast %29 : vector<16x16x128xbf16> to vector<256x128xbf16>
    %c0_32 = arith.constant 0 : index
    %c2 = arith.constant 2 : index
    %c0_33 = arith.constant 0 : index
    %31 = vector.load %arg8[%c0_32, %c2, %c0_33] : memref<18x18x128xbf16, #tpu.memory_space<vmem>>, vector<16x16x128xbf16>
    %32 = vector.shape_cast %31 : vector<16x16x128xbf16> to vector<256x128xbf16>
    %33 = tpu.concatenate %28, %30, %32 in 1 : vector<256x128xbf16>, vector<256x128xbf16>, vector<256x128xbf16> -> vector<256x384xbf16>
    %c0_34 = arith.constant 0 : index
    %c0_35 = arith.constant 0 : index
    %c0_36 = arith.constant 0 : index
    %34 = vector.load %arg5[%c0_34, %c0_35, %c0_36] : memref<3x384x128xbf16, #tpu.memory_space<vmem>>, vector<1x384x128xbf16>
    %35 = vector.shape_cast %34 : vector<1x384x128xbf16> to vector<384x128xbf16>
    %cst_37 = arith.constant dense<0.000000e+00> : vector<256x128xf32>
    %36 = tpu.matmul %33, %35, %cst_37 {dimension_numbers = #tpu.dot_dimension_numbers<[1], [0], [0], [1], [0, 0, 1, 1], [], []>} : vector<256x384xbf16>, vector<384x128xbf16>, vector<256x128xf32> -> vector<256x128xf32>
    %c1_38 = arith.constant 1 : index
    %c0_39 = arith.constant 0 : index
    %c0_40 = arith.constant 0 : index
    %37 = vector.load %arg8[%c1_38, %c0_39, %c0_40] : memref<18x18x128xbf16, #tpu.memory_space<vmem>>, vector<16x16x128xbf16>
    %38 = vector.shape_cast %37 : vector<16x16x128xbf16> to vector<256x128xbf16>
    %c1_41 = arith.constant 1 : index
    %c1_42 = arith.constant 1 : index
    %c0_43 = arith.constant 0 : index
    %39 = vector.load %arg8[%c1_41, %c1_42, %c0_43] : memref<18x18x128xbf16, #tpu.memory_space<vmem>>, vector<16x16x128xbf16>
    %40 = vector.shape_cast %39 : vector<16x16x128xbf16> to vector<256x128xbf16>
    %c1_44 = arith.constant 1 : index
    %c2_45 = arith.constant 2 : index
    %c0_46 = arith.constant 0 : index
    %41 = vector.load %arg8[%c1_44, %c2_45, %c0_46] : memref<18x18x128xbf16, #tpu.memory_space<vmem>>, vector<16x16x128xbf16>
    %42 = vector.shape_cast %41 : vector<16x16x128xbf16> to vector<256x128xbf16>
    %43 = tpu.concatenate %38, %40, %42 in 1 : vector<256x128xbf16>, vector<256x128xbf16>, vector<256x128xbf16> -> vector<256x384xbf16>
    %c1_47 = arith.constant 1 : index
    %c0_48 = arith.constant 0 : index
    %c0_49 = arith.constant 0 : index
    %44 = vector.load %arg5[%c1_47, %c0_48, %c0_49] : memref<3x384x128xbf16, #tpu.memory_space<vmem>>, vector<1x384x128xbf16>
    %45 = vector.shape_cast %44 : vector<1x384x128xbf16> to vector<384x128xbf16>
    %cst_50 = arith.constant dense<0.000000e+00> : vector<256x128xf32>
    %46 = tpu.matmul %43, %45, %cst_50 {dimension_numbers = #tpu.dot_dimension_numbers<[1], [0], [0], [1], [0, 0, 1, 1], [], []>} : vector<256x384xbf16>, vector<384x128xbf16>, vector<256x128xf32> -> vector<256x128xf32>
    %47 = arith.addf %36, %46 : vector<256x128xf32>
    %c2_51 = arith.constant 2 : index
    %c0_52 = arith.constant 0 : index
    %c0_53 = arith.constant 0 : index
    %48 = vector.load %arg8[%c2_51, %c0_52, %c0_53] : memref<18x18x128xbf16, #tpu.memory_space<vmem>>, vector<16x16x128xbf16>
    %49 = vector.shape_cast %48 : vector<16x16x128xbf16> to vector<256x128xbf16>
    %c2_54 = arith.constant 2 : index
    %c1_55 = arith.constant 1 : index
    %c0_56 = arith.constant 0 : index
    %50 = vector.load %arg8[%c2_54, %c1_55, %c0_56] : memref<18x18x128xbf16, #tpu.memory_space<vmem>>, vector<16x16x128xbf16>
    %51 = vector.shape_cast %50 : vector<16x16x128xbf16> to vector<256x128xbf16>
    %c2_57 = arith.constant 2 : index
    %c2_58 = arith.constant 2 : index
    %c0_59 = arith.constant 0 : index
    %52 = vector.load %arg8[%c2_57, %c2_58, %c0_59] : memref<18x18x128xbf16, #tpu.memory_space<vmem>>, vector<16x16x128xbf16>
    %53 = vector.shape_cast %52 : vector<16x16x128xbf16> to vector<256x128xbf16>
    %54 = tpu.concatenate %49, %51, %53 in 1 : vector<256x128xbf16>, vector<256x128xbf16>, vector<256x128xbf16> -> vector<256x384xbf16>
    %c2_60 = arith.constant 2 : index
    %c0_61 = arith.constant 0 : index
    %c0_62 = arith.constant 0 : index
    %55 = vector.load %arg5[%c2_60, %c0_61, %c0_62] : memref<3x384x128xbf16, #tpu.memory_space<vmem>>, vector<1x384x128xbf16>
    %56 = vector.shape_cast %55 : vector<1x384x128xbf16> to vector<384x128xbf16>
    %cst_63 = arith.constant dense<0.000000e+00> : vector<256x128xf32>
    %57 = tpu.matmul %54, %56, %cst_63 {dimension_numbers = #tpu.dot_dimension_numbers<[1], [0], [0], [1], [0, 0, 1, 1], [], []>} : vector<256x384xbf16>, vector<384x128xbf16>, vector<256x128xf32> -> vector<256x128xf32>
    %58 = arith.addf %47, %57 : vector<256x128xf32>
    %59 = vector.shape_cast %58 : vector<256x128xf32> to vector<1x16x16x128xf32>
    %60 = arith.truncf %59 : vector<1x16x16x128xf32> to vector<1x16x16x128xbf16>
    %c0_64 = arith.constant 0 : index
    %c0_65 = arith.constant 0 : index
    %c0_66 = arith.constant 0 : index
    %c0_67 = arith.constant 0 : index
    %61 = vector.load %arg6[%c0_64, %c0_65, %c0_66, %c0_67] : memref<1x16x16x128xbf16, #tpu.memory_space<vmem>>, vector<1x16x16x128xbf16>
    tpu.vector_store %arg6[%c0_64, %c0_65, %c0_66, %c0_67], %60 {strides = array<i32>} : memref<1x16x16x128xbf16, #tpu.memory_space<vmem>>, vector<1x16x16x128xbf16>,
    %cst_68 = arith.constant dense<0.000000e+00> : vector<128xf32>
    %62 = vector.multi_reduction <add>, %58, %cst_68 [0] : vector<256x128xf32> to vector<128xf32>
    %63 = vector.shape_cast %62 : vector<128xf32> to vector<1x128xf32>
    %cst_69 = arith.constant 3.906250e-03 : f32
    %64 = vector.broadcast %cst_69 : f32 to vector<1x128xf32>
    %65 = arith.mulf %63, %64 : vector<1x128xf32>
    %66 = vector.broadcast %65 : vector<1x128xf32> to vector<256x128xf32>
    %67 = arith.subf %58, %66 : vector<256x128xf32>
    %68 = arith.mulf %67, %67 : vector<256x128xf32>
    %cst_70 = arith.constant dense<0.000000e+00> : vector<128xf32>
    %69 = vector.multi_reduction <add>, %68, %cst_70 [0] : vector<256x128xf32> to vector<128xf32>
    %70 = vector.shape_cast %69 : vector<128xf32> to vector<1x128xf32>
    %71 = tpu.concatenate %63, %70 in 0 : vector<1x128xf32>, vector<1x128xf32> -> vector<2x128xf32>
    %72 = vector.shape_cast %71 : vector<2x128xf32> to vector<1x1x2x128xf32>
    %c0_71 = arith.constant 0 : index
    %c0_72 = arith.constant 0 : index
    %c0_73 = arith.constant 0 : index
    %c0_74 = arith.constant 0 : index
    %73 = vector.load %arg7[%c0_71, %c0_72, %c0_73, %c0_74] : memref<1x1x2x128xf32, #tpu.memory_space<vmem>>, vector<1x1x2x128xf32>
    tpu.vector_store %arg7[%c0_71, %c0_72, %c0_73, %c0_74], %72 {strides = array<i32>} : memref<1x1x2x128xf32, #tpu.memory_space<vmem>>, vector<1x1x2x128xf32>,
    return
  }
  func.func @transform_0(%arg0: i32, %arg1: i32) -> (i32, i32, i32, i32) {
    %c0_i32 = arith.constant 0 : i32
    %c0_i32_0 = arith.constant 0 : i32
    %c0_i32_1 = arith.constant 0 : i32
    %c0_i32_2 = arith.constant 0 : i32
    return %arg0, %c0_i32, %c0_i32_0, %c0_i32_1 : i32, i32, i32, i32
  }
  func.func @transform_1(%arg0: i32, %arg1: i32) -> (i32, i32) {
    %c0_i32 = arith.constant 0 : i32
    %c0_i32_0 = arith.constant 0 : i32
    %c0_i32_1 = arith.constant 0 : i32
    return %c0_i32, %c0_i32_0 : i32, i32
  }
  func.func @transform_2(%arg0: i32, %arg1: i32) -> (i32, i32) {
    %c0_i32 = arith.constant 0 : i32
    %c0_i32_0 = arith.constant 0 : i32
    %c0_i32_1 = arith.constant 0 : i32
    return %c0_i32, %c0_i32_0 : i32, i32
  }
  func.func @transform_3(%arg0: i32, %arg1: i32) -> (i32, i32, i32) {
    %c0_i32 = arith.constant 0 : i32
    %c0_i32_0 = arith.constant 0 : i32
    %c0_i32_1 = arith.constant 0 : i32
    %c0_i32_2 = arith.constant 0 : i32
    return %c0_i32, %c0_i32_0, %c0_i32_1 : i32, i32, i32
  }
  func.func @transform_4(%arg0: i32, %arg1: i32) -> (i32, i32, i32, i32) {
    %c0_i32 = arith.constant 0 : i32
    %c0_i32_0 = arith.constant 0 : i32
    %c0_i32_1 = arith.constant 0 : i32
    return %arg0, %arg1, %c0_i32, %c0_i32_0 : i32, i32, i32, i32
  }
  func.func @transform_5(%arg0: i32, %arg1: i32) -> (i32, i32, i32, i32) {
    %c0_i32 = arith.constant 0 : i32
    %c0_i32_0 = arith.constant 0 : i32
    %c0_i32_1 = arith.constant 0 : i32
    return %arg0, %arg1, %c0_i32, %c0_i32_0 : i32, i32, i32, i32
  }
}

module attributes {stable_mosaic.version = 11 : i64} {
  func.func @_bn_relu_kernel(%arg0: i32, %arg1: i32, %arg2: memref<1x16x16x128xbf16, #tpu.memory_space<vmem>>, %arg3: memref<1x128xf32, #tpu.memory_space<vmem>>, %arg4: memref<1x128xf32, #tpu.memory_space<vmem>>, %arg5: memref<1x16x16x128xf32, #tpu.memory_space<vmem>>) attributes {dimension_semantics = [#tpu.dimension_semantics<parallel>, #tpu.dimension_semantics<parallel>], iteration_bounds = array<i64: 2, 1>, scalar_prefetch = 0 : i64, scratch_operands = 0 : i64, tpu.core_type = #tpu.core_type<tc>, window_params = [{transform_indices = @transform_0, window_bounds = array<i64: 1, 16, 16, 128>}, {pipeline_mode = #tpu.pipeline_mode<synchronous>, transform_indices = @transform_1, window_bounds = array<i64: 1, 128>}, {pipeline_mode = #tpu.pipeline_mode<synchronous>, transform_indices = @transform_2, window_bounds = array<i64: 1, 128>}, {transform_indices = @transform_3, window_bounds = array<i64: 1, 16, 16, 128>}]} {
    %c0 = arith.constant 0 : index
    %c0_0 = arith.constant 0 : index
    %c0_1 = arith.constant 0 : index
    %c0_2 = arith.constant 0 : index
    %0 = vector.load %arg2[%c0, %c0_0, %c0_1, %c0_2] : memref<1x16x16x128xbf16, #tpu.memory_space<vmem>>, vector<1x16x16x128xbf16>
    %1 = arith.extf %0 : vector<1x16x16x128xbf16> to vector<1x16x16x128xf32>
    %c0_3 = arith.constant 0 : index
    %c0_4 = arith.constant 0 : index
    %2 = vector.load %arg3[%c0_3, %c0_4] : memref<1x128xf32, #tpu.memory_space<vmem>>, vector<1x128xf32>
    %3 = vector.shape_cast %2 : vector<1x128xf32> to vector<1x1x1x128xf32>
    %4 = vector.broadcast %3 : vector<1x1x1x128xf32> to vector<1x16x16x128xf32>
    %5 = arith.mulf %1, %4 : vector<1x16x16x128xf32>
    %c0_5 = arith.constant 0 : index
    %c0_6 = arith.constant 0 : index
    %6 = vector.load %arg4[%c0_5, %c0_6] : memref<1x128xf32, #tpu.memory_space<vmem>>, vector<1x128xf32>
    %7 = vector.shape_cast %6 : vector<1x128xf32> to vector<1x1x1x128xf32>
    %8 = vector.broadcast %7 : vector<1x1x1x128xf32> to vector<1x16x16x128xf32>
    %9 = arith.addf %5, %8 : vector<1x16x16x128xf32>
    %cst = arith.constant 0.000000e+00 : f32
    %10 = vector.broadcast %cst : f32 to vector<1x16x16x128xf32>
    %11 = arith.maximumf %9, %10 : vector<1x16x16x128xf32>
    %c0_7 = arith.constant 0 : index
    %c0_8 = arith.constant 0 : index
    %c0_9 = arith.constant 0 : index
    %c0_10 = arith.constant 0 : index
    %12 = vector.load %arg5[%c0_7, %c0_8, %c0_9, %c0_10] : memref<1x16x16x128xf32, #tpu.memory_space<vmem>>, vector<1x16x16x128xf32>
    tpu.vector_store %arg5[%c0_7, %c0_8, %c0_9, %c0_10], %11 {strides = array<i32>} : memref<1x16x16x128xf32, #tpu.memory_space<vmem>>, vector<1x16x16x128xf32>,
    return
  }
  func.func @transform_0(%arg0: i32, %arg1: i32) -> (i32, i32, i32, i32) {
    %c0_i32 = arith.constant 0 : i32
    %c0_i32_0 = arith.constant 0 : i32
    %c0_i32_1 = arith.constant 0 : i32
    return %arg0, %arg1, %c0_i32, %c0_i32_0 : i32, i32, i32, i32
  }
  func.func @transform_1(%arg0: i32, %arg1: i32) -> (i32, i32) {
    %c0_i32 = arith.constant 0 : i32
    %c0_i32_0 = arith.constant 0 : i32
    %c0_i32_1 = arith.constant 0 : i32
    return %c0_i32, %c0_i32_0 : i32, i32
  }
  func.func @transform_2(%arg0: i32, %arg1: i32) -> (i32, i32) {
    %c0_i32 = arith.constant 0 : i32
    %c0_i32_0 = arith.constant 0 : i32
    %c0_i32_1 = arith.constant 0 : i32
    return %c0_i32, %c0_i32_0 : i32, i32
  }
  func.func @transform_3(%arg0: i32, %arg1: i32) -> (i32, i32, i32, i32) {
    %c0_i32 = arith.constant 0 : i32
    %c0_i32_0 = arith.constant 0 : i32
    %c0_i32_1 = arith.constant 0 : i32
    return %arg0, %arg1, %c0_i32, %c0_i32_0 : i32, i32, i32, i32
  }
}

module attributes {stable_mosaic.version = 11 : i64} {
  func.func @_conv_stats_kernel(%arg0: i32, %arg1: i32, %arg2: memref<1x16x16x128xbf16, #tpu.memory_space<vmem>>, %arg3: memref<1x128xf32, #tpu.memory_space<vmem>>, %arg4: memref<1x128xf32, #tpu.memory_space<vmem>>, %arg5: memref<3x384x128xbf16, #tpu.memory_space<vmem>>, %arg6: memref<1x16x16x128xbf16, #tpu.memory_space<vmem>>, %arg7: memref<1x1x2x128xf32, #tpu.memory_space<vmem>>, %arg8: memref<18x18x128xbf16, #tpu.memory_space<vmem>>) attributes {dimension_semantics = [#tpu.dimension_semantics<parallel>, #tpu.dimension_semantics<parallel>], iteration_bounds = array<i64: 2, 1>, scalar_prefetch = 0 : i64, scratch_operands = 1 : i64, tpu.core_type = #tpu.core_type<tc>, window_params = [{transform_indices = @transform_0, window_bounds = array<i64: 1, 16, 16, 128>}, {pipeline_mode = #tpu.pipeline_mode<synchronous>, transform_indices = @transform_1, window_bounds = array<i64: 1, 128>}, {pipeline_mode = #tpu.pipeline_mode<synchronous>, transform_indices = @transform_2, window_bounds = array<i64: 1, 128>}, {pipeline_mode = #tpu.pipeline_mode<synchronous>, transform_indices = @transform_3, window_bounds = array<i64: 3, 384, 128>}, {transform_indices = @transform_4, window_bounds = array<i64: 1, 16, 16, 128>}, {transform_indices = @transform_5, window_bounds = array<i64: 1, 1, 2, 128>}]} {
    %c16_i32 = arith.constant 16 : i32
    %0 = arith.muli %arg1, %c16_i32 : i32
    %1 = tpu.assume_multiple %0, 16 : i32
    %cst = arith.constant 0.000000e+00 : bf16
    %2 = vector.broadcast %cst : bf16 to vector<18x1x128xbf16>
    %c0 = arith.constant 0 : index
    %c0_0 = arith.constant 0 : index
    %c0_1 = arith.constant 0 : index
    %3 = vector.load %arg8[%c0, %c0_0, %c0_1] : memref<18x18x128xbf16, #tpu.memory_space<vmem>>, vector<18x1x128xbf16>
    tpu.vector_store %arg8[%c0, %c0_0, %c0_1], %2 {strides = array<i32>} : memref<18x18x128xbf16, #tpu.memory_space<vmem>>, vector<18x1x128xbf16>,
    %c0_2 = arith.constant 0 : index
    %c17 = arith.constant 17 : index
    %c0_3 = arith.constant 0 : index
    %4 = vector.load %arg8[%c0_2, %c17, %c0_3] : memref<18x18x128xbf16, #tpu.memory_space<vmem>>, vector<18x1x128xbf16>
    tpu.vector_store %arg8[%c0_2, %c17, %c0_3], %2 {strides = array<i32>} : memref<18x18x128xbf16, #tpu.memory_space<vmem>>, vector<18x1x128xbf16>,
    %c0_4 = arith.constant 0 : index
    %5 = arith.index_cast %1 : i32 to index
    %c0_5 = arith.constant 0 : index
    %c0_6 = arith.constant 0 : index
    %6 = vector.load %arg2[%c0_4, %5, %c0_5, %c0_6] : memref<1x16x16x128xbf16, #tpu.memory_space<vmem>>, vector<1x16x16x128xbf16>
    %7 = vector.shape_cast %6 : vector<1x16x16x128xbf16> to vector<16x16x128xbf16>
    %8 = arith.extf %7 : vector<16x16x128xbf16> to vector<16x16x128xf32>
    %c0_7 = arith.constant 0 : index
    %c0_8 = arith.constant 0 : index
    %9 = vector.load %arg3[%c0_7, %c0_8] : memref<1x128xf32, #tpu.memory_space<vmem>>, vector<1x128xf32>
    %10 = vector.shape_cast %9 : vector<1x128xf32> to vector<1x1x128xf32>
    %11 = vector.broadcast %10 : vector<1x1x128xf32> to vector<16x16x128xf32>
    %12 = arith.mulf %8, %11 : vector<16x16x128xf32>
    %c0_9 = arith.constant 0 : index
    %c0_10 = arith.constant 0 : index
    %13 = vector.load %arg4[%c0_9, %c0_10] : memref<1x128xf32, #tpu.memory_space<vmem>>, vector<1x128xf32>
    %14 = vector.shape_cast %13 : vector<1x128xf32> to vector<1x1x128xf32>
    %15 = vector.broadcast %14 : vector<1x1x128xf32> to vector<16x16x128xf32>
    %16 = arith.addf %12, %15 : vector<16x16x128xf32>
    %cst_11 = arith.constant 0.000000e+00 : f32
    %17 = vector.broadcast %cst_11 : f32 to vector<16x16x128xf32>
    %18 = arith.maximumf %16, %17 : vector<16x16x128xf32>
    %19 = arith.truncf %18 : vector<16x16x128xf32> to vector<16x16x128xbf16>
    %c1 = arith.constant 1 : index
    %c1_12 = arith.constant 1 : index
    %c0_13 = arith.constant 0 : index
    %20 = vector.load %arg8[%c1, %c1_12, %c0_13] : memref<18x18x128xbf16, #tpu.memory_space<vmem>>, vector<16x16x128xbf16>
    tpu.vector_store %arg8[%c1, %c1_12, %c0_13], %19 {strides = array<i32>} : memref<18x18x128xbf16, #tpu.memory_space<vmem>>, vector<16x16x128xbf16>,
    %cst_14 = arith.constant 0.000000e+00 : bf16
    %21 = vector.broadcast %cst_14 : bf16 to vector<1x16x128xbf16>
    %c1_i32 = arith.constant 1 : i32
    %22 = arith.subi %1, %c1_i32 : i32
    %c0_i32 = arith.constant 0 : i32
    %23 = arith.maxsi %22, %c0_i32 : i32
    %c0_15 = arith.constant 0 : index
    %24 = arith.index_cast %23 : i32 to index
    %c0_16 = arith.constant 0 : index
    %c0_17 = arith.constant 0 : index
    %25 = vector.load %arg2[%c0_15, %24, %c0_16, %c0_17] : memref<1x16x16x128xbf16, #tpu.memory_space<vmem>>, vector<1x1x16x128xbf16>
    %26 = vector.shape_cast %25 : vector<1x1x16x128xbf16> to vector<1x16x128xbf16>
    %27 = arith.extf %26 : vector<1x16x128xbf16> to vector<1x16x128xf32>
    %c0_18 = arith.constant 0 : index
    %c0_19 = arith.constant 0 : index
    %28 = vector.load %arg3[%c0_18, %c0_19] : memref<1x128xf32, #tpu.memory_space<vmem>>, vector<1x128xf32>
    %29 = vector.shape_cast %28 : vector<1x128xf32> to vector<1x1x128xf32>
    %30 = vector.broadcast %29 : vector<1x1x128xf32> to vector<1x16x128xf32>
    %31 = arith.mulf %27, %30 : vector<1x16x128xf32>
    %c0_20 = arith.constant 0 : index
    %c0_21 = arith.constant 0 : index
    %32 = vector.load %arg4[%c0_20, %c0_21] : memref<1x128xf32, #tpu.memory_space<vmem>>, vector<1x128xf32>
    %33 = vector.shape_cast %32 : vector<1x128xf32> to vector<1x1x128xf32>
    %34 = vector.broadcast %33 : vector<1x1x128xf32> to vector<1x16x128xf32>
    %35 = arith.addf %31, %34 : vector<1x16x128xf32>
    %cst_22 = arith.constant 0.000000e+00 : f32
    %36 = vector.broadcast %cst_22 : f32 to vector<1x16x128xf32>
    %37 = arith.maximumf %35, %36 : vector<1x16x128xf32>
    %38 = arith.truncf %37 : vector<1x16x128xf32> to vector<1x16x128xbf16>
    %c16_i32_23 = arith.constant 16 : i32
    %39 = arith.addi %1, %c16_i32_23 : i32
    %c15_i32 = arith.constant 15 : i32
    %40 = arith.minsi %39, %c15_i32 : i32
    %c0_24 = arith.constant 0 : index
    %41 = arith.index_cast %40 : i32 to index
    %c0_25 = arith.constant 0 : index
    %c0_26 = arith.constant 0 : index
    %42 = vector.load %arg2[%c0_24, %41, %c0_25, %c0_26] : memref<1x16x16x128xbf16, #tpu.memory_space<vmem>>, vector<1x1x16x128xbf16>
    %43 = vector.shape_cast %42 : vector<1x1x16x128xbf16> to vector<1x16x128xbf16>
    %44 = arith.extf %43 : vector<1x16x128xbf16> to vector<1x16x128xf32>
    %c0_27 = arith.constant 0 : index
    %c0_28 = arith.constant 0 : index
    %45 = vector.load %arg3[%c0_27, %c0_28] : memref<1x128xf32, #tpu.memory_space<vmem>>, vector<1x128xf32>
    %46 = vector.shape_cast %45 : vector<1x128xf32> to vector<1x1x128xf32>
    %47 = vector.broadcast %46 : vector<1x1x128xf32> to vector<1x16x128xf32>
    %48 = arith.mulf %44, %47 : vector<1x16x128xf32>
    %c0_29 = arith.constant 0 : index
    %c0_30 = arith.constant 0 : index
    %49 = vector.load %arg4[%c0_29, %c0_30] : memref<1x128xf32, #tpu.memory_space<vmem>>, vector<1x128xf32>
    %50 = vector.shape_cast %49 : vector<1x128xf32> to vector<1x1x128xf32>
    %51 = vector.broadcast %50 : vector<1x1x128xf32> to vector<1x16x128xf32>
    %52 = arith.addf %48, %51 : vector<1x16x128xf32>
    %cst_31 = arith.constant 0.000000e+00 : f32
    %53 = vector.broadcast %cst_31 : f32 to vector<1x16x128xf32>
    %54 = arith.maximumf %52, %53 : vector<1x16x128xf32>
    %55 = arith.truncf %54 : vector<1x16x128xf32> to vector<1x16x128xbf16>
    %c0_i32_32 = arith.constant 0 : i32
    %56 = arith.cmpi sgt, %1, %c0_i32_32 : i32
    %57 = arith.select %56, %38, %21 : vector<1x16x128xbf16>
    %c0_33 = arith.constant 0 : index
    %c1_34 = arith.constant 1 : index
    %c0_35 = arith.constant 0 : index
    %58 = vector.load %arg8[%c0_33, %c1_34, %c0_35] : memref<18x18x128xbf16, #tpu.memory_space<vmem>>, vector<1x16x128xbf16>
    tpu.vector_store %arg8[%c0_33, %c1_34, %c0_35], %57 {strides = array<i32>} : memref<18x18x128xbf16, #tpu.memory_space<vmem>>, vector<1x16x128xbf16>,
    %c16_i32_36 = arith.constant 16 : i32
    %59 = arith.addi %1, %c16_i32_36 : i32
    %c16_i32_37 = arith.constant 16 : i32
    %60 = arith.cmpi slt, %59, %c16_i32_37 : i32
    %61 = arith.select %60, %55, %21 : vector<1x16x128xbf16>
    %c17_38 = arith.constant 17 : index
    %c1_39 = arith.constant 1 : index
    %c0_40 = arith.constant 0 : index
    %62 = vector.load %arg8[%c17_38, %c1_39, %c0_40] : memref<18x18x128xbf16, #tpu.memory_space<vmem>>, vector<1x16x128xbf16>
    tpu.vector_store %arg8[%c17_38, %c1_39, %c0_40], %61 {strides = array<i32>} : memref<18x18x128xbf16, #tpu.memory_space<vmem>>, vector<1x16x128xbf16>,
    %c0_41 = arith.constant 0 : index
    %c0_42 = arith.constant 0 : index
    %c0_43 = arith.constant 0 : index
    %63 = vector.load %arg8[%c0_41, %c0_42, %c0_43] : memref<18x18x128xbf16, #tpu.memory_space<vmem>>, vector<16x16x128xbf16>
    %64 = vector.shape_cast %63 : vector<16x16x128xbf16> to vector<256x128xbf16>
    %c0_44 = arith.constant 0 : index
    %c1_45 = arith.constant 1 : index
    %c0_46 = arith.constant 0 : index
    %65 = vector.load %arg8[%c0_44, %c1_45, %c0_46] : memref<18x18x128xbf16, #tpu.memory_space<vmem>>, vector<16x16x128xbf16>
    %66 = vector.shape_cast %65 : vector<16x16x128xbf16> to vector<256x128xbf16>
    %c0_47 = arith.constant 0 : index
    %c2 = arith.constant 2 : index
    %c0_48 = arith.constant 0 : index
    %67 = vector.load %arg8[%c0_47, %c2, %c0_48] : memref<18x18x128xbf16, #tpu.memory_space<vmem>>, vector<16x16x128xbf16>
    %68 = vector.shape_cast %67 : vector<16x16x128xbf16> to vector<256x128xbf16>
    %69 = tpu.concatenate %64, %66, %68 in 1 : vector<256x128xbf16>, vector<256x128xbf16>, vector<256x128xbf16> -> vector<256x384xbf16>
    %c0_49 = arith.constant 0 : index
    %c0_50 = arith.constant 0 : index
    %c0_51 = arith.constant 0 : index
    %70 = vector.load %arg5[%c0_49, %c0_50, %c0_51] : memref<3x384x128xbf16, #tpu.memory_space<vmem>>, vector<1x384x128xbf16>
    %71 = vector.shape_cast %70 : vector<1x384x128xbf16> to vector<384x128xbf16>
    %cst_52 = arith.constant dense<0.000000e+00> : vector<256x128xf32>
    %72 = tpu.matmul %69, %71, %cst_52 {dimension_numbers = #tpu.dot_dimension_numbers<[1], [0], [0], [1], [0, 0, 1, 1], [], []>} : vector<256x384xbf16>, vector<384x128xbf16>, vector<256x128xf32> -> vector<256x128xf32>
    %c1_53 = arith.constant 1 : index
    %c0_54 = arith.constant 0 : index
    %c0_55 = arith.constant 0 : index
    %73 = vector.load %arg8[%c1_53, %c0_54, %c0_55] : memref<18x18x128xbf16, #tpu.memory_space<vmem>>, vector<16x16x128xbf16>
    %74 = vector.shape_cast %73 : vector<16x16x128xbf16> to vector<256x128xbf16>
    %c1_56 = arith.constant 1 : index
    %c1_57 = arith.constant 1 : index
    %c0_58 = arith.constant 0 : index
    %75 = vector.load %arg8[%c1_56, %c1_57, %c0_58] : memref<18x18x128xbf16, #tpu.memory_space<vmem>>, vector<16x16x128xbf16>
    %76 = vector.shape_cast %75 : vector<16x16x128xbf16> to vector<256x128xbf16>
    %c1_59 = arith.constant 1 : index
    %c2_60 = arith.constant 2 : index
    %c0_61 = arith.constant 0 : index
    %77 = vector.load %arg8[%c1_59, %c2_60, %c0_61] : memref<18x18x128xbf16, #tpu.memory_space<vmem>>, vector<16x16x128xbf16>
    %78 = vector.shape_cast %77 : vector<16x16x128xbf16> to vector<256x128xbf16>
    %79 = tpu.concatenate %74, %76, %78 in 1 : vector<256x128xbf16>, vector<256x128xbf16>, vector<256x128xbf16> -> vector<256x384xbf16>
    %c1_62 = arith.constant 1 : index
    %c0_63 = arith.constant 0 : index
    %c0_64 = arith.constant 0 : index
    %80 = vector.load %arg5[%c1_62, %c0_63, %c0_64] : memref<3x384x128xbf16, #tpu.memory_space<vmem>>, vector<1x384x128xbf16>
    %81 = vector.shape_cast %80 : vector<1x384x128xbf16> to vector<384x128xbf16>
    %cst_65 = arith.constant dense<0.000000e+00> : vector<256x128xf32>
    %82 = tpu.matmul %79, %81, %cst_65 {dimension_numbers = #tpu.dot_dimension_numbers<[1], [0], [0], [1], [0, 0, 1, 1], [], []>} : vector<256x384xbf16>, vector<384x128xbf16>, vector<256x128xf32> -> vector<256x128xf32>
    %83 = arith.addf %72, %82 : vector<256x128xf32>
    %c2_66 = arith.constant 2 : index
    %c0_67 = arith.constant 0 : index
    %c0_68 = arith.constant 0 : index
    %84 = vector.load %arg8[%c2_66, %c0_67, %c0_68] : memref<18x18x128xbf16, #tpu.memory_space<vmem>>, vector<16x16x128xbf16>
    %85 = vector.shape_cast %84 : vector<16x16x128xbf16> to vector<256x128xbf16>
    %c2_69 = arith.constant 2 : index
    %c1_70 = arith.constant 1 : index
    %c0_71 = arith.constant 0 : index
    %86 = vector.load %arg8[%c2_69, %c1_70, %c0_71] : memref<18x18x128xbf16, #tpu.memory_space<vmem>>, vector<16x16x128xbf16>
    %87 = vector.shape_cast %86 : vector<16x16x128xbf16> to vector<256x128xbf16>
    %c2_72 = arith.constant 2 : index
    %c2_73 = arith.constant 2 : index
    %c0_74 = arith.constant 0 : index
    %88 = vector.load %arg8[%c2_72, %c2_73, %c0_74] : memref<18x18x128xbf16, #tpu.memory_space<vmem>>, vector<16x16x128xbf16>
    %89 = vector.shape_cast %88 : vector<16x16x128xbf16> to vector<256x128xbf16>
    %90 = tpu.concatenate %85, %87, %89 in 1 : vector<256x128xbf16>, vector<256x128xbf16>, vector<256x128xbf16> -> vector<256x384xbf16>
    %c2_75 = arith.constant 2 : index
    %c0_76 = arith.constant 0 : index
    %c0_77 = arith.constant 0 : index
    %91 = vector.load %arg5[%c2_75, %c0_76, %c0_77] : memref<3x384x128xbf16, #tpu.memory_space<vmem>>, vector<1x384x128xbf16>
    %92 = vector.shape_cast %91 : vector<1x384x128xbf16> to vector<384x128xbf16>
    %cst_78 = arith.constant dense<0.000000e+00> : vector<256x128xf32>
    %93 = tpu.matmul %90, %92, %cst_78 {dimension_numbers = #tpu.dot_dimension_numbers<[1], [0], [0], [1], [0, 0, 1, 1], [], []>} : vector<256x384xbf16>, vector<384x128xbf16>, vector<256x128xf32> -> vector<256x128xf32>
    %94 = arith.addf %83, %93 : vector<256x128xf32>
    %95 = vector.shape_cast %94 : vector<256x128xf32> to vector<1x16x16x128xf32>
    %96 = arith.truncf %95 : vector<1x16x16x128xf32> to vector<1x16x16x128xbf16>
    %c0_79 = arith.constant 0 : index
    %c0_80 = arith.constant 0 : index
    %c0_81 = arith.constant 0 : index
    %c0_82 = arith.constant 0 : index
    %97 = vector.load %arg6[%c0_79, %c0_80, %c0_81, %c0_82] : memref<1x16x16x128xbf16, #tpu.memory_space<vmem>>, vector<1x16x16x128xbf16>
    tpu.vector_store %arg6[%c0_79, %c0_80, %c0_81, %c0_82], %96 {strides = array<i32>} : memref<1x16x16x128xbf16, #tpu.memory_space<vmem>>, vector<1x16x16x128xbf16>,
    %cst_83 = arith.constant dense<0.000000e+00> : vector<128xf32>
    %98 = vector.multi_reduction <add>, %94, %cst_83 [0] : vector<256x128xf32> to vector<128xf32>
    %99 = vector.shape_cast %98 : vector<128xf32> to vector<1x128xf32>
    %cst_84 = arith.constant 3.906250e-03 : f32
    %100 = vector.broadcast %cst_84 : f32 to vector<1x128xf32>
    %101 = arith.mulf %99, %100 : vector<1x128xf32>
    %102 = vector.broadcast %101 : vector<1x128xf32> to vector<256x128xf32>
    %103 = arith.subf %94, %102 : vector<256x128xf32>
    %104 = arith.mulf %103, %103 : vector<256x128xf32>
    %cst_85 = arith.constant dense<0.000000e+00> : vector<128xf32>
    %105 = vector.multi_reduction <add>, %104, %cst_85 [0] : vector<256x128xf32> to vector<128xf32>
    %106 = vector.shape_cast %105 : vector<128xf32> to vector<1x128xf32>
    %107 = tpu.concatenate %99, %106 in 0 : vector<1x128xf32>, vector<1x128xf32> -> vector<2x128xf32>
    %108 = vector.shape_cast %107 : vector<2x128xf32> to vector<1x1x2x128xf32>
    %c0_86 = arith.constant 0 : index
    %c0_87 = arith.constant 0 : index
    %c0_88 = arith.constant 0 : index
    %c0_89 = arith.constant 0 : index
    %109 = vector.load %arg7[%c0_86, %c0_87, %c0_88, %c0_89] : memref<1x1x2x128xf32, #tpu.memory_space<vmem>>, vector<1x1x2x128xf32>
    tpu.vector_store %arg7[%c0_86, %c0_87, %c0_88, %c0_89], %108 {strides = array<i32>} : memref<1x1x2x128xf32, #tpu.memory_space<vmem>>, vector<1x1x2x128xf32>,
    return
  }
  func.func @transform_0(%arg0: i32, %arg1: i32) -> (i32, i32, i32, i32) {
    %c0_i32 = arith.constant 0 : i32
    %c0_i32_0 = arith.constant 0 : i32
    %c0_i32_1 = arith.constant 0 : i32
    %c0_i32_2 = arith.constant 0 : i32
    return %arg0, %c0_i32, %c0_i32_0, %c0_i32_1 : i32, i32, i32, i32
  }
  func.func @transform_1(%arg0: i32, %arg1: i32) -> (i32, i32) {
    %c0_i32 = arith.constant 0 : i32
    %c0_i32_0 = arith.constant 0 : i32
    %c0_i32_1 = arith.constant 0 : i32
    return %c0_i32, %c0_i32_0 : i32, i32
  }
  func.func @transform_2(%arg0: i32, %arg1: i32) -> (i32, i32) {
    %c0_i32 = arith.constant 0 : i32
    %c0_i32_0 = arith.constant 0 : i32
    %c0_i32_1 = arith.constant 0 : i32
    return %c0_i32, %c0_i32_0 : i32, i32
  }
  func.func @transform_3(%arg0: i32, %arg1: i32) -> (i32, i32, i32) {
    %c0_i32 = arith.constant 0 : i32
    %c0_i32_0 = arith.constant 0 : i32
    %c0_i32_1 = arith.constant 0 : i32
    %c0_i32_2 = arith.constant 0 : i32
    return %c0_i32, %c0_i32_0, %c0_i32_1 : i32, i32, i32
  }
  func.func @transform_4(%arg0: i32, %arg1: i32) -> (i32, i32, i32, i32) {
    %c0_i32 = arith.constant 0 : i32
    %c0_i32_0 = arith.constant 0 : i32
    %c0_i32_1 = arith.constant 0 : i32
    return %arg0, %arg1, %c0_i32, %c0_i32_0 : i32, i32, i32, i32
  }
  func.func @transform_5(%arg0: i32, %arg1: i32) -> (i32, i32, i32, i32) {
    %c0_i32 = arith.constant 0 : i32
    %c0_i32_0 = arith.constant 0 : i32
    %c0_i32_1 = arith.constant 0 : i32
    return %arg0, %arg1, %c0_i32, %c0_i32_0 : i32, i32, i32, i32
  }
}

</mosaic_0001>

<llo_original>
// kernel: double_conv.5
$region0: #{double_conv.5}
  #allocation0 [shape = 'u32[]', space=smem, size = 0x4, offset = 0x4, fixed_abs, tag = 'smem constant byte address 0x4 - core index']
  #allocation1 [shape = 'u32[144,128]{1,0:T(1,128)}', space=vmem, size = 0x12000, scoped, tag = 'internal scratch']
  %s0 = inlined_call_operand.vmem [shape: bf16[2,16,16,128], index: 0, kind: input, shape index: {}]
  %s1 = inlined_call_operand.vmem [shape: f32[1,128], index: 1, kind: input, shape index: {}]
  %s2 = inlined_call_operand.vmem [shape: f32[1,128], index: 2, kind: input, shape index: {}]
  %s3 = inlined_call_operand.vmem [shape: f32[2,16,16,128], index: 3, kind: output, shape index: {}]
  %s4 = sld [smem:[#allocation0]]
  $region45: #{double_conv.5} parent=0
    _
  %s6 = ssub.s32 1, %s4
  %s7 = scalar_select 0, %s6, %s4
  loop: start=0, step=1, limit=4
  $region2: #{double_conv.5} parent=0 // loop_pre_header
    _
  $region3: #{double_conv.5} parent=0 // loop_header
    %s9 = sphi 0, %s13
    %p10 = scmp.ge.s32.totalorder %s9, 4
    %s16 = sphi 0, %s28
    %s17 = sphi 0, %s24
    %s18 = sphi 0, %s16
    %s19 = sphi 0, %s17
    %s20 = sphi 0, %s18
    %s21 = sphi 0, %s19
    %s33 = sphi 0, %s35
    %s36 = sphi 0, %s33
    %s37 = sphi 0, %s36
    %s53 = sphi 0, %s37
    %s57 = sphi 0, %s57
    %s59 = sphi 0, %s57
    %s60 = sphi 0, %s59
    %s74 = sphi 0, %s60
    %s78 = sphi 0, %s78
    %s80 = sphi 0, %s78
    %s81 = sphi 0, %s80
    %s95 = sphi 0, %s81
    %s103 = sphi 0, %s105
    %s106 = sphi 0, %s103
    %s107 = sphi 0, %s106
    %s123 = sphi 0, %s107
  $region4: #{double_conv.5} parent=0 // loop_header_branch
    %12 = sbr.rel (%p10) target = $region8
  $region5: #{double_conv.5} parent=0 // loop_body
    %s14 = ssub.s32 %s9, 1
    %s15 = ssub.s32 %s9, 2
    %s22 = sadd.s32 1, %s17
    %p23 = scmp.ge.s32.totalorder %s22, 1
    %s24 = scalar_select %p23, 0, %s22
    %s25 = sadd.s32 1, %s16
    %s26 = scalar_select %p23, %s25, %s16
    %p27 = scmp.ge.s32.totalorder %s26, 2
    %s28 = scalar_select %p27, 0, %s26
    %s29 = ssub.s32 %s16, %s28
    %s30 = ssub.s32 %s17, %s24
    %s31 = sor.u32 %s29, %s30
    %p32 = scmp.eq.s32.totalorder %s31, 0
    %s34 = sadd.s32 %s33, 1
    %s35 = scalar_select %p32, %s33, %s34
    %p38 = pneg %p32
    %p39 = scmp.eq.s32.totalorder %s9, 1
    %p40 = por %p38, %p39
    %p41 = scmp.ne.s32.totalorder %s33, %s36
    %p42 = scmp.eq.s32.totalorder %s9, 0
    %p43 = por %p41, %p42
    %p44 = scmp.ne.s32.totalorder %s33, %s36
    %p45 = scmp.eq.s32.totalorder %s14, 1
    %p46 = por %p44, %p45
    %p47 = scmp.ne.s32.totalorder %s36, %s37
    %p48 = scmp.eq.s32.totalorder %s14, 0
    %p49 = por %p47, %p48
    %p50 = scmp.ne.s32.totalorder %s36, %s37
    %p51 = scmp.eq.s32.totalorder %s15, 1
    %p52 = por %p50, %p51
    %p54 = scmp.ne.s32.totalorder %s37, %s53
    %p55 = scmp.eq.s32.totalorder %s15, 0
    %p56 = por %p54, %p55
    %s58 = sadd.s32 %s57, 1
    %p61 = scmp.eq.s32.totalorder %s9, 1
    %p62 = scmp.ne.s32.totalorder %s57, %s59
    %p63 = scmp.eq.s32.totalorder %s9, 0
    %p64 = por %p62, %p63
    %p65 = scmp.ne.s32.totalorder %s57, %s59
    %p66 = scmp.eq.s32.totalorder %s14, 1
    %p67 = por %p65, %p66
    %p68 = scmp.ne.s32.totalorder %s59, %s60
    %p69 = scmp.eq.s32.totalorder %s14, 0
    %p70 = por %p68, %p69
    %p71 = scmp.ne.s32.totalorder %s59, %s60
    %p72 = scmp.eq.s32.totalorder %s15, 1
    %p73 = por %p71, %p72
    %p75 = scmp.ne.s32.totalorder %s60, %s74
    %p76 = scmp.eq.s32.totalorder %s15, 0
    %p77 = por %p75, %p76
    %s79 = sadd.s32 %s78, 1
    %p82 = scmp.eq.s32.totalorder %s9, 1
    %p83 = scmp.ne.s32.totalorder %s78, %s80
    %p84 = scmp.eq.s32.totalorder %s9, 0
    %p85 = por %p83, %p84
    %p86 = scmp.ne.s32.totalorder %s78, %s80
    %p87 = scmp.eq.s32.totalorder %s14, 1
    %p88 = por %p86, %p87
    %p89 = scmp.ne.s32.totalorder %s80, %s81
    %p90 = scmp.eq.s32.totalorder %s14, 0
    %p91 = por %p89, %p90
    %p92 = scmp.ne.s32.totalorder %s80, %s81
    %p93 = scmp.eq.s32.totalorder %s15, 1
    %p94 = por %p92, %p93
    %p96 = scmp.ne.s32.totalorder %s81, %s95
    %p97 = scmp.eq.s32.totalorder %s15, 0
    %p98 = por %p96, %p97
    %s99 = ssub.s32 %s16, %s28
    %s100 = ssub.s32 %s17, %s24
    %s101 = sor.u32 %s99, %s100
    %p102 = scmp.eq.s32.totalorder %s101, 0
    %s104 = sadd.s32 %s103, 1
    %s105 = scalar_select %p102, %s103, %s104
    %p108 = pneg %p102
    %p109 = scmp.eq.s32.totalorder %s9, 1
    %p110 = por %p108, %p109
    %p111 = scmp.ne.s32.totalorder %s103, %s106
    %p112 = scmp.eq.s32.totalorder %s9, 0
    %p113 = por %p111, %p112
    %p114 = scmp.ne.s32.totalorder %s103, %s106
    %p115 = scmp.eq.s32.totalorder %s14, 1
    %p116 = por %p114, %p115
    %p117 = scmp.ne.s32.totalorder %s106, %s107
    %p118 = scmp.eq.s32.totalorder %s14, 0
    %p119 = por %p117, %p118
    %p120 = scmp.ne.s32.totalorder %s106, %s107
    %p121 = scmp.eq.s32.totalorder %s15, 1
    %p122 = por %p120, %p121
    %p124 = scmp.ne.s32.totalorder %s107, %s123
    %p125 = scmp.eq.s32.totalorder %s15, 0
    %p126 = por %p124, %p125
    %p127 = scmp.le.s32.totalorder 1, %s9
    %p128 = scmp.lt.s32.totalorder %s9, 3
    %p129 = pnand %p127, %p128
    %p130 = pneg %p129
    // Predicated region
    $region9: #{double_conv.5} parent=5 // pred_check
      _
    $region10: #{double_conv.5} parent=5 // pred_check_branch
      %132 = sbr.rel (%p129) target = $region12
    $region11: #{double_conv.5} parent=5 // pred_region
      %s133 = ssub.s32 %s9, 1
      // Predicated region
      $region13: #{double_conv.5} parent=11 // pred_check
        %p134 = pneg %p70
      $region14: #{double_conv.5} parent=11 // pred_check_branch
        %136 = sbr.rel (%p134) target = $region16
      $region15: #{double_conv.5} parent=11 // pred_region
        _
      $region16: #{double_conv.5} parent=11 // pred_fallthru
        _
      // Predicated region
      $region17: #{double_conv.5} parent=11 // pred_check
        %p137 = pneg %p91
      $region18: #{double_conv.5} parent=11 // pred_check_branch
        %139 = sbr.rel (%p137) target = $region20
      $region19: #{double_conv.5} parent=11 // pred_region
        _
      $region20: #{double_conv.5} parent=11 // pred_fallthru
        _
    $region12: #{double_conv.5} parent=5 // pred_fallthru
      _
    %p140 = scmp.lt.s32.totalorder %s9, 2
    // Predicated region
    $region21: #{double_conv.5} parent=5 // pred_check
      %p141 = pneg %p140
    $region22: #{double_conv.5} parent=5 // pred_check_branch
      %143 = sbr.rel (%p141) target = $region24
    $region23: #{double_conv.5} parent=5 // pred_region
      // Predicated region
      $region25: #{double_conv.5} parent=23 // pred_check
        %p144 = pneg %p43
      $region26: #{double_conv.5} parent=23 // pred_check_branch
        %146 = sbr.rel (%p144) target = $region28
      $region27: #{double_conv.5} parent=23 // pred_region
        %s147 = smul.u32 16, %s17
        %p148 = scmp.lt.s32.totalorder %s16, 1
        %s149 = scalar_select %p148, %s16, 1
        %p150 = scmp.lt.s32.totalorder %s147, 15
        %s151 = scalar_select %p150, %s147, 15
        %s152 = smul.addr %s151, 2
        %s153 = smul.addr %s149, 32
        %s154 = sadd.s32 %s152, %s153
        %s155 = smul.addr %s154, 4
        %s156 = scalar_lea.vmem %s0, %s155
        %s157 = smul.u32 16, %s17
      $region28: #{double_conv.5} parent=23 // pred_fallthru
        _
    $region24: #{double_conv.5} parent=5 // pred_fallthru
      _
    %p158 = scmp.le.s32.totalorder 1, %s9
    %p159 = scmp.lt.s32.totalorder %s9, 3
    %p160 = pnand %p158, %p159
    %p161 = pneg %p160
    // Predicated region
    $region29: #{double_conv.5} parent=5 // pred_check
      _
    $region30: #{double_conv.5} parent=5 // pred_check_branch
      %163 = sbr.rel (%p160) target = $region32
    $region31: #{double_conv.5} parent=5 // pred_region
      %s164 = ssub.s32 %s9, 1
      %s165 = smul.u32 16, %s19
      %p166 = scmp.lt.s32.totalorder %s18, 1
      %s167 = scalar_select %p166, %s18, 1
      %p168 = scmp.lt.s32.totalorder %s165, 15
      %s169 = scalar_select %p168, %s165, 15
      %s170 = smul.addr %s169, 2
      %s171 = smul.addr %s167, 32
      %s172 = sadd.s32 %s170, %s171
      %s173 = smul.addr %s172, 4
      %s174 = scalar_lea.vmem %s0, %s173
      %p175 = pneg %p49
      %p176 = pneg %p46
      %p177 = pneg %p70
      %p178 = pneg %p67
      %p179 = pneg %p91
      %p180 = pneg %p88
      %p181 = pneg %p119
      %p182 = pneg %p116
      %s183 = smul.u32 16, %s19
      %p184 = scmp.lt.s32.totalorder %s18, 1
      %s185 = scalar_select %p184, %s18, 1
      %p186 = scmp.lt.s32.totalorder %s183, 15
      %s187 = scalar_select %p186, %s183, 15
      %s188 = smul.addr %s187, 2
      %s189 = smul.addr %s185, 32
      %s190 = sadd.s32 %s188, %s189
      %s191 = smul.addr %s190, 8
      %s192 = scalar_lea.vmem %s3, %s191
      %s193 = smul.u32 16, %s19
      %p194 = scmp.lt.s32.totalorder %s18, 1
      %s195 = scalar_select %p194, %s18, 1
      %p196 = scmp.lt.s32.totalorder %s193, 15
      %s197 = scalar_select %p196, %s193, 15
      %s198 = smul.addr %s197, 2
      %s199 = smul.addr %s195, 32
      %s200 = sadd.s32 %s198, %s199
      %s201 = smul.addr %s200, 4
      %s202 = scalar_lea.vmem %s0, %s201
      %s203 = smul.u32 16, %s19
      %s204 = smul.u32 16, %s19
      %p205 = scmp.lt.s32.totalorder %s18, 1
      %s206 = scalar_select %p205, %s18, 1
      %p207 = scmp.lt.s32.totalorder %s204, 15
      %s208 = scalar_select %p207, %s204, 15
      %s209 = smul.addr %s208, 2
      %s210 = smul.addr %s206, 32
      %s211 = sadd.s32 %s209, %s210
      %s212 = smul.addr %s211, 8
      %s213 = scalar_lea.vmem %s3, %s212
      %s214 = smul.u32 16, %s19
      %v215 = vld [vmem:[%s202] sm:$0xf]
      %v216 = vld [vmem:[%s202 + $0x4] sm:$0xf]
      %v217 = vld [vmem:[%s202 + $0x8] sm:$0xf]
      %v218 = vld [vmem:[%s202 + $0xc] sm:$0xf]
      %v219 = vld [vmem:[%s202 + $0x10] sm:$0xf]
      %v220 = vld [vmem:[%s202 + $0x14] sm:$0xf]
      %v221 = vld [vmem:[%s202 + $0x18] sm:$0xf]
      %v222 = vld [vmem:[%s202 + $0x1c] sm:$0xf]
      %v223 = vld [vmem:[%s202 + $0x20] sm:$0xf]
      %v224 = vld [vmem:[%s202 + $0x24] sm:$0xf]
      %v225 = vld [vmem:[%s202 + $0x28] sm:$0xf]
      %v226 = vld [vmem:[%s202 + $0x2c] sm:$0xf]
      %v227 = vld [vmem:[%s202 + $0x30] sm:$0xf]
      %v228 = vld [vmem:[%s202 + $0x34] sm:$0xf]
      %v229 = vld [vmem:[%s202 + $0x38] sm:$0xf]
      %v230 = vld [vmem:[%s202 + $0x3c] sm:$0xf]
      %v231 = vld [vmem:[%s202 + $0x40] sm:$0xf]
      %v232 = vld [vmem:[%s202 + $0x44] sm:$0xf]
      %v233 = vld [vmem:[%s202 + $0x48] sm:$0xf]
      %v234 = vld [vmem:[%s202 + $0x4c] sm:$0xf]
      %v235 = vld [vmem:[%s202 + $0x50] sm:$0xf]
      %v236 = vld [vmem:[%s202 + $0x54] sm:$0xf]
      %v237 = vld [vmem:[%s202 + $0x58] sm:$0xf]
      %v238 = vld [vmem:[%s202 + $0x5c] sm:$0xf]
      %v239 = vld [vmem:[%s202 + $0x60] sm:$0xf]
      %v240 = vld [vmem:[%s202 + $0x64] sm:$0xf]
      %v241 = vld [vmem:[%s202 + $0x68] sm:$0xf]
      %v242 = vld [vmem:[%s202 + $0x6c] sm:$0xf]
      %v243 = vld [vmem:[%s202 + $0x70] sm:$0xf]
      %v244 = vld [vmem:[%s202 + $0x74] sm:$0xf]
      %v245 = vld [vmem:[%s202 + $0x78] sm:$0xf]
      %v246 = vld [vmem:[%s202 + $0x7c] sm:$0xf]
      %v247 = vunpack.c.l.bf16 %v215
      %v248 = vunpack.c.l.bf16 %v216
      %v249 = vunpack.c.l.bf16 %v217
      %v250 = vunpack.c.l.bf16 %v218
      %v251 = vunpack.c.l.bf16 %v219
      %v252 = vunpack.c.l.bf16 %v220
      %v253 = vunpack.c.l.bf16 %v221
      %v254 = vunpack.c.l.bf16 %v222
      %v255 = vunpack.c.l.bf16 %v223
      %v256 = vunpack.c.l.bf16 %v224
      %v257 = vunpack.c.l.bf16 %v225
      %v258 = vunpack.c.l.bf16 %v226
      %v259 = vunpack.c.l.bf16 %v227
      %v260 = vunpack.c.l.bf16 %v228
      %v261 = vunpack.c.l.bf16 %v229
      %v262 = vunpack.c.l.bf16 %v230
      %v263 = vunpack.c.l.bf16 %v231
      %v264 = vunpack.c.l.bf16 %v232
      %v265 = vunpack.c.l.bf16 %v233
      %v266 = vunpack.c.l.bf16 %v234
      %v267 = vunpack.c.l.bf16 %v235
      %v268 = vunpack.c.l.bf16 %v236
      %v269 = vunpack.c.l.bf16 %v237
      %v270 = vunpack.c.l.bf16 %v238
      %v271 = vunpack.c.l.bf16 %v239
      %v272 = vunpack.c.l.bf16 %v240
      %v273 = vunpack.c.l.bf16 %v241
      %v274 = vunpack.c.l.bf16 %v242
      %v275 = vunpack.c.l.bf16 %v243
      %v276 = vunpack.c.l.bf16 %v244
      %v277 = vunpack.c.l.bf16 %v245
      %v278 = vunpack.c.l.bf16 %v246
      %v279 = vld [vmem:[%s1] sm:$0x1]
      %v281 = vlaneseq
      %v282 = vshrl.u32 %v281, 7
      %v283 = vsub.s32 0, %v282
      %v284 = vrot.slane %v279, %v283
      %v286 = vmul.f32 %v247, %v284
      %v287 = vmul.f32 %v248, %v284
      %v288 = vmul.f32 %v249, %v284
      %v289 = vmul.f32 %v250, %v284
      %v290 = vmul.f32 %v251, %v284
      %v291 = vmul.f32 %v252, %v284
      %v292 = vmul.f32 %v253, %v284
      %v293 = vmul.f32 %v254, %v284
      %v294 = vmul.f32 %v255, %v284
      %v295 = vmul.f32 %v256, %v284
      %v296 = vmul.f32 %v257, %v284
      %v297 = vmul.f32 %v258, %v284
      %v298 = vmul.f32 %v259, %v284
      %v299 = vmul.f32 %v260, %v284
      %v300 = vmul.f32 %v261, %v284
      %v301 = vmul.f32 %v262, %v284
      %v302 = vmul.f32 %v263, %v284
      %v303 = vmul.f32 %v264, %v284
      %v304 = vmul.f32 %v265, %v284
      %v305 = vmul.f32 %v266, %v284
      %v306 = vmul.f32 %v267, %v284
      %v307 = vmul.f32 %v268, %v284
      %v308 = vmul.f32 %v269, %v284
      %v309 = vmul.f32 %v270, %v284
      %v310 = vmul.f32 %v271, %v284
      %v311 = vmul.f32 %v272, %v284
      %v312 = vmul.f32 %v273, %v284
      %v313 = vmul.f32 %v274, %v284
      %v314 = vmul.f32 %v275, %v284
      %v315 = vmul.f32 %v276, %v284
      %v316 = vmul.f32 %v277, %v284
      %v317 = vmul.f32 %v278, %v284
      %v318 = vld [vmem:[%s2] sm:$0x1]
      %v320 = vlaneseq
      %v321 = vshrl.u32 %v320, 7
      %v322 = vsub.s32 0, %v321
      %v323 = vrot.slane %v318, %v322
      %v325 = vadd.f32 %v286, %v323
      %v326 = vadd.f32 %v287, %v323
      %v327 = vadd.f32 %v288, %v323
      %v328 = vadd.f32 %v289, %v323
      %v329 = vadd.f32 %v290, %v323
      %v330 = vadd.f32 %v291, %v323
      %v331 = vadd.f32 %v292, %v323
      %v332 = vadd.f32 %v293, %v323
      %v333 = vadd.f32 %v294, %v323
      %v334 = vadd.f32 %v295, %v323
      %v335 = vadd.f32 %v296, %v323
      %v336 = vadd.f32 %v297, %v323
      %v337 = vadd.f32 %v298, %v323
      %v338 = vadd.f32 %v299, %v323
      %v339 = vadd.f32 %v300, %v323
      %v340 = vadd.f32 %v301, %v323
      %v341 = vadd.f32 %v302, %v323
      %v342 = vadd.f32 %v303, %v323
      %v343 = vadd.f32 %v304, %v323
      %v344 = vadd.f32 %v305, %v323
      %v345 = vadd.f32 %v306, %v323
      %v346 = vadd.f32 %v307, %v323
      %v347 = vadd.f32 %v308, %v323
      %v348 = vadd.f32 %v309, %v323
      %v349 = vadd.f32 %v310, %v323
      %v350 = vadd.f32 %v311, %v323
      %v351 = vadd.f32 %v312, %v323
      %v352 = vadd.f32 %v313, %v323
      %v353 = vadd.f32 %v314, %v323
      %v354 = vadd.f32 %v315, %v323
      %v355 = vadd.f32 %v316, %v323
      %v356 = vadd.f32 %v317, %v323
      %v357 = vmax.f32 %v325, 0.0
      %v358 = vmax.f32 %v326, 0.0
      %v359 = vmax.f32 %v327, 0.0
      %v360 = vmax.f32 %v328, 0.0
      %v361 = vmax.f32 %v329, 0.0
      %v362 = vmax.f32 %v330, 0.0
      %v363 = vmax.f32 %v331, 0.0
      %v364 = vmax.f32 %v332, 0.0
      %v365 = vmax.f32 %v333, 0.0
      %v366 = vmax.f32 %v334, 0.0
      %v367 = vmax.f32 %v335, 0.0
      %v368 = vmax.f32 %v336, 0.0
      %v369 = vmax.f32 %v337, 0.0
      %v370 = vmax.f32 %v338, 0.0
      %v371 = vmax.f32 %v339, 0.0
      %v372 = vmax.f32 %v340, 0.0
      %v373 = vmax.f32 %v341, 0.0
      %v374 = vmax.f32 %v342, 0.0
      %v375 = vmax.f32 %v343, 0.0
      %v376 = vmax.f32 %v344, 0.0
      %v377 = vmax.f32 %v345, 0.0
      %v378 = vmax.f32 %v346, 0.0
      %v379 = vmax.f32 %v347, 0.0
      %v380 = vmax.f32 %v348, 0.0
      %v381 = vmax.f32 %v349, 0.0
      %v382 = vmax.f32 %v350, 0.0
      %v383 = vmax.f32 %v351, 0.0
      %v384 = vmax.f32 %v352, 0.0
      %v385 = vmax.f32 %v353, 0.0
      %v386 = vmax.f32 %v354, 0.0
      %v387 = vmax.f32 %v355, 0.0
      %v388 = vmax.f32 %v356, 0.0
      %389 = vst [vmem:[%s213] sm:$0xff] %v357
      %390 = vst [vmem:[%s213 + $0x8] sm:$0xff] %v358
      %391 = vst [vmem:[%s213 + $0x10] sm:$0xff] %v359
      %392 = vst [vmem:[%s213 + $0x18] sm:$0xff] %v360
      %393 = vst [vmem:[%s213 + $0x20] sm:$0xff] %v361
      %394 = vst [vmem:[%s213 + $0x28] sm:$0xff] %v362
      %395 = vst [vmem:[%s213 + $0x30] sm:$0xff] %v363
      %396 = vst [vmem:[%s213 + $0x38] sm:$0xff] %v364
      %397 = vst [vmem:[%s213 + $0x40] sm:$0xff] %v365
      %398 = vst [vmem:[%s213 + $0x48] sm:$0xff] %v366
      %399 = vst [vmem:[%s213 + $0x50] sm:$0xff] %v367
      %400 = vst [vmem:[%s213 + $0x58] sm:$0xff] %v368
      %401 = vst [vmem:[%s213 + $0x60] sm:$0xff] %v369
      %402 = vst [vmem:[%s213 + $0x68] sm:$0xff] %v370
      %403 = vst [vmem:[%s213 + $0x70] sm:$0xff] %v371
      %404 = vst [vmem:[%s213 + $0x78] sm:$0xff] %v372
      %405 = vst [vmem:[%s213 + $0x80] sm:$0xff] %v373
      %406 = vst [vmem:[%s213 + $0x88] sm:$0xff] %v374
      %407 = vst [vmem:[%s213 + $0x90] sm:$0xff] %v375
      %408 = vst [vmem:[%s213 + $0x98] sm:$0xff] %v376
      %409 = vst [vmem:[%s213 + $0xa0] sm:$0xff] %v377
      %410 = vst [vmem:[%s213 + $0xa8] sm:$0xff] %v378
      %411 = vst [vmem:[%s213 + $0xb0] sm:$0xff] %v379
      %412 = vst [vmem:[%s213 + $0xb8] sm:$0xff] %v380
      %413 = vst [vmem:[%s213 + $0xc0] sm:$0xff] %v381
      %414 = vst [vmem:[%s213 + $0xc8] sm:$0xff] %v382
      %415 = vst [vmem:[%s213 + $0xd0] sm:$0xff] %v383
      %416 = vst [vmem:[%s213 + $0xd8] sm:$0xff] %v384
      %417 = vst [vmem:[%s213 + $0xe0] sm:$0xff] %v385
      %418 = vst [vmem:[%s213 + $0xe8] sm:$0xff] %v386
      %419 = vst [vmem:[%s213 + $0xf0] sm:$0xff] %v387
      %420 = vst [vmem:[%s213 + $0xf8] sm:$0xff] %v388
      %s421 = smul.u32 16, %s19
      %p422 = scmp.lt.s32.totalorder %s18, 1
      %s423 = scalar_select %p422, %s18, 1
      %p424 = scmp.lt.s32.totalorder %s421, 15
      %s425 = scalar_select %p424, %s421, 15
      %s426 = smul.addr %s425, 2
      %s427 = smul.addr %s423, 32
      %s428 = sadd.s32 %s426, %s427
      %s429 = smul.addr %s428, 8
      %s430 = scalar_lea.vmem %s3, %s429
      // Predicated region
      $region33: #{double_conv.5} parent=31 // pred_check
        %p431 = pneg %p116
      $region34: #{double_conv.5} parent=31 // pred_check_branch
        %433 = sbr.rel (%p431) target = $region36
      $region35: #{double_conv.5} parent=31 // pred_region
        %s434 = smul.u32 16, %s19
      $region36: #{double_conv.5} parent=31 // pred_fallthru
        _
    $region32: #{double_conv.5} parent=5 // pred_fallthru
      _
    %p435 = scmp.le.s32.totalorder 2, %s9
    // Predicated region
    $region37: #{double_conv.5} parent=5 // pred_check
      %p436 = pneg %p435
    $region38: #{double_conv.5} parent=5 // pred_check_branch
      %438 = sbr.rel (%p436) target = $region40
    $region39: #{double_conv.5} parent=5 // pred_region
      %s439 = ssub.s32 %s9, 2
      // Predicated region
      $region41: #{double_conv.5} parent=39 // pred_check
        %p440 = pneg %p122
      $region42: #{double_conv.5} parent=39 // pred_check_branch
        %442 = sbr.rel (%p440) target = $region44
      $region43: #{double_conv.5} parent=39 // pred_region
        %s443 = smul.u32 16, %s21
        %p444 = scmp.lt.s32.totalorder %s20, 1
        %s445 = scalar_select %p444, %s20, 1
        %p446 = scmp.lt.s32.totalorder %s443, 15
        %s447 = scalar_select %p446, %s443, 15
        %s448 = smul.addr %s447, 2
        %s449 = smul.addr %s445, 32
        %s450 = sadd.s32 %s448, %s449
        %s451 = smul.addr %s450, 8
        %s452 = scalar_lea.vmem %s3, %s451
      $region44: #{double_conv.5} parent=39 // pred_fallthru
        _
    $region40: #{double_conv.5} parent=5 // pred_fallthru
      _
  $region6: #{double_conv.5} parent=0 // loop_footer
    %s13 = sadd.s32 1, %s9
  $region7: #{double_conv.5} parent=0 // loop_footer_branch
    %8 = sbr.rel target = $region3
  $region8: #{double_conv.5} parent=0 // loop_exit
    _

// kernel: double_conv.4
$region0: #{double_conv.4}
  #allocation0 [shape = 'u32[]', space=smem, size = 0x4, offset = 0x4, fixed_abs, tag = 'smem constant byte address 0x4 - core index']
  #allocation1 [shape = 'u32[144,128]{1,0:T(1,128)}', space=vmem, size = 0x12000, scoped, tag = 'internal scratch']
  #allocation2 [shape = 'bf16[18,18,128]{2,1,0:T(8,128)(2,1)}', space=vmem, size = 0x1b000, scoped, tag = 'scratch operand']
  %s0 = inlined_call_operand.vmem [shape: bf16[2,16,16,128], index: 0, kind: input, shape index: {}]
  %s1 = inlined_call_operand.vmem [shape: f32[1,128], index: 1, kind: input, shape index: {}]
  %s2 = inlined_call_operand.vmem [shape: f32[1,128], index: 2, kind: input, shape index: {}]
  %s3 = inlined_call_operand.vmem [shape: bf16[3,384,128], index: 3, kind: input, shape index: {}]
  %s4 = inlined_call_operand.vmem [shape: bf16[2,16,16,128], index: 4, kind: output, shape index: {0}]
  %s5 = inlined_call_operand.vmem [shape: f32[2,1,2,128], index: 5, kind: output, shape index: {1}]
  %6 = xla_tuple %s4, %s5
  %s7 = sld [smem:[#allocation0]]
  $region57: #{double_conv.4} parent=0
    _
  %s9 = ssub.s32 1, %s7
  %s10 = scalar_select 0, %s9, %s7
  loop: start=0, step=1, limit=4
  $region2: #{double_conv.4} parent=0 // loop_pre_header
    _
  $region3: #{double_conv.4} parent=0 // loop_header
    %s12 = sphi 0, %s16
    %p13 = scmp.ge.s32.totalorder %s12, 4
    %s19 = sphi 0, %s31
    %s20 = sphi 0, %s27
    %s21 = sphi 0, %s19
    %s22 = sphi 0, %s20
    %s23 = sphi 0, %s21
    %s24 = sphi 0, %s22
    %s34 = sphi 0, %s36
    %s37 = sphi 0, %s34
    %s38 = sphi 0, %s37
    %s54 = sphi 0, %s38
    %s58 = sphi 0, %s58
    %s60 = sphi 0, %s58
    %s61 = sphi 0, %s60
    %s75 = sphi 0, %s61
    %s79 = sphi 0, %s79
    %s81 = sphi 0, %s79
    %s82 = sphi 0, %s81
    %s96 = sphi 0, %s82
    %s100 = sphi 0, %s100
    %s102 = sphi 0, %s100
    %s103 = sphi 0, %s102
    %s117 = sphi 0, %s103
    %s125 = sphi 0, %s127
    %s128 = sphi 0, %s125
    %s129 = sphi 0, %s128
    %s145 = sphi 0, %s129
    %s153 = sphi 0, %s155
    %s156 = sphi 0, %s153
    %s157 = sphi 0, %s156
    %s173 = sphi 0, %s157
  $region4: #{double_conv.4} parent=0 // loop_header_branch
    %15 = sbr.rel (%p13) target = $region8
  $region5: #{double_conv.4} parent=0 // loop_body
    %s17 = ssub.s32 %s12, 1
    %s18 = ssub.s32 %s12, 2
    %s25 = sadd.s32 1, %s20
    %p26 = scmp.ge.s32.totalorder %s25, 1
    %s27 = scalar_select %p26, 0, %s25
    %s28 = sadd.s32 1, %s19
    %s29 = scalar_select %p26, %s28, %s19
    %p30 = scmp.ge.s32.totalorder %s29, 2
    %s31 = scalar_select %p30, 0, %s29
    %s32 = ssub.s32 %s19, %s31
    %p33 = scmp.eq.s32.totalorder %s32, 0
    %s35 = sadd.s32 %s34, 1
    %s36 = scalar_select %p33, %s34, %s35
    %p39 = pneg %p33
    %p40 = scmp.eq.s32.totalorder %s12, 1
    %p41 = por %p39, %p40
    %p42 = scmp.ne.s32.totalorder %s34, %s37
    %p43 = scmp.eq.s32.totalorder %s12, 0
    %p44 = por %p42, %p43
    %p45 = scmp.ne.s32.totalorder %s34, %s37
    %p46 = scmp.eq.s32.totalorder %s17, 1
    %p47 = por %p45, %p46
    %p48 = scmp.ne.s32.totalorder %s37, %s38
    %p49 = scmp.eq.s32.totalorder %s17, 0
    %p50 = por %p48, %p49
    %p51 = scmp.ne.s32.totalorder %s37, %s38
    %p52 = scmp.eq.s32.totalorder %s18, 1
    %p53 = por %p51, %p52
    %p55 = scmp.ne.s32.totalorder %s38, %s54
    %p56 = scmp.eq.s32.totalorder %s18, 0
    %p57 = por %p55, %p56
    %s59 = sadd.s32 %s58, 1
    %p62 = scmp.eq.s32.totalorder %s12, 1
    %p63 = scmp.ne.s32.totalorder %s58, %s60
    %p64 = scmp.eq.s32.totalorder %s12, 0
    %p65 = por %p63, %p64
    %p66 = scmp.ne.s32.totalorder %s58, %s60
    %p67 = scmp.eq.s32.totalorder %s17, 1
    %p68 = por %p66, %p67
    %p69 = scmp.ne.s32.totalorder %s60, %s61
    %p70 = scmp.eq.s32.totalorder %s17, 0
    %p71 = por %p69, %p70
    %p72 = scmp.ne.s32.totalorder %s60, %s61
    %p73 = scmp.eq.s32.totalorder %s18, 1
    %p74 = por %p72, %p73
    %p76 = scmp.ne.s32.totalorder %s61, %s75
    %p77 = scmp.eq.s32.totalorder %s18, 0
    %p78 = por %p76, %p77
    %s80 = sadd.s32 %s79, 1
    %p83 = scmp.eq.s32.totalorder %s12, 1
    %p84 = scmp.ne.s32.totalorder %s79, %s81
    %p85 = scmp.eq.s32.totalorder %s12, 0
    %p86 = por %p84, %p85
    %p87 = scmp.ne.s32.totalorder %s79, %s81
    %p88 = scmp.eq.s32.totalorder %s17, 1
    %p89 = por %p87, %p88
    %p90 = scmp.ne.s32.totalorder %s81, %s82
    %p91 = scmp.eq.s32.totalorder %s17, 0
    %p92 = por %p90, %p91
    %p93 = scmp.ne.s32.totalorder %s81, %s82
    %p94 = scmp.eq.s32.totalorder %s18, 1
    %p95 = por %p93, %p94
    %p97 = scmp.ne.s32.totalorder %s82, %s96
    %p98 = scmp.eq.s32.totalorder %s18, 0
    %p99 = por %p97, %p98
    %s101 = sadd.s32 %s100, 1
    %p104 = scmp.eq.s32.totalorder %s12, 1
    %p105 = scmp.ne.s32.totalorder %s100, %s102
    %p106 = scmp.eq.s32.totalorder %s12, 0
    %p107 = por %p105, %p106
    %p108 = scmp.ne.s32.totalorder %s100, %s102
    %p109 = scmp.eq.s32.totalorder %s17, 1
    %p110 = por %p108, %p109
    %p111 = scmp.ne.s32.totalorder %s102, %s103
    %p112 = scmp.eq.s32.totalorder %s17, 0
    %p113 = por %p111, %p112
    %p114 = scmp.ne.s32.totalorder %s102, %s103
    %p115 = scmp.eq.s32.totalorder %s18, 1
    %p116 = por %p114, %p115
    %p118 = scmp.ne.s32.totalorder %s103, %s117
    %p119 = scmp.eq.s32.totalorder %s18, 0
    %p120 = por %p118, %p119
    %s121 = ssub.s32 %s19, %s31
    %s122 = ssub.s32 %s20, %s27
    %s123 = sor.u32 %s121, %s122
    %p124 = scmp.eq.s32.totalorder %s123, 0
    %s126 = sadd.s32 %s125, 1
    %s127 = scalar_select %p124, %s125, %s126
    %p130 = pneg %p124
    %p131 = scmp.eq.s32.totalorder %s12, 1
    %p132 = por %p130, %p131
    %p133 = scmp.ne.s32.totalorder %s125, %s128
    %p134 = scmp.eq.s32.totalorder %s12, 0
    %p135 = por %p133, %p134
    %p136 = scmp.ne.s32.totalorder %s125, %s128
    %p137 = scmp.eq.s32.totalorder %s17, 1
    %p138 = por %p136, %p137
    %p139 = scmp.ne.s32.totalorder %s128, %s129
    %p140 = scmp.eq.s32.totalorder %s17, 0
    %p141 = por %p139, %p140
    %p142 = scmp.ne.s32.totalorder %s128, %s129
    %p143 = scmp.eq.s32.totalorder %s18, 1
    %p144 = por %p142, %p143
    %p146 = scmp.ne.s32.totalorder %s129, %s145
    %p147 = scmp.eq.s32.totalorder %s18, 0
    %p148 = por %p146, %p147
    %s149 = ssub.s32 %s19, %s31
    %s150 = ssub.s32 %s20, %s27
    %s151 = sor.u32 %s149, %s150
    %p152 = scmp.eq.s32.totalorder %s151, 0
    %s154 = sadd.s32 %s153, 1
    %s155 = scalar_select %p152, %s153, %s154
    %p158 = pneg %p152
    %p159 = scmp.eq.s32.totalorder %s12, 1
    %p160 = por %p158, %p159
    %p161 = scmp.ne.s32.totalorder %s153, %s156
    %p162 = scmp.eq.s32.totalorder %s12, 0
    %p163 = por %p161, %p162
    %p164 = scmp.ne.s32.totalorder %s153, %s156
    %p165 = scmp.eq.s32.totalorder %s17, 1
    %p166 = por %p164, %p165
    %p167 = scmp.ne.s32.totalorder %s156, %s157
    %p168 = scmp.eq.s32.totalorder %s17, 0
    %p169 = por %p167, %p168
    %p170 = scmp.ne.s32.totalorder %s156, %s157
    %p171 = scmp.eq.s32.totalorder %s18, 1
    %p172 = por %p170, %p171
    %p174 = scmp.ne.s32.totalorder %s157, %s173
    %p175 = scmp.eq.s32.totalorder %s18, 0
    %p176 = por %p174, %p175
    %p177 = scmp.le.s32.totalorder 1, %s12
    %p178 = scmp.lt.s32.totalorder %s12, 3
    %p179 = pnand %p177, %p178
    %p180 = pneg %p179
    // Predicated region
    $region9: #{double_conv.4} parent=5 // pred_check
      _
    $region10: #{double_conv.4} parent=5 // pred_check_branch
      %182 = sbr.rel (%p179) target = $region12
    $region11: #{double_conv.4} parent=5 // pred_region
      %s183 = ssub.s32 %s12, 1
      // Predicated region
      $region13: #{double_conv.4} parent=11 // pred_check
        %p184 = pneg %p71
      $region14: #{double_conv.4} parent=11 // pred_check_branch
        %186 = sbr.rel (%p184) target = $region16
      $region15: #{double_conv.4} parent=11 // pred_region
        _
      $region16: #{double_conv.4} parent=11 // pred_fallthru
        _
      // Predicated region
      $region17: #{double_conv.4} parent=11 // pred_check
        %p187 = pneg %p92
      $region18: #{double_conv.4} parent=11 // pred_check_branch
        %189 = sbr.rel (%p187) target = $region20
      $region19: #{double_conv.4} parent=11 // pred_region
        _
      $region20: #{double_conv.4} parent=11 // pred_fallthru
        _
      // Predicated region
      $region21: #{double_conv.4} parent=11 // pred_check
        %p190 = pneg %p113
      $region22: #{double_conv.4} parent=11 // pred_check_branch
        %192 = sbr.rel (%p190) target = $region24
      $region23: #{double_conv.4} parent=11 // pred_region
        _
      $region24: #{double_conv.4} parent=11 // pred_fallthru
        _
    $region12: #{double_conv.4} parent=5 // pred_fallthru
      _
    %p193 = scmp.lt.s32.totalorder %s12, 2
    // Predicated region
    $region25: #{double_conv.4} parent=5 // pred_check
      %p194 = pneg %p193
    $region26: #{double_conv.4} parent=5 // pred_check_branch
      %196 = sbr.rel (%p194) target = $region28
    $region27: #{double_conv.4} parent=5 // pred_region
      // Predicated region
      $region29: #{double_conv.4} parent=27 // pred_check
        %p197 = pneg %p44
      $region30: #{double_conv.4} parent=27 // pred_check_branch
        %199 = sbr.rel (%p197) target = $region32
      $region31: #{double_conv.4} parent=27 // pred_region
        %p200 = scmp.lt.s32.totalorder %s19, 1
        %s201 = scalar_select %p200, %s19, 1
        %s202 = smul.addr %s201, 32
        %s203 = smul.addr %s202, 4
        %s204 = scalar_lea.vmem %s0, %s203
      $region32: #{double_conv.4} parent=27 // pred_fallthru
        _
    $region28: #{double_conv.4} parent=5 // pred_fallthru
      _
    %p205 = scmp.le.s32.totalorder 1, %s12
    %p206 = scmp.lt.s32.totalorder %s12, 3
    %p207 = pnand %p205, %p206
    %p208 = pneg %p207
    // Predicated region
    $region33: #{double_conv.4} parent=5 // pred_check
      _
    $region34: #{double_conv.4} parent=5 // pred_check_branch
      %210 = sbr.rel (%p207) target = $region36
    $region35: #{double_conv.4} parent=5 // pred_region
      %s211 = ssub.s32 %s12, 1
      %p212 = scmp.lt.s32.totalorder %s21, 1
      %s213 = scalar_select %p212, %s21, 1
      %s214 = smul.addr %s213, 32
      %s215 = smul.addr %s214, 4
      %s216 = scalar_lea.vmem %s0, %s215
      %p217 = pneg %p50
      %p218 = pneg %p47
      %p219 = pneg %p71
      %p220 = pneg %p68
      %p221 = pneg %p92
      %p222 = pneg %p89
      %p223 = pneg %p113
      %p224 = pneg %p110
      %p225 = pneg %p141
      %p226 = pneg %p138
      %s227 = smul.u32 16, %s22
      %p228 = scmp.lt.s32.totalorder %s21, 1
      %s229 = scalar_select %p228, %s21, 1
      %p230 = scmp.lt.s32.totalorder %s227, 15
      %s231 = scalar_select %p230, %s227, 15
      %s232 = smul.addr %s231, 2
      %s233 = smul.addr %s229, 32
      %s234 = sadd.s32 %s232, %s233
      %s235 = smul.addr %s234, 4
      %s236 = scalar_lea.vmem %s4, %s235
      %p237 = pneg %p169
      %p238 = pneg %p166
      %p239 = scmp.lt.s32.totalorder %s21, 1
      %s240 = scalar_select %p239, %s21, 1
      %p241 = scmp.lt.s32.totalorder %s22, 0
      %s242 = scalar_select %p241, %s22, 0
      %s243 = sadd.s32 %s242, %s240
      %s244 = smul.addr %s243, 2
      %s245 = scalar_lea.vmem %s5, %s244
      %p246 = scmp.lt.s32.totalorder %s21, 1
      %s247 = scalar_select %p246, %s21, 1
      %s248 = smul.addr %s247, 32
      %s249 = smul.addr %s248, 4
      %s250 = scalar_lea.vmem %s0, %s249
      %s251 = smul.u32 16, %s22
      %p252 = scmp.lt.s32.totalorder %s21, 1
      %s253 = scalar_select %p252, %s21, 1
      %p254 = scmp.lt.s32.totalorder %s251, 15
      %s255 = scalar_select %p254, %s251, 15
      %s256 = smul.addr %s255, 2
      %s257 = smul.addr %s253, 32
      %s258 = sadd.s32 %s256, %s257
      %s259 = smul.addr %s258, 4
      %s260 = scalar_lea.vmem %s4, %s259
      %s261 = smul.u32 16, %s22
      %p262 = scmp.lt.s32.totalorder %s21, 1
      %s263 = scalar_select %p262, %s21, 1
      %p264 = scmp.lt.s32.totalorder %s22, 0
      %s265 = scalar_select %p264, %s22, 0
      %s266 = sadd.s32 %s265, %s263
      %s267 = smul.addr %s266, 2
      %s268 = scalar_lea.vmem %s5, %s267
      %s270 = smul.u32 %s22, 16
      %vm271 = vcmask 1040384
      %vm272 = vsmask.f32 256
      %vm273 = vmand %vm271, %vm272
      %v274 = vld [vmem:[#allocation2] sm:$0x1]
      %v275 = vsel %vm273, 0, %v274
      %276 = vst [vmem:[#allocation2] sm:$0x1] %v275
      %v277 = vld [vmem:[#allocation2 + $0xc] sm:$0x1]
      %v278 = vsel %vm273, 0, %v277
      %279 = vst [vmem:[#allocation2 + $0xc] sm:$0x1] %v278
      %v280 = vld [vmem:[#allocation2 + $0x18] sm:$0x1]
      %v281 = vsel %vm273, 0, %v280
      %282 = vst [vmem:[#allocation2 + $0x18] sm:$0x1] %v281
      %v283 = vld [vmem:[#allocation2 + $0x24] sm:$0x1]
      %v284 = vsel %vm273, 0, %v283
      %285 = vst [vmem:[#allocation2 + $0x24] sm:$0x1] %v284
      %v286 = vld [vmem:[#allocation2 + $0x30] sm:$0x1]
      %v287 = vsel %vm273, 0, %v286
      %288 = vst [vmem:[#allocation2 + $0x30] sm:$0x1] %v287
      %v289 = vld [vmem:[#allocation2 + $0x3c] sm:$0x1]
      %v290 = vsel %vm273, 0, %v289
      %291 = vst [vmem:[#allocation2 + $0x3c] sm:$0x1] %v290
      %v292 = vld [vmem:[#allocation2 + $0x48] sm:$0x1]
      %v293 = vsel %vm273, 0, %v292
      %294 = vst [vmem:[#allocation2 + $0x48] sm:$0x1] %v293
      %v295 = vld [vmem:[#allocation2 + $0x54] sm:$0x1]
      %v296 = vsel %vm273, 0, %v295
      %297 = vst [vmem:[#allocation2 + $0x54] sm:$0x1] %v296
      %v298 = vld [vmem:[#allocation2 + $0x60] sm:$0x1]
      %v299 = vsel %vm273, 0, %v298
      %300 = vst [vmem:[#allocation2 + $0x60] sm:$0x1] %v299
      %v301 = vld [vmem:[#allocation2 + $0x6c] sm:$0x1]
      %v302 = vsel %vm273, 0, %v301
      %303 = vst [vmem:[#allocation2 + $0x6c] sm:$0x1] %v302
      %v304 = vld [vmem:[#allocation2 + $0x78] sm:$0x1]
      %v305 = vsel %vm273, 0, %v304
      %306 = vst [vmem:[#allocation2 + $0x78] sm:$0x1] %v305
      %v307 = vld [vmem:[#allocation2 + $0x84] sm:$0x1]
      %v308 = vsel %vm273, 0, %v307
      %309 = vst [vmem:[#allocation2 + $0x84] sm:$0x1] %v308
      %v310 = vld [vmem:[#allocation2 + $0x90] sm:$0x1]
      %v311 = vsel %vm273, 0, %v310
      %312 = vst [vmem:[#allocation2 + $0x90] sm:$0x1] %v311
      %v313 = vld [vmem:[#allocation2 + $0x9c] sm:$0x1]
      %v314 = vsel %vm273, 0, %v313
      %315 = vst [vmem:[#allocation2 + $0x9c] sm:$0x1] %v314
      %v316 = vld [vmem:[#allocation2 + $0xa8] sm:$0x1]
      %v317 = vsel %vm273, 0, %v316
      %318 = vst [vmem:[#allocation2 + $0xa8] sm:$0x1] %v317
      %v319 = vld [vmem:[#allocation2 + $0xb4] sm:$0x1]
      %v320 = vsel %vm273, 0, %v319
      %321 = vst [vmem:[#allocation2 + $0xb4] sm:$0x1] %v320
      %v322 = vld [vmem:[#allocation2 + $0xc0] sm:$0x1]
      %v323 = vsel %vm273, 0, %v322
      %324 = vst [vmem:[#allocation2 + $0xc0] sm:$0x1] %v323
      %v325 = vld [vmem:[#allocation2 + $0xcc] sm:$0x1]
      %v326 = vsel %vm273, 0, %v325
      %327 = vst [vmem:[#allocation2 + $0xcc] sm:$0x1] %v326
      %vm328 = vsmask.f32 7938
      %vm329 = vmand %vm271, %vm328
      %v330 = vld [vmem:[#allocation2 + $0x8] sm:$0x1]
      %v331 = vsel %vm329, 0, %v330
      %332 = vst [vmem:[#allocation2 + $0x8] sm:$0x1] %v331
      %v333 = vld [vmem:[#allocation2 + $0x14] sm:$0x1]
      %v334 = vsel %vm329, 0, %v333
      %335 = vst [vmem:[#allocation2 + $0x14] sm:$0x1] %v334
      %v336 = vld [vmem:[#allocation2 + $0x20] sm:$0x1]
      %v337 = vsel %vm329, 0, %v336
      %338 = vst [vmem:[#allocation2 + $0x20] sm:$0x1] %v337
      %v339 = vld [vmem:[#allocation2 + $0x2c] sm:$0x1]
      %v340 = vsel %vm329, 0, %v339
      %341 = vst [vmem:[#allocation2 + $0x2c] sm:$0x1] %v340
      %v342 = vld [vmem:[#allocation2 + $0x38] sm:$0x1]
      %v343 = vsel %vm329, 0, %v342
      %344 = vst [vmem:[#allocation2 + $0x38] sm:$0x1] %v343
      %v345 = vld [vmem:[#allocation2 + $0x44] sm:$0x1]
      %v346 = vsel %vm329, 0, %v345
      %347 = vst [vmem:[#allocation2 + $0x44] sm:$0x1] %v346
      %v348 = vld [vmem:[#allocation2 + $0x50] sm:$0x1]
      %v349 = vsel %vm329, 0, %v348
      %350 = vst [vmem:[#allocation2 + $0x50] sm:$0x1] %v349
      %v351 = vld [vmem:[#allocation2 + $0x5c] sm:$0x1]
      %v352 = vsel %vm329, 0, %v351
      %353 = vst [vmem:[#allocation2 + $0x5c] sm:$0x1] %v352
      %v354 = vld [vmem:[#allocation2 + $0x68] sm:$0x1]
      %v355 = vsel %vm329, 0, %v354
      %356 = vst [vmem:[#allocation2 + $0x68] sm:$0x1] %v355
      %v357 = vld [vmem:[#allocation2 + $0x74] sm:$0x1]
      %v358 = vsel %vm329, 0, %v357
      %359 = vst [vmem:[#allocation2 + $0x74] sm:$0x1] %v358
      %v360 = vld [vmem:[#allocation2 + $0x80] sm:$0x1]
      %v361 = vsel %vm329, 0, %v360
      %362 = vst [vmem:[#allocation2 + $0x80] sm:$0x1] %v361
      %v363 = vld [vmem:[#allocation2 + $0x8c] sm:$0x1]
      %v364 = vsel %vm329, 0, %v363
      %365 = vst [vmem:[#allocation2 + $0x8c] sm:$0x1] %v364
      %v366 = vld [vmem:[#allocation2 + $0x98] sm:$0x1]
      %v367 = vsel %vm329, 0, %v366
      %368 = vst [vmem:[#allocation2 + $0x98] sm:$0x1] %v367
      %v369 = vld [vmem:[#allocation2 + $0xa4] sm:$0x1]
      %v370 = vsel %vm329, 0, %v369
      %371 = vst [vmem:[#allocation2 + $0xa4] sm:$0x1] %v370
      %v372 = vld [vmem:[#allocation2 + $0xb0] sm:$0x1]
      %v373 = vsel %vm329, 0, %v372
      %374 = vst [vmem:[#allocation2 + $0xb0] sm:$0x1] %v373
      %v375 = vld [vmem:[#allocation2 + $0xbc] sm:$0x1]
      %v376 = vsel %vm329, 0, %v375
      %377 = vst [vmem:[#allocation2 + $0xbc] sm:$0x1] %v376
      %v378 = vld [vmem:[#allocation2 + $0xc8] sm:$0x1]
      %v379 = vsel %vm329, 0, %v378
      %380 = vst [vmem:[#allocation2 + $0xc8] sm:$0x1] %v379
      %v381 = vld [vmem:[#allocation2 + $0xd4] sm:$0x1]
      %v382 = vsel %vm329, 0, %v381
      %383 = vst [vmem:[#allocation2 + $0xd4] sm:$0x1] %v382
      %s384 = smul.u32 %s270, 2
      %s385 = smul.addr %s384, 4
      %s386 = scalar_lea.vmem %s250, %s385
      %v387 = vld [vmem:[%s386] sm:$0xf]
      %v388 = vld [vmem:[%s386 + $0x4] sm:$0xf]
      %v389 = vld [vmem:[%s386 + $0x8] sm:$0xf]
      %v390 = vld [vmem:[%s386 + $0xc] sm:$0xf]
      %v391 = vld [vmem:[%s386 + $0x10] sm:$0xf]
      %v392 = vld [vmem:[%s386 + $0x14] sm:$0xf]
      %v393 = vld [vmem:[%s386 + $0x18] sm:$0xf]
      %v394 = vld [vmem:[%s386 + $0x1c] sm:$0xf]
      %v395 = vld [vmem:[%s386 + $0x20] sm:$0xf]
      %v396 = vld [vmem:[%s386 + $0x24] sm:$0xf]
      %v397 = vld [vmem:[%s386 + $0x28] sm:$0xf]
      %v398 = vld [vmem:[%s386 + $0x2c] sm:$0xf]
      %v399 = vld [vmem:[%s386 + $0x30] sm:$0xf]
      %v400 = vld [vmem:[%s386 + $0x34] sm:$0xf]
      %v401 = vld [vmem:[%s386 + $0x38] sm:$0xf]
      %v402 = vld [vmem:[%s386 + $0x3c] sm:$0xf]
      %v403 = vld [vmem:[%s386 + $0x40] sm:$0xf]
      %v404 = vld [vmem:[%s386 + $0x44] sm:$0xf]
      %v405 = vld [vmem:[%s386 + $0x48] sm:$0xf]
      %v406 = vld [vmem:[%s386 + $0x4c] sm:$0xf]
      %v407 = vld [vmem:[%s386 + $0x50] sm:$0xf]
      %v408 = vld [vmem:[%s386 + $0x54] sm:$0xf]
      %v409 = vld [vmem:[%s386 + $0x58] sm:$0xf]
      %v410 = vld [vmem:[%s386 + $0x5c] sm:$0xf]
      %v411 = vld [vmem:[%s386 + $0x60] sm:$0xf]
      %v412 = vld [vmem:[%s386 + $0x64] sm:$0xf]
      %v413 = vld [vmem:[%s386 + $0x68] sm:$0xf]
      %v414 = vld [vmem:[%s386 + $0x6c] sm:$0xf]
      %v415 = vld [vmem:[%s386 + $0x70] sm:$0xf]
      %v416 = vld [vmem:[%s386 + $0x74] sm:$0xf]
      %v417 = vld [vmem:[%s386 + $0x78] sm:$0xf]
      %v418 = vld [vmem:[%s386 + $0x7c] sm:$0xf]
      %v419 = vunpack.c.l.bf16 %v387
      %v420 = vunpack.c.l.bf16 %v388
      %v421 = vunpack.c.l.bf16 %v389
      %v422 = vunpack.c.l.bf16 %v390
      %v423 = vunpack.c.l.bf16 %v391
      %v424 = vunpack.c.l.bf16 %v392
      %v425 = vunpack.c.l.bf16 %v393
      %v426 = vunpack.c.l.bf16 %v394
      %v427 = vunpack.c.l.bf16 %v395
      %v428 = vunpack.c.l.bf16 %v396
      %v429 = vunpack.c.l.bf16 %v397
      %v430 = vunpack.c.l.bf16 %v398
      %v431 = vunpack.c.l.bf16 %v399
      %v432 = vunpack.c.l.bf16 %v400
      %v433 = vunpack.c.l.bf16 %v401
      %v434 = vunpack.c.l.bf16 %v402
      %v435 = vunpack.c.l.bf16 %v403
      %v436 = vunpack.c.l.bf16 %v404
      %v437 = vunpack.c.l.bf16 %v405
      %v438 = vunpack.c.l.bf16 %v406
      %v439 = vunpack.c.l.bf16 %v407
      %v440 = vunpack.c.l.bf16 %v408
      %v441 = vunpack.c.l.bf16 %v409
      %v442 = vunpack.c.l.bf16 %v410
      %v443 = vunpack.c.l.bf16 %v411
      %v444 = vunpack.c.l.bf16 %v412
      %v445 = vunpack.c.l.bf16 %v413
      %v446 = vunpack.c.l.bf16 %v414
      %v447 = vunpack.c.l.bf16 %v415
      %v448 = vunpack.c.l.bf16 %v416
      %v449 = vunpack.c.l.bf16 %v417
      %v450 = vunpack.c.l.bf16 %v418
      %v451 = vld [vmem:[%s1] sm:$0x1]
      %v453 = vlaneseq
      %v454 = vshrl.u32 %v453, 7
      %v455 = vsub.s32 0, %v454
      %v456 = vrot.slane %v451, %v455
      %v458 = vmul.f32 %v419, %v456
      %v459 = vmul.f32 %v420, %v456
      %v460 = vmul.f32 %v421, %v456
      %v461 = vmul.f32 %v422, %v456
      %v462 = vmul.f32 %v423, %v456
      %v463 = vmul.f32 %v424, %v456
      %v464 = vmul.f32 %v425, %v456
      %v465 = vmul.f32 %v426, %v456
      %v466 = vmul.f32 %v427, %v456
      %v467 = vmul.f32 %v428, %v456
      %v468 = vmul.f32 %v429, %v456
      %v469 = vmul.f32 %v430, %v456
      %v470 = vmul.f32 %v431, %v456
      %v471 = vmul.f32 %v432, %v456
      %v472 = vmul.f32 %v433, %v456
      %v473 = vmul.f32 %v434, %v456
      %v474 = vmul.f32 %v435, %v456
      %v475 = vmul.f32 %v436, %v456
      %v476 = vmul.f32 %v437, %v456
      %v477 = vmul.f32 %v438, %v456
      %v478 = vmul.f32 %v439, %v456
      %v479 = vmul.f32 %v440, %v456
      %v480 = vmul.f32 %v441, %v456
      %v481 = vmul.f32 %v442, %v456
      %v482 = vmul.f32 %v443, %v456
      %v483 = vmul.f32 %v444, %v456
      %v484 = vmul.f32 %v445, %v456
      %v485 = vmul.f32 %v446, %v456
      %v486 = vmul.f32 %v447, %v456
      %v487 = vmul.f32 %v448, %v456
      %v488 = vmul.f32 %v449, %v456
      %v489 = vmul.f32 %v450, %v456
      %v490 = vld [vmem:[%s2] sm:$0x1]
      %v492 = vlaneseq
      %v493 = vshrl.u32 %v492, 7
      %v494 = vsub.s32 0, %v493
      %v495 = vrot.slane %v490, %v494
      %v497 = vadd.f32 %v458, %v495
      %v498 = vadd.f32 %v459, %v495
      %v499 = vadd.f32 %v460, %v495
      %v500 = vadd.f32 %v461, %v495
      %v501 = vadd.f32 %v462, %v495
      %v502 = vadd.f32 %v463, %v495
      %v503 = vadd.f32 %v464, %v495
      %v504 = vadd.f32 %v465, %v495
      %v505 = vadd.f32 %v466, %v495
      %v506 = vadd.f32 %v467, %v495
      %v507 = vadd.f32 %v468, %v495
      %v508 = vadd.f32 %v469, %v495
      %v509 = vadd.f32 %v470, %v495
      %v510 = vadd.f32 %v471, %v495
      %v511 = vadd.f32 %v472, %v495
      %v512 = vadd.f32 %v473, %v495
      %v513 = vadd.f32 %v474, %v495
      %v514 = vadd.f32 %v475, %v495
      %v515 = vadd.f32 %v476, %v495
      %v516 = vadd.f32 %v477, %v495
      %v517 = vadd.f32 %v478, %v495
      %v518 = vadd.f32 %v479, %v495
      %v519 = vadd.f32 %v480, %v495
      %v520 = vadd.f32 %v481, %v495
      %v521 = vadd.f32 %v482, %v495
      %v522 = vadd.f32 %v483, %v495
      %v523 = vadd.f32 %v484, %v495
      %v524 = vadd.f32 %v485, %v495
      %v525 = vadd.f32 %v486, %v495
      %v526 = vadd.f32 %v487, %v495
      %v527 = vadd.f32 %v488, %v495
      %v528 = vadd.f32 %v489, %v495
      %v529 = vmax.f32 %v497, 0.0
      %v530 = vmax.f32 %v498, 0.0
      %v531 = vmax.f32 %v499, 0.0
      %v532 = vmax.f32 %v500, 0.0
      %v533 = vmax.f32 %v501, 0.0
      %v534 = vmax.f32 %v502, 0.0
      %v535 = vmax.f32 %v503, 0.0
      %v536 = vmax.f32 %v504, 0.0
      %v537 = vmax.f32 %v505, 0.0
      %v538 = vmax.f32 %v506, 0.0
      %v539 = vmax.f32 %v507, 0.0
      %v540 = vmax.f32 %v508, 0.0
      %v541 = vmax.f32 %v509, 0.0
      %v542 = vmax.f32 %v510, 0.0
      %v543 = vmax.f32 %v511, 0.0
      %v544 = vmax.f32 %v512, 0.0
      %v545 = vmax.f32 %v513, 0.0
      %v546 = vmax.f32 %v514, 0.0
      %v547 = vmax.f32 %v515, 0.0
      %v548 = vmax.f32 %v516, 0.0
      %v549 = vmax.f32 %v517, 0.0
      %v550 = vmax.f32 %v518, 0.0
      %v551 = vmax.f32 %v519, 0.0
      %v552 = vmax.f32 %v520, 0.0
      %v553 = vmax.f32 %v521, 0.0
      %v554 = vmax.f32 %v522, 0.0
      %v555 = vmax.f32 %v523, 0.0
      %v556 = vmax.f32 %v524, 0.0
      %v557 = vmax.f32 %v525, 0.0
      %v558 = vmax.f32 %v526, 0.0
      %v559 = vmax.f32 %v527, 0.0
      %v560 = vmax.f32 %v528, 0.0
      %v561 = vpack.c.bf16 %v530, %v529
      %v562 = vpack.c.bf16 %v532, %v531
      %v563 = vpack.c.bf16 %v534, %v533
      %v564 = vpack.c.bf16 %v536, %v535
      %v565 = vpack.c.bf16 %v538, %v537
      %v566 = vpack.c.bf16 %v540, %v539
      %v567 = vpack.c.bf16 %v542, %v541
      %v568 = vpack.c.bf16 %v544, %v543
      %v569 = vpack.c.bf16 %v546, %v545
      %v570 = vpack.c.bf16 %v548, %v547
      %v571 = vpack.c.bf16 %v550, %v549
      %v572 = vpack.c.bf16 %v552, %v551
      %v573 = vpack.c.bf16 %v554, %v553
      %v574 = vpack.c.bf16 %v556, %v555
      %v575 = vpack.c.bf16 %v558, %v557
      %v576 = vpack.c.bf16 %v560, %v559
      %v593 = vunpack.c.l.b16 %v561
      %v594 = vunpack.c.h.b16 %v561
      %v595 = vunpack.c.l.b16 %v562
      %v596 = vunpack.c.h.b16 %v562
      %v597 = vunpack.c.l.b16 %v563
      %v598 = vunpack.c.h.b16 %v563
      %v599 = vunpack.c.l.b16 %v564
      %v600 = vunpack.c.h.b16 %v564
      %v601 = vunpack.c.l.b16 %v565
      %v602 = vunpack.c.h.b16 %v565
      %v603 = vunpack.c.l.b16 %v566
      %v604 = vunpack.c.h.b16 %v566
      %v605 = vunpack.c.l.b16 %v567
      %v606 = vunpack.c.h.b16 %v567
      %v607 = vunpack.c.l.b16 %v568
      %v608 = vunpack.c.h.b16 %v568
      %v609 = vunpack.c.l.b16 %v569
      %v610 = vunpack.c.h.b16 %v569
      %v611 = vunpack.c.l.b16 %v570
      %v612 = vunpack.c.h.b16 %v570
      %v613 = vunpack.c.l.b16 %v571
      %v614 = vunpack.c.h.b16 %v571
      %v615 = vunpack.c.l.b16 %v572
      %v616 = vunpack.c.h.b16 %v572
      %v617 = vunpack.c.l.b16 %v573
      %v618 = vunpack.c.h.b16 %v573
      %v619 = vunpack.c.l.b16 %v574
      %v620 = vunpack.c.h.b16 %v574
      %v621 = vunpack.c.l.b16 %v575
      %v622 = vunpack.c.h.b16 %v575
      %v623 = vunpack.c.l.b16 %v576
      %v624 = vunpack.c.h.b16 %v576
      %v625 = vpack.c.b16 %v593, %v593
      %v626 = vpack.c.b16 %v594, %v594
      %v627 = vpack.c.b16 %v595, %v595
      %v628 = vpack.c.b16 %v596, %v596
      %v629 = vpack.c.b16 %v597, %v597
      %v630 = vpack.c.b16 %v598, %v598
      %v631 = vpack.c.b16 %v599, %v599
      %v632 = vpack.c.b16 %v600, %v600
      %v633 = vpack.c.b16 %v601, %v601
      %v634 = vpack.c.b16 %v602, %v602
      %v635 = vpack.c.b16 %v603, %v603
      %v636 = vpack.c.b16 %v604, %v604
      %v637 = vpack.c.b16 %v605, %v605
      %v638 = vpack.c.b16 %v606, %v606
      %v639 = vpack.c.b16 %v607, %v607
      %v640 = vpack.c.b16 %v608, %v608
      %v641 = vpack.c.b16 %v609, %v609
      %v642 = vpack.c.b16 %v610, %v610
      %v643 = vpack.c.b16 %v611, %v611
      %v644 = vpack.c.b16 %v612, %v612
      %v645 = vpack.c.b16 %v613, %v613
      %v646 = vpack.c.b16 %v614, %v614
      %v647 = vpack.c.b16 %v615, %v615
      %v648 = vpack.c.b16 %v616, %v616
      %v649 = vpack.c.b16 %v617, %v617
      %v650 = vpack.c.b16 %v618, %v618
      %v651 = vpack.c.b16 %v619, %v619
      %v652 = vpack.c.b16 %v620, %v620
      %v653 = vpack.c.b16 %v621, %v621
      %v654 = vpack.c.b16 %v622, %v622
      %v655 = vpack.c.b16 %v623, %v623
      %v656 = vpack.c.b16 %v624, %v624
      %vm657 = vsmask.f32 4368
      %vm658 = vmor %vm272, %vm657
      %v660 = vshrl.u32 %v625, 16
      %v662 = vrot.slane %v660, 7
      %v663 = vshll.u32 %v625, 16
      %v665 = vor.u32 %v662, %v663
      %v666 = vrot.slane %v662, 4
      %v668 = vshrl.u32 %v626, 16
      %v670 = vrot.slane %v668, 7
      %v671 = vshll.u32 %v626, 16
      %v673 = vor.u32 %v670, %v671
      %v674 = vsel %vm658, %v666, %v673
      %v675 = vrot.slane %v670, 4
      %v677 = vshrl.u32 %v627, 16
      %v679 = vrot.slane %v677, 7
      %v680 = vshll.u32 %v627, 16
      %v682 = vor.u32 %v679, %v680
      %v683 = vrot.slane %v679, 4
      %v685 = vshrl.u32 %v628, 16
      %v687 = vrot.slane %v685, 7
      %v688 = vshll.u32 %v628, 16
      %v690 = vor.u32 %v687, %v688
      %v691 = vsel %vm658, %v683, %v690
      %v692 = vrot.slane %v687, 4
      %v694 = vshrl.u32 %v629, 16
      %v696 = vrot.slane %v694, 7
      %v697 = vshll.u32 %v629, 16
      %v699 = vor.u32 %v696, %v697
      %v700 = vrot.slane %v696, 4
      %v702 = vshrl.u32 %v630, 16
      %v704 = vrot.slane %v702, 7
      %v705 = vshll.u32 %v630, 16
      %v707 = vor.u32 %v704, %v705
      %v708 = vsel %vm658, %v700, %v707
      %v709 = vrot.slane %v704, 4
      %v711 = vshrl.u32 %v631, 16
      %v713 = vrot.slane %v711, 7
      %v714 = vshll.u32 %v631, 16
      %v716 = vor.u32 %v713, %v714
      %v717 = vrot.slane %v713, 4
      %v719 = vshrl.u32 %v632, 16
      %v721 = vrot.slane %v719, 7
      %v722 = vshll.u32 %v632, 16
      %v724 = vor.u32 %v721, %v722
      %v725 = vsel %vm658, %v717, %v724
      %v726 = vrot.slane %v721, 4
      %v728 = vshrl.u32 %v633, 16
      %v730 = vrot.slane %v728, 7
      %v731 = vshll.u32 %v633, 16
      %v733 = vor.u32 %v730, %v731
      %v734 = vrot.slane %v730, 4
      %v736 = vshrl.u32 %v634, 16
      %v738 = vrot.slane %v736, 7
      %v739 = vshll.u32 %v634, 16
      %v741 = vor.u32 %v738, %v739
      %v742 = vsel %vm658, %v734, %v741
      %v743 = vrot.slane %v738, 4
      %v745 = vshrl.u32 %v635, 16
      %v747 = vrot.slane %v745, 7
      %v748 = vshll.u32 %v635, 16
      %v750 = vor.u32 %v747, %v748
      %v751 = vrot.slane %v747, 4
      %v753 = vshrl.u32 %v636, 16
      %v755 = vrot.slane %v753, 7
      %v756 = vshll.u32 %v636, 16
      %v758 = vor.u32 %v755, %v756
      %v759 = vsel %vm658, %v751, %v758
      %v760 = vrot.slane %v755, 4
      %v762 = vshrl.u32 %v637, 16
      %v764 = vrot.slane %v762, 7
      %v765 = vshll.u32 %v637, 16
      %v767 = vor.u32 %v764, %v765
      %v768 = vrot.slane %v764, 4
      %v770 = vshrl.u32 %v638, 16
      %v772 = vrot.slane %v770, 7
      %v773 = vshll.u32 %v638, 16
      %v775 = vor.u32 %v772, %v773
      %v776 = vsel %vm658, %v768, %v775
      %v777 = vrot.slane %v772, 4
      %v779 = vshrl.u32 %v639, 16
      %v781 = vrot.slane %v779, 7
      %v782 = vshll.u32 %v639, 16
      %v784 = vor.u32 %v781, %v782
      %v785 = vrot.slane %v781, 4
      %v787 = vshrl.u32 %v640, 16
      %v789 = vrot.slane %v787, 7
      %v790 = vshll.u32 %v640, 16
      %v792 = vor.u32 %v789, %v790
      %v793 = vsel %vm658, %v785, %v792
      %v794 = vrot.slane %v789, 4
      %v796 = vshrl.u32 %v641, 16
      %v798 = vrot.slane %v796, 7
      %v799 = vshll.u32 %v641, 16
      %v801 = vor.u32 %v798, %v799
      %v802 = vrot.slane %v798, 4
      %v804 = vshrl.u32 %v642, 16
      %v806 = vrot.slane %v804, 7
      %v807 = vshll.u32 %v642, 16
      %v809 = vor.u32 %v806, %v807
      %v810 = vsel %vm658, %v802, %v809
      %v811 = vrot.slane %v806, 4
      %v813 = vshrl.u32 %v643, 16
      %v815 = vrot.slane %v813, 7
      %v816 = vshll.u32 %v643, 16
      %v818 = vor.u32 %v815, %v816
      %v819 = vrot.slane %v815, 4
      %v821 = vshrl.u32 %v644, 16
      %v823 = vrot.slane %v821, 7
      %v824 = vshll.u32 %v644, 16
      %v826 = vor.u32 %v823, %v824
      %v827 = vsel %vm658, %v819, %v826
      %v828 = vrot.slane %v823, 4
      %v830 = vshrl.u32 %v645, 16
      %v832 = vrot.slane %v830, 7
      %v833 = vshll.u32 %v645, 16
      %v835 = vor.u32 %v832, %v833
      %v836 = vrot.slane %v832, 4
      %v838 = vshrl.u32 %v646, 16
      %v840 = vrot.slane %v838, 7
      %v841 = vshll.u32 %v646, 16
      %v843 = vor.u32 %v840, %v841
      %v844 = vsel %vm658, %v836, %v843
      %v845 = vrot.slane %v840, 4
      %v847 = vshrl.u32 %v647, 16
      %v849 = vrot.slane %v847, 7
      %v850 = vshll.u32 %v647, 16
      %v852 = vor.u32 %v849, %v850
      %v853 = vrot.slane %v849, 4
      %v855 = vshrl.u32 %v648, 16
      %v857 = vrot.slane %v855, 7
      %v858 = vshll.u32 %v648, 16
      %v860 = vor.u32 %v857, %v858
      %v861 = vsel %vm658, %v853, %v860
      %v862 = vrot.slane %v857, 4
      %v864 = vshrl.u32 %v649, 16
      %v866 = vrot.slane %v864, 7
      %v867 = vshll.u32 %v649, 16
      %v869 = vor.u32 %v866, %v867
      %v870 = vrot.slane %v866, 4
      %v872 = vshrl.u32 %v650, 16
      %v874 = vrot.slane %v872, 7
      %v875 = vshll.u32 %v650, 16
      %v877 = vor.u32 %v874, %v875
      %v878 = vsel %vm658, %v870, %v877
      %v879 = vrot.slane %v874, 4
      %v881 = vshrl.u32 %v651, 16
      %v883 = vrot.slane %v881, 7
      %v884 = vshll.u32 %v651, 16
      %v886 = vor.u32 %v883, %v884
      %v887 = vrot.slane %v883, 4
      %v889 = vshrl.u32 %v652, 16
      %v891 = vrot.slane %v889, 7
      %v892 = vshll.u32 %v652, 16
      %v894 = vor.u32 %v891, %v892
      %v895 = vsel %vm658, %v887, %v894
      %v896 = vrot.slane %v891, 4
      %v898 = vshrl.u32 %v653, 16
      %v900 = vrot.slane %v898, 7
      %v901 = vshll.u32 %v653, 16
      %v903 = vor.u32 %v900, %v901
      %v904 = vrot.slane %v900, 4
      %v906 = vshrl.u32 %v654, 16
      %v908 = vrot.slane %v906, 7
      %v909 = vshll.u32 %v654, 16
      %v911 = vor.u32 %v908, %v909
      %v912 = vsel %vm658, %v904, %v911
      %v913 = vrot.slane %v908, 4
      %v915 = vshrl.u32 %v655, 16
      %v917 = vrot.slane %v915, 7
      %v918 = vshll.u32 %v655, 16
      %v920 = vor.u32 %v917, %v918
      %v921 = vrot.slane %v917, 4
      %v923 = vshrl.u32 %v656, 16
      %v925 = vrot.slane %v923, 7
      %v926 = vshll.u32 %v656, 16
      %v928 = vor.u32 %v925, %v926
      %v929 = vsel %vm658, %v921, %v928
      %v930 = vrot.slane %v925, 4
      %s979 = scalar_lea.vmem [#allocation2], 12
      %vm980 = vcmask 1043456
      %vm981 = vmand %vm980, %vm328
      %v982 = vld [vmem:[%s979] sm:$0xf]
      %v983 = vsel %vm981, %v665, %v982
      %984 = vst [vmem:[%s979] sm:$0xf] %v983
      %985 = vst [vmem:[%s979 + $0x4] sm:$0xf] %v674
      %v986 = vld [vmem:[%s979 + $0x8] sm:$0x1]
      %v987 = vsel %vm273, %v675, %v986
      %988 = vst [vmem:[%s979 + $0x8] sm:$0x1] %v987
      %v989 = vld [vmem:[%s979 + $0xc] sm:$0xf]
      %v990 = vsel %vm981, %v682, %v989
      %991 = vst [vmem:[%s979 + $0xc] sm:$0xf] %v990
      %992 = vst [vmem:[%s979 + $0x10] sm:$0xf] %v691
      %v993 = vld [vmem:[%s979 + $0x14] sm:$0x1]
      %v994 = vsel %vm273, %v692, %v993
      %995 = vst [vmem:[%s979 + $0x14] sm:$0x1] %v994
      %v996 = vld [vmem:[%s979 + $0x18] sm:$0xf]
      %v997 = vsel %vm981, %v699, %v996
      %998 = vst [vmem:[%s979 + $0x18] sm:$0xf] %v997
      %999 = vst [vmem:[%s979 + $0x1c] sm:$0xf] %v708
      %v1000 = vld [vmem:[%s979 + $0x20] sm:$0x1]
      %v1001 = vsel %vm273, %v709, %v1000
      %1002 = vst [vmem:[%s979 + $0x20] sm:$0x1] %v1001
      %v1003 = vld [vmem:[%s979 + $0x24] sm:$0xf]
      %v1004 = vsel %vm981, %v716, %v1003
      %1005 = vst [vmem:[%s979 + $0x24] sm:$0xf] %v1004
      %1006 = vst [vmem:[%s979 + $0x28] sm:$0xf] %v725
      %v1007 = vld [vmem:[%s979 + $0x2c] sm:$0x1]
      %v1008 = vsel %vm273, %v726, %v1007
      %1009 = vst [vmem:[%s979 + $0x2c] sm:$0x1] %v1008
      %v1010 = vld [vmem:[%s979 + $0x30] sm:$0xf]
      %v1011 = vsel %vm981, %v733, %v1010
      %1012 = vst [vmem:[%s979 + $0x30] sm:$0xf] %v1011
      %1013 = vst [vmem:[%s979 + $0x34] sm:$0xf] %v742
      %v1014 = vld [vmem:[%s979 + $0x38] sm:$0x1]
      %v1015 = vsel %vm273, %v743, %v1014
      %1016 = vst [vmem:[%s979 + $0x38] sm:$0x1] %v1015
      %v1017 = vld [vmem:[%s979 + $0x3c] sm:$0xf]
      %v1018 = vsel %vm981, %v750, %v1017
      %1019 = vst [vmem:[%s979 + $0x3c] sm:$0xf] %v1018
      %1020 = vst [vmem:[%s979 + $0x40] sm:$0xf] %v759
      %v1021 = vld [vmem:[%s979 + $0x44] sm:$0x1]
      %v1022 = vsel %vm273, %v760, %v1021
      %1023 = vst [vmem:[%s979 + $0x44] sm:$0x1] %v1022
      %v1024 = vld [vmem:[%s979 + $0x48] sm:$0xf]
      %v1025 = vsel %vm981, %v767, %v1024
      %1026 = vst [vmem:[%s979 + $0x48] sm:$0xf] %v1025
      %1027 = vst [vmem:[%s979 + $0x4c] sm:$0xf] %v776
      %v1028 = vld [vmem:[%s979 + $0x50] sm:$0x1]
      %v1029 = vsel %vm273, %v777, %v1028
      %1030 = vst [vmem:[%s979 + $0x50] sm:$0x1] %v1029
      %v1031 = vld [vmem:[%s979 + $0x54] sm:$0xf]
      %v1032 = vsel %vm981, %v784, %v1031
      %1033 = vst [vmem:[%s979 + $0x54] sm:$0xf] %v1032
      %1034 = vst [vmem:[%s979 + $0x58] sm:$0xf] %v793
      %v1035 = vld [vmem:[%s979 + $0x5c] sm:$0x1]
      %v1036 = vsel %vm273, %v794, %v1035
      %1037 = vst [vmem:[%s979 + $0x5c] sm:$0x1] %v1036
      %v1038 = vld [vmem:[%s979 + $0x60] sm:$0xf]
      %v1039 = vsel %vm981, %v801, %v1038
      %1040 = vst [vmem:[%s979 + $0x60] sm:$0xf] %v1039
      %1041 = vst [vmem:[%s979 + $0x64] sm:$0xf] %v810
      %v1042 = vld [vmem:[%s979 + $0x68] sm:$0x1]
      %v1043 = vsel %vm273, %v811, %v1042
      %1044 = vst [vmem:[%s979 + $0x68] sm:$0x1] %v1043
      %v1045 = vld [vmem:[%s979 + $0x6c] sm:$0xf]
      %v1046 = vsel %vm981, %v818, %v1045
      %1047 = vst [vmem:[%s979 + $0x6c] sm:$0xf] %v1046
      %1048 = vst [vmem:[%s979 + $0x70] sm:$0xf] %v827
      %v1049 = vld [vmem:[%s979 + $0x74] sm:$0x1]
      %v1050 = vsel %vm273, %v828, %v1049
      %1051 = vst [vmem:[%s979 + $0x74] sm:$0x1] %v1050
      %v1052 = vld [vmem:[%s979 + $0x78] sm:$0xf]
      %v1053 = vsel %vm981, %v835, %v1052
      %1054 = vst [vmem:[%s979 + $0x78] sm:$0xf] %v1053
      %1055 = vst [vmem:[%s979 + $0x7c] sm:$0xf] %v844
      %v1056 = vld [vmem:[%s979 + $0x80] sm:$0x1]
      %v1057 = vsel %vm273, %v845, %v1056
      %1058 = vst [vmem:[%s979 + $0x80] sm:$0x1] %v1057
      %v1059 = vld [vmem:[%s979 + $0x84] sm:$0xf]
      %v1060 = vsel %vm981, %v852, %v1059
      %1061 = vst [vmem:[%s979 + $0x84] sm:$0xf] %v1060
      %1062 = vst [vmem:[%s979 + $0x88] sm:$0xf] %v861
      %v1063 = vld [vmem:[%s979 + $0x8c] sm:$0x1]
      %v1064 = vsel %vm273, %v862, %v1063
      %1065 = vst [vmem:[%s979 + $0x8c] sm:$0x1] %v1064
      %v1066 = vld [vmem:[%s979 + $0x90] sm:$0xf]
      %v1067 = vsel %vm981, %v869, %v1066
      %1068 = vst [vmem:[%s979 + $0x90] sm:$0xf] %v1067
      %1069 = vst [vmem:[%s979 + $0x94] sm:$0xf] %v878
      %v1070 = vld [vmem:[%s979 + $0x98] sm:$0x1]
      %v1071 = vsel %vm273, %v879, %v1070
      %1072 = vst [vmem:[%s979 + $0x98] sm:$0x1] %v1071
      %v1073 = vld [vmem:[%s979 + $0x9c] sm:$0xf]
      %v1074 = vsel %vm981, %v886, %v1073
      %1075 = vst [vmem:[%s979 + $0x9c] sm:$0xf] %v1074
      %1076 = vst [vmem:[%s979 + $0xa0] sm:$0xf] %v895
      %v1077 = vld [vmem:[%s979 + $0xa4] sm:$0x1]
      %v1078 = vsel %vm273, %v896, %v1077
      %1079 = vst [vmem:[%s979 + $0xa4] sm:$0x1] %v1078
      %v1080 = vld [vmem:[%s979 + $0xa8] sm:$0xf]
      %v1081 = vsel %vm981, %v903, %v1080
      %1082 = vst [vmem:[%s979 + $0xa8] sm:$0xf] %v1081
      %1083 = vst [vmem:[%s979 + $0xac] sm:$0xf] %v912
      %v1084 = vld [vmem:[%s979 + $0xb0] sm:$0x1]
      %v1085 = vsel %vm273, %v913, %v1084
      %1086 = vst [vmem:[%s979 + $0xb0] sm:$0x1] %v1085
      %v1087 = vld [vmem:[%s979 + $0xb4] sm:$0xf]
      %v1088 = vsel %vm981, %v920, %v1087
      %1089 = vst [vmem:[%s979 + $0xb4] sm:$0xf] %v1088
      %1090 = vst [vmem:[%s979 + $0xb8] sm:$0xf] %v929
      %v1091 = vld [vmem:[%s979 + $0xbc] sm:$0x1]
      %v1092 = vsel %vm273, %v930, %v1091
      %1093 = vst [vmem:[%s979 + $0xbc] sm:$0x1] %v1092
      %s1094 = ssub.s32 %s270, 1
      %p1095 = scmp.gt.s32.totalorder %s1094, 0
      %s1096 = scalar_select %p1095, %s1094, 0
      %s1097 = smul.u32 %s1096, 2
      %s1098 = smul.addr %s1097, 4
      %s1099 = scalar_lea.vmem %s250, %s1098
      %v1100 = vld [vmem:[%s1099] sm:$0xf]
      %v1101 = vld [vmem:[%s1099 + $0x4] sm:$0xf]
      %v1102 = vunpack.c.l.bf16 %v1100
      %v1103 = vunpack.c.l.bf16 %v1101
      %v1104 = vld [vmem:[%s1] sm:$0x1]
      %v1106 = vlaneseq
      %v1107 = vshrl.u32 %v1106, 7
      %v1108 = vsub.s32 0, %v1107
      %v1109 = vrot.slane %v1104, %v1108
      %v1111 = vmul.f32 %v1102, %v1109
      %v1112 = vmul.f32 %v1103, %v1109
      %v1113 = vld [vmem:[%s2] sm:$0x1]
      %v1115 = vlaneseq
      %v1116 = vshrl.u32 %v1115, 7
      %v1117 = vsub.s32 0, %v1116
      %v1118 = vrot.slane %v1113, %v1117
      %v1120 = vadd.f32 %v1111, %v1118
      %v1121 = vadd.f32 %v1112, %v1118
      %v1122 = vmax.f32 %v1120, 0.0
      %v1123 = vmax.f32 %v1121, 0.0
      %v1124 = vpack.c.bf16 %v1123, %v1122
      %s1125 = sadd.s32 %s270, 16
      %p1126 = scmp.lt.s32.totalorder %s1125, 15
      %s1127 = scalar_select %p1126, %s1125, 15
      %s1128 = smul.u32 %s1127, 2
      %s1129 = smul.addr %s1128, 4
      %s1130 = scalar_lea.vmem %s250, %s1129
      %v1131 = vld [vmem:[%s1130] sm:$0xf]
      %v1132 = vld [vmem:[%s1130 + $0x4] sm:$0xf]
      %v1133 = vunpack.c.l.bf16 %v1131
      %v1134 = vunpack.c.l.bf16 %v1132
      %v1135 = vmul.f32 %v1133, %v1109
      %v1136 = vmul.f32 %v1134, %v1109
      %v1137 = vadd.f32 %v1135, %v1118
      %v1138 = vadd.f32 %v1136, %v1118
      %v1139 = vmax.f32 %v1137, 0.0
      %v1140 = vmax.f32 %v1138, 0.0
      %v1141 = vpack.c.bf16 %v1140, %v1139
      %p1142 = scmp.gt.s32.totalorder %s270, 0
      %s1143 = scalar_select %p1142, 1, 0
      %v1144 = vstv %s1143
      %vm1145 = vcmp.eq.s32.totalorder %v1144, 1
      %v1146 = vsel %vm1145, %v1124, 0
      %v1148 = vunpack.c.l.b16 %v1146
      %v1149 = vunpack.c.h.b16 %v1146
      %v1150 = vpack.c.b16 %v1148, %v1148
      %v1151 = vpack.c.b16 %v1149, %v1149
      %v1153 = vshrl.u32 %v1150, 16
      %v1155 = vrot.slane %v1153, 7
      %v1156 = vshll.u32 %v1150, 16
      %v1158 = vor.u32 %v1155, %v1156
      %v1159 = vrot.slane %v1155, 4
      %v1161 = vshrl.u32 %v1151, 16
      %v1163 = vrot.slane %v1161, 7
      %v1164 = vshll.u32 %v1151, 16
      %v1166 = vor.u32 %v1163, %v1164
      %v1167 = vsel %vm658, %v1159, %v1166
      %v1168 = vrot.slane %v1163, 4
      %v1172 = vld [vmem:[#allocation2] sm:$0xf]
      %v1173 = vsel %vm981, %v1158, %v1172
      %1174 = vst [vmem:[#allocation2] sm:$0xf] %v1173
      %1175 = vst [vmem:[#allocation2 + $0x4] sm:$0xf] %v1167
      %v1176 = vld [vmem:[#allocation2 + $0x8] sm:$0x1]
      %v1177 = vsel %vm273, %v1168, %v1176
      %1178 = vst [vmem:[#allocation2 + $0x8] sm:$0x1] %v1177
      %p1179 = scmp.lt.s32.totalorder %s1125, 16
      %s1180 = scalar_select %p1179, 1, 0
      %v1181 = vstv %s1180
      %vm1182 = vcmp.eq.s32.totalorder %v1181, 1
      %v1183 = vsel %vm1182, %v1141, 0
      %v1185 = vunpack.c.l.b16 %v1183
      %v1186 = vunpack.c.h.b16 %v1183
      %v1187 = vpack.c.b16 %v1185, %v1185
      %v1188 = vpack.c.b16 %v1186, %v1186
      %v1190 = vshrl.u32 %v1187, 16
      %v1192 = vrot.slane %v1190, 7
      %v1193 = vshll.u32 %v1187, 16
      %v1195 = vor.u32 %v1192, %v1193
      %v1196 = vrot.slane %v1192, 4
      %v1198 = vshrl.u32 %v1188, 16
      %v1200 = vrot.slane %v1198, 7
      %v1201 = vshll.u32 %v1188, 16
      %v1203 = vor.u32 %v1200, %v1201
      %v1204 = vsel %vm658, %v1196, %v1203
      %v1205 = vrot.slane %v1200, 4
      %s1209 = scalar_lea.vmem [#allocation2], 204
      %v1210 = vld [vmem:[%s1209] sm:$0xf]
      %v1211 = vsel %vm981, %v1195, %v1210
      %1212 = vst [vmem:[%s1209] sm:$0xf] %v1211
      %1213 = vst [vmem:[%s1209 + $0x4] sm:$0xf] %v1204
      %v1214 = vld [vmem:[%s1209 + $0x8] sm:$0x1]
      %v1215 = vsel %vm273, %v1205, %v1214
      %1216 = vst [vmem:[%s1209 + $0x8] sm:$0x1] %v1215
      %v1217 = vld [vmem:[#allocation2] sm:$0xf]
      %v1218 = vld [vmem:[#allocation2 + $0x4] sm:$0xf]
      %v1219 = vld [vmem:[#allocation2 + $0xc] sm:$0xf]
      %v1220 = vld [vmem:[#allocation2 + $0x10] sm:$0xf]
      %v1221 = vld [vmem:[#allocation2 + $0x18] sm:$0xf]
      %v1222 = vld [vmem:[#allocation2 + $0x1c] sm:$0xf]
      %v1223 = vld [vmem:[#allocation2 + $0x24] sm:$0xf]
      %v1224 = vld [vmem:[#allocation2 + $0x28] sm:$0xf]
      %v1225 = vld [vmem:[#allocation2 + $0x30] sm:$0xf]
      %v1226 = vld [vmem:[#allocation2 + $0x34] sm:$0xf]
      %v1227 = vld [vmem:[#allocation2 + $0x3c] sm:$0xf]
      %v1228 = vld [vmem:[#allocation2 + $0x40] sm:$0xf]
      %v1229 = vld [vmem:[#allocation2 + $0x48] sm:$0xf]
      %v1230 = vld [vmem:[#allocation2 + $0x4c] sm:$0xf]
      %v1231 = vld [vmem:[#allocation2 + $0x54] sm:$0xf]
      %v1232 = vld [vmem:[#allocation2 + $0x58] sm:$0xf]
      %v1233 = vld [vmem:[#allocation2 + $0x60] sm:$0xf]
      %v1234 = vld [vmem:[#allocation2 + $0x64] sm:$0xf]
      %v1235 = vld [vmem:[#allocation2 + $0x6c] sm:$0xf]
      %v1236 = vld [vmem:[#allocation2 + $0x70] sm:$0xf]
      %v1237 = vld [vmem:[#allocation2 + $0x78] sm:$0xf]
      %v1238 = vld [vmem:[#allocation2 + $0x7c] sm:$0xf]
      %v1239 = vld [vmem:[#allocation2 + $0x84] sm:$0xf]
      %v1240 = vld [vmem:[#allocation2 + $0x88] sm:$0xf]
      %v1241 = vld [vmem:[#allocation2 + $0x90] sm:$0xf]
      %v1242 = vld [vmem:[#allocation2 + $0x94] sm:$0xf]
      %v1243 = vld [vmem:[#allocation2 + $0x9c] sm:$0xf]
      %v1244 = vld [vmem:[#allocation2 + $0xa0] sm:$0xf]
      %v1245 = vld [vmem:[#allocation2 + $0xa8] sm:$0xf]
      %v1246 = vld [vmem:[#allocation2 + $0xac] sm:$0xf]
      %v1247 = vld [vmem:[#allocation2 + $0xb4] sm:$0xf]
      %v1248 = vld [vmem:[#allocation2 + $0xb8] sm:$0xf]
      %v1249 = vld [vmem:[#allocation2 + $0x8] sm:$0x1]
      %v1250 = vld [vmem:[#allocation2 + $0x14] sm:$0x1]
      %v1251 = vld [vmem:[#allocation2 + $0x20] sm:$0x1]
      %v1252 = vld [vmem:[#allocation2 + $0x2c] sm:$0x1]
      %v1253 = vld [vmem:[#allocation2 + $0x38] sm:$0x1]
      %v1254 = vld [vmem:[#allocation2 + $0x44] sm:$0x1]
      %v1255 = vld [vmem:[#allocation2 + $0x50] sm:$0x1]
      %v1256 = vld [vmem:[#allocation2 + $0x5c] sm:$0x1]
      %v1257 = vld [vmem:[#allocation2 + $0x68] sm:$0x1]
      %v1258 = vld [vmem:[#allocation2 + $0x74] sm:$0x1]
      %v1259 = vld [vmem:[#allocation2 + $0x80] sm:$0x1]
      %v1260 = vld [vmem:[#allocation2 + $0x8c] sm:$0x1]
      %v1261 = vld [vmem:[#allocation2 + $0x98] sm:$0x1]
      %v1262 = vld [vmem:[#allocation2 + $0xa4] sm:$0x1]
      %v1263 = vld [vmem:[#allocation2 + $0xb0] sm:$0x1]
      %v1264 = vld [vmem:[#allocation2 + $0xbc] sm:$0x1]
      %vm1265 = vsmask.f32 3328
      %vm1266 = vsmask.f32 7440
      %vm1267 = vmor %vm1265, %vm1266
      %v1269 = vshrl.u32 %v1217, 16
      %v1271 = vrot.slane %v1269, 4
      %v1272 = vshll.u32 %v1217, 16
      %v1274 = vrot.slane %v1272, 5
      %v1275 = vor.u32 %v1271, %v1274
      %v1276 = vrot.slane %v1275, 4
      %v1278 = vshll.u32 %v1218, 16
      %v1280 = vrot.slane %v1278, 5
      %v1281 = vsel %vm1267, %v1276, %v1280
      %v1282 = vshrl.u32 %v1218, 16
      %v1284 = vrot.slane %v1282, 4
      %v1285 = vor.u32 %v1284, %v1280
      %v1286 = vrot.slane %v1285, 4
      %v1288 = vshll.u32 %v1249, 16
      %v1290 = vrot.slane %v1288, 5
      %v1291 = vsel %vm1267, %v1286, %v1290
      %v1293 = vshrl.u32 %v1219, 16
      %v1295 = vrot.slane %v1293, 4
      %v1296 = vshll.u32 %v1219, 16
      %v1298 = vrot.slane %v1296, 5
      %v1299 = vor.u32 %v1295, %v1298
      %v1300 = vrot.slane %v1299, 4
      %v1302 = vshll.u32 %v1220, 16
      %v1304 = vrot.slane %v1302, 5
      %v1305 = vsel %vm1267, %v1300, %v1304
      %v1306 = vshrl.u32 %v1220, 16
      %v1308 = vrot.slane %v1306, 4
      %v1309 = vor.u32 %v1308, %v1304
      %v1310 = vrot.slane %v1309, 4
      %v1312 = vshll.u32 %v1250, 16
      %v1314 = vrot.slane %v1312, 5
      %v1315 = vsel %vm1267, %v1310, %v1314
      %v1317 = vshrl.u32 %v1221, 16
      %v1319 = vrot.slane %v1317, 4
      %v1320 = vshll.u32 %v1221, 16
      %v1322 = vrot.slane %v1320, 5
      %v1323 = vor.u32 %v1319, %v1322
      %v1324 = vrot.slane %v1323, 4
      %v1326 = vshll.u32 %v1222, 16
      %v1328 = vrot.slane %v1326, 5
      %v1329 = vsel %vm1267, %v1324, %v1328
      %v1330 = vshrl.u32 %v1222, 16
      %v1332 = vrot.slane %v1330, 4
      %v1333 = vor.u32 %v1332, %v1328
      %v1334 = vrot.slane %v1333, 4
      %v1336 = vshll.u32 %v1251, 16
      %v1338 = vrot.slane %v1336, 5
      %v1339 = vsel %vm1267, %v1334, %v1338
      %v1341 = vshrl.u32 %v1223, 16
      %v1343 = vrot.slane %v1341, 4
      %v1344 = vshll.u32 %v1223, 16
      %v1346 = vrot.slane %v1344, 5
      %v1347 = vor.u32 %v1343, %v1346
      %v1348 = vrot.slane %v1347, 4
      %v1350 = vshll.u32 %v1224, 16
      %v1352 = vrot.slane %v1350, 5
      %v1353 = vsel %vm1267, %v1348, %v1352
      %v1354 = vshrl.u32 %v1224, 16
      %v1356 = vrot.slane %v1354, 4
      %v1357 = vor.u32 %v1356, %v1352
      %v1358 = vrot.slane %v1357, 4
      %v1360 = vshll.u32 %v1252, 16
      %v1362 = vrot.slane %v1360, 5
      %v1363 = vsel %vm1267, %v1358, %v1362
      %v1365 = vshrl.u32 %v1225, 16
      %v1367 = vrot.slane %v1365, 4
      %v1368 = vshll.u32 %v1225, 16
      %v1370 = vrot.slane %v1368, 5
      %v1371 = vor.u32 %v1367, %v1370
      %v1372 = vrot.slane %v1371, 4
      %v1374 = vshll.u32 %v1226, 16
      %v1376 = vrot.slane %v1374, 5
      %v1377 = vsel %vm1267, %v1372, %v1376
      %v1378 = vshrl.u32 %v1226, 16
      %v1380 = vrot.slane %v1378, 4
      %v1381 = vor.u32 %v1380, %v1376
      %v1382 = vrot.slane %v1381, 4
      %v1384 = vshll.u32 %v1253, 16
      %v1386 = vrot.slane %v1384, 5
      %v1387 = vsel %vm1267, %v1382, %v1386
      %v1389 = vshrl.u32 %v1227, 16
      %v1391 = vrot.slane %v1389, 4
      %v1392 = vshll.u32 %v1227, 16
      %v1394 = vrot.slane %v1392, 5
      %v1395 = vor.u32 %v1391, %v1394
      %v1396 = vrot.slane %v1395, 4
      %v1398 = vshll.u32 %v1228, 16
      %v1400 = vrot.slane %v1398, 5
      %v1401 = vsel %vm1267, %v1396, %v1400
      %v1402 = vshrl.u32 %v1228, 16
      %v1404 = vrot.slane %v1402, 4
      %v1405 = vor.u32 %v1404, %v1400
      %v1406 = vrot.slane %v1405, 4
      %v1408 = vshll.u32 %v1254, 16
      %v1410 = vrot.slane %v1408, 5
      %v1411 = vsel %vm1267, %v1406, %v1410
      %v1413 = vshrl.u32 %v1229, 16
      %v1415 = vrot.slane %v1413, 4
      %v1416 = vshll.u32 %v1229, 16
      %v1418 = vrot.slane %v1416, 5
      %v1419 = vor.u32 %v1415, %v1418
      %v1420 = vrot.slane %v1419, 4
      %v1422 = vshll.u32 %v1230, 16
      %v1424 = vrot.slane %v1422, 5
      %v1425 = vsel %vm1267, %v1420, %v1424
      %v1426 = vshrl.u32 %v1230, 16
      %v1428 = vrot.slane %v1426, 4
      %v1429 = vor.u32 %v1428, %v1424
      %v1430 = vrot.slane %v1429, 4
      %v1432 = vshll.u32 %v1255, 16
      %v1434 = vrot.slane %v1432, 5
      %v1435 = vsel %vm1267, %v1430, %v1434
      %v1437 = vshrl.u32 %v1231, 16
      %v1439 = vrot.slane %v1437, 4
      %v1440 = vshll.u32 %v1231, 16
      %v1442 = vrot.slane %v1440, 5
      %v1443 = vor.u32 %v1439, %v1442
      %v1444 = vrot.slane %v1443, 4
      %v1446 = vshll.u32 %v1232, 16
      %v1448 = vrot.slane %v1446, 5
      %v1449 = vsel %vm1267, %v1444, %v1448
      %v1450 = vshrl.u32 %v1232, 16
      %v1452 = vrot.slane %v1450, 4
      %v1453 = vor.u32 %v1452, %v1448
      %v1454 = vrot.slane %v1453, 4
      %v1456 = vshll.u32 %v1256, 16
      %v1458 = vrot.slane %v1456, 5
      %v1459 = vsel %vm1267, %v1454, %v1458
      %v1461 = vshrl.u32 %v1233, 16
      %v1463 = vrot.slane %v1461, 4
      %v1464 = vshll.u32 %v1233, 16
      %v1466 = vrot.slane %v1464, 5
      %v1467 = vor.u32 %v1463, %v1466
      %v1468 = vrot.slane %v1467, 4
      %v1470 = vshll.u32 %v1234, 16
      %v1472 = vrot.slane %v1470, 5
      %v1473 = vsel %vm1267, %v1468, %v1472
      %v1474 = vshrl.u32 %v1234, 16
      %v1476 = vrot.slane %v1474, 4
      %v1477 = vor.u32 %v1476, %v1472
      %v1478 = vrot.slane %v1477, 4
      %v1480 = vshll.u32 %v1257, 16
      %v1482 = vrot.slane %v1480, 5
      %v1483 = vsel %vm1267, %v1478, %v1482
      %v1485 = vshrl.u32 %v1235, 16
      %v1487 = vrot.slane %v1485, 4
      %v1488 = vshll.u32 %v1235, 16
      %v1490 = vrot.slane %v1488, 5
      %v1491 = vor.u32 %v1487, %v1490
      %v1492 = vrot.slane %v1491, 4
      %v1494 = vshll.u32 %v1236, 16
      %v1496 = vrot.slane %v1494, 5
      %v1497 = vsel %vm1267, %v1492, %v1496
      %v1498 = vshrl.u32 %v1236, 16
      %v1500 = vrot.slane %v1498, 4
      %v1501 = vor.u32 %v1500, %v1496
      %v1502 = vrot.slane %v1501, 4
      %v1504 = vshll.u32 %v1258, 16
      %v1506 = vrot.slane %v1504, 5
      %v1507 = vsel %vm1267, %v1502, %v1506
      %v1509 = vshrl.u32 %v1237, 16
      %v1511 = vrot.slane %v1509, 4
      %v1512 = vshll.u32 %v1237, 16
      %v1514 = vrot.slane %v1512, 5
      %v1515 = vor.u32 %v1511, %v1514
      %v1516 = vrot.slane %v1515, 4
      %v1518 = vshll.u32 %v1238, 16
      %v1520 = vrot.slane %v1518, 5
      %v1521 = vsel %vm1267, %v1516, %v1520
      %v1522 = vshrl.u32 %v1238, 16
      %v1524 = vrot.slane %v1522, 4
      %v1525 = vor.u32 %v1524, %v1520
      %v1526 = vrot.slane %v1525, 4
      %v1528 = vshll.u32 %v1259, 16
      %v1530 = vrot.slane %v1528, 5
      %v1531 = vsel %vm1267, %v1526, %v1530
      %v1533 = vshrl.u32 %v1239, 16
      %v1535 = vrot.slane %v1533, 4
      %v1536 = vshll.u32 %v1239, 16
      %v1538 = vrot.slane %v1536, 5
      %v1539 = vor.u32 %v1535, %v1538
      %v1540 = vrot.slane %v1539, 4
      %v1542 = vshll.u32 %v1240, 16
      %v1544 = vrot.slane %v1542, 5
      %v1545 = vsel %vm1267, %v1540, %v1544
      %v1546 = vshrl.u32 %v1240, 16
      %v1548 = vrot.slane %v1546, 4
      %v1549 = vor.u32 %v1548, %v1544
      %v1550 = vrot.slane %v1549, 4
      %v1552 = vshll.u32 %v1260, 16
      %v1554 = vrot.slane %v1552, 5
      %v1555 = vsel %vm1267, %v1550, %v1554
      %v1557 = vshrl.u32 %v1241, 16
      %v1559 = vrot.slane %v1557, 4
      %v1560 = vshll.u32 %v1241, 16
      %v1562 = vrot.slane %v1560, 5
      %v1563 = vor.u32 %v1559, %v1562
      %v1564 = vrot.slane %v1563, 4
      %v1566 = vshll.u32 %v1242, 16
      %v1568 = vrot.slane %v1566, 5
      %v1569 = vsel %vm1267, %v1564, %v1568
      %v1570 = vshrl.u32 %v1242, 16
      %v1572 = vrot.slane %v1570, 4
      %v1573 = vor.u32 %v1572, %v1568
      %v1574 = vrot.slane %v1573, 4
      %v1576 = vshll.u32 %v1261, 16
      %v1578 = vrot.slane %v1576, 5
      %v1579 = vsel %vm1267, %v1574, %v1578
      %v1581 = vshrl.u32 %v1243, 16
      %v1583 = vrot.slane %v1581, 4
      %v1584 = vshll.u32 %v1243, 16
      %v1586 = vrot.slane %v1584, 5
      %v1587 = vor.u32 %v1583, %v1586
      %v1588 = vrot.slane %v1587, 4
      %v1590 = vshll.u32 %v1244, 16
      %v1592 = vrot.slane %v1590, 5
      %v1593 = vsel %vm1267, %v1588, %v1592
      %v1594 = vshrl.u32 %v1244, 16
      %v1596 = vrot.slane %v1594, 4
      %v1597 = vor.u32 %v1596, %v1592
      %v1598 = vrot.slane %v1597, 4
      %v1600 = vshll.u32 %v1262, 16
      %v1602 = vrot.slane %v1600, 5
      %v1603 = vsel %vm1267, %v1598, %v1602
      %v1605 = vshrl.u32 %v1245, 16
      %v1607 = vrot.slane %v1605, 4
      %v1608 = vshll.u32 %v1245, 16
      %v1610 = vrot.slane %v1608, 5
      %v1611 = vor.u32 %v1607, %v1610
      %v1612 = vrot.slane %v1611, 4
      %v1614 = vshll.u32 %v1246, 16
      %v1616 = vrot.slane %v1614, 5
      %v1617 = vsel %vm1267, %v1612, %v1616
      %v1618 = vshrl.u32 %v1246, 16
      %v1620 = vrot.slane %v1618, 4
      %v1621 = vor.u32 %v1620, %v1616
      %v1622 = vrot.slane %v1621, 4
      %v1624 = vshll.u32 %v1263, 16
      %v1626 = vrot.slane %v1624, 5
      %v1627 = vsel %vm1267, %v1622, %v1626
      %v1629 = vshrl.u32 %v1247, 16
      %v1631 = vrot.slane %v1629, 4
      %v1632 = vshll.u32 %v1247, 16
      %v1634 = vrot.slane %v1632, 5
      %v1635 = vor.u32 %v1631, %v1634
      %v1636 = vrot.slane %v1635, 4
      %v1638 = vshll.u32 %v1248, 16
      %v1640 = vrot.slane %v1638, 5
      %v1641 = vsel %vm1267, %v1636, %v1640
      %v1642 = vshrl.u32 %v1248, 16
      %v1644 = vrot.slane %v1642, 4
      %v1645 = vor.u32 %v1644, %v1640
      %v1646 = vrot.slane %v1645, 4
      %v1648 = vshll.u32 %v1264, 16
      %v1650 = vrot.slane %v1648, 5
      %v1651 = vsel %vm1267, %v1646, %v1650
      %v1652 = vld [vmem:[#allocation2] sm:$0xe]
      %v1653 = vld [vmem:[#allocation2 + $0xc] sm:$0xe]
      %v1654 = vld [vmem:[#allocation2 + $0x18] sm:$0xe]
      %v1655 = vld [vmem:[#allocation2 + $0x24] sm:$0xe]
      %v1656 = vld [vmem:[#allocation2 + $0x30] sm:$0xe]
      %v1657 = vld [vmem:[#allocation2 + $0x3c] sm:$0xe]
      %v1658 = vld [vmem:[#allocation2 + $0x48] sm:$0xe]
      %v1659 = vld [vmem:[#allocation2 + $0x54] sm:$0xe]
      %v1660 = vld [vmem:[#allocation2 + $0x60] sm:$0xe]
      %v1661 = vld [vmem:[#allocation2 + $0x6c] sm:$0xe]
      %v1662 = vld [vmem:[#allocation2 + $0x78] sm:$0xe]
      %v1663 = vld [vmem:[#allocation2 + $0x84] sm:$0xe]
      %v1664 = vld [vmem:[#allocation2 + $0x90] sm:$0xe]
      %v1665 = vld [vmem:[#allocation2 + $0x9c] sm:$0xe]
      %v1666 = vld [vmem:[#allocation2 + $0xa8] sm:$0xe]
      %v1667 = vld [vmem:[#allocation2 + $0xb4] sm:$0xe]
      %vm1716 = vcmask 1042432
      %vm1717 = vcmask 1046532
      %vm1718 = vmor %vm1716, %vm1717
      %v1719 = vrot.slane %v1652, 5
      %v1720 = vrot.slane %v1719, 4
      %v1721 = vrot.slane %v1218, 5
      %v1722 = vsel %vm1718, %v1720, %v1721
      %v1723 = vrot.slane %v1721, 4
      %v1724 = vrot.slane %v1249, 5
      %v1725 = vsel %vm1718, %v1723, %v1724
      %v1726 = vrot.slane %v1653, 5
      %v1727 = vrot.slane %v1726, 4
      %v1728 = vrot.slane %v1220, 5
      %v1729 = vsel %vm1718, %v1727, %v1728
      %v1730 = vrot.slane %v1728, 4
      %v1731 = vrot.slane %v1250, 5
      %v1732 = vsel %vm1718, %v1730, %v1731
      %v1733 = vrot.slane %v1654, 5
      %v1734 = vrot.slane %v1733, 4
      %v1735 = vrot.slane %v1222, 5
      %v1736 = vsel %vm1718, %v1734, %v1735
      %v1737 = vrot.slane %v1735, 4
      %v1738 = vrot.slane %v1251, 5
      %v1739 = vsel %vm1718, %v1737, %v1738
      %v1740 = vrot.slane %v1655, 5
      %v1741 = vrot.slane %v1740, 4
      %v1742 = vrot.slane %v1224, 5
      %v1743 = vsel %vm1718, %v1741, %v1742
      %v1744 = vrot.slane %v1742, 4
      %v1745 = vrot.slane %v1252, 5
      %v1746 = vsel %vm1718, %v1744, %v1745
      %v1747 = vrot.slane %v1656, 5
      %v1748 = vrot.slane %v1747, 4
      %v1749 = vrot.slane %v1226, 5
      %v1750 = vsel %vm1718, %v1748, %v1749
      %v1751 = vrot.slane %v1749, 4
      %v1752 = vrot.slane %v1253, 5
      %v1753 = vsel %vm1718, %v1751, %v1752
      %v1754 = vrot.slane %v1657, 5
      %v1755 = vrot.slane %v1754, 4
      %v1756 = vrot.slane %v1228, 5
      %v1757 = vsel %vm1718, %v1755, %v1756
      %v1758 = vrot.slane %v1756, 4
      %v1759 = vrot.slane %v1254, 5
      %v1760 = vsel %vm1718, %v1758, %v1759
      %v1761 = vrot.slane %v1658, 5
      %v1762 = vrot.slane %v1761, 4
      %v1763 = vrot.slane %v1230, 5
      %v1764 = vsel %vm1718, %v1762, %v1763
      %v1765 = vrot.slane %v1763, 4
      %v1766 = vrot.slane %v1255, 5
      %v1767 = vsel %vm1718, %v1765, %v1766
      %v1768 = vrot.slane %v1659, 5
      %v1769 = vrot.slane %v1768, 4
      %v1770 = vrot.slane %v1232, 5
      %v1771 = vsel %vm1718, %v1769, %v1770
      %v1772 = vrot.slane %v1770, 4
      %v1773 = vrot.slane %v1256, 5
      %v1774 = vsel %vm1718, %v1772, %v1773
      %v1775 = vrot.slane %v1660, 5
      %v1776 = vrot.slane %v1775, 4
      %v1777 = vrot.slane %v1234, 5
      %v1778 = vsel %vm1718, %v1776, %v1777
      %v1779 = vrot.slane %v1777, 4
      %v1780 = vrot.slane %v1257, 5
      %v1781 = vsel %vm1718, %v1779, %v1780
      %v1782 = vrot.slane %v1661, 5
      %v1783 = vrot.slane %v1782, 4
      %v1784 = vrot.slane %v1236, 5
      %v1785 = vsel %vm1718, %v1783, %v1784
      %v1786 = vrot.slane %v1784, 4
      %v1787 = vrot.slane %v1258, 5
      %v1788 = vsel %vm1718, %v1786, %v1787
      %v1789 = vrot.slane %v1662, 5
      %v1790 = vrot.slane %v1789, 4
      %v1791 = vrot.slane %v1238, 5
      %v1792 = vsel %vm1718, %v1790, %v1791
      %v1793 = vrot.slane %v1791, 4
      %v1794 = vrot.slane %v1259, 5
      %v1795 = vsel %vm1718, %v1793, %v1794
      %v1796 = vrot.slane %v1663, 5
      %v1797 = vrot.slane %v1796, 4
      %v1798 = vrot.slane %v1240, 5
      %v1799 = vsel %vm1718, %v1797, %v1798
      %v1800 = vrot.slane %v1798, 4
      %v1801 = vrot.slane %v1260, 5
      %v1802 = vsel %vm1718, %v1800, %v1801
      %v1803 = vrot.slane %v1664, 5
      %v1804 = vrot.slane %v1803, 4
      %v1805 = vrot.slane %v1242, 5
      %v1806 = vsel %vm1718, %v1804, %v1805
      %v1807 = vrot.slane %v1805, 4
      %v1808 = vrot.slane %v1261, 5
      %v1809 = vsel %vm1718, %v1807, %v1808
      %v1810 = vrot.slane %v1665, 5
      %v1811 = vrot.slane %v1810, 4
      %v1812 = vrot.slane %v1244, 5
      %v1813 = vsel %vm1718, %v1811, %v1812
      %v1814 = vrot.slane %v1812, 4
      %v1815 = vrot.slane %v1262, 5
      %v1816 = vsel %vm1718, %v1814, %v1815
      %v1817 = vrot.slane %v1666, 5
      %v1818 = vrot.slane %v1817, 4
      %v1819 = vrot.slane %v1246, 5
      %v1820 = vsel %vm1718, %v1818, %v1819
      %v1821 = vrot.slane %v1819, 4
      %v1822 = vrot.slane %v1263, 5
      %v1823 = vsel %vm1718, %v1821, %v1822
      %v1824 = vrot.slane %v1667, 5
      %v1825 = vrot.slane %v1824, 4
      %v1826 = vrot.slane %v1248, 5
      %v1827 = vsel %vm1718, %v1825, %v1826
      %v1828 = vrot.slane %v1826, 4
      %v1829 = vrot.slane %v1264, 5
      %v1830 = vsel %vm1718, %v1828, %v1829
      %v1847 = vunpack.c.l.b16 %v1217
      %v1848 = vunpack.c.l.b16 %v1218
      %v1849 = vunpack.c.l.b16 %v1219
      %v1850 = vunpack.c.l.b16 %v1220
      %v1851 = vunpack.c.l.b16 %v1221
      %v1852 = vunpack.c.l.b16 %v1222
      %v1853 = vunpack.c.l.b16 %v1223
      %v1854 = vunpack.c.l.b16 %v1224
      %v1855 = vunpack.c.l.b16 %v1225
      %v1856 = vunpack.c.l.b16 %v1226
      %v1857 = vunpack.c.l.b16 %v1227
      %v1858 = vunpack.c.l.b16 %v1228
      %v1859 = vunpack.c.l.b16 %v1229
      %v1860 = vunpack.c.l.b16 %v1230
      %v1861 = vunpack.c.l.b16 %v1231
      %v1862 = vunpack.c.l.b16 %v1232
      %v1863 = vunpack.c.l.b16 %v1233
      %v1864 = vunpack.c.l.b16 %v1234
      %v1865 = vunpack.c.l.b16 %v1235
      %v1866 = vunpack.c.l.b16 %v1236
      %v1867 = vunpack.c.l.b16 %v1237
      %v1868 = vunpack.c.l.b16 %v1238
      %v1869 = vunpack.c.l.b16 %v1239
      %v1870 = vunpack.c.l.b16 %v1240
      %v1871 = vunpack.c.l.b16 %v1241
      %v1872 = vunpack.c.l.b16 %v1242
      %v1873 = vunpack.c.l.b16 %v1243
      %v1874 = vunpack.c.l.b16 %v1244
      %v1875 = vunpack.c.l.b16 %v1245
      %v1876 = vunpack.c.l.b16 %v1246
      %v1877 = vunpack.c.l.b16 %v1247
      %v1878 = vunpack.c.l.b16 %v1248
      %v1879 = vpack.c.b16 %v1848, %v1847
      %v1880 = vpack.c.b16 %v1850, %v1849
      %v1881 = vpack.c.b16 %v1852, %v1851
      %v1882 = vpack.c.b16 %v1854, %v1853
      %v1883 = vpack.c.b16 %v1856, %v1855
      %v1884 = vpack.c.b16 %v1858, %v1857
      %v1885 = vpack.c.b16 %v1860, %v1859
      %v1886 = vpack.c.b16 %v1862, %v1861
      %v1887 = vpack.c.b16 %v1864, %v1863
      %v1888 = vpack.c.b16 %v1866, %v1865
      %v1889 = vpack.c.b16 %v1868, %v1867
      %v1890 = vpack.c.b16 %v1870, %v1869
      %v1891 = vpack.c.b16 %v1872, %v1871
      %v1892 = vpack.c.b16 %v1874, %v1873
      %v1893 = vpack.c.b16 %v1876, %v1875
      %v1894 = vpack.c.b16 %v1878, %v1877
      %v1911 = vunpack.c.l.b16 %v1281
      %v1912 = vunpack.c.l.b16 %v1291
      %v1913 = vunpack.c.l.b16 %v1305
      %v1914 = vunpack.c.l.b16 %v1315
      %v1915 = vunpack.c.l.b16 %v1329
      %v1916 = vunpack.c.l.b16 %v1339
      %v1917 = vunpack.c.l.b16 %v1353
      %v1918 = vunpack.c.l.b16 %v1363
      %v1919 = vunpack.c.l.b16 %v1377
      %v1920 = vunpack.c.l.b16 %v1387
      %v1921 = vunpack.c.l.b16 %v1401
      %v1922 = vunpack.c.l.b16 %v1411
      %v1923 = vunpack.c.l.b16 %v1425
      %v1924 = vunpack.c.l.b16 %v1435
      %v1925 = vunpack.c.l.b16 %v1449
      %v1926 = vunpack.c.l.b16 %v1459
      %v1927 = vunpack.c.l.b16 %v1473
      %v1928 = vunpack.c.l.b16 %v1483
      %v1929 = vunpack.c.l.b16 %v1497
      %v1930 = vunpack.c.l.b16 %v1507
      %v1931 = vunpack.c.l.b16 %v1521
      %v1932 = vunpack.c.l.b16 %v1531
      %v1933 = vunpack.c.l.b16 %v1545
      %v1934 = vunpack.c.l.b16 %v1555
      %v1935 = vunpack.c.l.b16 %v1569
      %v1936 = vunpack.c.l.b16 %v1579
      %v1937 = vunpack.c.l.b16 %v1593
      %v1938 = vunpack.c.l.b16 %v1603
      %v1939 = vunpack.c.l.b16 %v1617
      %v1940 = vunpack.c.l.b16 %v1627
      %v1941 = vunpack.c.l.b16 %v1641
      %v1942 = vunpack.c.l.b16 %v1651
      %v1943 = vpack.c.b16 %v1912, %v1911
      %v1944 = vpack.c.b16 %v1914, %v1913
      %v1945 = vpack.c.b16 %v1916, %v1915
      %v1946 = vpack.c.b16 %v1918, %v1917
      %v1947 = vpack.c.b16 %v1920, %v1919
      %v1948 = vpack.c.b16 %v1922, %v1921
      %v1949 = vpack.c.b16 %v1924, %v1923
      %v1950 = vpack.c.b16 %v1926, %v1925
      %v1951 = vpack.c.b16 %v1928, %v1927
      %v1952 = vpack.c.b16 %v1930, %v1929
      %v1953 = vpack.c.b16 %v1932, %v1931
      %v1954 = vpack.c.b16 %v1934, %v1933
      %v1955 = vpack.c.b16 %v1936, %v1935
      %v1956 = vpack.c.b16 %v1938, %v1937
      %v1957 = vpack.c.b16 %v1940, %v1939
      %v1958 = vpack.c.b16 %v1942, %v1941
      %v1975 = vunpack.c.l.b16 %v1722
      %v1976 = vunpack.c.l.b16 %v1725
      %v1977 = vunpack.c.l.b16 %v1729
      %v1978 = vunpack.c.l.b16 %v1732
      %v1979 = vunpack.c.l.b16 %v1736
      %v1980 = vunpack.c.l.b16 %v1739
      %v1981 = vunpack.c.l.b16 %v1743
      %v1982 = vunpack.c.l.b16 %v1746
      %v1983 = vunpack.c.l.b16 %v1750
      %v1984 = vunpack.c.l.b16 %v1753
      %v1985 = vunpack.c.l.b16 %v1757
      %v1986 = vunpack.c.l.b16 %v1760
      %v1987 = vunpack.c.l.b16 %v1764
      %v1988 = vunpack.c.l.b16 %v1767
      %v1989 = vunpack.c.l.b16 %v1771
      %v1990 = vunpack.c.l.b16 %v1774
      %v1991 = vunpack.c.l.b16 %v1778
      %v1992 = vunpack.c.l.b16 %v1781
      %v1993 = vunpack.c.l.b16 %v1785
      %v1994 = vunpack.c.l.b16 %v1788
      %v1995 = vunpack.c.l.b16 %v1792
      %v1996 = vunpack.c.l.b16 %v1795
      %v1997 = vunpack.c.l.b16 %v1799
      %v1998 = vunpack.c.l.b16 %v1802
      %v1999 = vunpack.c.l.b16 %v1806
      %v2000 = vunpack.c.l.b16 %v1809
      %v2001 = vunpack.c.l.b16 %v1813
      %v2002 = vunpack.c.l.b16 %v1816
      %v2003 = vunpack.c.l.b16 %v1820
      %v2004 = vunpack.c.l.b16 %v1823
      %v2005 = vunpack.c.l.b16 %v1827
      %v2006 = vunpack.c.l.b16 %v1830
      %v2007 = vpack.c.b16 %v1976, %v1975
      %v2008 = vpack.c.b16 %v1978, %v1977
      %v2009 = vpack.c.b16 %v1980, %v1979
      %v2010 = vpack.c.b16 %v1982, %v1981
      %v2011 = vpack.c.b16 %v1984, %v1983
      %v2012 = vpack.c.b16 %v1986, %v1985
      %v2013 = vpack.c.b16 %v1988, %v1987
      %v2014 = vpack.c.b16 %v1990, %v1989
      %v2015 = vpack.c.b16 %v1992, %v1991
      %v2016 = vpack.c.b16 %v1994, %v1993
      %v2017 = vpack.c.b16 %v1996, %v1995
      %v2018 = vpack.c.b16 %v1998, %v1997
      %v2019 = vpack.c.b16 %v2000, %v1999
      %v2020 = vpack.c.b16 %v2002, %v2001
      %v2021 = vpack.c.b16 %v2004, %v2003
      %v2022 = vpack.c.b16 %v2006, %v2005
      %v2039 = vld [vmem:[%s3] sm:$0xf]
      %v2040 = vld [vmem:[%s3 + $0x4] sm:$0xf]
      %v2041 = vld [vmem:[%s3 + $0x8] sm:$0xf]
      %v2042 = vld [vmem:[%s3 + $0xc] sm:$0xf]
      %v2043 = vld [vmem:[%s3 + $0x10] sm:$0xf]
      %v2044 = vld [vmem:[%s3 + $0x14] sm:$0xf]
      %v2045 = vld [vmem:[%s3 + $0x18] sm:$0xf]
      %v2046 = vld [vmem:[%s3 + $0x1c] sm:$0xf]
      %v2047 = vld [vmem:[%s3 + $0x20] sm:$0xf]
      %v2048 = vld [vmem:[%s3 + $0x24] sm:$0xf]
      %v2049 = vld [vmem:[%s3 + $0x28] sm:$0xf]
      %v2050 = vld [vmem:[%s3 + $0x2c] sm:$0xf]
      %v2051 = vld [vmem:[%s3 + $0x30] sm:$0xf]
      %v2052 = vld [vmem:[%s3 + $0x34] sm:$0xf]
      %v2053 = vld [vmem:[%s3 + $0x38] sm:$0xf]
      %v2054 = vld [vmem:[%s3 + $0x3c] sm:$0xf]
      %v2055 = vld [vmem:[%s3 + $0x40] sm:$0xf]
      %v2056 = vld [vmem:[%s3 + $0x44] sm:$0xf]
      %v2057 = vld [vmem:[%s3 + $0x48] sm:$0xf]
      %v2058 = vld [vmem:[%s3 + $0x4c] sm:$0xf]
      %v2059 = vld [vmem:[%s3 + $0x50] sm:$0xf]
      %v2060 = vld [vmem:[%s3 + $0x54] sm:$0xf]
      %v2061 = vld [vmem:[%s3 + $0x58] sm:$0xf]
      %v2062 = vld [vmem:[%s3 + $0x5c] sm:$0xf]
      %v2063 = vld [vmem:[%s3 + $0x60] sm:$0xf]
      %v2064 = vld [vmem:[%s3 + $0x64] sm:$0xf]
      %v2065 = vld [vmem:[%s3 + $0x68] sm:$0xf]
      %v2066 = vld [vmem:[%s3 + $0x6c] sm:$0xf]
      %v2067 = vld [vmem:[%s3 + $0x70] sm:$0xf]
      %v2068 = vld [vmem:[%s3 + $0x74] sm:$0xf]
      %v2069 = vld [vmem:[%s3 + $0x78] sm:$0xf]
      %v2070 = vld [vmem:[%s3 + $0x7c] sm:$0xf]
      %v2071 = vld [vmem:[%s3 + $0x80] sm:$0xf]
      %v2072 = vld [vmem:[%s3 + $0x84] sm:$0xf]
      %v2073 = vld [vmem:[%s3 + $0x88] sm:$0xf]
      %v2074 = vld [vmem:[%s3 + $0x8c] sm:$0xf]
      %v2075 = vld [vmem:[%s3 + $0x90] sm:$0xf]
      %v2076 = vld [vmem:[%s3 + $0x94] sm:$0xf]
      %v2077 = vld [vmem:[%s3 + $0x98] sm:$0xf]
      %v2078 = vld [vmem:[%s3 + $0x9c] sm:$0xf]
      %v2079 = vld [vmem:[%s3 + $0xa0] sm:$0xf]
      %v2080 = vld [vmem:[%s3 + $0xa4] sm:$0xf]
      %v2081 = vld [vmem:[%s3 + $0xa8] sm:$0xf]
      %v2082 = vld [vmem:[%s3 + $0xac] sm:$0xf]
      %v2083 = vld [vmem:[%s3 + $0xb0] sm:$0xf]
      %v2084 = vld [vmem:[%s3 + $0xb4] sm:$0xf]
      %v2085 = vld [vmem:[%s3 + $0xb8] sm:$0xf]
      %v2086 = vld [vmem:[%s3 + $0xbc] sm:$0xf]
      %v2087 = vld [vmem:[%s979] sm:$0xf]
      %v2088 = vld [vmem:[%s979 + $0x4] sm:$0xf]
      %v2089 = vld [vmem:[%s979 + $0xc] sm:$0xf]
      %v2090 = vld [vmem:[%s979 + $0x10] sm:$0xf]
      %v2091 = vld [vmem:[%s979 + $0x18] sm:$0xf]
      %v2092 = vld [vmem:[%s979 + $0x1c] sm:$0xf]
      %v2093 = vld [vmem:[%s979 + $0x24] sm:$0xf]
      %v2094 = vld [vmem:[%s979 + $0x28] sm:$0xf]
      %v2095 = vld [vmem:[%s979 + $0x30] sm:$0xf]
      %v2096 = vld [vmem:[%s979 + $0x34] sm:$0xf]
      %v2097 = vld [vmem:[%s979 + $0x3c] sm:$0xf]
      %v2098 = vld [vmem:[%s979 + $0x40] sm:$0xf]
      %v2099 = vld [vmem:[%s979 + $0x48] sm:$0xf]
      %v2100 = vld [vmem:[%s979 + $0x4c] sm:$0xf]
      %v2101 = vld [vmem:[%s979 + $0x54] sm:$0xf]
      %v2102 = vld [vmem:[%s979 + $0x58] sm:$0xf]
      %v2103 = vld [vmem:[%s979 + $0x60] sm:$0xf]
      %v2104 = vld [vmem:[%s979 + $0x64] sm:$0xf]
      %v2105 = vld [vmem:[%s979 + $0x6c] sm:$0xf]
      %v2106 = vld [vmem:[%s979 + $0x70] sm:$0xf]
      %v2107 = vld [vmem:[%s979 + $0x78] sm:$0xf]
      %v2108 = vld [vmem:[%s979 + $0x7c] sm:$0xf]
      %v2109 = vld [vmem:[%s979 + $0x84] sm:$0xf]
      %v2110 = vld [vmem:[%s979 + $0x88] sm:$0xf]
      %v2111 = vld [vmem:[%s979 + $0x90] sm:$0xf]
      %v2112 = vld [vmem:[%s979 + $0x94] sm:$0xf]
      %v2113 = vld [vmem:[%s979 + $0x9c] sm:$0xf]
      %v2114 = vld [vmem:[%s979 + $0xa0] sm:$0xf]
      %v2115 = vld [vmem:[%s979 + $0xa8] sm:$0xf]
      %v2116 = vld [vmem:[%s979 + $0xac] sm:$0xf]
      %v2117 = vld [vmem:[%s979 + $0xb4] sm:$0xf]
      %v2118 = vld [vmem:[%s979 + $0xb8] sm:$0xf]
      %v2119 = vld [vmem:[%s979 + $0x8] sm:$0x1]
      %v2120 = vld [vmem:[%s979 + $0x14] sm:$0x1]
      %v2121 = vld [vmem:[%s979 + $0x20] sm:$0x1]
      %v2122 = vld [vmem:[%s979 + $0x2c] sm:$0x1]
      %v2123 = vld [vmem:[%s979 + $0x38] sm:$0x1]
      %v2124 = vld [vmem:[%s979 + $0x44] sm:$0x1]
      %v2125 = vld [vmem:[%s979 + $0x50] sm:$0x1]
      %v2126 = vld [vmem:[%s979 + $0x5c] sm:$0x1]
      %v2127 = vld [vmem:[%s979 + $0x68] sm:$0x1]
      %v2128 = vld [vmem:[%s979 + $0x74] sm:$0x1]
      %v2129 = vld [vmem:[%s979 + $0x80] sm:$0x1]
      %v2130 = vld [vmem:[%s979 + $0x8c] sm:$0x1]
      %v2131 = vld [vmem:[%s979 + $0x98] sm:$0x1]
      %v2132 = vld [vmem:[%s979 + $0xa4] sm:$0x1]
      %v2133 = vld [vmem:[%s979 + $0xb0] sm:$0x1]
      %v2134 = vld [vmem:[%s979 + $0xbc] sm:$0x1]
      %v2136 = vshrl.u32 %v2087, 16
      %v2138 = vrot.slane %v2136, 4
      %v2139 = vshll.u32 %v2087, 16
      %v2141 = vrot.slane %v2139, 5
      %v2142 = vor.u32 %v2138, %v2141
      %v2143 = vrot.slane %v2142, 4
      %v2145 = vshll.u32 %v2088, 16
      %v2147 = vrot.slane %v2145, 5
      %v2148 = vsel %vm1267, %v2143, %v2147
      %v2149 = vshrl.u32 %v2088, 16
      %v2151 = vrot.slane %v2149, 4
      %v2152 = vor.u32 %v2151, %v2147
      %v2153 = vrot.slane %v2152, 4
      %v2155 = vshll.u32 %v2119, 16
      %v2157 = vrot.slane %v2155, 5
      %v2158 = vsel %vm1267, %v2153, %v2157
      %v2160 = vshrl.u32 %v2089, 16
      %v2162 = vrot.slane %v2160, 4
      %v2163 = vshll.u32 %v2089, 16
      %v2165 = vrot.slane %v2163, 5
      %v2166 = vor.u32 %v2162, %v2165
      %v2167 = vrot.slane %v2166, 4
      %v2169 = vshll.u32 %v2090, 16
      %v2171 = vrot.slane %v2169, 5
      %v2172 = vsel %vm1267, %v2167, %v2171
      %v2173 = vshrl.u32 %v2090, 16
      %v2175 = vrot.slane %v2173, 4
      %v2176 = vor.u32 %v2175, %v2171
      %v2177 = vrot.slane %v2176, 4
      %v2179 = vshll.u32 %v2120, 16
      %v2181 = vrot.slane %v2179, 5
      %v2182 = vsel %vm1267, %v2177, %v2181
      %v2184 = vshrl.u32 %v2091, 16
      %v2186 = vrot.slane %v2184, 4
      %v2187 = vshll.u32 %v2091, 16
      %v2189 = vrot.slane %v2187, 5
      %v2190 = vor.u32 %v2186, %v2189
      %v2191 = vrot.slane %v2190, 4
      %v2193 = vshll.u32 %v2092, 16
      %v2195 = vrot.slane %v2193, 5
      %v2196 = vsel %vm1267, %v2191, %v2195
      %v2197 = vshrl.u32 %v2092, 16
      %v2199 = vrot.slane %v2197, 4
      %v2200 = vor.u32 %v2199, %v2195
      %v2201 = vrot.slane %v2200, 4
      %v2203 = vshll.u32 %v2121, 16
      %v2205 = vrot.slane %v2203, 5
      %v2206 = vsel %vm1267, %v2201, %v2205
      %v2208 = vshrl.u32 %v2093, 16
      %v2210 = vrot.slane %v2208, 4
      %v2211 = vshll.u32 %v2093, 16
      %v2213 = vrot.slane %v2211, 5
      %v2214 = vor.u32 %v2210, %v2213
      %v2215 = vrot.slane %v2214, 4
      %v2217 = vshll.u32 %v2094, 16
      %v2219 = vrot.slane %v2217, 5
      %v2220 = vsel %vm1267, %v2215, %v2219
      %v2221 = vshrl.u32 %v2094, 16
      %v2223 = vrot.slane %v2221, 4
      %v2224 = vor.u32 %v2223, %v2219
      %v2225 = vrot.slane %v2224, 4
      %v2227 = vshll.u32 %v2122, 16
      %v2229 = vrot.slane %v2227, 5
      %v2230 = vsel %vm1267, %v2225, %v2229
      %v2232 = vshrl.u32 %v2095, 16
      %v2234 = vrot.slane %v2232, 4
      %v2235 = vshll.u32 %v2095, 16
      %v2237 = vrot.slane %v2235, 5
      %v2238 = vor.u32 %v2234, %v2237
      %v2239 = vrot.slane %v2238, 4
      %v2241 = vshll.u32 %v2096, 16
      %v2243 = vrot.slane %v2241, 5
      %v2244 = vsel %vm1267, %v2239, %v2243
      %v2245 = vshrl.u32 %v2096, 16
      %v2247 = vrot.slane %v2245, 4
      %v2248 = vor.u32 %v2247, %v2243
      %v2249 = vrot.slane %v2248, 4
      %v2251 = vshll.u32 %v2123, 16
      %v2253 = vrot.slane %v2251, 5
      %v2254 = vsel %vm1267, %v2249, %v2253
      %v2256 = vshrl.u32 %v2097, 16
      %v2258 = vrot.slane %v2256, 4
      %v2259 = vshll.u32 %v2097, 16
      %v2261 = vrot.slane %v2259, 5
      %v2262 = vor.u32 %v2258, %v2261
      %v2263 = vrot.slane %v2262, 4
      %v2265 = vshll.u32 %v2098, 16
      %v2267 = vrot.slane %v2265, 5
      %v2268 = vsel %vm1267, %v2263, %v2267
      %v2269 = vshrl.u32 %v2098, 16
      %v2271 = vrot.slane %v2269, 4
      %v2272 = vor.u32 %v2271, %v2267
      %v2273 = vrot.slane %v2272, 4
      %v2275 = vshll.u32 %v2124, 16
      %v2277 = vrot.slane %v2275, 5
      %v2278 = vsel %vm1267, %v2273, %v2277
      %v2280 = vshrl.u32 %v2099, 16
      %v2282 = vrot.slane %v2280, 4
      %v2283 = vshll.u32 %v2099, 16
      %v2285 = vrot.slane %v2283, 5
      %v2286 = vor.u32 %v2282, %v2285
      %v2287 = vrot.slane %v2286, 4
      %v2289 = vshll.u32 %v2100, 16
      %v2291 = vrot.slane %v2289, 5
      %v2292 = vsel %vm1267, %v2287, %v2291
      %v2293 = vshrl.u32 %v2100, 16
      %v2295 = vrot.slane %v2293, 4
      %v2296 = vor.u32 %v2295, %v2291
      %v2297 = vrot.slane %v2296, 4
      %v2299 = vshll.u32 %v2125, 16
      %v2301 = vrot.slane %v2299, 5
      %v2302 = vsel %vm1267, %v2297, %v2301
      %v2304 = vshrl.u32 %v2101, 16
      %v2306 = vrot.slane %v2304, 4
      %v2307 = vshll.u32 %v2101, 16
      %v2309 = vrot.slane %v2307, 5
      %v2310 = vor.u32 %v2306, %v2309
      %v2311 = vrot.slane %v2310, 4
      %v2313 = vshll.u32 %v2102, 16
      %v2315 = vrot.slane %v2313, 5
      %v2316 = vsel %vm1267, %v2311, %v2315
      %v2317 = vshrl.u32 %v2102, 16
      %v2319 = vrot.slane %v2317, 4
      %v2320 = vor.u32 %v2319, %v2315
      %v2321 = vrot.slane %v2320, 4
      %v2323 = vshll.u32 %v2126, 16
      %v2325 = vrot.slane %v2323, 5
      %v2326 = vsel %vm1267, %v2321, %v2325
      %v2328 = vshrl.u32 %v2103, 16
      %v2330 = vrot.slane %v2328, 4
      %v2331 = vshll.u32 %v2103, 16
      %v2333 = vrot.slane %v2331, 5
      %v2334 = vor.u32 %v2330, %v2333
      %v2335 = vrot.slane %v2334, 4
      %v2337 = vshll.u32 %v2104, 16
      %v2339 = vrot.slane %v2337, 5
      %v2340 = vsel %vm1267, %v2335, %v2339
      %v2341 = vshrl.u32 %v2104, 16
      %v2343 = vrot.slane %v2341, 4
      %v2344 = vor.u32 %v2343, %v2339
      %v2345 = vrot.slane %v2344, 4
      %v2347 = vshll.u32 %v2127, 16
      %v2349 = vrot.slane %v2347, 5
      %v2350 = vsel %vm1267, %v2345, %v2349
      %v2352 = vshrl.u32 %v2105, 16
      %v2354 = vrot.slane %v2352, 4
      %v2355 = vshll.u32 %v2105, 16
      %v2357 = vrot.slane %v2355, 5
      %v2358 = vor.u32 %v2354, %v2357
      %v2359 = vrot.slane %v2358, 4
      %v2361 = vshll.u32 %v2106, 16
      %v2363 = vrot.slane %v2361, 5
      %v2364 = vsel %vm1267, %v2359, %v2363
      %v2365 = vshrl.u32 %v2106, 16
      %v2367 = vrot.slane %v2365, 4
      %v2368 = vor.u32 %v2367, %v2363
      %v2369 = vrot.slane %v2368, 4
      %v2371 = vshll.u32 %v2128, 16
      %v2373 = vrot.slane %v2371, 5
      %v2374 = vsel %vm1267, %v2369, %v2373
      %v2376 = vshrl.u32 %v2107, 16
      %v2378 = vrot.slane %v2376, 4
      %v2379 = vshll.u32 %v2107, 16
      %v2381 = vrot.slane %v2379, 5
      %v2382 = vor.u32 %v2378, %v2381
      %v2383 = vrot.slane %v2382, 4
      %v2385 = vshll.u32 %v2108, 16
      %v2387 = vrot.slane %v2385, 5
      %v2388 = vsel %vm1267, %v2383, %v2387
      %v2389 = vshrl.u32 %v2108, 16
      %v2391 = vrot.slane %v2389, 4
      %v2392 = vor.u32 %v2391, %v2387
      %v2393 = vrot.slane %v2392, 4
      %v2395 = vshll.u32 %v2129, 16
      %v2397 = vrot.slane %v2395, 5
      %v2398 = vsel %vm1267, %v2393, %v2397
      %v2400 = vshrl.u32 %v2109, 16
      %v2402 = vrot.slane %v2400, 4
      %v2403 = vshll.u32 %v2109, 16
      %v2405 = vrot.slane %v2403, 5
      %v2406 = vor.u32 %v2402, %v2405
      %v2407 = vrot.slane %v2406, 4
      %v2409 = vshll.u32 %v2110, 16
      %v2411 = vrot.slane %v2409, 5
      %v2412 = vsel %vm1267, %v2407, %v2411
      %v2413 = vshrl.u32 %v2110, 16
      %v2415 = vrot.slane %v2413, 4
      %v2416 = vor.u32 %v2415, %v2411
      %v2417 = vrot.slane %v2416, 4
      %v2419 = vshll.u32 %v2130, 16
      %v2421 = vrot.slane %v2419, 5
      %v2422 = vsel %vm1267, %v2417, %v2421
      %v2424 = vshrl.u32 %v2111, 16
      %v2426 = vrot.slane %v2424, 4
      %v2427 = vshll.u32 %v2111, 16
      %v2429 = vrot.slane %v2427, 5
      %v2430 = vor.u32 %v2426, %v2429
      %v2431 = vrot.slane %v2430, 4
      %v2433 = vshll.u32 %v2112, 16
      %v2435 = vrot.slane %v2433, 5
      %v2436 = vsel %vm1267, %v2431, %v2435
      %v2437 = vshrl.u32 %v2112, 16
      %v2439 = vrot.slane %v2437, 4
      %v2440 = vor.u32 %v2439, %v2435
      %v2441 = vrot.slane %v2440, 4
      %v2443 = vshll.u32 %v2131, 16
      %v2445 = vrot.slane %v2443, 5
      %v2446 = vsel %vm1267, %v2441, %v2445
      %v2448 = vshrl.u32 %v2113, 16
      %v2450 = vrot.slane %v2448, 4
      %v2451 = vshll.u32 %v2113, 16
      %v2453 = vrot.slane %v2451, 5
      %v2454 = vor.u32 %v2450, %v2453
      %v2455 = vrot.slane %v2454, 4
      %v2457 = vshll.u32 %v2114, 16
      %v2459 = vrot.slane %v2457, 5
      %v2460 = vsel %vm1267, %v2455, %v2459
      %v2461 = vshrl.u32 %v2114, 16
      %v2463 = vrot.slane %v2461, 4
      %v2464 = vor.u32 %v2463, %v2459
      %v2465 = vrot.slane %v2464, 4
      %v2467 = vshll.u32 %v2132, 16
      %v2469 = vrot.slane %v2467, 5
      %v2470 = vsel %vm1267, %v2465, %v2469
      %v2472 = vshrl.u32 %v2115, 16
      %v2474 = vrot.slane %v2472, 4
      %v2475 = vshll.u32 %v2115, 16
      %v2477 = vrot.slane %v2475, 5
      %v2478 = vor.u32 %v2474, %v2477
      %v2479 = vrot.slane %v2478, 4
      %v2481 = vshll.u32 %v2116, 16
      %v2483 = vrot.slane %v2481, 5
      %v2484 = vsel %vm1267, %v2479, %v2483
      %v2485 = vshrl.u32 %v2116, 16
      %v2487 = vrot.slane %v2485, 4
      %v2488 = vor.u32 %v2487, %v2483
      %v2489 = vrot.slane %v2488, 4
      %v2491 = vshll.u32 %v2133, 16
      %v2493 = vrot.slane %v2491, 5
      %v2494 = vsel %vm1267, %v2489, %v2493
      %v2496 = vshrl.u32 %v2117, 16
      %v2498 = vrot.slane %v2496, 4
      %v2499 = vshll.u32 %v2117, 16
      %v2501 = vrot.slane %v2499, 5
      %v2502 = vor.u32 %v2498, %v2501
      %v2503 = vrot.slane %v2502, 4
      %v2505 = vshll.u32 %v2118, 16
      %v2507 = vrot.slane %v2505, 5
      %v2508 = vsel %vm1267, %v2503, %v2507
      %v2509 = vshrl.u32 %v2118, 16
      %v2511 = vrot.slane %v2509, 4
      %v2512 = vor.u32 %v2511, %v2507
      %v2513 = vrot.slane %v2512, 4
      %v2515 = vshll.u32 %v2134, 16
      %v2517 = vrot.slane %v2515, 5
      %v2518 = vsel %vm1267, %v2513, %v2517
      %v2519 = vld [vmem:[%s979] sm:$0xe]
      %v2520 = vld [vmem:[%s979 + $0xc] sm:$0xe]
      %v2521 = vld [vmem:[%s979 + $0x18] sm:$0xe]
      %v2522 = vld [vmem:[%s979 + $0x24] sm:$0xe]
      %v2523 = vld [vmem:[%s979 + $0x30] sm:$0xe]
      %v2524 = vld [vmem:[%s979 + $0x3c] sm:$0xe]
      %v2525 = vld [vmem:[%s979 + $0x48] sm:$0xe]
      %v2526 = vld [vmem:[%s979 + $0x54] sm:$0xe]
      %v2527 = vld [vmem:[%s979 + $0x60] sm:$0xe]
      %v2528 = vld [vmem:[%s979 + $0x6c] sm:$0xe]
      %v2529 = vld [vmem:[%s979 + $0x78] sm:$0xe]
      %v2530 = vld [vmem:[%s979 + $0x84] sm:$0xe]
      %v2531 = vld [vmem:[%s979 + $0x90] sm:$0xe]
      %v2532 = vld [vmem:[%s979 + $0x9c] sm:$0xe]
      %v2533 = vld [vmem:[%s979 + $0xa8] sm:$0xe]
      %v2534 = vld [vmem:[%s979 + $0xb4] sm:$0xe]
      %v2583 = vrot.slane %v2519, 5
      %v2584 = vrot.slane %v2583, 4
      %v2585 = vrot.slane %v2088, 5
      %v2586 = vsel %vm1718, %v2584, %v2585
      %v2587 = vrot.slane %v2585, 4
      %v2588 = vrot.slane %v2119, 5
      %v2589 = vsel %vm1718, %v2587, %v2588
      %v2590 = vrot.slane %v2520, 5
      %v2591 = vrot.slane %v2590, 4
      %v2592 = vrot.slane %v2090, 5
      %v2593 = vsel %vm1718, %v2591, %v2592
      %v2594 = vrot.slane %v2592, 4
      %v2595 = vrot.slane %v2120, 5
      %v2596 = vsel %vm1718, %v2594, %v2595
      %v2597 = vrot.slane %v2521, 5
      %v2598 = vrot.slane %v2597, 4
      %v2599 = vrot.slane %v2092, 5
      %v2600 = vsel %vm1718, %v2598, %v2599
      %v2601 = vrot.slane %v2599, 4
      %v2602 = vrot.slane %v2121, 5
      %v2603 = vsel %vm1718, %v2601, %v2602
      %v2604 = vrot.slane %v2522, 5
      %v2605 = vrot.slane %v2604, 4
      %v2606 = vrot.slane %v2094, 5
      %v2607 = vsel %vm1718, %v2605, %v2606
      %v2608 = vrot.slane %v2606, 4
      %v2609 = vrot.slane %v2122, 5
      %v2610 = vsel %vm1718, %v2608, %v2609
      %v2611 = vrot.slane %v2523, 5
      %v2612 = vrot.slane %v2611, 4
      %v2613 = vrot.slane %v2096, 5
      %v2614 = vsel %vm1718, %v2612, %v2613
      %v2615 = vrot.slane %v2613, 4
      %v2616 = vrot.slane %v2123, 5
      %v2617 = vsel %vm1718, %v2615, %v2616
      %v2618 = vrot.slane %v2524, 5
      %v2619 = vrot.slane %v2618, 4
      %v2620 = vrot.slane %v2098, 5
      %v2621 = vsel %vm1718, %v2619, %v2620
      %v2622 = vrot.slane %v2620, 4
      %v2623 = vrot.slane %v2124, 5
      %v2624 = vsel %vm1718, %v2622, %v2623
      %v2625 = vrot.slane %v2525, 5
      %v2626 = vrot.slane %v2625, 4
      %v2627 = vrot.slane %v2100, 5
      %v2628 = vsel %vm1718, %v2626, %v2627
      %v2629 = vrot.slane %v2627, 4
      %v2630 = vrot.slane %v2125, 5
      %v2631 = vsel %vm1718, %v2629, %v2630
      %v2632 = vrot.slane %v2526, 5
      %v2633 = vrot.slane %v2632, 4
      %v2634 = vrot.slane %v2102, 5
      %v2635 = vsel %vm1718, %v2633, %v2634
      %v2636 = vrot.slane %v2634, 4
      %v2637 = vrot.slane %v2126, 5
      %v2638 = vsel %vm1718, %v2636, %v2637
      %v2639 = vrot.slane %v2527, 5
      %v2640 = vrot.slane %v2639, 4
      %v2641 = vrot.slane %v2104, 5
      %v2642 = vsel %vm1718, %v2640, %v2641
      %v2643 = vrot.slane %v2641, 4
      %v2644 = vrot.slane %v2127, 5
      %v2645 = vsel %vm1718, %v2643, %v2644
      %v2646 = vrot.slane %v2528, 5
      %v2647 = vrot.slane %v2646, 4
      %v2648 = vrot.slane %v2106, 5
      %v2649 = vsel %vm1718, %v2647, %v2648
      %v2650 = vrot.slane %v2648, 4
      %v2651 = vrot.slane %v2128, 5
      %v2652 = vsel %vm1718, %v2650, %v2651
      %v2653 = vrot.slane %v2529, 5
      %v2654 = vrot.slane %v2653, 4
      %v2655 = vrot.slane %v2108, 5
      %v2656 = vsel %vm1718, %v2654, %v2655
      %v2657 = vrot.slane %v2655, 4
      %v2658 = vrot.slane %v2129, 5
      %v2659 = vsel %vm1718, %v2657, %v2658
      %v2660 = vrot.slane %v2530, 5
      %v2661 = vrot.slane %v2660, 4
      %v2662 = vrot.slane %v2110, 5
      %v2663 = vsel %vm1718, %v2661, %v2662
      %v2664 = vrot.slane %v2662, 4
      %v2665 = vrot.slane %v2130, 5
      %v2666 = vsel %vm1718, %v2664, %v2665
      %v2667 = vrot.slane %v2531, 5
      %v2668 = vrot.slane %v2667, 4
      %v2669 = vrot.slane %v2112, 5
      %v2670 = vsel %vm1718, %v2668, %v2669
      %v2671 = vrot.slane %v2669, 4
      %v2672 = vrot.slane %v2131, 5
      %v2673 = vsel %vm1718, %v2671, %v2672
      %v2674 = vrot.slane %v2532, 5
      %v2675 = vrot.slane %v2674, 4
      %v2676 = vrot.slane %v2114, 5
      %v2677 = vsel %vm1718, %v2675, %v2676
      %v2678 = vrot.slane %v2676, 4
      %v2679 = vrot.slane %v2132, 5
      %v2680 = vsel %vm1718, %v2678, %v2679
      %v2681 = vrot.slane %v2533, 5
      %v2682 = vrot.slane %v2681, 4
      %v2683 = vrot.slane %v2116, 5
      %v2684 = vsel %vm1718, %v2682, %v2683
      %v2685 = vrot.slane %v2683, 4
      %v2686 = vrot.slane %v2133, 5
      %v2687 = vsel %vm1718, %v2685, %v2686
      %v2688 = vrot.slane %v2534, 5
      %v2689 = vrot.slane %v2688, 4
      %v2690 = vrot.slane %v2118, 5
      %v2691 = vsel %vm1718, %v2689, %v2690
      %v2692 = vrot.slane %v2690, 4
      %v2693 = vrot.slane %v2134, 5
      %v2694 = vsel %vm1718, %v2692, %v2693
      %v2711 = vunpack.c.l.b16 %v2087
      %v2712 = vunpack.c.l.b16 %v2088
      %v2713 = vunpack.c.l.b16 %v2089
      %v2714 = vunpack.c.l.b16 %v2090
      %v2715 = vunpack.c.l.b16 %v2091
      %v2716 = vunpack.c.l.b16 %v2092
      %v2717 = vunpack.c.l.b16 %v2093
      %v2718 = vunpack.c.l.b16 %v2094
      %v2719 = vunpack.c.l.b16 %v2095
      %v2720 = vunpack.c.l.b16 %v2096
      %v2721 = vunpack.c.l.b16 %v2097
      %v2722 = vunpack.c.l.b16 %v2098
      %v2723 = vunpack.c.l.b16 %v2099
      %v2724 = vunpack.c.l.b16 %v2100
      %v2725 = vunpack.c.l.b16 %v2101
      %v2726 = vunpack.c.l.b16 %v2102
      %v2727 = vunpack.c.l.b16 %v2103
      %v2728 = vunpack.c.l.b16 %v2104
      %v2729 = vunpack.c.l.b16 %v2105
      %v2730 = vunpack.c.l.b16 %v2106
      %v2731 = vunpack.c.l.b16 %v2107
      %v2732 = vunpack.c.l.b16 %v2108
      %v2733 = vunpack.c.l.b16 %v2109
      %v2734 = vunpack.c.l.b16 %v2110
      %v2735 = vunpack.c.l.b16 %v2111
      %v2736 = vunpack.c.l.b16 %v2112
      %v2737 = vunpack.c.l.b16 %v2113
      %v2738 = vunpack.c.l.b16 %v2114
      %v2739 = vunpack.c.l.b16 %v2115
      %v2740 = vunpack.c.l.b16 %v2116
      %v2741 = vunpack.c.l.b16 %v2117
      %v2742 = vunpack.c.l.b16 %v2118
      %v2743 = vpack.c.b16 %v2712, %v2711
      %v2744 = vpack.c.b16 %v2714, %v2713
      %v2745 = vpack.c.b16 %v2716, %v2715
      %v2746 = vpack.c.b16 %v2718, %v2717
      %v2747 = vpack.c.b16 %v2720, %v2719
      %v2748 = vpack.c.b16 %v2722, %v2721
      %v2749 = vpack.c.b16 %v2724, %v2723
      %v2750 = vpack.c.b16 %v2726, %v2725
      %v2751 = vpack.c.b16 %v2728, %v2727
      %v2752 = vpack.c.b16 %v2730, %v2729
      %v2753 = vpack.c.b16 %v2732, %v2731
      %v2754 = vpack.c.b16 %v2734, %v2733
      %v2755 = vpack.c.b16 %v2736, %v2735
      %v2756 = vpack.c.b16 %v2738, %v2737
      %v2757 = vpack.c.b16 %v2740, %v2739
      %v2758 = vpack.c.b16 %v2742, %v2741
      %v2775 = vunpack.c.l.b16 %v2148
      %v2776 = vunpack.c.l.b16 %v2158
      %v2777 = vunpack.c.l.b16 %v2172
      %v2778 = vunpack.c.l.b16 %v2182
      %v2779 = vunpack.c.l.b16 %v2196
      %v2780 = vunpack.c.l.b16 %v2206
      %v2781 = vunpack.c.l.b16 %v2220
      %v2782 = vunpack.c.l.b16 %v2230
      %v2783 = vunpack.c.l.b16 %v2244
      %v2784 = vunpack.c.l.b16 %v2254
      %v2785 = vunpack.c.l.b16 %v2268
      %v2786 = vunpack.c.l.b16 %v2278
      %v2787 = vunpack.c.l.b16 %v2292
      %v2788 = vunpack.c.l.b16 %v2302
      %v2789 = vunpack.c.l.b16 %v2316
      %v2790 = vunpack.c.l.b16 %v2326
      %v2791 = vunpack.c.l.b16 %v2340
      %v2792 = vunpack.c.l.b16 %v2350
      %v2793 = vunpack.c.l.b16 %v2364
      %v2794 = vunpack.c.l.b16 %v2374
      %v2795 = vunpack.c.l.b16 %v2388
      %v2796 = vunpack.c.l.b16 %v2398
      %v2797 = vunpack.c.l.b16 %v2412
      %v2798 = vunpack.c.l.b16 %v2422
      %v2799 = vunpack.c.l.b16 %v2436
      %v2800 = vunpack.c.l.b16 %v2446
      %v2801 = vunpack.c.l.b16 %v2460
      %v2802 = vunpack.c.l.b16 %v2470
      %v2803 = vunpack.c.l.b16 %v2484
      %v2804 = vunpack.c.l.b16 %v2494
      %v2805 = vunpack.c.l.b16 %v2508
      %v2806 = vunpack.c.l.b16 %v2518
      %v2807 = vpack.c.b16 %v2776, %v2775
      %v2808 = vpack.c.b16 %v2778, %v2777
      %v2809 = vpack.c.b16 %v2780, %v2779
      %v2810 = vpack.c.b16 %v2782, %v2781
      %v2811 = vpack.c.b16 %v2784, %v2783
      %v2812 = vpack.c.b16 %v2786, %v2785
      %v2813 = vpack.c.b16 %v2788, %v2787
      %v2814 = vpack.c.b16 %v2790, %v2789
      %v2815 = vpack.c.b16 %v2792, %v2791
      %v2816 = vpack.c.b16 %v2794, %v2793
      %v2817 = vpack.c.b16 %v2796, %v2795
      %v2818 = vpack.c.b16 %v2798, %v2797
      %v2819 = vpack.c.b16 %v2800, %v2799
      %v2820 = vpack.c.b16 %v2802, %v2801
      %v2821 = vpack.c.b16 %v2804, %v2803
      %v2822 = vpack.c.b16 %v2806, %v2805
      %v2839 = vunpack.c.l.b16 %v2586
      %v2840 = vunpack.c.l.b16 %v2589
      %v2841 = vunpack.c.l.b16 %v2593
      %v2842 = vunpack.c.l.b16 %v2596
      %v2843 = vunpack.c.l.b16 %v2600
      %v2844 = vunpack.c.l.b16 %v2603
      %v2845 = vunpack.c.l.b16 %v2607
      %v2846 = vunpack.c.l.b16 %v2610
      %v2847 = vunpack.c.l.b16 %v2614
      %v2848 = vunpack.c.l.b16 %v2617
      %v2849 = vunpack.c.l.b16 %v2621
      %v2850 = vunpack.c.l.b16 %v2624
      %v2851 = vunpack.c.l.b16 %v2628
      %v2852 = vunpack.c.l.b16 %v2631
      %v2853 = vunpack.c.l.b16 %v2635
      %v2854 = vunpack.c.l.b16 %v2638
      %v2855 = vunpack.c.l.b16 %v2642
      %v2856 = vunpack.c.l.b16 %v2645
      %v2857 = vunpack.c.l.b16 %v2649
      %v2858 = vunpack.c.l.b16 %v2652
      %v2859 = vunpack.c.l.b16 %v2656
      %v2860 = vunpack.c.l.b16 %v2659
      %v2861 = vunpack.c.l.b16 %v2663
      %v2862 = vunpack.c.l.b16 %v2666
      %v2863 = vunpack.c.l.b16 %v2670
      %v2864 = vunpack.c.l.b16 %v2673
      %v2865 = vunpack.c.l.b16 %v2677
      %v2866 = vunpack.c.l.b16 %v2680
      %v2867 = vunpack.c.l.b16 %v2684
      %v2868 = vunpack.c.l.b16 %v2687
      %v2869 = vunpack.c.l.b16 %v2691
      %v2870 = vunpack.c.l.b16 %v2694
      %v2871 = vpack.c.b16 %v2840, %v2839
      %v2872 = vpack.c.b16 %v2842, %v2841
      %v2873 = vpack.c.b16 %v2844, %v2843
      %v2874 = vpack.c.b16 %v2846, %v2845
      %v2875 = vpack.c.b16 %v2848, %v2847
      %v2876 = vpack.c.b16 %v2850, %v2849
      %v2877 = vpack.c.b16 %v2852, %v2851
      %v2878 = vpack.c.b16 %v2854, %v2853
      %v2879 = vpack.c.b16 %v2856, %v2855
      %v2880 = vpack.c.b16 %v2858, %v2857
      %v2881 = vpack.c.b16 %v2860, %v2859
      %v2882 = vpack.c.b16 %v2862, %v2861
      %v2883 = vpack.c.b16 %v2864, %v2863
      %v2884 = vpack.c.b16 %v2866, %v2865
      %v2885 = vpack.c.b16 %v2868, %v2867
      %v2886 = vpack.c.b16 %v2870, %v2869
      %s2903 = scalar_lea.vmem %s3, 192
      %v2904 = vld [vmem:[%s2903] sm:$0xf]
      %v2905 = vld [vmem:[%s2903 + $0x4] sm:$0xf]
      %v2906 = vld [vmem:[%s2903 + $0x8] sm:$0xf]
      %v2907 = vld [vmem:[%s2903 + $0xc] sm:$0xf]
      %v2908 = vld [vmem:[%s2903 + $0x10] sm:$0xf]
      %v2909 = vld [vmem:[%s2903 + $0x14] sm:$0xf]
      %v2910 = vld [vmem:[%s2903 + $0x18] sm:$0xf]
      %v2911 = vld [vmem:[%s2903 + $0x1c] sm:$0xf]
      %v2912 = vld [vmem:[%s2903 + $0x20] sm:$0xf]
      %v2913 = vld [vmem:[%s2903 + $0x24] sm:$0xf]
      %v2914 = vld [vmem:[%s2903 + $0x28] sm:$0xf]
      %v2915 = vld [vmem:[%s2903 + $0x2c] sm:$0xf]
      %v2916 = vld [vmem:[%s2903 + $0x30] sm:$0xf]
      %v2917 = vld [vmem:[%s2903 + $0x34] sm:$0xf]
      %v2918 = vld [vmem:[%s2903 + $0x38] sm:$0xf]
      %v2919 = vld [vmem:[%s2903 + $0x3c] sm:$0xf]
      %v2920 = vld [vmem:[%s2903 + $0x40] sm:$0xf]
      %v2921 = vld [vmem:[%s2903 + $0x44] sm:$0xf]
      %v2922 = vld [vmem:[%s2903 + $0x48] sm:$0xf]
      %v2923 = vld [vmem:[%s2903 + $0x4c] sm:$0xf]
      %v2924 = vld [vmem:[%s2903 + $0x50] sm:$0xf]
      %v2925 = vld [vmem:[%s2903 + $0x54] sm:$0xf]
      %v2926 = vld [vmem:[%s2903 + $0x58] sm:$0xf]
      %v2927 = vld [vmem:[%s2903 + $0x5c] sm:$0xf]
      %v2928 = vld [vmem:[%s2903 + $0x60] sm:$0xf]
      %v2929 = vld [vmem:[%s2903 + $0x64] sm:$0xf]
      %v2930 = vld [vmem:[%s2903 + $0x68] sm:$0xf]
      %v2931 = vld [vmem:[%s2903 + $0x6c] sm:$0xf]
      %v2932 = vld [vmem:[%s2903 + $0x70] sm:$0xf]
      %v2933 = vld [vmem:[%s2903 + $0x74] sm:$0xf]
      %v2934 = vld [vmem:[%s2903 + $0x78] sm:$0xf]
      %v2935 = vld [vmem:[%s2903 + $0x7c] sm:$0xf]
      %v2936 = vld [vmem:[%s2903 + $0x80] sm:$0xf]
      %v2937 = vld [vmem:[%s2903 + $0x84] sm:$0xf]
      %v2938 = vld [vmem:[%s2903 + $0x88] sm:$0xf]
      %v2939 = vld [vmem:[%s2903 + $0x8c] sm:$0xf]
      %v2940 = vld [vmem:[%s2903 + $0x90] sm:$0xf]
      %v2941 = vld [vmem:[%s2903 + $0x94] sm:$0xf]
      %v2942 = vld [vmem:[%s2903 + $0x98] sm:$0xf]
      %v2943 = vld [vmem:[%s2903 + $0x9c] sm:$0xf]
      %v2944 = vld [vmem:[%s2903 + $0xa0] sm:$0xf]
      %v2945 = vld [vmem:[%s2903 + $0xa4] sm:$0xf]
      %v2946 = vld [vmem:[%s2903 + $0xa8] sm:$0xf]
      %v2947 = vld [vmem:[%s2903 + $0xac] sm:$0xf]
      %v2948 = vld [vmem:[%s2903 + $0xb0] sm:$0xf]
      %v2949 = vld [vmem:[%s2903 + $0xb4] sm:$0xf]
      %v2950 = vld [vmem:[%s2903 + $0xb8] sm:$0xf]
      %v2951 = vld [vmem:[%s2903 + $0xbc] sm:$0xf]
      %v3000 = vunpack.c.l.b16 %v2904
      %v3001 = vunpack.c.l.b16 %v2905
      %v3002 = vunpack.c.l.b16 %v2906
      %v3003 = vunpack.c.l.b16 %v2907
      %v3004 = vunpack.c.l.b16 %v2908
      %v3005 = vunpack.c.l.b16 %v2909
      %v3006 = vunpack.c.l.b16 %v2910
      %v3007 = vunpack.c.l.b16 %v2911
      %v3008 = vunpack.c.l.b16 %v2912
      %v3009 = vunpack.c.l.b16 %v2913
      %v3010 = vunpack.c.l.b16 %v2914
      %v3011 = vunpack.c.l.b16 %v2915
      %v3012 = vunpack.c.l.b16 %v2916
      %v3013 = vunpack.c.l.b16 %v2917
      %v3014 = vunpack.c.l.b16 %v2918
      %v3015 = vunpack.c.l.b16 %v2919
      %v3016 = vunpack.c.l.b16 %v2920
      %v3017 = vunpack.c.l.b16 %v2921
      %v3018 = vunpack.c.l.b16 %v2922
      %v3019 = vunpack.c.l.b16 %v2923
      %v3020 = vunpack.c.l.b16 %v2924
      %v3021 = vunpack.c.l.b16 %v2925
      %v3022 = vunpack.c.l.b16 %v2926
      %v3023 = vunpack.c.l.b16 %v2927
      %v3024 = vunpack.c.l.b16 %v2928
      %v3025 = vunpack.c.l.b16 %v2929
      %v3026 = vunpack.c.l.b16 %v2930
      %v3027 = vunpack.c.l.b16 %v2931
      %v3028 = vunpack.c.l.b16 %v2932
      %v3029 = vunpack.c.l.b16 %v2933
      %v3030 = vunpack.c.l.b16 %v2934
      %v3031 = vunpack.c.l.b16 %v2935
      %v3032 = vunpack.c.l.b16 %v2936
      %v3033 = vunpack.c.l.b16 %v2937
      %v3034 = vunpack.c.l.b16 %v2938
      %v3035 = vunpack.c.l.b16 %v2939
      %v3036 = vunpack.c.l.b16 %v2940
      %v3037 = vunpack.c.l.b16 %v2941
      %v3038 = vunpack.c.l.b16 %v2942
      %v3039 = vunpack.c.l.b16 %v2943
      %v3040 = vunpack.c.l.b16 %v2944
      %v3041 = vunpack.c.l.b16 %v2945
      %v3042 = vunpack.c.l.b16 %v2946
      %v3043 = vunpack.c.l.b16 %v2947
      %v3044 = vunpack.c.l.b16 %v2948
      %v3045 = vunpack.c.l.b16 %v2949
      %v3046 = vunpack.c.l.b16 %v2950
      %v3047 = vunpack.c.l.b16 %v2951
      %v3048 = vpack.c.b16 %v3001, %v3000
      %v3049 = vpack.c.b16 %v3003, %v3002
      %v3050 = vpack.c.b16 %v3005, %v3004
      %v3051 = vpack.c.b16 %v3007, %v3006
      %v3052 = vpack.c.b16 %v3009, %v3008
      %v3053 = vpack.c.b16 %v3011, %v3010
      %v3054 = vpack.c.b16 %v3013, %v3012
      %v3055 = vpack.c.b16 %v3015, %v3014
      %v3056 = vpack.c.b16 %v3017, %v3016
      %v3057 = vpack.c.b16 %v3019, %v3018
      %v3058 = vpack.c.b16 %v3021, %v3020
      %v3059 = vpack.c.b16 %v3023, %v3022
      %v3060 = vpack.c.b16 %v3025, %v3024
      %v3061 = vpack.c.b16 %v3027, %v3026
      %v3062 = vpack.c.b16 %v3029, %v3028
      %v3063 = vpack.c.b16 %v3031, %v3030
      %v3064 = vpack.c.b16 %v3033, %v3032
      %v3065 = vpack.c.b16 %v3035, %v3034
      %v3066 = vpack.c.b16 %v3037, %v3036
      %v3067 = vpack.c.b16 %v3039, %v3038
      %v3068 = vpack.c.b16 %v3041, %v3040
      %v3069 = vpack.c.b16 %v3043, %v3042
      %v3070 = vpack.c.b16 %v3045, %v3044
      %v3071 = vpack.c.b16 %v3047, %v3046
      %3096 = vmatprep.subr.bf16.mxu0 0
      %3097 = vmatpush1.bf16.msra.mxu0 %v3048
      %3098 = vmatprep.subr.bf16.mxu0 0
      %3099 = vmatpush1.bf16.msra.mxu0 %v3049
      %3100 = vmatprep.subr.bf16.mxu0 0
      %3101 = vmatpush1.bf16.msra.mxu0 %v3050
      %3102 = vmatprep.subr.bf16.mxu0 0
      %3103 = vmatpush1.bf16.msra.mxu0 %v3051
      %3104 = vmatprep.subr.bf16.mxu0 0
      %3105 = vmatpush1.bf16.msra.mxu0 %v3052
      %3106 = vmatprep.subr.bf16.mxu0 0
      %3107 = vmatpush1.bf16.msra.mxu0 %v3053
      %3108 = vmatprep.subr.bf16.mxu0 0
      %3109 = vmatpush1.bf16.msra.mxu0 %v3054
      %3110 = vmatprep.subr.bf16.mxu0 0
      %3111 = vmatpush1.bf16.msra.mxu0 %v3055
      %3112 = vmatprep.subr.bf16.mxu0 0
      %3113 = vmatpush1.bf16.msra.mxu0 %v3056
      %3114 = vmatprep.subr.bf16.mxu0 0
      %3115 = vmatpush1.bf16.msra.mxu0 %v3057
      %3116 = vmatprep.subr.bf16.mxu0 0
      %3117 = vmatpush1.bf16.msra.mxu0 %v3058
      %3118 = vmatprep.subr.bf16.mxu0 0
      %3119 = vmatpush1.bf16.msra.mxu0 %v3059
      %3120 = vmatprep.subr.bf16.mxu0 0
      %3121 = vmatpush1.bf16.msra.mxu0 %v3060
      %3122 = vmatprep.subr.bf16.mxu0 0
      %3123 = vmatpush1.bf16.msra.mxu0 %v3061
      %3124 = vmatprep.subr.bf16.mxu0 0
      %3125 = vmatpush1.bf16.msra.mxu0 %v3062
      %3126 = vmatprep.subr.bf16.mxu0 0
      %3127 = vmatpush1.bf16.msra.mxu0 %v3063
      %3128 = vmatprep.mubr.bf16.mxu0 %v2807
      %3129 = vmatmul.mubr.bf16.gmra.mrb[0].mxu0 %v2743
      %v3130 = vpop.f32.mrb[0].mxu0
      %v3131 = vadd.f32 0.0, %v3130
      %v3132 = vpop.f32.mrb[0].mxu0
      %v3133 = vpop.f32.mrb[0].mxu0
      %v3134 = vadd.f32 0.0, %v3133
      %v3135 = vpop.f32.mrb[0].mxu0
      %3136 = vmatprep.mubr.bf16.mxu0 %v2808
      %3137 = vmatmul.mubr.bf16.gmra.mrb[0].mxu0 %v2744
      %v3138 = vpop.f32.mrb[0].mxu0
      %v3139 = vadd.f32 0.0, %v3138
      %v3140 = vpop.f32.mrb[0].mxu0
      %v3141 = vpop.f32.mrb[0].mxu0
      %v3142 = vadd.f32 0.0, %v3141
      %v3143 = vpop.f32.mrb[0].mxu0
      %3144 = vmatprep.mubr.bf16.mxu0 %v2809
      %3145 = vmatmul.mubr.bf16.gmra.mrb[0].mxu0 %v2745
      %v3146 = vpop.f32.mrb[0].mxu0
      %v3147 = vadd.f32 0.0, %v3146
      %v3148 = vpop.f32.mrb[0].mxu0
      %v3149 = vpop.f32.mrb[0].mxu0
      %v3150 = vadd.f32 0.0, %v3149
      %v3151 = vpop.f32.mrb[0].mxu0
      %3152 = vmatprep.mubr.bf16.mxu0 %v2810
      %3153 = vmatmul.mubr.bf16.gmra.mrb[0].mxu0 %v2746
      %v3154 = vpop.f32.mrb[0].mxu0
      %v3155 = vadd.f32 0.0, %v3154
      %v3156 = vpop.f32.mrb[0].mxu0
      %v3157 = vpop.f32.mrb[0].mxu0
      %v3158 = vadd.f32 0.0, %v3157
      %v3159 = vpop.f32.mrb[0].mxu0
      %3160 = vmatprep.mubr.bf16.mxu0 %v2811
      %3161 = vmatmul.mubr.bf16.gmra.mrb[0].mxu0 %v2747
      %v3162 = vpop.f32.mrb[0].mxu0
      %v3163 = vadd.f32 0.0, %v3162
      %v3164 = vpop.f32.mrb[0].mxu0
      %v3165 = vpop.f32.mrb[0].mxu0
      %v3166 = vadd.f32 0.0, %v3165
      %v3167 = vpop.f32.mrb[0].mxu0
      %3168 = vmatprep.mubr.bf16.mxu0 %v2812
      %3169 = vmatmul.mubr.bf16.gmra.mrb[0].mxu0 %v2748
      %v3170 = vpop.f32.mrb[0].mxu0
      %v3171 = vadd.f32 0.0, %v3170
      %v3172 = vpop.f32.mrb[0].mxu0
      %v3173 = vpop.f32.mrb[0].mxu0
      %v3174 = vadd.f32 0.0, %v3173
      %v3175 = vpop.f32.mrb[0].mxu0
      %3176 = vmatprep.mubr.bf16.mxu0 %v2813
      %3177 = vmatmul.mubr.bf16.gmra.mrb[0].mxu0 %v2749
      %v3178 = vpop.f32.mrb[0].mxu0
      %v3179 = vadd.f32 0.0, %v3178
      %v3180 = vpop.f32.mrb[0].mxu0
      %v3181 = vpop.f32.mrb[0].mxu0
      %v3182 = vadd.f32 0.0, %v3181
      %v3183 = vpop.f32.mrb[0].mxu0
      %3184 = vmatprep.mubr.bf16.mxu0 %v2814
      %3185 = vmatmul.mubr.bf16.gmra.mrb[0].mxu0 %v2750
      %v3186 = vpop.f32.mrb[0].mxu0
      %v3187 = vadd.f32 0.0, %v3186
      %v3188 = vpop.f32.mrb[0].mxu0
      %v3189 = vpop.f32.mrb[0].mxu0
      %v3190 = vadd.f32 0.0, %v3189
      %v3191 = vpop.f32.mrb[0].mxu0
      %3192 = vmatprep.mubr.bf16.mxu0 %v2815
      %3193 = vmatmul.mubr.bf16.gmra.mrb[0].mxu0 %v2751
      %v3194 = vpop.f32.mrb[0].mxu0
      %v3195 = vadd.f32 0.0, %v3194
      %v3196 = vpop.f32.mrb[0].mxu0
      %v3197 = vpop.f32.mrb[0].mxu0
      %v3198 = vadd.f32 0.0, %v3197
      %v3199 = vpop.f32.mrb[0].mxu0
      %3200 = vmatprep.mubr.bf16.mxu0 %v2816
      %3201 = vmatmul.mubr.bf16.gmra.mrb[0].mxu0 %v2752
      %v3202 = vpop.f32.mrb[0].mxu0
      %v3203 = vadd.f32 0.0, %v3202
      %v3204 = vpop.f32.mrb[0].mxu0
      %v3205 = vpop.f32.mrb[0].mxu0
      %v3206 = vadd.f32 0.0, %v3205
      %v3207 = vpop.f32.mrb[0].mxu0
      %3208 = vmatprep.mubr.bf16.mxu0 %v2817
      %3209 = vmatmul.mubr.bf16.gmra.mrb[0].mxu0 %v2753
      %v3210 = vpop.f32.mrb[0].mxu0
      %v3211 = vadd.f32 0.0, %v3210
      %v3212 = vpop.f32.mrb[0].mxu0
      %v3213 = vpop.f32.mrb[0].mxu0
      %v3214 = vadd.f32 0.0, %v3213
      %v3215 = vpop.f32.mrb[0].mxu0
      %3216 = vmatprep.mubr.bf16.mxu0 %v2818
      %3217 = vmatmul.mubr.bf16.gmra.mrb[0].mxu0 %v2754
      %v3218 = vpop.f32.mrb[0].mxu0
      %v3219 = vadd.f32 0.0, %v3218
      %v3220 = vpop.f32.mrb[0].mxu0
      %v3221 = vpop.f32.mrb[0].mxu0
      %v3222 = vadd.f32 0.0, %v3221
      %v3223 = vpop.f32.mrb[0].mxu0
      %3224 = vmatprep.mubr.bf16.mxu0 %v2819
      %3225 = vmatmul.mubr.bf16.gmra.mrb[0].mxu0 %v2755
      %v3226 = vpop.f32.mrb[0].mxu0
      %v3227 = vadd.f32 0.0, %v3226
      %v3228 = vpop.f32.mrb[0].mxu0
      %v3229 = vpop.f32.mrb[0].mxu0
      %v3230 = vadd.f32 0.0, %v3229
      %v3231 = vpop.f32.mrb[0].mxu0
      %3232 = vmatprep.mubr.bf16.mxu0 %v2820
      %3233 = vmatmul.mubr.bf16.gmra.mrb[0].mxu0 %v2756
      %v3234 = vpop.f32.mrb[0].mxu0
      %v3235 = vadd.f32 0.0, %v3234
      %v3236 = vpop.f32.mrb[0].mxu0
      %v3237 = vpop.f32.mrb[0].mxu0
      %v3238 = vadd.f32 0.0, %v3237
      %v3239 = vpop.f32.mrb[0].mxu0
      %3240 = vmatprep.mubr.bf16.mxu0 %v2821
      %3241 = vmatmul.mubr.bf16.gmra.mrb[0].mxu0 %v2757
      %v3242 = vpop.f32.mrb[0].mxu0
      %v3243 = vadd.f32 0.0, %v3242
      %v3244 = vpop.f32.mrb[0].mxu0
      %v3245 = vpop.f32.mrb[0].mxu0
      %v3246 = vadd.f32 0.0, %v3245
      %v3247 = vpop.f32.mrb[0].mxu0
      %3248 = vmatprep.mubr.bf16.mxu0 %v2822
      %3249 = vmatmul.mubr.bf16.gmra.mrb[0].mxu0 %v2758
      %v3250 = vpop.f32.mrb[0].mxu0
      %v3251 = vadd.f32 0.0, %v3250
      %v3252 = vpop.f32.mrb[0].mxu0
      %v3253 = vpop.f32.mrb[0].mxu0
      %v3254 = vadd.f32 0.0, %v3253
      %v3255 = vpop.f32.mrb[0].mxu0
      %3256 = vdwg.mxu0
      %3257 = vmatprep.subr.bf16.mxu0 0
      %3258 = vmatpush1.bf16.msra.mxu0 %v3064
      %3259 = vmatprep.subr.bf16.mxu0 0
      %3260 = vmatpush1.bf16.msra.mxu0 %v3065
      %3261 = vmatprep.subr.bf16.mxu0 0
      %3262 = vmatpush1.bf16.msra.mxu0 %v3066
      %3263 = vmatprep.subr.bf16.mxu0 0
      %3264 = vmatpush1.bf16.msra.mxu0 %v3067
      %3265 = vmatprep.subr.bf16.mxu0 0
      %3266 = vmatpush1.bf16.msra.mxu0 %v3068
      %3267 = vmatprep.subr.bf16.mxu0 0
      %3268 = vmatpush1.bf16.msra.mxu0 %v3069
      %3269 = vmatprep.subr.bf16.mxu0 0
      %3270 = vmatpush1.bf16.msra.mxu0 %v3070
      %3271 = vmatprep.subr.bf16.mxu0 0
      %3272 = vmatpush1.bf16.msra.mxu0 %v3071
      %3273 = vmatprep.subr.bf16.mxu0 0
      %3274 = vmatpush1.bf16.msra.mxu0 0
      %3275 = vmatprep.subr.bf16.mxu0 0
      %3276 = vmatpush1.bf16.msra.mxu0 0
      %3277 = vmatprep.subr.bf16.mxu0 0
      %3278 = vmatpush1.bf16.msra.mxu0 0
      %3279 = vmatprep.subr.bf16.mxu0 0
      %3280 = vmatpush1.bf16.msra.mxu0 0
      %3281 = vmatprep.subr.bf16.mxu0 0
      %3282 = vmatpush1.bf16.msra.mxu0 0
      %3283 = vmatprep.subr.bf16.mxu0 0
      %3284 = vmatpush1.bf16.msra.mxu0 0
      %3285 = vmatprep.subr.bf16.mxu0 0
      %3286 = vmatpush1.bf16.msra.mxu0 0
      %3287 = vmatprep.subr.bf16.mxu0 0
      %3288 = vmatpush1.bf16.msra.mxu0 0
      %3289 = vmatprep.mubr.bf16.mxu0 0
      %3290 = vmatmul.mubr.bf16.gmra.mrb[0].mxu0 %v2871
      %v3291 = vpop.f32.mrb[0].mxu0
      %v3292 = vadd.f32 %v3131, %v3291
      %v3293 = vpop.f32.mrb[0].mxu0
      %v3294 = vpop.f32.mrb[0].mxu0
      %v3295 = vadd.f32 %v3134, %v3294
      %v3296 = vpop.f32.mrb[0].mxu0
      %3297 = vmatprep.mubr.bf16.mxu0 0
      %3298 = vmatmul.mubr.bf16.gmra.mrb[0].mxu0 %v2872
      %v3299 = vpop.f32.mrb[0].mxu0
      %v3300 = vadd.f32 %v3139, %v3299
      %v3301 = vpop.f32.mrb[0].mxu0
      %v3302 = vpop.f32.mrb[0].mxu0
      %v3303 = vadd.f32 %v3142, %v3302
      %v3304 = vpop.f32.mrb[0].mxu0
      %3305 = vmatprep.mubr.bf16.mxu0 0
      %3306 = vmatmul.mubr.bf16.gmra.mrb[0].mxu0 %v2873
      %v3307 = vpop.f32.mrb[0].mxu0
      %v3308 = vadd.f32 %v3147, %v3307
      %v3309 = vpop.f32.mrb[0].mxu0
      %v3310 = vpop.f32.mrb[0].mxu0
      %v3311 = vadd.f32 %v3150, %v3310
      %v3312 = vpop.f32.mrb[0].mxu0
      %3313 = vmatprep.mubr.bf16.mxu0 0
      %3314 = vmatmul.mubr.bf16.gmra.mrb[0].mxu0 %v2874
      %v3315 = vpop.f32.mrb[0].mxu0
      %v3316 = vadd.f32 %v3155, %v3315
      %v3317 = vpop.f32.mrb[0].mxu0
      %v3318 = vpop.f32.mrb[0].mxu0
      %v3319 = vadd.f32 %v3158, %v3318
      %v3320 = vpop.f32.mrb[0].mxu0
      %3321 = vmatprep.mubr.bf16.mxu0 0
      %3322 = vmatmul.mubr.bf16.gmra.mrb[0].mxu0 %v2875
      %v3323 = vpop.f32.mrb[0].mxu0
      %v3324 = vadd.f32 %v3163, %v3323
      %v3325 = vpop.f32.mrb[0].mxu0
      %v3326 = vpop.f32.mrb[0].mxu0
      %v3327 = vadd.f32 %v3166, %v3326
      %v3328 = vpop.f32.mrb[0].mxu0
      %3329 = vmatprep.mubr.bf16.mxu0 0
      %3330 = vmatmul.mubr.bf16.gmra.mrb[0].mxu0 %v2876
      %v3331 = vpop.f32.mrb[0].mxu0
      %v3332 = vadd.f32 %v3171, %v3331
      %v3333 = vpop.f32.mrb[0].mxu0
      %v3334 = vpop.f32.mrb[0].mxu0
      %v3335 = vadd.f32 %v3174, %v3334
      %v3336 = vpop.f32.mrb[0].mxu0
      %3337 = vmatprep.mubr.bf16.mxu0 0
      %3338 = vmatmul.mubr.bf16.gmra.mrb[0].mxu0 %v2877
      %v3339 = vpop.f32.mrb[0].mxu0
      %v3340 = vadd.f32 %v3179, %v3339
      %v3341 = vpop.f32.mrb[0].mxu0
      %v3342 = vpop.f32.mrb[0].mxu0
      %v3343 = vadd.f32 %v3182, %v3342
      %v3344 = vpop.f32.mrb[0].mxu0
      %3345 = vmatprep.mubr.bf16.mxu0 0
      %3346 = vmatmul.mubr.bf16.gmra.mrb[0].mxu0 %v2878
      %v3347 = vpop.f32.mrb[0].mxu0
      %v3348 = vadd.f32 %v3187, %v3347
      %v3349 = vpop.f32.mrb[0].mxu0
      %v3350 = vpop.f32.mrb[0].mxu0
      %v3351 = vadd.f32 %v3190, %v3350
      %v3352 = vpop.f32.mrb[0].mxu0
      %3353 = vmatprep.mubr.bf16.mxu0 0
      %3354 = vmatmul.mubr.bf16.gmra.mrb[0].mxu0 %v2879
      %v3355 = vpop.f32.mrb[0].mxu0
      %v3356 = vadd.f32 %v3195, %v3355
      %v3357 = vpop.f32.mrb[0].mxu0
      %v3358 = vpop.f32.mrb[0].mxu0
      %v3359 = vadd.f32 %v3198, %v3358
      %v3360 = vpop.f32.mrb[0].mxu0
      %3361 = vmatprep.mubr.bf16.mxu0 0
      %3362 = vmatmul.mubr.bf16.gmra.mrb[0].mxu0 %v2880
      %v3363 = vpop.f32.mrb[0].mxu0
      %v3364 = vadd.f32 %v3203, %v3363
      %v3365 = vpop.f32.mrb[0].mxu0
      %v3366 = vpop.f32.mrb[0].mxu0
      %v3367 = vadd.f32 %v3206, %v3366
      %v3368 = vpop.f32.mrb[0].mxu0
      %3369 = vmatprep.mubr.bf16.mxu0 0
      %3370 = vmatmul.mubr.bf16.gmra.mrb[0].mxu0 %v2881
      %v3371 = vpop.f32.mrb[0].mxu0
      %v3372 = vadd.f32 %v3211, %v3371
      %v3373 = vpop.f32.mrb[0].mxu0
      %v3374 = vpop.f32.mrb[0].mxu0
      %v3375 = vadd.f32 %v3214, %v3374
      %v3376 = vpop.f32.mrb[0].mxu0
      %3377 = vmatprep.mubr.bf16.mxu0 0
      %3378 = vmatmul.mubr.bf16.gmra.mrb[0].mxu0 %v2882
      %v3379 = vpop.f32.mrb[0].mxu0
      %v3380 = vadd.f32 %v3219, %v3379
      %v3381 = vpop.f32.mrb[0].mxu0
      %v3382 = vpop.f32.mrb[0].mxu0
      %v3383 = vadd.f32 %v3222, %v3382
      %v3384 = vpop.f32.mrb[0].mxu0
      %3385 = vmatprep.mubr.bf16.mxu0 0
      %3386 = vmatmul.mubr.bf16.gmra.mrb[0].mxu0 %v2883
      %v3387 = vpop.f32.mrb[0].mxu0
      %v3388 = vadd.f32 %v3227, %v3387
      %v3389 = vpop.f32.mrb[0].mxu0
      %v3390 = vpop.f32.mrb[0].mxu0
      %v3391 = vadd.f32 %v3230, %v3390
      %v3392 = vpop.f32.mrb[0].mxu0
      %3393 = vmatprep.mubr.bf16.mxu0 0
      %3394 = vmatmul.mubr.bf16.gmra.mrb[0].mxu0 %v2884
      %v3395 = vpop.f32.mrb[0].mxu0
      %v3396 = vadd.f32 %v3235, %v3395
      %v3397 = vpop.f32.mrb[0].mxu0
      %v3398 = vpop.f32.mrb[0].mxu0
      %v3399 = vadd.f32 %v3238, %v3398
      %v3400 = vpop.f32.mrb[0].mxu0
      %3401 = vmatprep.mubr.bf16.mxu0 0
      %3402 = vmatmul.mubr.bf16.gmra.mrb[0].mxu0 %v2885
      %v3403 = vpop.f32.mrb[0].mxu0
      %v3404 = vadd.f32 %v3243, %v3403
      %v3405 = vpop.f32.mrb[0].mxu0
      %v3406 = vpop.f32.mrb[0].mxu0
      %v3407 = vadd.f32 %v3246, %v3406
      %v3408 = vpop.f32.mrb[0].mxu0
      %3409 = vmatprep.mubr.bf16.mxu0 0
      %3410 = vmatmul.mubr.bf16.gmra.mrb[0].mxu0 %v2886
      %v3411 = vpop.f32.mrb[0].mxu0
      %v3412 = vadd.f32 %v3251, %v3411
      %v3413 = vpop.f32.mrb[0].mxu0
      %v3414 = vpop.f32.mrb[0].mxu0
      %v3415 = vadd.f32 %v3254, %v3414
      %v3416 = vpop.f32.mrb[0].mxu0
      %3417 = vdwg.mxu0
      %v3466 = vunpack.c.l.b16 %v2039
      %v3467 = vunpack.c.l.b16 %v2040
      %v3468 = vunpack.c.l.b16 %v2041
      %v3469 = vunpack.c.l.b16 %v2042
      %v3470 = vunpack.c.l.b16 %v2043
      %v3471 = vunpack.c.l.b16 %v2044
      %v3472 = vunpack.c.l.b16 %v2045
      %v3473 = vunpack.c.l.b16 %v2046
      %v3474 = vunpack.c.l.b16 %v2047
      %v3475 = vunpack.c.l.b16 %v2048
      %v3476 = vunpack.c.l.b16 %v2049
      %v3477 = vunpack.c.l.b16 %v2050
      %v3478 = vunpack.c.l.b16 %v2051
      %v3479 = vunpack.c.l.b16 %v2052
      %v3480 = vunpack.c.l.b16 %v2053
      %v3481 = vunpack.c.l.b16 %v2054
      %v3482 = vunpack.c.l.b16 %v2055
      %v3483 = vunpack.c.l.b16 %v2056
      %v3484 = vunpack.c.l.b16 %v2057
      %v3485 = vunpack.c.l.b16 %v2058
      %v3486 = vunpack.c.l.b16 %v2059
      %v3487 = vunpack.c.l.b16 %v2060
      %v3488 = vunpack.c.l.b16 %v2061
      %v3489 = vunpack.c.l.b16 %v2062
      %v3490 = vunpack.c.l.b16 %v2063
      %v3491 = vunpack.c.l.b16 %v2064
      %v3492 = vunpack.c.l.b16 %v2065
      %v3493 = vunpack.c.l.b16 %v2066
      %v3494 = vunpack.c.l.b16 %v2067
      %v3495 = vunpack.c.l.b16 %v2068
      %v3496 = vunpack.c.l.b16 %v2069
      %v3497 = vunpack.c.l.b16 %v2070
      %v3498 = vunpack.c.l.b16 %v2071
      %v3499 = vunpack.c.l.b16 %v2072
      %v3500 = vunpack.c.l.b16 %v2073
      %v3501 = vunpack.c.l.b16 %v2074
      %v3502 = vunpack.c.l.b16 %v2075
      %v3503 = vunpack.c.l.b16 %v2076
      %v3504 = vunpack.c.l.b16 %v2077
      %v3505 = vunpack.c.l.b16 %v2078
      %v3506 = vunpack.c.l.b16 %v2079
      %v3507 = vunpack.c.l.b16 %v2080
      %v3508 = vunpack.c.l.b16 %v2081
      %v3509 = vunpack.c.l.b16 %v2082
      %v3510 = vunpack.c.l.b16 %v2083
      %v3511 = vunpack.c.l.b16 %v2084
      %v3512 = vunpack.c.l.b16 %v2085
      %v3513 = vunpack.c.l.b16 %v2086
      %v3514 = vpack.c.b16 %v3467, %v3466
      %v3515 = vpack.c.b16 %v3469, %v3468
      %v3516 = vpack.c.b16 %v3471, %v3470
      %v3517 = vpack.c.b16 %v3473, %v3472
      %v3518 = vpack.c.b16 %v3475, %v3474
      %v3519 = vpack.c.b16 %v3477, %v3476
      %v3520 = vpack.c.b16 %v3479, %v3478
      %v3521 = vpack.c.b16 %v3481, %v3480
      %v3522 = vpack.c.b16 %v3483, %v3482
      %v3523 = vpack.c.b16 %v3485, %v3484
      %v3524 = vpack.c.b16 %v3487, %v3486
      %v3525 = vpack.c.b16 %v3489, %v3488
      %v3526 = vpack.c.b16 %v3491, %v3490
      %v3527 = vpack.c.b16 %v3493, %v3492
      %v3528 = vpack.c.b16 %v3495, %v3494
      %v3529 = vpack.c.b16 %v3497, %v3496
      %v3530 = vpack.c.b16 %v3499, %v3498
      %v3531 = vpack.c.b16 %v3501, %v3500
      %v3532 = vpack.c.b16 %v3503, %v3502
      %v3533 = vpack.c.b16 %v3505, %v3504
      %v3534 = vpack.c.b16 %v3507, %v3506
      %v3535 = vpack.c.b16 %v3509, %v3508
      %v3536 = vpack.c.b16 %v3511, %v3510
      %v3537 = vpack.c.b16 %v3513, %v3512
      %3562 = vmatprep.subr.bf16.mxu0 0
      %3563 = vmatpush1.bf16.msra.mxu0 %v3514
      %3564 = vmatprep.subr.bf16.mxu0 0
      %3565 = vmatpush1.bf16.msra.mxu0 %v3515
      %3566 = vmatprep.subr.bf16.mxu0 0
      %3567 = vmatpush1.bf16.msra.mxu0 %v3516
      %3568 = vmatprep.subr.bf16.mxu0 0
      %3569 = vmatpush1.bf16.msra.mxu0 %v3517
      %3570 = vmatprep.subr.bf16.mxu0 0
      %3571 = vmatpush1.bf16.msra.mxu0 %v3518
      %3572 = vmatprep.subr.bf16.mxu0 0
      %3573 = vmatpush1.bf16.msra.mxu0 %v3519
      %3574 = vmatprep.subr.bf16.mxu0 0
      %3575 = vmatpush1.bf16.msra.mxu0 %v3520
      %3576 = vmatprep.subr.bf16.mxu0 0
      %3577 = vmatpush1.bf16.msra.mxu0 %v3521
      %3578 = vmatprep.subr.bf16.mxu0 0
      %3579 = vmatpush1.bf16.msra.mxu0 %v3522
      %3580 = vmatprep.subr.bf16.mxu0 0
      %3581 = vmatpush1.bf16.msra.mxu0 %v3523
      %3582 = vmatprep.subr.bf16.mxu0 0
      %3583 = vmatpush1.bf16.msra.mxu0 %v3524
      %3584 = vmatprep.subr.bf16.mxu0 0
      %3585 = vmatpush1.bf16.msra.mxu0 %v3525
      %3586 = vmatprep.subr.bf16.mxu0 0
      %3587 = vmatpush1.bf16.msra.mxu0 %v3526
      %3588 = vmatprep.subr.bf16.mxu0 0
      %3589 = vmatpush1.bf16.msra.mxu0 %v3527
      %3590 = vmatprep.subr.bf16.mxu0 0
      %3591 = vmatpush1.bf16.msra.mxu0 %v3528
      %3592 = vmatprep.subr.bf16.mxu0 0
      %3593 = vmatpush1.bf16.msra.mxu0 %v3529
      %3594 = vmatprep.mubr.bf16.mxu0 %v1943
      %3595 = vmatmul.mubr.bf16.gmra.mrb[0].mxu0 %v1879
      %v3596 = vpop.f32.mrb[0].mxu0
      %v3597 = vadd.f32 %v3292, %v3596
      %v3598 = vpop.f32.mrb[0].mxu0
      %v3599 = vpop.f32.mrb[0].mxu0
      %v3600 = vadd.f32 %v3295, %v3599
      %v3601 = vpop.f32.mrb[0].mxu0
      %3602 = vmatprep.mubr.bf16.mxu0 %v1944
      %3603 = vmatmul.mubr.bf16.gmra.mrb[0].mxu0 %v1880
      %v3604 = vpop.f32.mrb[0].mxu0
      %v3605 = vadd.f32 %v3300, %v3604
      %v3606 = vpop.f32.mrb[0].mxu0
      %v3607 = vpop.f32.mrb[0].mxu0
      %v3608 = vadd.f32 %v3303, %v3607
      %v3609 = vpop.f32.mrb[0].mxu0
      %3610 = vmatprep.mubr.bf16.mxu0 %v1945
      %3611 = vmatmul.mubr.bf16.gmra.mrb[0].mxu0 %v1881
      %v3612 = vpop.f32.mrb[0].mxu0
      %v3613 = vadd.f32 %v3308, %v3612
      %v3614 = vpop.f32.mrb[0].mxu0
      %v3615 = vpop.f32.mrb[0].mxu0
      %v3616 = vadd.f32 %v3311, %v3615
      %v3617 = vpop.f32.mrb[0].mxu0
      %3618 = vmatprep.mubr.bf16.mxu0 %v1946
      %3619 = vmatmul.mubr.bf16.gmra.mrb[0].mxu0 %v1882
      %v3620 = vpop.f32.mrb[0].mxu0
      %v3621 = vadd.f32 %v3316, %v3620
      %v3622 = vpop.f32.mrb[0].mxu0
      %v3623 = vpop.f32.mrb[0].mxu0
      %v3624 = vadd.f32 %v3319, %v3623
      %v3625 = vpop.f32.mrb[0].mxu0
      %3626 = vmatprep.mubr.bf16.mxu0 %v1947
      %3627 = vmatmul.mubr.bf16.gmra.mrb[0].mxu0 %v1883
      %v3628 = vpop.f32.mrb[0].mxu0
      %v3629 = vadd.f32 %v3324, %v3628
      %v3630 = vpop.f32.mrb[0].mxu0
      %v3631 = vpop.f32.mrb[0].mxu0
      %v3632 = vadd.f32 %v3327, %v3631
      %v3633 = vpop.f32.mrb[0].mxu0
      %3634 = vmatprep.mubr.bf16.mxu0 %v1948
      %3635 = vmatmul.mubr.bf16.gmra.mrb[0].mxu0 %v1884
      %v3636 = vpop.f32.mrb[0].mxu0
      %v3637 = vadd.f32 %v3332, %v3636
      %v3638 = vpop.f32.mrb[0].mxu0
      %v3639 = vpop.f32.mrb[0].mxu0
      %v3640 = vadd.f32 %v3335, %v3639
      %v3641 = vpop.f32.mrb[0].mxu0
      %3642 = vmatprep.mubr.bf16.mxu0 %v1949
      %3643 = vmatmul.mubr.bf16.gmra.mrb[0].mxu0 %v1885
      %v3644 = vpop.f32.mrb[0].mxu0
      %v3645 = vadd.f32 %v3340, %v3644
      %v3646 = vpop.f32.mrb[0].mxu0
      %v3647 = vpop.f32.mrb[0].mxu0
      %v3648 = vadd.f32 %v3343, %v3647
      %v3649 = vpop.f32.mrb[0].mxu0
      %3650 = vmatprep.mubr.bf16.mxu0 %v1950
      %3651 = vmatmul.mubr.bf16.gmra.mrb[0].mxu0 %v1886
      %v3652 = vpop.f32.mrb[0].mxu0
      %v3653 = vadd.f32 %v3348, %v3652
      %v3654 = vpop.f32.mrb[0].mxu0
      %v3655 = vpop.f32.mrb[0].mxu0
      %v3656 = vadd.f32 %v3351, %v3655
      %v3657 = vpop.f32.mrb[0].mxu0
      %3658 = vmatprep.mubr.bf16.mxu0 %v1951
      %3659 = vmatmul.mubr.bf16.gmra.mrb[0].mxu0 %v1887
      %v3660 = vpop.f32.mrb[0].mxu0
      %v3661 = vadd.f32 %v3356, %v3660
      %v3662 = vpop.f32.mrb[0].mxu0
      %v3663 = vpop.f32.mrb[0].mxu0
      %v3664 = vadd.f32 %v3359, %v3663
      %v3665 = vpop.f32.mrb[0].mxu0
      %3666 = vmatprep.mubr.bf16.mxu0 %v1952
      %3667 = vmatmul.mubr.bf16.gmra.mrb[0].mxu0 %v1888
      %v3668 = vpop.f32.mrb[0].mxu0
      %v3669 = vadd.f32 %v3364, %v3668
      %v3670 = vpop.f32.mrb[0].mxu0
      %v3671 = vpop.f32.mrb[0].mxu0
      %v3672 = vadd.f32 %v3367, %v3671
      %v3673 = vpop.f32.mrb[0].mxu0
      %3674 = vmatprep.mubr.bf16.mxu0 %v1953
      %3675 = vmatmul.mubr.bf16.gmra.mrb[0].mxu0 %v1889
      %v3676 = vpop.f32.mrb[0].mxu0
      %v3677 = vadd.f32 %v3372, %v3676
      %v3678 = vpop.f32.mrb[0].mxu0
      %v3679 = vpop.f32.mrb[0].mxu0
      %v3680 = vadd.f32 %v3375, %v3679
      %v3681 = vpop.f32.mrb[0].mxu0
      %3682 = vmatprep.mubr.bf16.mxu0 %v1954
      %3683 = vmatmul.mubr.bf16.gmra.mrb[0].mxu0 %v1890
      %v3684 = vpop.f32.mrb[0].mxu0
      %v3685 = vadd.f32 %v3380, %v3684
      %v3686 = vpop.f32.mrb[0].mxu0
      %v3687 = vpop.f32.mrb[0].mxu0
      %v3688 = vadd.f32 %v3383, %v3687
      %v3689 = vpop.f32.mrb[0].mxu0
      %3690 = vmatprep.mubr.bf16.mxu0 %v1955
      %3691 = vmatmul.mubr.bf16.gmra.mrb[0].mxu0 %v1891
      %v3692 = vpop.f32.mrb[0].mxu0
      %v3693 = vadd.f32 %v3388, %v3692
      %v3694 = vpop.f32.mrb[0].mxu0
      %v3695 = vpop.f32.mrb[0].mxu0
      %v3696 = vadd.f32 %v3391, %v3695
      %v3697 = vpop.f32.mrb[0].mxu0
      %3698 = vmatprep.mubr.bf16.mxu0 %v1956
      %3699 = vmatmul.mubr.bf16.gmra.mrb[0].mxu0 %v1892
      %v3700 = vpop.f32.mrb[0].mxu0
      %v3701 = vadd.f32 %v3396, %v3700
      %v3702 = vpop.f32.mrb[0].mxu0
      %v3703 = vpop.f32.mrb[0].mxu0
      %v3704 = vadd.f32 %v3399, %v3703
      %v3705 = vpop.f32.mrb[0].mxu0
      %3706 = vmatprep.mubr.bf16.mxu0 %v1957
      %3707 = vmatmul.mubr.bf16.gmra.mrb[0].mxu0 %v1893
      %v3708 = vpop.f32.mrb[0].mxu0
      %v3709 = vadd.f32 %v3404, %v3708
      %v3710 = vpop.f32.mrb[0].mxu0
      %v3711 = vpop.f32.mrb[0].mxu0
      %v3712 = vadd.f32 %v3407, %v3711
      %v3713 = vpop.f32.mrb[0].mxu0
      %3714 = vmatprep.mubr.bf16.mxu0 %v1958
      %3715 = vmatmul.mubr.bf16.gmra.mrb[0].mxu0 %v1894
      %v3716 = vpop.f32.mrb[0].mxu0
      %v3717 = vadd.f32 %v3412, %v3716
      %v3718 = vpop.f32.mrb[0].mxu0
      %v3719 = vpop.f32.mrb[0].mxu0
      %v3720 = vadd.f32 %v3415, %v3719
      %v3721 = vpop.f32.mrb[0].mxu0
      %3722 = vdwg.mxu0
      %3723 = vmatprep.subr.bf16.mxu0 0
      %3724 = vmatpush1.bf16.msra.mxu0 %v3530
      %3725 = vmatprep.subr.bf16.mxu0 0
      %3726 = vmatpush1.bf16.msra.mxu0 %v3531
      %3727 = vmatprep.subr.bf16.mxu0 0
      %3728 = vmatpush1.bf16.msra.mxu0 %v3532
      %3729 = vmatprep.subr.bf16.mxu0 0
      %3730 = vmatpush1.bf16.msra.mxu0 %v3533
      %3731 = vmatprep.subr.bf16.mxu0 0
      %3732 = vmatpush1.bf16.msra.mxu0 %v3534
      %3733 = vmatprep.subr.bf16.mxu0 0
      %3734 = vmatpush1.bf16.msra.mxu0 %v3535
      %3735 = vmatprep.subr.bf16.mxu0 0
      %3736 = vmatpush1.bf16.msra.mxu0 %v3536
      %3737 = vmatprep.subr.bf16.mxu0 0
      %3738 = vmatpush1.bf16.msra.mxu0 %v3537
      %3739 = vmatprep.subr.bf16.mxu0 0
      %3740 = vmatpush1.bf16.msra.mxu0 0
      %3741 = vmatprep.subr.bf16.mxu0 0
      %3742 = vmatpush1.bf16.msra.mxu0 0
      %3743 = vmatprep.subr.bf16.mxu0 0
      %3744 = vmatpush1.bf16.msra.mxu0 0
      %3745 = vmatprep.subr.bf16.mxu0 0
      %3746 = vmatpush1.bf16.msra.mxu0 0
      %3747 = vmatprep.subr.bf16.mxu0 0
      %3748 = vmatpush1.bf16.msra.mxu0 0
      %3749 = vmatprep.subr.bf16.mxu0 0
      %3750 = vmatpush1.bf16.msra.mxu0 0
      %3751 = vmatprep.subr.bf16.mxu0 0
      %3752 = vmatpush1.bf16.msra.mxu0 0
      %3753 = vmatprep.subr.bf16.mxu0 0
      %3754 = vmatpush1.bf16.msra.mxu0 0
      %3755 = vmatprep.mubr.bf16.mxu0 0
      %3756 = vmatmul.mubr.bf16.gmra.mrb[0].mxu0 %v2007
      %v3757 = vpop.f32.mrb[0].mxu0
      %v3758 = vadd.f32 %v3597, %v3757
      %v3759 = vpop.f32.mrb[0].mxu0
      %v3760 = vpop.f32.mrb[0].mxu0
      %v3761 = vadd.f32 %v3600, %v3760
      %v3762 = vpop.f32.mrb[0].mxu0
      %3763 = vmatprep.mubr.bf16.mxu0 0
      %3764 = vmatmul.mubr.bf16.gmra.mrb[0].mxu0 %v2008
      %v3765 = vpop.f32.mrb[0].mxu0
      %v3766 = vadd.f32 %v3605, %v3765
      %v3767 = vpop.f32.mrb[0].mxu0
      %v3768 = vpop.f32.mrb[0].mxu0
      %v3769 = vadd.f32 %v3608, %v3768
      %v3770 = vpop.f32.mrb[0].mxu0
      %3771 = vmatprep.mubr.bf16.mxu0 0
      %3772 = vmatmul.mubr.bf16.gmra.mrb[0].mxu0 %v2009
      %v3773 = vpop.f32.mrb[0].mxu0
      %v3774 = vadd.f32 %v3613, %v3773
      %v3775 = vpop.f32.mrb[0].mxu0
      %v3776 = vpop.f32.mrb[0].mxu0
      %v3777 = vadd.f32 %v3616, %v3776
      %v3778 = vpop.f32.mrb[0].mxu0
      %3779 = vmatprep.mubr.bf16.mxu0 0
      %3780 = vmatmul.mubr.bf16.gmra.mrb[0].mxu0 %v2010
      %v3781 = vpop.f32.mrb[0].mxu0
      %v3782 = vadd.f32 %v3621, %v3781
      %v3783 = vpop.f32.mrb[0].mxu0
      %v3784 = vpop.f32.mrb[0].mxu0
      %v3785 = vadd.f32 %v3624, %v3784
      %v3786 = vpop.f32.mrb[0].mxu0
      %3787 = vmatprep.mubr.bf16.mxu0 0
      %3788 = vmatmul.mubr.bf16.gmra.mrb[0].mxu0 %v2011
      %v3789 = vpop.f32.mrb[0].mxu0
      %v3790 = vadd.f32 %v3629, %v3789
      %v3791 = vpop.f32.mrb[0].mxu0
      %v3792 = vpop.f32.mrb[0].mxu0
      %v3793 = vadd.f32 %v3632, %v3792
      %v3794 = vpop.f32.mrb[0].mxu0
      %3795 = vmatprep.mubr.bf16.mxu0 0
      %3796 = vmatmul.mubr.bf16.gmra.mrb[0].mxu0 %v2012
      %v3797 = vpop.f32.mrb[0].mxu0
      %v3798 = vadd.f32 %v3637, %v3797
      %v3799 = vpop.f32.mrb[0].mxu0
      %v3800 = vpop.f32.mrb[0].mxu0
      %v3801 = vadd.f32 %v3640, %v3800
      %v3802 = vpop.f32.mrb[0].mxu0
      %3803 = vmatprep.mubr.bf16.mxu0 0
      %3804 = vmatmul.mubr.bf16.gmra.mrb[0].mxu0 %v2013
      %v3805 = vpop.f32.mrb[0].mxu0
      %v3806 = vadd.f32 %v3645, %v3805
      %v3807 = vpop.f32.mrb[0].mxu0
      %v3808 = vpop.f32.mrb[0].mxu0
      %v3809 = vadd.f32 %v3648, %v3808
      %v3810 = vpop.f32.mrb[0].mxu0
      %3811 = vmatprep.mubr.bf16.mxu0 0
      %3812 = vmatmul.mubr.bf16.gmra.mrb[0].mxu0 %v2014
      %v3813 = vpop.f32.mrb[0].mxu0
      %v3814 = vadd.f32 %v3653, %v3813
      %v3815 = vpop.f32.mrb[0].mxu0
      %v3816 = vpop.f32.mrb[0].mxu0
      %v3817 = vadd.f32 %v3656, %v3816
      %v3818 = vpop.f32.mrb[0].mxu0
      %3819 = vmatprep.mubr.bf16.mxu0 0
      %3820 = vmatmul.mubr.bf16.gmra.mrb[0].mxu0 %v2015
      %v3821 = vpop.f32.mrb[0].mxu0
      %v3822 = vadd.f32 %v3661, %v3821
      %v3823 = vpop.f32.mrb[0].mxu0
      %v3824 = vpop.f32.mrb[0].mxu0
      %v3825 = vadd.f32 %v3664, %v3824
      %v3826 = vpop.f32.mrb[0].mxu0
      %3827 = vmatprep.mubr.bf16.mxu0 0
      %3828 = vmatmul.mubr.bf16.gmra.mrb[0].mxu0 %v2016
      %v3829 = vpop.f32.mrb[0].mxu0
      %v3830 = vadd.f32 %v3669, %v3829
      %v3831 = vpop.f32.mrb[0].mxu0
      %v3832 = vpop.f32.mrb[0].mxu0
      %v3833 = vadd.f32 %v3672, %v3832
      %v3834 = vpop.f32.mrb[0].mxu0
      %3835 = vmatprep.mubr.bf16.mxu0 0
      %3836 = vmatmul.mubr.bf16.gmra.mrb[0].mxu0 %v2017
      %v3837 = vpop.f32.mrb[0].mxu0
      %v3838 = vadd.f32 %v3677, %v3837
      %v3839 = vpop.f32.mrb[0].mxu0
      %v3840 = vpop.f32.mrb[0].mxu0
      %v3841 = vadd.f32 %v3680, %v3840
      %v3842 = vpop.f32.mrb[0].mxu0
      %3843 = vmatprep.mubr.bf16.mxu0 0
      %3844 = vmatmul.mubr.bf16.gmra.mrb[0].mxu0 %v2018
      %v3845 = vpop.f32.mrb[0].mxu0
      %v3846 = vadd.f32 %v3685, %v3845
      %v3847 = vpop.f32.mrb[0].mxu0
      %v3848 = vpop.f32.mrb[0].mxu0
      %v3849 = vadd.f32 %v3688, %v3848
      %v3850 = vpop.f32.mrb[0].mxu0
      %3851 = vmatprep.mubr.bf16.mxu0 0
      %3852 = vmatmul.mubr.bf16.gmra.mrb[0].mxu0 %v2019
      %v3853 = vpop.f32.mrb[0].mxu0
      %v3854 = vadd.f32 %v3693, %v3853
      %v3855 = vpop.f32.mrb[0].mxu0
      %v3856 = vpop.f32.mrb[0].mxu0
      %v3857 = vadd.f32 %v3696, %v3856
      %v3858 = vpop.f32.mrb[0].mxu0
      %3859 = vmatprep.mubr.bf16.mxu0 0
      %3860 = vmatmul.mubr.bf16.gmra.mrb[0].mxu0 %v2020
      %v3861 = vpop.f32.mrb[0].mxu0
      %v3862 = vadd.f32 %v3701, %v3861
      %v3863 = vpop.f32.mrb[0].mxu0
      %v3864 = vpop.f32.mrb[0].mxu0
      %v3865 = vadd.f32 %v3704, %v3864
      %v3866 = vpop.f32.mrb[0].mxu0
      %3867 = vmatprep.mubr.bf16.mxu0 0
      %3868 = vmatmul.mubr.bf16.gmra.mrb[0].mxu0 %v2021
      %v3869 = vpop.f32.mrb[0].mxu0
      %v3870 = vadd.f32 %v3709, %v3869
      %v3871 = vpop.f32.mrb[0].mxu0
      %v3872 = vpop.f32.mrb[0].mxu0
      %v3873 = vadd.f32 %v3712, %v3872
      %v3874 = vpop.f32.mrb[0].mxu0
      %3875 = vmatprep.mubr.bf16.mxu0 0
      %3876 = vmatmul.mubr.bf16.gmra.mrb[0].mxu0 %v2022
      %v3877 = vpop.f32.mrb[0].mxu0
      %v3878 = vadd.f32 %v3717, %v3877
      %v3879 = vpop.f32.mrb[0].mxu0
      %v3880 = vpop.f32.mrb[0].mxu0
      %v3881 = vadd.f32 %v3720, %v3880
      %v3882 = vpop.f32.mrb[0].mxu0
      %3883 = vdwg.mxu0
      %s3884 = scalar_lea.vmem [#allocation2], 24
      %v3885 = vld [vmem:[%s3884] sm:$0xf]
      %v3886 = vld [vmem:[%s3884 + $0x4] sm:$0xf]
      %v3887 = vld [vmem:[%s3884 + $0xc] sm:$0xf]
      %v3888 = vld [vmem:[%s3884 + $0x10] sm:$0xf]
      %v3889 = vld [vmem:[%s3884 + $0x18] sm:$0xf]
      %v3890 = vld [vmem:[%s3884 + $0x1c] sm:$0xf]
      %v3891 = vld [vmem:[%s3884 + $0x24] sm:$0xf]
      %v3892 = vld [vmem:[%s3884 + $0x28] sm:$0xf]
      %v3893 = vld [vmem:[%s3884 + $0x30] sm:$0xf]
      %v3894 = vld [vmem:[%s3884 + $0x34] sm:$0xf]
      %v3895 = vld [vmem:[%s3884 + $0x3c] sm:$0xf]
      %v3896 = vld [vmem:[%s3884 + $0x40] sm:$0xf]
      %v3897 = vld [vmem:[%s3884 + $0x48] sm:$0xf]
      %v3898 = vld [vmem:[%s3884 + $0x4c] sm:$0xf]
      %v3899 = vld [vmem:[%s3884 + $0x54] sm:$0xf]
      %v3900 = vld [vmem:[%s3884 + $0x58] sm:$0xf]
      %v3901 = vld [vmem:[%s3884 + $0x60] sm:$0xf]
      %v3902 = vld [vmem:[%s3884 + $0x64] sm:$0xf]
      %v3903 = vld [vmem:[%s3884 + $0x6c] sm:$0xf]
      %v3904 = vld [vmem:[%s3884 + $0x70] sm:$0xf]
      %v3905 = vld [vmem:[%s3884 + $0x78] sm:$0xf]
      %v3906 = vld [vmem:[%s3884 + $0x7c] sm:$0xf]
      %v3907 = vld [vmem:[%s3884 + $0x84] sm:$0xf]
      %v3908 = vld [vmem:[%s3884 + $0x88] sm:$0xf]
      %v3909 = vld [vmem:[%s3884 + $0x90] sm:$0xf]
      %v3910 = vld [vmem:[%s3884 + $0x94] sm:$0xf]
      %v3911 = vld [vmem:[%s3884 + $0x9c] sm:$0xf]
      %v3912 = vld [vmem:[%s3884 + $0xa0] sm:$0xf]
      %v3913 = vld [vmem:[%s3884 + $0xa8] sm:$0xf]
      %v3914 = vld [vmem:[%s3884 + $0xac] sm:$0xf]
      %v3915 = vld [vmem:[%s3884 + $0xb4] sm:$0xf]
      %v3916 = vld [vmem:[%s3884 + $0xb8] sm:$0xf]
      %v3917 = vld [vmem:[%s3884 + $0x8] sm:$0x1]
      %v3918 = vld [vmem:[%s3884 + $0x14] sm:$0x1]
      %v3919 = vld [vmem:[%s3884 + $0x20] sm:$0x1]
      %v3920 = vld [vmem:[%s3884 + $0x2c] sm:$0x1]
      %v3921 = vld [vmem:[%s3884 + $0x38] sm:$0x1]
      %v3922 = vld [vmem:[%s3884 + $0x44] sm:$0x1]
      %v3923 = vld [vmem:[%s3884 + $0x50] sm:$0x1]
      %v3924 = vld [vmem:[%s3884 + $0x5c] sm:$0x1]
      %v3925 = vld [vmem:[%s3884 + $0x68] sm:$0x1]
      %v3926 = vld [vmem:[%s3884 + $0x74] sm:$0x1]
      %v3927 = vld [vmem:[%s3884 + $0x80] sm:$0x1]
      %v3928 = vld [vmem:[%s3884 + $0x8c] sm:$0x1]
      %v3929 = vld [vmem:[%s3884 + $0x98] sm:$0x1]
      %v3930 = vld [vmem:[%s3884 + $0xa4] sm:$0x1]
      %v3931 = vld [vmem:[%s3884 + $0xb0] sm:$0x1]
      %v3932 = vld [vmem:[%s3884 + $0xbc] sm:$0x1]
      %v3934 = vshrl.u32 %v3885, 16
      %v3936 = vrot.slane %v3934, 4
      %v3937 = vshll.u32 %v3885, 16
      %v3939 = vrot.slane %v3937, 5
      %v3940 = vor.u32 %v3936, %v3939
      %v3941 = vrot.slane %v3940, 4
      %v3943 = vshll.u32 %v3886, 16
      %v3945 = vrot.slane %v3943, 5
      %v3946 = vsel %vm1267, %v3941, %v3945
      %v3947 = vshrl.u32 %v3886, 16
      %v3949 = vrot.slane %v3947, 4
      %v3950 = vor.u32 %v3949, %v3945
      %v3951 = vrot.slane %v3950, 4
      %v3953 = vshll.u32 %v3917, 16
      %v3955 = vrot.slane %v3953, 5
      %v3956 = vsel %vm1267, %v3951, %v3955
      %v3958 = vshrl.u32 %v3887, 16
      %v3960 = vrot.slane %v3958, 4
      %v3961 = vshll.u32 %v3887, 16
      %v3963 = vrot.slane %v3961, 5
      %v3964 = vor.u32 %v3960, %v3963
      %v3965 = vrot.slane %v3964, 4
      %v3967 = vshll.u32 %v3888, 16
      %v3969 = vrot.slane %v3967, 5
      %v3970 = vsel %vm1267, %v3965, %v3969
      %v3971 = vshrl.u32 %v3888, 16
      %v3973 = vrot.slane %v3971, 4
      %v3974 = vor.u32 %v3973, %v3969
      %v3975 = vrot.slane %v3974, 4
      %v3977 = vshll.u32 %v3918, 16
      %v3979 = vrot.slane %v3977, 5
      %v3980 = vsel %vm1267, %v3975, %v3979
      %v3982 = vshrl.u32 %v3889, 16
      %v3984 = vrot.slane %v3982, 4
      %v3985 = vshll.u32 %v3889, 16
      %v3987 = vrot.slane %v3985, 5
      %v3988 = vor.u32 %v3984, %v3987
      %v3989 = vrot.slane %v3988, 4
      %v3991 = vshll.u32 %v3890, 16
      %v3993 = vrot.slane %v3991, 5
      %v3994 = vsel %vm1267, %v3989, %v3993
      %v3995 = vshrl.u32 %v3890, 16
      %v3997 = vrot.slane %v3995, 4
      %v3998 = vor.u32 %v3997, %v3993
      %v3999 = vrot.slane %v3998, 4
      %v4001 = vshll.u32 %v3919, 16
      %v4003 = vrot.slane %v4001, 5
      %v4004 = vsel %vm1267, %v3999, %v4003
      %v4006 = vshrl.u32 %v3891, 16
      %v4008 = vrot.slane %v4006, 4
      %v4009 = vshll.u32 %v3891, 16
      %v4011 = vrot.slane %v4009, 5
      %v4012 = vor.u32 %v4008, %v4011
      %v4013 = vrot.slane %v4012, 4
      %v4015 = vshll.u32 %v3892, 16
      %v4017 = vrot.slane %v4015, 5
      %v4018 = vsel %vm1267, %v4013, %v4017
      %v4019 = vshrl.u32 %v3892, 16
      %v4021 = vrot.slane %v4019, 4
      %v4022 = vor.u32 %v4021, %v4017
      %v4023 = vrot.slane %v4022, 4
      %v4025 = vshll.u32 %v3920, 16
      %v4027 = vrot.slane %v4025, 5
      %v4028 = vsel %vm1267, %v4023, %v4027
      %v4030 = vshrl.u32 %v3893, 16
      %v4032 = vrot.slane %v4030, 4
      %v4033 = vshll.u32 %v3893, 16
      %v4035 = vrot.slane %v4033, 5
      %v4036 = vor.u32 %v4032, %v4035
      %v4037 = vrot.slane %v4036, 4
      %v4039 = vshll.u32 %v3894, 16
      %v4041 = vrot.slane %v4039, 5
      %v4042 = vsel %vm1267, %v4037, %v4041
      %v4043 = vshrl.u32 %v3894, 16
      %v4045 = vrot.slane %v4043, 4
      %v4046 = vor.u32 %v4045, %v4041
      %v4047 = vrot.slane %v4046, 4
      %v4049 = vshll.u32 %v3921, 16
      %v4051 = vrot.slane %v4049, 5
      %v4052 = vsel %vm1267, %v4047, %v4051
      %v4054 = vshrl.u32 %v3895, 16
      %v4056 = vrot.slane %v4054, 4
      %v4057 = vshll.u32 %v3895, 16
      %v4059 = vrot.slane %v4057, 5
      %v4060 = vor.u32 %v4056, %v4059
      %v4061 = vrot.slane %v4060, 4
      %v4063 = vshll.u32 %v3896, 16
      %v4065 = vrot.slane %v4063, 5
      %v4066 = vsel %vm1267, %v4061, %v4065
      %v4067 = vshrl.u32 %v3896, 16
      %v4069 = vrot.slane %v4067, 4
      %v4070 = vor.u32 %v4069, %v4065
      %v4071 = vrot.slane %v4070, 4
      %v4073 = vshll.u32 %v3922, 16
      %v4075 = vrot.slane %v4073, 5
      %v4076 = vsel %vm1267, %v4071, %v4075
      %v4078 = vshrl.u32 %v3897, 16
      %v4080 = vrot.slane %v4078, 4
      %v4081 = vshll.u32 %v3897, 16
      %v4083 = vrot.slane %v4081, 5
      %v4084 = vor.u32 %v4080, %v4083
      %v4085 = vrot.slane %v4084, 4
      %v4087 = vshll.u32 %v3898, 16
      %v4089 = vrot.slane %v4087, 5
      %v4090 = vsel %vm1267, %v4085, %v4089
      %v4091 = vshrl.u32 %v3898, 16
      %v4093 = vrot.slane %v4091, 4
      %v4094 = vor.u32 %v4093, %v4089
      %v4095 = vrot.slane %v4094, 4
      %v4097 = vshll.u32 %v3923, 16
      %v4099 = vrot.slane %v4097, 5
      %v4100 = vsel %vm1267, %v4095, %v4099
      %v4102 = vshrl.u32 %v3899, 16
      %v4104 = vrot.slane %v4102, 4
      %v4105 = vshll.u32 %v3899, 16
      %v4107 = vrot.slane %v4105, 5
      %v4108 = vor.u32 %v4104, %v4107
      %v4109 = vrot.slane %v4108, 4
      %v4111 = vshll.u32 %v3900, 16
      %v4113 = vrot.slane %v4111, 5
      %v4114 = vsel %vm1267, %v4109, %v4113
      %v4115 = vshrl.u32 %v3900, 16
      %v4117 = vrot.slane %v4115, 4
      %v4118 = vor.u32 %v4117, %v4113
      %v4119 = vrot.slane %v4118, 4
      %v4121 = vshll.u32 %v3924, 16
      %v4123 = vrot.slane %v4121, 5
      %v4124 = vsel %vm1267, %v4119, %v4123
      %v4126 = vshrl.u32 %v3901, 16
      %v4128 = vrot.slane %v4126, 4
      %v4129 = vshll.u32 %v3901, 16
      %v4131 = vrot.slane %v4129, 5
      %v4132 = vor.u32 %v4128, %v4131
      %v4133 = vrot.slane %v4132, 4
      %v4135 = vshll.u32 %v3902, 16
      %v4137 = vrot.slane %v4135, 5
      %v4138 = vsel %vm1267, %v4133, %v4137
      %v4139 = vshrl.u32 %v3902, 16
      %v4141 = vrot.slane %v4139, 4
      %v4142 = vor.u32 %v4141, %v4137
      %v4143 = vrot.slane %v4142, 4
      %v4145 = vshll.u32 %v3925, 16
      %v4147 = vrot.slane %v4145, 5
      %v4148 = vsel %vm1267, %v4143, %v4147
      %v4150 = vshrl.u32 %v3903, 16
      %v4152 = vrot.slane %v4150, 4
      %v4153 = vshll.u32 %v3903, 16
      %v4155 = vrot.slane %v4153, 5
      %v4156 = vor.u32 %v4152, %v4155
      %v4157 = vrot.slane %v4156, 4
      %v4159 = vshll.u32 %v3904, 16
      %v4161 = vrot.slane %v4159, 5
      %v4162 = vsel %vm1267, %v4157, %v4161
      %v4163 = vshrl.u32 %v3904, 16
      %v4165 = vrot.slane %v4163, 4
      %v4166 = vor.u32 %v4165, %v4161
      %v4167 = vrot.slane %v4166, 4
      %v4169 = vshll.u32 %v3926, 16
      %v4171 = vrot.slane %v4169, 5
      %v4172 = vsel %vm1267, %v4167, %v4171
      %v4174 = vshrl.u32 %v3905, 16
      %v4176 = vrot.slane %v4174, 4
      %v4177 = vshll.u32 %v3905, 16
      %v4179 = vrot.slane %v4177, 5
      %v4180 = vor.u32 %v4176, %v4179
      %v4181 = vrot.slane %v4180, 4
      %v4183 = vshll.u32 %v3906, 16
      %v4185 = vrot.slane %v4183, 5
      %v4186 = vsel %vm1267, %v4181, %v4185
      %v4187 = vshrl.u32 %v3906, 16
      %v4189 = vrot.slane %v4187, 4
      %v4190 = vor.u32 %v4189, %v4185
      %v4191 = vrot.slane %v4190, 4
      %v4193 = vshll.u32 %v3927, 16
      %v4195 = vrot.slane %v4193, 5
      %v4196 = vsel %vm1267, %v4191, %v4195
      %v4198 = vshrl.u32 %v3907, 16
      %v4200 = vrot.slane %v4198, 4
      %v4201 = vshll.u32 %v3907, 16
      %v4203 = vrot.slane %v4201, 5
      %v4204 = vor.u32 %v4200, %v4203
      %v4205 = vrot.slane %v4204, 4
      %v4207 = vshll.u32 %v3908, 16
      %v4209 = vrot.slane %v4207, 5
      %v4210 = vsel %vm1267, %v4205, %v4209
      %v4211 = vshrl.u32 %v3908, 16
      %v4213 = vrot.slane %v4211, 4
      %v4214 = vor.u32 %v4213, %v4209
      %v4215 = vrot.slane %v4214, 4
      %v4217 = vshll.u32 %v3928, 16
      %v4219 = vrot.slane %v4217, 5
      %v4220 = vsel %vm1267, %v4215, %v4219
      %v4222 = vshrl.u32 %v3909, 16
      %v4224 = vrot.slane %v4222, 4
      %v4225 = vshll.u32 %v3909, 16
      %v4227 = vrot.slane %v4225, 5
      %v4228 = vor.u32 %v4224, %v4227
      %v4229 = vrot.slane %v4228, 4
      %v4231 = vshll.u32 %v3910, 16
      %v4233 = vrot.slane %v4231, 5
      %v4234 = vsel %vm1267, %v4229, %v4233
      %v4235 = vshrl.u32 %v3910, 16
      %v4237 = vrot.slane %v4235, 4
      %v4238 = vor.u32 %v4237, %v4233
      %v4239 = vrot.slane %v4238, 4
      %v4241 = vshll.u32 %v3929, 16
      %v4243 = vrot.slane %v4241, 5
      %v4244 = vsel %vm1267, %v4239, %v4243
      %v4246 = vshrl.u32 %v3911, 16
      %v4248 = vrot.slane %v4246, 4
      %v4249 = vshll.u32 %v3911, 16
      %v4251 = vrot.slane %v4249, 5
      %v4252 = vor.u32 %v4248, %v4251
      %v4253 = vrot.slane %v4252, 4
      %v4255 = vshll.u32 %v3912, 16
      %v4257 = vrot.slane %v4255, 5
      %v4258 = vsel %vm1267, %v4253, %v4257
      %v4259 = vshrl.u32 %v3912, 16
      %v4261 = vrot.slane %v4259, 4
      %v4262 = vor.u32 %v4261, %v4257
      %v4263 = vrot.slane %v4262, 4
      %v4265 = vshll.u32 %v3930, 16
      %v4267 = vrot.slane %v4265, 5
      %v4268 = vsel %vm1267, %v4263, %v4267
      %v4270 = vshrl.u32 %v3913, 16
      %v4272 = vrot.slane %v4270, 4
      %v4273 = vshll.u32 %v3913, 16
      %v4275 = vrot.slane %v4273, 5
      %v4276 = vor.u32 %v4272, %v4275
      %v4277 = vrot.slane %v4276, 4
      %v4279 = vshll.u32 %v3914, 16
      %v4281 = vrot.slane %v4279, 5
      %v4282 = vsel %vm1267, %v4277, %v4281
      %v4283 = vshrl.u32 %v3914, 16
      %v4285 = vrot.slane %v4283, 4
      %v4286 = vor.u32 %v4285, %v4281
      %v4287 = vrot.slane %v4286, 4
      %v4289 = vshll.u32 %v3931, 16
      %v4291 = vrot.slane %v4289, 5
      %v4292 = vsel %vm1267, %v4287, %v4291
      %v4294 = vshrl.u32 %v3915, 16
      %v4296 = vrot.slane %v4294, 4
      %v4297 = vshll.u32 %v3915, 16
      %v4299 = vrot.slane %v4297, 5
      %v4300 = vor.u32 %v4296, %v4299
      %v4301 = vrot.slane %v4300, 4
      %v4303 = vshll.u32 %v3916, 16
      %v4305 = vrot.slane %v4303, 5
      %v4306 = vsel %vm1267, %v4301, %v4305
      %v4307 = vshrl.u32 %v3916, 16
      %v4309 = vrot.slane %v4307, 4
      %v4310 = vor.u32 %v4309, %v4305
      %v4311 = vrot.slane %v4310, 4
      %v4313 = vshll.u32 %v3932, 16
      %v4315 = vrot.slane %v4313, 5
      %v4316 = vsel %vm1267, %v4311, %v4315
      %v4317 = vld [vmem:[%s3884] sm:$0xe]
      %v4318 = vld [vmem:[%s3884 + $0xc] sm:$0xe]
      %v4319 = vld [vmem:[%s3884 + $0x18] sm:$0xe]
      %v4320 = vld [vmem:[%s3884 + $0x24] sm:$0xe]
      %v4321 = vld [vmem:[%s3884 + $0x30] sm:$0xe]
      %v4322 = vld [vmem:[%s3884 + $0x3c] sm:$0xe]
      %v4323 = vld [vmem:[%s3884 + $0x48] sm:$0xe]
      %v4324 = vld [vmem:[%s3884 + $0x54] sm:$0xe]
      %v4325 = vld [vmem:[%s3884 + $0x60] sm:$0xe]
      %v4326 = vld [vmem:[%s3884 + $0x6c] sm:$0xe]
      %v4327 = vld [vmem:[%s3884 + $0x78] sm:$0xe]
      %v4328 = vld [vmem:[%s3884 + $0x84] sm:$0xe]
      %v4329 = vld [vmem:[%s3884 + $0x90] sm:$0xe]
      %v4330 = vld [vmem:[%s3884 + $0x9c] sm:$0xe]
      %v4331 = vld [vmem:[%s3884 + $0xa8] sm:$0xe]
      %v4332 = vld [vmem:[%s3884 + $0xb4] sm:$0xe]
      %v4381 = vrot.slane %v4317, 5
      %v4382 = vrot.slane %v4381, 4
      %v4383 = vrot.slane %v3886, 5
      %v4384 = vsel %vm1718, %v4382, %v4383
      %v4385 = vrot.slane %v4383, 4
      %v4386 = vrot.slane %v3917, 5
      %v4387 = vsel %vm1718, %v4385, %v4386
      %v4388 = vrot.slane %v4318, 5
      %v4389 = vrot.slane %v4388, 4
      %v4390 = vrot.slane %v3888, 5
      %v4391 = vsel %vm1718, %v4389, %v4390
      %v4392 = vrot.slane %v4390, 4
      %v4393 = vrot.slane %v3918, 5
      %v4394 = vsel %vm1718, %v4392, %v4393
      %v4395 = vrot.slane %v4319, 5
      %v4396 = vrot.slane %v4395, 4
      %v4397 = vrot.slane %v3890, 5
      %v4398 = vsel %vm1718, %v4396, %v4397
      %v4399 = vrot.slane %v4397, 4
      %v4400 = vrot.slane %v3919, 5
      %v4401 = vsel %vm1718, %v4399, %v4400
      %v4402 = vrot.slane %v4320, 5
      %v4403 = vrot.slane %v4402, 4
      %v4404 = vrot.slane %v3892, 5
      %v4405 = vsel %vm1718, %v4403, %v4404
      %v4406 = vrot.slane %v4404, 4
      %v4407 = vrot.slane %v3920, 5
      %v4408 = vsel %vm1718, %v4406, %v4407
      %v4409 = vrot.slane %v4321, 5
      %v4410 = vrot.slane %v4409, 4
      %v4411 = vrot.slane %v3894, 5
      %v4412 = vsel %vm1718, %v4410, %v4411
      %v4413 = vrot.slane %v4411, 4
      %v4414 = vrot.slane %v3921, 5
      %v4415 = vsel %vm1718, %v4413, %v4414
      %v4416 = vrot.slane %v4322, 5
      %v4417 = vrot.slane %v4416, 4
      %v4418 = vrot.slane %v3896, 5
      %v4419 = vsel %vm1718, %v4417, %v4418
      %v4420 = vrot.slane %v4418, 4
      %v4421 = vrot.slane %v3922, 5
      %v4422 = vsel %vm1718, %v4420, %v4421
      %v4423 = vrot.slane %v4323, 5
      %v4424 = vrot.slane %v4423, 4
      %v4425 = vrot.slane %v3898, 5
      %v4426 = vsel %vm1718, %v4424, %v4425
      %v4427 = vrot.slane %v4425, 4
      %v4428 = vrot.slane %v3923, 5
      %v4429 = vsel %vm1718, %v4427, %v4428
      %v4430 = vrot.slane %v4324, 5
      %v4431 = vrot.slane %v4430, 4
      %v4432 = vrot.slane %v3900, 5
      %v4433 = vsel %vm1718, %v4431, %v4432
      %v4434 = vrot.slane %v4432, 4
      %v4435 = vrot.slane %v3924, 5
      %v4436 = vsel %vm1718, %v4434, %v4435
      %v4437 = vrot.slane %v4325, 5
      %v4438 = vrot.slane %v4437, 4
      %v4439 = vrot.slane %v3902, 5
      %v4440 = vsel %vm1718, %v4438, %v4439
      %v4441 = vrot.slane %v4439, 4
      %v4442 = vrot.slane %v3925, 5
      %v4443 = vsel %vm1718, %v4441, %v4442
      %v4444 = vrot.slane %v4326, 5
      %v4445 = vrot.slane %v4444, 4
      %v4446 = vrot.slane %v3904, 5
      %v4447 = vsel %vm1718, %v4445, %v4446
      %v4448 = vrot.slane %v4446, 4
      %v4449 = vrot.slane %v3926, 5
      %v4450 = vsel %vm1718, %v4448, %v4449
      %v4451 = vrot.slane %v4327, 5
      %v4452 = vrot.slane %v4451, 4
      %v4453 = vrot.slane %v3906, 5
      %v4454 = vsel %vm1718, %v4452, %v4453
      %v4455 = vrot.slane %v4453, 4
      %v4456 = vrot.slane %v3927, 5
      %v4457 = vsel %vm1718, %v4455, %v4456
      %v4458 = vrot.slane %v4328, 5
      %v4459 = vrot.slane %v4458, 4
      %v4460 = vrot.slane %v3908, 5
      %v4461 = vsel %vm1718, %v4459, %v4460
      %v4462 = vrot.slane %v4460, 4
      %v4463 = vrot.slane %v3928, 5
      %v4464 = vsel %vm1718, %v4462, %v4463
      %v4465 = vrot.slane %v4329, 5
      %v4466 = vrot.slane %v4465, 4
      %v4467 = vrot.slane %v3910, 5
      %v4468 = vsel %vm1718, %v4466, %v4467
      %v4469 = vrot.slane %v4467, 4
      %v4470 = vrot.slane %v3929, 5
      %v4471 = vsel %vm1718, %v4469, %v4470
      %v4472 = vrot.slane %v4330, 5
      %v4473 = vrot.slane %v4472, 4
      %v4474 = vrot.slane %v3912, 5
      %v4475 = vsel %vm1718, %v4473, %v4474
      %v4476 = vrot.slane %v4474, 4
      %v4477 = vrot.slane %v3930, 5
      %v4478 = vsel %vm1718, %v4476, %v4477
      %v4479 = vrot.slane %v4331, 5
      %v4480 = vrot.slane %v4479, 4
      %v4481 = vrot.slane %v3914, 5
      %v4482 = vsel %vm1718, %v4480, %v4481
      %v4483 = vrot.slane %v4481, 4
      %v4484 = vrot.slane %v3931, 5
      %v4485 = vsel %vm1718, %v4483, %v4484
      %v4486 = vrot.slane %v4332, 5
      %v4487 = vrot.slane %v4486, 4
      %v4488 = vrot.slane %v3916, 5
      %v4489 = vsel %vm1718, %v4487, %v4488
      %v4490 = vrot.slane %v4488, 4
      %v4491 = vrot.slane %v3932, 5
      %v4492 = vsel %vm1718, %v4490, %v4491
      %v4509 = vunpack.c.l.b16 %v3885
      %v4510 = vunpack.c.l.b16 %v3886
      %v4511 = vunpack.c.l.b16 %v3887
      %v4512 = vunpack.c.l.b16 %v3888
      %v4513 = vunpack.c.l.b16 %v3889
      %v4514 = vunpack.c.l.b16 %v3890
      %v4515 = vunpack.c.l.b16 %v3891
      %v4516 = vunpack.c.l.b16 %v3892
      %v4517 = vunpack.c.l.b16 %v3893
      %v4518 = vunpack.c.l.b16 %v3894
      %v4519 = vunpack.c.l.b16 %v3895
      %v4520 = vunpack.c.l.b16 %v3896
      %v4521 = vunpack.c.l.b16 %v3897
      %v4522 = vunpack.c.l.b16 %v3898
      %v4523 = vunpack.c.l.b16 %v3899
      %v4524 = vunpack.c.l.b16 %v3900
      %v4525 = vunpack.c.l.b16 %v3901
      %v4526 = vunpack.c.l.b16 %v3902
      %v4527 = vunpack.c.l.b16 %v3903
      %v4528 = vunpack.c.l.b16 %v3904
      %v4529 = vunpack.c.l.b16 %v3905
      %v4530 = vunpack.c.l.b16 %v3906
      %v4531 = vunpack.c.l.b16 %v3907
      %v4532 = vunpack.c.l.b16 %v3908
      %v4533 = vunpack.c.l.b16 %v3909
      %v4534 = vunpack.c.l.b16 %v3910
      %v4535 = vunpack.c.l.b16 %v3911
      %v4536 = vunpack.c.l.b16 %v3912
      %v4537 = vunpack.c.l.b16 %v3913
      %v4538 = vunpack.c.l.b16 %v3914
      %v4539 = vunpack.c.l.b16 %v3915
      %v4540 = vunpack.c.l.b16 %v3916
      %v4541 = vpack.c.b16 %v4510, %v4509
      %v4542 = vpack.c.b16 %v4512, %v4511
      %v4543 = vpack.c.b16 %v4514, %v4513
      %v4544 = vpack.c.b16 %v4516, %v4515
      %v4545 = vpack.c.b16 %v4518, %v4517
      %v4546 = vpack.c.b16 %v4520, %v4519
      %v4547 = vpack.c.b16 %v4522, %v4521
      %v4548 = vpack.c.b16 %v4524, %v4523
      %v4549 = vpack.c.b16 %v4526, %v4525
      %v4550 = vpack.c.b16 %v4528, %v4527
      %v4551 = vpack.c.b16 %v4530, %v4529
      %v4552 = vpack.c.b16 %v4532, %v4531
      %v4553 = vpack.c.b16 %v4534, %v4533
      %v4554 = vpack.c.b16 %v4536, %v4535
      %v4555 = vpack.c.b16 %v4538, %v4537
      %v4556 = vpack.c.b16 %v4540, %v4539
      %v4573 = vunpack.c.l.b16 %v3946
      %v4574 = vunpack.c.l.b16 %v3956
      %v4575 = vunpack.c.l.b16 %v3970
      %v4576 = vunpack.c.l.b16 %v3980
      %v4577 = vunpack.c.l.b16 %v3994
      %v4578 = vunpack.c.l.b16 %v4004
      %v4579 = vunpack.c.l.b16 %v4018
      %v4580 = vunpack.c.l.b16 %v4028
      %v4581 = vunpack.c.l.b16 %v4042
      %v4582 = vunpack.c.l.b16 %v4052
      %v4583 = vunpack.c.l.b16 %v4066
      %v4584 = vunpack.c.l.b16 %v4076
      %v4585 = vunpack.c.l.b16 %v4090
      %v4586 = vunpack.c.l.b16 %v4100
      %v4587 = vunpack.c.l.b16 %v4114
      %v4588 = vunpack.c.l.b16 %v4124
      %v4589 = vunpack.c.l.b16 %v4138
      %v4590 = vunpack.c.l.b16 %v4148
      %v4591 = vunpack.c.l.b16 %v4162
      %v4592 = vunpack.c.l.b16 %v4172
      %v4593 = vunpack.c.l.b16 %v4186
      %v4594 = vunpack.c.l.b16 %v4196
      %v4595 = vunpack.c.l.b16 %v4210
      %v4596 = vunpack.c.l.b16 %v4220
      %v4597 = vunpack.c.l.b16 %v4234
      %v4598 = vunpack.c.l.b16 %v4244
      %v4599 = vunpack.c.l.b16 %v4258
      %v4600 = vunpack.c.l.b16 %v4268
      %v4601 = vunpack.c.l.b16 %v4282
      %v4602 = vunpack.c.l.b16 %v4292
      %v4603 = vunpack.c.l.b16 %v4306
      %v4604 = vunpack.c.l.b16 %v4316
      %v4605 = vpack.c.b16 %v4574, %v4573
      %v4606 = vpack.c.b16 %v4576, %v4575
      %v4607 = vpack.c.b16 %v4578, %v4577
      %v4608 = vpack.c.b16 %v4580, %v4579
      %v4609 = vpack.c.b16 %v4582, %v4581
      %v4610 = vpack.c.b16 %v4584, %v4583
      %v4611 = vpack.c.b16 %v4586, %v4585
      %v4612 = vpack.c.b16 %v4588, %v4587
      %v4613 = vpack.c.b16 %v4590, %v4589
      %v4614 = vpack.c.b16 %v4592, %v4591
      %v4615 = vpack.c.b16 %v4594, %v4593
      %v4616 = vpack.c.b16 %v4596, %v4595
      %v4617 = vpack.c.b16 %v4598, %v4597
      %v4618 = vpack.c.b16 %v4600, %v4599
      %v4619 = vpack.c.b16 %v4602, %v4601
      %v4620 = vpack.c.b16 %v4604, %v4603
      %v4637 = vunpack.c.l.b16 %v4384
      %v4638 = vunpack.c.l.b16 %v4387
      %v4639 = vunpack.c.l.b16 %v4391
      %v4640 = vunpack.c.l.b16 %v4394
      %v4641 = vunpack.c.l.b16 %v4398
      %v4642 = vunpack.c.l.b16 %v4401
      %v4643 = vunpack.c.l.b16 %v4405
      %v4644 = vunpack.c.l.b16 %v4408
      %v4645 = vunpack.c.l.b16 %v4412
      %v4646 = vunpack.c.l.b16 %v4415
      %v4647 = vunpack.c.l.b16 %v4419
      %v4648 = vunpack.c.l.b16 %v4422
      %v4649 = vunpack.c.l.b16 %v4426
      %v4650 = vunpack.c.l.b16 %v4429
      %v4651 = vunpack.c.l.b16 %v4433
      %v4652 = vunpack.c.l.b16 %v4436
      %v4653 = vunpack.c.l.b16 %v4440
      %v4654 = vunpack.c.l.b16 %v4443
      %v4655 = vunpack.c.l.b16 %v4447
      %v4656 = vunpack.c.l.b16 %v4450
      %v4657 = vunpack.c.l.b16 %v4454
      %v4658 = vunpack.c.l.b16 %v4457
      %v4659 = vunpack.c.l.b16 %v4461
      %v4660 = vunpack.c.l.b16 %v4464
      %v4661 = vunpack.c.l.b16 %v4468
      %v4662 = vunpack.c.l.b16 %v4471
      %v4663 = vunpack.c.l.b16 %v4475
      %v4664 = vunpack.c.l.b16 %v4478
      %v4665 = vunpack.c.l.b16 %v4482
      %v4666 = vunpack.c.l.b16 %v4485
      %v4667 = vunpack.c.l.b16 %v4489
      %v4668 = vunpack.c.l.b16 %v4492
      %v4669 = vpack.c.b16 %v4638, %v4637
      %v4670 = vpack.c.b16 %v4640, %v4639
      %v4671 = vpack.c.b16 %v4642, %v4641
      %v4672 = vpack.c.b16 %v4644, %v4643
      %v4673 = vpack.c.b16 %v4646, %v4645
      %v4674 = vpack.c.b16 %v4648, %v4647
      %v4675 = vpack.c.b16 %v4650, %v4649
      %v4676 = vpack.c.b16 %v4652, %v4651
      %v4677 = vpack.c.b16 %v4654, %v4653
      %v4678 = vpack.c.b16 %v4656, %v4655
      %v4679 = vpack.c.b16 %v4658, %v4657
      %v4680 = vpack.c.b16 %v4660, %v4659
      %v4681 = vpack.c.b16 %v4662, %v4661
      %v4682 = vpack.c.b16 %v4664, %v4663
      %v4683 = vpack.c.b16 %v4666, %v4665
      %v4684 = vpack.c.b16 %v4668, %v4667
      %s4701 = scalar_lea.vmem %s3, 384
      %v4702 = vld [vmem:[%s4701] sm:$0xf]
      %v4703 = vld [vmem:[%s4701 + $0x4] sm:$0xf]
      %v4704 = vld [vmem:[%s4701 + $0x8] sm:$0xf]
      %v4705 = vld [vmem:[%s4701 + $0xc] sm:$0xf]
      %v4706 = vld [vmem:[%s4701 + $0x10] sm:$0xf]
      %v4707 = vld [vmem:[%s4701 + $0x14] sm:$0xf]
      %v4708 = vld [vmem:[%s4701 + $0x18] sm:$0xf]
      %v4709 = vld [vmem:[%s4701 + $0x1c] sm:$0xf]
      %v4710 = vld [vmem:[%s4701 + $0x20] sm:$0xf]
      %v4711 = vld [vmem:[%s4701 + $0x24] sm:$0xf]
      %v4712 = vld [vmem:[%s4701 + $0x28] sm:$0xf]
      %v4713 = vld [vmem:[%s4701 + $0x2c] sm:$0xf]
      %v4714 = vld [vmem:[%s4701 + $0x30] sm:$0xf]
      %v4715 = vld [vmem:[%s4701 + $0x34] sm:$0xf]
      %v4716 = vld [vmem:[%s4701 + $0x38] sm:$0xf]
      %v4717 = vld [vmem:[%s4701 + $0x3c] sm:$0xf]
      %v4718 = vld [vmem:[%s4701 + $0x40] sm:$0xf]
      %v4719 = vld [vmem:[%s4701 + $0x44] sm:$0xf]
      %v4720 = vld [vmem:[%s4701 + $0x48] sm:$0xf]
      %v4721 = vld [vmem:[%s4701 + $0x4c] sm:$0xf]
      %v4722 = vld [vmem:[%s4701 + $0x50] sm:$0xf]
      %v4723 = vld [vmem:[%s4701 + $0x54] sm:$0xf]
      %v4724 = vld [vmem:[%s4701 + $0x58] sm:$0xf]
      %v4725 = vld [vmem:[%s4701 + $0x5c] sm:$0xf]
      %v4726 = vld [vmem:[%s4701 + $0x60] sm:$0xf]
      %v4727 = vld [vmem:[%s4701 + $0x64] sm:$0xf]
      %v4728 = vld [vmem:[%s4701 + $0x68] sm:$0xf]
      %v4729 = vld [vmem:[%s4701 + $0x6c] sm:$0xf]
      %v4730 = vld [vmem:[%s4701 + $0x70] sm:$0xf]
      %v4731 = vld [vmem:[%s4701 + $0x74] sm:$0xf]
      %v4732 = vld [vmem:[%s4701 + $0x78] sm:$0xf]
      %v4733 = vld [vmem:[%s4701 + $0x7c] sm:$0xf]
      %v4734 = vld [vmem:[%s4701 + $0x80] sm:$0xf]
      %v4735 = vld [vmem:[%s4701 + $0x84] sm:$0xf]
      %v4736 = vld [vmem:[%s4701 + $0x88] sm:$0xf]
      %v4737 = vld [vmem:[%s4701 + $0x8c] sm:$0xf]
      %v4738 = vld [vmem:[%s4701 + $0x90] sm:$0xf]
      %v4739 = vld [vmem:[%s4701 + $0x94] sm:$0xf]
      %v4740 = vld [vmem:[%s4701 + $0x98] sm:$0xf]
      %v4741 = vld [vmem:[%s4701 + $0x9c] sm:$0xf]
      %v4742 = vld [vmem:[%s4701 + $0xa0] sm:$0xf]
      %v4743 = vld [vmem:[%s4701 + $0xa4] sm:$0xf]
      %v4744 = vld [vmem:[%s4701 + $0xa8] sm:$0xf]
      %v4745 = vld [vmem:[%s4701 + $0xac] sm:$0xf]
      %v4746 = vld [vmem:[%s4701 + $0xb0] sm:$0xf]
      %v4747 = vld [vmem:[%s4701 + $0xb4] sm:$0xf]
      %v4748 = vld [vmem:[%s4701 + $0xb8] sm:$0xf]
      %v4749 = vld [vmem:[%s4701 + $0xbc] sm:$0xf]
      %v4798 = vunpack.c.l.b16 %v4702
      %v4799 = vunpack.c.l.b16 %v4703
      %v4800 = vunpack.c.l.b16 %v4704
      %v4801 = vunpack.c.l.b16 %v4705
      %v4802 = vunpack.c.l.b16 %v4706
      %v4803 = vunpack.c.l.b16 %v4707
      %v4804 = vunpack.c.l.b16 %v4708
      %v4805 = vunpack.c.l.b16 %v4709
      %v4806 = vunpack.c.l.b16 %v4710
      %v4807 = vunpack.c.l.b16 %v4711
      %v4808 = vunpack.c.l.b16 %v4712
      %v4809 = vunpack.c.l.b16 %v4713
      %v4810 = vunpack.c.l.b16 %v4714
      %v4811 = vunpack.c.l.b16 %v4715
      %v4812 = vunpack.c.l.b16 %v4716
      %v4813 = vunpack.c.l.b16 %v4717
      %v4814 = vunpack.c.l.b16 %v4718
      %v4815 = vunpack.c.l.b16 %v4719
      %v4816 = vunpack.c.l.b16 %v4720
      %v4817 = vunpack.c.l.b16 %v4721
      %v4818 = vunpack.c.l.b16 %v4722
      %v4819 = vunpack.c.l.b16 %v4723
      %v4820 = vunpack.c.l.b16 %v4724
      %v4821 = vunpack.c.l.b16 %v4725
      %v4822 = vunpack.c.l.b16 %v4726
      %v4823 = vunpack.c.l.b16 %v4727
      %v4824 = vunpack.c.l.b16 %v4728
      %v4825 = vunpack.c.l.b16 %v4729
      %v4826 = vunpack.c.l.b16 %v4730
      %v4827 = vunpack.c.l.b16 %v4731
      %v4828 = vunpack.c.l.b16 %v4732
      %v4829 = vunpack.c.l.b16 %v4733
      %v4830 = vunpack.c.l.b16 %v4734
      %v4831 = vunpack.c.l.b16 %v4735
      %v4832 = vunpack.c.l.b16 %v4736
      %v4833 = vunpack.c.l.b16 %v4737
      %v4834 = vunpack.c.l.b16 %v4738
      %v4835 = vunpack.c.l.b16 %v4739
      %v4836 = vunpack.c.l.b16 %v4740
      %v4837 = vunpack.c.l.b16 %v4741
      %v4838 = vunpack.c.l.b16 %v4742
      %v4839 = vunpack.c.l.b16 %v4743
      %v4840 = vunpack.c.l.b16 %v4744
      %v4841 = vunpack.c.l.b16 %v4745
      %v4842 = vunpack.c.l.b16 %v4746
      %v4843 = vunpack.c.l.b16 %v4747
      %v4844 = vunpack.c.l.b16 %v4748
      %v4845 = vunpack.c.l.b16 %v4749
      %v4846 = vpack.c.b16 %v4799, %v4798
      %v4847 = vpack.c.b16 %v4801, %v4800
      %v4848 = vpack.c.b16 %v4803, %v4802
      %v4849 = vpack.c.b16 %v4805, %v4804
      %v4850 = vpack.c.b16 %v4807, %v4806
      %v4851 = vpack.c.b16 %v4809, %v4808
      %v4852 = vpack.c.b16 %v4811, %v4810
      %v4853 = vpack.c.b16 %v4813, %v4812
      %v4854 = vpack.c.b16 %v4815, %v4814
      %v4855 = vpack.c.b16 %v4817, %v4816
      %v4856 = vpack.c.b16 %v4819, %v4818
      %v4857 = vpack.c.b16 %v4821, %v4820
      %v4858 = vpack.c.b16 %v4823, %v4822
      %v4859 = vpack.c.b16 %v4825, %v4824
      %v4860 = vpack.c.b16 %v4827, %v4826
      %v4861 = vpack.c.b16 %v4829, %v4828
      %v4862 = vpack.c.b16 %v4831, %v4830
      %v4863 = vpack.c.b16 %v4833, %v4832
      %v4864 = vpack.c.b16 %v4835, %v4834
      %v4865 = vpack.c.b16 %v4837, %v4836
      %v4866 = vpack.c.b16 %v4839, %v4838
      %v4867 = vpack.c.b16 %v4841, %v4840
      %v4868 = vpack.c.b16 %v4843, %v4842
      %v4869 = vpack.c.b16 %v4845, %v4844
      %4894 = vmatprep.subr.bf16.mxu0 0
      %4895 = vmatpush1.bf16.msra.mxu0 %v4846
      %4896 = vmatprep.subr.bf16.mxu0 0
      %4897 = vmatpush1.bf16.msra.mxu0 %v4847
      %4898 = vmatprep.subr.bf16.mxu0 0
      %4899 = vmatpush1.bf16.msra.mxu0 %v4848
      %4900 = vmatprep.subr.bf16.mxu0 0
      %4901 = vmatpush1.bf16.msra.mxu0 %v4849
      %4902 = vmatprep.subr.bf16.mxu0 0
      %4903 = vmatpush1.bf16.msra.mxu0 %v4850
      %4904 = vmatprep.subr.bf16.mxu0 0
      %4905 = vmatpush1.bf16.msra.mxu0 %v4851
      %4906 = vmatprep.subr.bf16.mxu0 0
      %4907 = vmatpush1.bf16.msra.mxu0 %v4852
      %4908 = vmatprep.subr.bf16.mxu0 0
      %4909 = vmatpush1.bf16.msra.mxu0 %v4853
      %4910 = vmatprep.subr.bf16.mxu0 0
      %4911 = vmatpush1.bf16.msra.mxu0 %v4854
      %4912 = vmatprep.subr.bf16.mxu0 0
      %4913 = vmatpush1.bf16.msra.mxu0 %v4855
      %4914 = vmatprep.subr.bf16.mxu0 0
      %4915 = vmatpush1.bf16.msra.mxu0 %v4856
      %4916 = vmatprep.subr.bf16.mxu0 0
      %4917 = vmatpush1.bf16.msra.mxu0 %v4857
      %4918 = vmatprep.subr.bf16.mxu0 0
      %4919 = vmatpush1.bf16.msra.mxu0 %v4858
      %4920 = vmatprep.subr.bf16.mxu0 0
      %4921 = vmatpush1.bf16.msra.mxu0 %v4859
      %4922 = vmatprep.subr.bf16.mxu0 0
      %4923 = vmatpush1.bf16.msra.mxu0 %v4860
      %4924 = vmatprep.subr.bf16.mxu0 0
      %4925 = vmatpush1.bf16.msra.mxu0 %v4861
      %4926 = vmatprep.mubr.bf16.mxu0 %v4605
      %4927 = vmatmul.mubr.bf16.gmra.mrb[0].mxu0 %v4541
      %v4928 = vpop.f32.mrb[0].mxu0
      %v4929 = vadd.f32 0.0, %v4928
      %v4930 = vpop.f32.mrb[0].mxu0
      %v4931 = vpop.f32.mrb[0].mxu0
      %v4932 = vadd.f32 0.0, %v4931
      %v4933 = vpop.f32.mrb[0].mxu0
      %4934 = vmatprep.mubr.bf16.mxu0 %v4606
      %4935 = vmatmul.mubr.bf16.gmra.mrb[0].mxu0 %v4542
      %v4936 = vpop.f32.mrb[0].mxu0
      %v4937 = vadd.f32 0.0, %v4936
      %v4938 = vpop.f32.mrb[0].mxu0
      %v4939 = vpop.f32.mrb[0].mxu0
      %v4940 = vadd.f32 0.0, %v4939
      %v4941 = vpop.f32.mrb[0].mxu0
      %4942 = vmatprep.mubr.bf16.mxu0 %v4607
      %4943 = vmatmul.mubr.bf16.gmra.mrb[0].mxu0 %v4543
      %v4944 = vpop.f32.mrb[0].mxu0
      %v4945 = vadd.f32 0.0, %v4944
      %v4946 = vpop.f32.mrb[0].mxu0
      %v4947 = vpop.f32.mrb[0].mxu0
      %v4948 = vadd.f32 0.0, %v4947
      %v4949 = vpop.f32.mrb[0].mxu0
      %4950 = vmatprep.mubr.bf16.mxu0 %v4608
      %4951 = vmatmul.mubr.bf16.gmra.mrb[0].mxu0 %v4544
      %v4952 = vpop.f32.mrb[0].mxu0
      %v4953 = vadd.f32 0.0, %v4952
      %v4954 = vpop.f32.mrb[0].mxu0
      %v4955 = vpop.f32.mrb[0].mxu0
      %v4956 = vadd.f32 0.0, %v4955
      %v4957 = vpop.f32.mrb[0].mxu0
      %4958 = vmatprep.mubr.bf16.mxu0 %v4609
      %4959 = vmatmul.mubr.bf16.gmra.mrb[0].mxu0 %v4545
      %v4960 = vpop.f32.mrb[0].mxu0
      %v4961 = vadd.f32 0.0, %v4960
      %v4962 = vpop.f32.mrb[0].mxu0
      %v4963 = vpop.f32.mrb[0].mxu0
      %v4964 = vadd.f32 0.0, %v4963
      %v4965 = vpop.f32.mrb[0].mxu0
      %4966 = vmatprep.mubr.bf16.mxu0 %v4610
      %4967 = vmatmul.mubr.bf16.gmra.mrb[0].mxu0 %v4546
      %v4968 = vpop.f32.mrb[0].mxu0
      %v4969 = vadd.f32 0.0, %v4968
      %v4970 = vpop.f32.mrb[0].mxu0
      %v4971 = vpop.f32.mrb[0].mxu0
      %v4972 = vadd.f32 0.0, %v4971
      %v4973 = vpop.f32.mrb[0].mxu0
      %4974 = vmatprep.mubr.bf16.mxu0 %v4611
      %4975 = vmatmul.mubr.bf16.gmra.mrb[0].mxu0 %v4547
      %v4976 = vpop.f32.mrb[0].mxu0
      %v4977 = vadd.f32 0.0, %v4976
      %v4978 = vpop.f32.mrb[0].mxu0
      %v4979 = vpop.f32.mrb[0].mxu0
      %v4980 = vadd.f32 0.0, %v4979
      %v4981 = vpop.f32.mrb[0].mxu0
      %4982 = vmatprep.mubr.bf16.mxu0 %v4612
      %4983 = vmatmul.mubr.bf16.gmra.mrb[0].mxu0 %v4548
      %v4984 = vpop.f32.mrb[0].mxu0
      %v4985 = vadd.f32 0.0, %v4984
      %v4986 = vpop.f32.mrb[0].mxu0
      %v4987 = vpop.f32.mrb[0].mxu0
      %v4988 = vadd.f32 0.0, %v4987
      %v4989 = vpop.f32.mrb[0].mxu0
      %4990 = vmatprep.mubr.bf16.mxu0 %v4613
      %4991 = vmatmul.mubr.bf16.gmra.mrb[0].mxu0 %v4549
      %v4992 = vpop.f32.mrb[0].mxu0
      %v4993 = vadd.f32 0.0, %v4992
      %v4994 = vpop.f32.mrb[0].mxu0
      %v4995 = vpop.f32.mrb[0].mxu0
      %v4996 = vadd.f32 0.0, %v4995
      %v4997 = vpop.f32.mrb[0].mxu0
      %4998 = vmatprep.mubr.bf16.mxu0 %v4614
      %4999 = vmatmul.mubr.bf16.gmra.mrb[0].mxu0 %v4550
      %v5000 = vpop.f32.mrb[0].mxu0
      %v5001 = vadd.f32 0.0, %v5000
      %v5002 = vpop.f32.mrb[0].mxu0
      %v5003 = vpop.f32.mrb[0].mxu0
      %v5004 = vadd.f32 0.0, %v5003
      %v5005 = vpop.f32.mrb[0].mxu0
      %5006 = vmatprep.mubr.bf16.mxu0 %v4615
      %5007 = vmatmul.mubr.bf16.gmra.mrb[0].mxu0 %v4551
      %v5008 = vpop.f32.mrb[0].mxu0
      %v5009 = vadd.f32 0.0, %v5008
      %v5010 = vpop.f32.mrb[0].mxu0
      %v5011 = vpop.f32.mrb[0].mxu0
      %v5012 = vadd.f32 0.0, %v5011
      %v5013 = vpop.f32.mrb[0].mxu0
      %5014 = vmatprep.mubr.bf16.mxu0 %v4616
      %5015 = vmatmul.mubr.bf16.gmra.mrb[0].mxu0 %v4552
      %v5016 = vpop.f32.mrb[0].mxu0
      %v5017 = vadd.f32 0.0, %v5016
      %v5018 = vpop.f32.mrb[0].mxu0
      %v5019 = vpop.f32.mrb[0].mxu0
      %v5020 = vadd.f32 0.0, %v5019
      %v5021 = vpop.f32.mrb[0].mxu0
      %5022 = vmatprep.mubr.bf16.mxu0 %v4617
      %5023 = vmatmul.mubr.bf16.gmra.mrb[0].mxu0 %v4553
      %v5024 = vpop.f32.mrb[0].mxu0
      %v5025 = vadd.f32 0.0, %v5024
      %v5026 = vpop.f32.mrb[0].mxu0
      %v5027 = vpop.f32.mrb[0].mxu0
      %v5028 = vadd.f32 0.0, %v5027
      %v5029 = vpop.f32.mrb[0].mxu0
      %5030 = vmatprep.mubr.bf16.mxu0 %v4618
      %5031 = vmatmul.mubr.bf16.gmra.mrb[0].mxu0 %v4554
      %v5032 = vpop.f32.mrb[0].mxu0
      %v5033 = vadd.f32 0.0, %v5032
      %v5034 = vpop.f32.mrb[0].mxu0
      %v5035 = vpop.f32.mrb[0].mxu0
      %v5036 = vadd.f32 0.0, %v5035
      %v5037 = vpop.f32.mrb[0].mxu0
      %5038 = vmatprep.mubr.bf16.mxu0 %v4619
      %5039 = vmatmul.mubr.bf16.gmra.mrb[0].mxu0 %v4555
      %v5040 = vpop.f32.mrb[0].mxu0
      %v5041 = vadd.f32 0.0, %v5040
      %v5042 = vpop.f32.mrb[0].mxu0
      %v5043 = vpop.f32.mrb[0].mxu0
      %v5044 = vadd.f32 0.0, %v5043
      %v5045 = vpop.f32.mrb[0].mxu0
      %5046 = vmatprep.mubr.bf16.mxu0 %v4620
      %5047 = vmatmul.mubr.bf16.gmra.mrb[0].mxu0 %v4556
      %v5048 = vpop.f32.mrb[0].mxu0
      %v5049 = vadd.f32 0.0, %v5048
      %v5050 = vpop.f32.mrb[0].mxu0
      %v5051 = vpop.f32.mrb[0].mxu0
      %v5052 = vadd.f32 0.0, %v5051
      %v5053 = vpop.f32.mrb[0].mxu0
      %5054 = vdwg.mxu0
      %5055 = vmatprep.subr.bf16.mxu0 0
      %5056 = vmatpush1.bf16.msra.mxu0 %v4862
      %5057 = vmatprep.subr.bf16.mxu0 0
      %5058 = vmatpush1.bf16.msra.mxu0 %v4863
      %5059 = vmatprep.subr.bf16.mxu0 0
      %5060 = vmatpush1.bf16.msra.mxu0 %v4864
      %5061 = vmatprep.subr.bf16.mxu0 0
      %5062 = vmatpush1.bf16.msra.mxu0 %v4865
      %5063 = vmatprep.subr.bf16.mxu0 0
      %5064 = vmatpush1.bf16.msra.mxu0 %v4866
      %5065 = vmatprep.subr.bf16.mxu0 0
      %5066 = vmatpush1.bf16.msra.mxu0 %v4867
      %5067 = vmatprep.subr.bf16.mxu0 0
      %5068 = vmatpush1.bf16.msra.mxu0 %v4868
      %5069 = vmatprep.subr.bf16.mxu0 0
      %5070 = vmatpush1.bf16.msra.mxu0 %v4869
      %5071 = vmatprep.subr.bf16.mxu0 0
      %5072 = vmatpush1.bf16.msra.mxu0 0
      %5073 = vmatprep.subr.bf16.mxu0 0
      %5074 = vmatpush1.bf16.msra.mxu0 0
      %5075 = vmatprep.subr.bf16.mxu0 0
      %5076 = vmatpush1.bf16.msra.mxu0 0
      %5077 = vmatprep.subr.bf16.mxu0 0
      %5078 = vmatpush1.bf16.msra.mxu0 0
      %5079 = vmatprep.subr.bf16.mxu0 0
      %5080 = vmatpush1.bf16.msra.mxu0 0
      %5081 = vmatprep.subr.bf16.mxu0 0
      %5082 = vmatpush1.bf16.msra.mxu0 0
      %5083 = vmatprep.subr.bf16.mxu0 0
      %5084 = vmatpush1.bf16.msra.mxu0 0
      %5085 = vmatprep.subr.bf16.mxu0 0
      %5086 = vmatpush1.bf16.msra.mxu0 0
      %5087 = vmatprep.mubr.bf16.mxu0 0
      %5088 = vmatmul.mubr.bf16.gmra.mrb[0].mxu0 %v4669
      %v5089 = vpop.f32.mrb[0].mxu0
      %v5090 = vadd.f32 %v4929, %v5089
      %v5091 = vpop.f32.mrb[0].mxu0
      %v5092 = vpop.f32.mrb[0].mxu0
      %v5093 = vadd.f32 %v4932, %v5092
      %v5094 = vpop.f32.mrb[0].mxu0
      %5095 = vmatprep.mubr.bf16.mxu0 0
      %5096 = vmatmul.mubr.bf16.gmra.mrb[0].mxu0 %v4670
      %v5097 = vpop.f32.mrb[0].mxu0
      %v5098 = vadd.f32 %v4937, %v5097
      %v5099 = vpop.f32.mrb[0].mxu0
      %v5100 = vpop.f32.mrb[0].mxu0
      %v5101 = vadd.f32 %v4940, %v5100
      %v5102 = vpop.f32.mrb[0].mxu0
      %5103 = vmatprep.mubr.bf16.mxu0 0
      %5104 = vmatmul.mubr.bf16.gmra.mrb[0].mxu0 %v4671
      %v5105 = vpop.f32.mrb[0].mxu0
      %v5106 = vadd.f32 %v4945, %v5105
      %v5107 = vpop.f32.mrb[0].mxu0
      %v5108 = vpop.f32.mrb[0].mxu0
      %v5109 = vadd.f32 %v4948, %v5108
      %v5110 = vpop.f32.mrb[0].mxu0
      %5111 = vmatprep.mubr.bf16.mxu0 0
      %5112 = vmatmul.mubr.bf16.gmra.mrb[0].mxu0 %v4672
      %v5113 = vpop.f32.mrb[0].mxu0
      %v5114 = vadd.f32 %v4953, %v5113
      %v5115 = vpop.f32.mrb[0].mxu0
      %v5116 = vpop.f32.mrb[0].mxu0
      %v5117 = vadd.f32 %v4956, %v5116
      %v5118 = vpop.f32.mrb[0].mxu0
      %5119 = vmatprep.mubr.bf16.mxu0 0
      %5120 = vmatmul.mubr.bf16.gmra.mrb[0].mxu0 %v4673
      %v5121 = vpop.f32.mrb[0].mxu0
      %v5122 = vadd.f32 %v4961, %v5121
      %v5123 = vpop.f32.mrb[0].mxu0
      %v5124 = vpop.f32.mrb[0].mxu0
      %v5125 = vadd.f32 %v4964, %v5124
      %v5126 = vpop.f32.mrb[0].mxu0
      %5127 = vmatprep.mubr.bf16.mxu0 0
      %5128 = vmatmul.mubr.bf16.gmra.mrb[0].mxu0 %v4674
      %v5129 = vpop.f32.mrb[0].mxu0
      %v5130 = vadd.f32 %v4969, %v5129
      %v5131 = vpop.f32.mrb[0].mxu0
      %v5132 = vpop.f32.mrb[0].mxu0
      %v5133 = vadd.f32 %v4972, %v5132
      %v5134 = vpop.f32.mrb[0].mxu0
      %5135 = vmatprep.mubr.bf16.mxu0 0
      %5136 = vmatmul.mubr.bf16.gmra.mrb[0].mxu0 %v4675
      %v5137 = vpop.f32.mrb[0].mxu0
      %v5138 = vadd.f32 %v4977, %v5137
      %v5139 = vpop.f32.mrb[0].mxu0
      %v5140 = vpop.f32.mrb[0].mxu0
      %v5141 = vadd.f32 %v4980, %v5140
      %v5142 = vpop.f32.mrb[0].mxu0
      %5143 = vmatprep.mubr.bf16.mxu0 0
      %5144 = vmatmul.mubr.bf16.gmra.mrb[0].mxu0 %v4676
      %v5145 = vpop.f32.mrb[0].mxu0
      %v5146 = vadd.f32 %v4985, %v5145
      %v5147 = vpop.f32.mrb[0].mxu0
      %v5148 = vpop.f32.mrb[0].mxu0
      %v5149 = vadd.f32 %v4988, %v5148
      %v5150 = vpop.f32.mrb[0].mxu0
      %5151 = vmatprep.mubr.bf16.mxu0 0
      %5152 = vmatmul.mubr.bf16.gmra.mrb[0].mxu0 %v4677
      %v5153 = vpop.f32.mrb[0].mxu0
      %v5154 = vadd.f32 %v4993, %v5153
      %v5155 = vpop.f32.mrb[0].mxu0
      %v5156 = vpop.f32.mrb[0].mxu0
      %v5157 = vadd.f32 %v4996, %v5156
      %v5158 = vpop.f32.mrb[0].mxu0
      %5159 = vmatprep.mubr.bf16.mxu0 0
      %5160 = vmatmul.mubr.bf16.gmra.mrb[0].mxu0 %v4678
      %v5161 = vpop.f32.mrb[0].mxu0
      %v5162 = vadd.f32 %v5001, %v5161
      %v5163 = vpop.f32.mrb[0].mxu0
      %v5164 = vpop.f32.mrb[0].mxu0
      %v5165 = vadd.f32 %v5004, %v5164
      %v5166 = vpop.f32.mrb[0].mxu0
      %5167 = vmatprep.mubr.bf16.mxu0 0
      %5168 = vmatmul.mubr.bf16.gmra.mrb[0].mxu0 %v4679
      %v5169 = vpop.f32.mrb[0].mxu0
      %v5170 = vadd.f32 %v5009, %v5169
      %v5171 = vpop.f32.mrb[0].mxu0
      %v5172 = vpop.f32.mrb[0].mxu0
      %v5173 = vadd.f32 %v5012, %v5172
      %v5174 = vpop.f32.mrb[0].mxu0
      %5175 = vmatprep.mubr.bf16.mxu0 0
      %5176 = vmatmul.mubr.bf16.gmra.mrb[0].mxu0 %v4680
      %v5177 = vpop.f32.mrb[0].mxu0
      %v5178 = vadd.f32 %v5017, %v5177
      %v5179 = vpop.f32.mrb[0].mxu0
      %v5180 = vpop.f32.mrb[0].mxu0
      %v5181 = vadd.f32 %v5020, %v5180
      %v5182 = vpop.f32.mrb[0].mxu0
      %5183 = vmatprep.mubr.bf16.mxu0 0
      %5184 = vmatmul.mubr.bf16.gmra.mrb[0].mxu0 %v4681
      %v5185 = vpop.f32.mrb[0].mxu0
      %v5186 = vadd.f32 %v5025, %v5185
      %v5187 = vpop.f32.mrb[0].mxu0
      %v5188 = vpop.f32.mrb[0].mxu0
      %v5189 = vadd.f32 %v5028, %v5188
      %v5190 = vpop.f32.mrb[0].mxu0
      %5191 = vmatprep.mubr.bf16.mxu0 0
      %5192 = vmatmul.mubr.bf16.gmra.mrb[0].mxu0 %v4682
      %v5193 = vpop.f32.mrb[0].mxu0
      %v5194 = vadd.f32 %v5033, %v5193
      %v5195 = vpop.f32.mrb[0].mxu0
      %v5196 = vpop.f32.mrb[0].mxu0
      %v5197 = vadd.f32 %v5036, %v5196
      %v5198 = vpop.f32.mrb[0].mxu0
      %5199 = vmatprep.mubr.bf16.mxu0 0
      %5200 = vmatmul.mubr.bf16.gmra.mrb[0].mxu0 %v4683
      %v5201 = vpop.f32.mrb[0].mxu0
      %v5202 = vadd.f32 %v5041, %v5201
      %v5203 = vpop.f32.mrb[0].mxu0
      %v5204 = vpop.f32.mrb[0].mxu0
      %v5205 = vadd.f32 %v5044, %v5204
      %v5206 = vpop.f32.mrb[0].mxu0
      %5207 = vmatprep.mubr.bf16.mxu0 0
      %5208 = vmatmul.mubr.bf16.gmra.mrb[0].mxu0 %v4684
      %v5209 = vpop.f32.mrb[0].mxu0
      %v5210 = vadd.f32 %v5049, %v5209
      %v5211 = vpop.f32.mrb[0].mxu0
      %v5212 = vpop.f32.mrb[0].mxu0
      %v5213 = vadd.f32 %v5052, %v5212
      %v5214 = vpop.f32.mrb[0].mxu0
      %5215 = vdwg.mxu0
      %v5216 = vadd.f32 %v3758, %v5090
      %v5217 = vadd.f32 %v3761, %v5093
      %v5218 = vadd.f32 %v3766, %v5098
      %v5219 = vadd.f32 %v3769, %v5101
      %v5220 = vadd.f32 %v3774, %v5106
      %v5221 = vadd.f32 %v3777, %v5109
      %v5222 = vadd.f32 %v3782, %v5114
      %v5223 = vadd.f32 %v3785, %v5117
      %v5224 = vadd.f32 %v3790, %v5122
      %v5225 = vadd.f32 %v3793, %v5125
      %v5226 = vadd.f32 %v3798, %v5130
      %v5227 = vadd.f32 %v3801, %v5133
      %v5228 = vadd.f32 %v3806, %v5138
      %v5229 = vadd.f32 %v3809, %v5141
      %v5230 = vadd.f32 %v3814, %v5146
      %v5231 = vadd.f32 %v3817, %v5149
      %v5232 = vadd.f32 %v3822, %v5154
      %v5233 = vadd.f32 %v3825, %v5157
      %v5234 = vadd.f32 %v3830, %v5162
      %v5235 = vadd.f32 %v3833, %v5165
      %v5236 = vadd.f32 %v3838, %v5170
      %v5237 = vadd.f32 %v3841, %v5173
      %v5238 = vadd.f32 %v3846, %v5178
      %v5239 = vadd.f32 %v3849, %v5181
      %v5240 = vadd.f32 %v3854, %v5186
      %v5241 = vadd.f32 %v3857, %v5189
      %v5242 = vadd.f32 %v3862, %v5194
      %v5243 = vadd.f32 %v3865, %v5197
      %v5244 = vadd.f32 %v3870, %v5202
      %v5245 = vadd.f32 %v3873, %v5205
      %v5246 = vadd.f32 %v3878, %v5210
      %v5247 = vadd.f32 %v3881, %v5213
      %v5248 = vpack.c.bf16 %v5217, %v5216
      %v5249 = vpack.c.bf16 %v5219, %v5218
      %v5250 = vpack.c.bf16 %v5221, %v5220
      %v5251 = vpack.c.bf16 %v5223, %v5222
      %v5252 = vpack.c.bf16 %v5225, %v5224
      %v5253 = vpack.c.bf16 %v5227, %v5226
      %v5254 = vpack.c.bf16 %v5229, %v5228
      %v5255 = vpack.c.bf16 %v5231, %v5230
      %v5256 = vpack.c.bf16 %v5233, %v5232
      %v5257 = vpack.c.bf16 %v5235, %v5234
      %v5258 = vpack.c.bf16 %v5237, %v5236
      %v5259 = vpack.c.bf16 %v5239, %v5238
      %v5260 = vpack.c.bf16 %v5241, %v5240
      %v5261 = vpack.c.bf16 %v5243, %v5242
      %v5262 = vpack.c.bf16 %v5245, %v5244
      %v5263 = vpack.c.bf16 %v5247, %v5246
      %v5280 = vunpack.c.l.b16 %v5248
      %v5281 = vunpack.c.h.b16 %v5248
      %v5282 = vunpack.c.l.b16 %v5249
      %v5283 = vunpack.c.h.b16 %v5249
      %v5284 = vunpack.c.l.b16 %v5250
      %v5285 = vunpack.c.h.b16 %v5250
      %v5286 = vunpack.c.l.b16 %v5251
      %v5287 = vunpack.c.h.b16 %v5251
      %v5288 = vunpack.c.l.b16 %v5252
      %v5289 = vunpack.c.h.b16 %v5252
      %v5290 = vunpack.c.l.b16 %v5253
      %v5291 = vunpack.c.h.b16 %v5253
      %v5292 = vunpack.c.l.b16 %v5254
      %v5293 = vunpack.c.h.b16 %v5254
      %v5294 = vunpack.c.l.b16 %v5255
      %v5295 = vunpack.c.h.b16 %v5255
      %v5296 = vunpack.c.l.b16 %v5256
      %v5297 = vunpack.c.h.b16 %v5256
      %v5298 = vunpack.c.l.b16 %v5257
      %v5299 = vunpack.c.h.b16 %v5257
      %v5300 = vunpack.c.l.b16 %v5258
      %v5301 = vunpack.c.h.b16 %v5258
      %v5302 = vunpack.c.l.b16 %v5259
      %v5303 = vunpack.c.h.b16 %v5259
      %v5304 = vunpack.c.l.b16 %v5260
      %v5305 = vunpack.c.h.b16 %v5260
      %v5306 = vunpack.c.l.b16 %v5261
      %v5307 = vunpack.c.h.b16 %v5261
      %v5308 = vunpack.c.l.b16 %v5262
      %v5309 = vunpack.c.h.b16 %v5262
      %v5310 = vunpack.c.l.b16 %v5263
      %v5311 = vunpack.c.h.b16 %v5263
      %v5312 = vpack.c.b16 %v5280, %v5280
      %v5313 = vpack.c.b16 %v5281, %v5281
      %v5314 = vpack.c.b16 %v5282, %v5282
      %v5315 = vpack.c.b16 %v5283, %v5283
      %v5316 = vpack.c.b16 %v5284, %v5284
      %v5317 = vpack.c.b16 %v5285, %v5285
      %v5318 = vpack.c.b16 %v5286, %v5286
      %v5319 = vpack.c.b16 %v5287, %v5287
      %v5320 = vpack.c.b16 %v5288, %v5288
      %v5321 = vpack.c.b16 %v5289, %v5289
      %v5322 = vpack.c.b16 %v5290, %v5290
      %v5323 = vpack.c.b16 %v5291, %v5291
      %v5324 = vpack.c.b16 %v5292, %v5292
      %v5325 = vpack.c.b16 %v5293, %v5293
      %v5326 = vpack.c.b16 %v5294, %v5294
      %v5327 = vpack.c.b16 %v5295, %v5295
      %v5328 = vpack.c.b16 %v5296, %v5296
      %v5329 = vpack.c.b16 %v5297, %v5297
      %v5330 = vpack.c.b16 %v5298, %v5298
      %v5331 = vpack.c.b16 %v5299, %v5299
      %v5332 = vpack.c.b16 %v5300, %v5300
      %v5333 = vpack.c.b16 %v5301, %v5301
      %v5334 = vpack.c.b16 %v5302, %v5302
      %v5335 = vpack.c.b16 %v5303, %v5303
      %v5336 = vpack.c.b16 %v5304, %v5304
      %v5337 = vpack.c.b16 %v5305, %v5305
      %v5338 = vpack.c.b16 %v5306, %v5306
      %v5339 = vpack.c.b16 %v5307, %v5307
      %v5340 = vpack.c.b16 %v5308, %v5308
      %v5341 = vpack.c.b16 %v5309, %v5309
      %v5342 = vpack.c.b16 %v5310, %v5310
      %v5343 = vpack.c.b16 %v5311, %v5311
      %5376 = vst [vmem:[%s260] sm:$0xf] %v5312
      %5377 = vst [vmem:[%s260 + $0x4] sm:$0xf] %v5313
      %5378 = vst [vmem:[%s260 + $0x8] sm:$0xf] %v5314
      %5379 = vst [vmem:[%s260 + $0xc] sm:$0xf] %v5315
      %5380 = vst [vmem:[%s260 + $0x10] sm:$0xf] %v5316
      %5381 = vst [vmem:[%s260 + $0x14] sm:$0xf] %v5317
      %5382 = vst [vmem:[%s260 + $0x18] sm:$0xf] %v5318
      %5383 = vst [vmem:[%s260 + $0x1c] sm:$0xf] %v5319
      %5384 = vst [vmem:[%s260 + $0x20] sm:$0xf] %v5320
      %5385 = vst [vmem:[%s260 + $0x24] sm:$0xf] %v5321
      %5386 = vst [vmem:[%s260 + $0x28] sm:$0xf] %v5322
      %5387 = vst [vmem:[%s260 + $0x2c] sm:$0xf] %v5323
      %5388 = vst [vmem:[%s260 + $0x30] sm:$0xf] %v5324
      %5389 = vst [vmem:[%s260 + $0x34] sm:$0xf] %v5325
      %5390 = vst [vmem:[%s260 + $0x38] sm:$0xf] %v5326
      %5391 = vst [vmem:[%s260 + $0x3c] sm:$0xf] %v5327
      %5392 = vst [vmem:[%s260 + $0x40] sm:$0xf] %v5328
      %5393 = vst [vmem:[%s260 + $0x44] sm:$0xf] %v5329
      %5394 = vst [vmem:[%s260 + $0x48] sm:$0xf] %v5330
      %5395 = vst [vmem:[%s260 + $0x4c] sm:$0xf] %v5331
      %5396 = vst [vmem:[%s260 + $0x50] sm:$0xf] %v5332
      %5397 = vst [vmem:[%s260 + $0x54] sm:$0xf] %v5333
      %5398 = vst [vmem:[%s260 + $0x58] sm:$0xf] %v5334
      %5399 = vst [vmem:[%s260 + $0x5c] sm:$0xf] %v5335
      %5400 = vst [vmem:[%s260 + $0x60] sm:$0xf] %v5336
      %5401 = vst [vmem:[%s260 + $0x64] sm:$0xf] %v5337
      %5402 = vst [vmem:[%s260 + $0x68] sm:$0xf] %v5338
      %5403 = vst [vmem:[%s260 + $0x6c] sm:$0xf] %v5339
      %5404 = vst [vmem:[%s260 + $0x70] sm:$0xf] %v5340
      %5405 = vst [vmem:[%s260 + $0x74] sm:$0xf] %v5341
      %5406 = vst [vmem:[%s260 + $0x78] sm:$0xf] %v5342
      %5407 = vst [vmem:[%s260 + $0x7c] sm:$0xf] %v5343
      %v5408 = vadd.f32 %v5216, %v5217
      %v5409 = vadd.f32 %v5408, %v5218
      %v5410 = vadd.f32 %v5409, %v5219
      %v5411 = vadd.f32 %v5410, %v5220
      %v5412 = vadd.f32 %v5411, %v5221
      %v5413 = vadd.f32 %v5412, %v5222
      %v5414 = vadd.f32 %v5413, %v5223
      %v5415 = vadd.f32 %v5414, %v5224
      %v5416 = vadd.f32 %v5415, %v5225
      %v5417 = vadd.f32 %v5416, %v5226
      %v5418 = vadd.f32 %v5417, %v5227
      %v5419 = vadd.f32 %v5418, %v5228
      %v5420 = vadd.f32 %v5419, %v5229
      %v5421 = vadd.f32 %v5420, %v5230
      %v5422 = vadd.f32 %v5421, %v5231
      %v5423 = vadd.f32 %v5422, %v5232
      %v5424 = vadd.f32 %v5423, %v5233
      %v5425 = vadd.f32 %v5424, %v5234
      %v5426 = vadd.f32 %v5425, %v5235
      %v5427 = vadd.f32 %v5426, %v5236
      %v5428 = vadd.f32 %v5427, %v5237
      %v5429 = vadd.f32 %v5428, %v5238
      %v5430 = vadd.f32 %v5429, %v5239
      %v5431 = vadd.f32 %v5430, %v5240
      %v5432 = vadd.f32 %v5431, %v5241
      %v5433 = vadd.f32 %v5432, %v5242
      %v5434 = vadd.f32 %v5433, %v5243
      %v5435 = vadd.f32 %v5434, %v5244
      %v5436 = vadd.f32 %v5435, %v5245
      %v5437 = vadd.f32 %v5436, %v5246
      %v5438 = vadd.f32 %v5437, %v5247
      %v5439 = vrot.slane %v5438, 4
      %v5440 = vadd.f32 %v5438, %v5439
      %v5441 = vrot.slane %v5440, 2
      %v5442 = vadd.f32 %v5440, %v5441
      %v5443 = vrot.slane %v5442, 1
      %v5444 = vadd.f32 %v5442, %v5443
      %v5445 = vmul.f32 %v5444, 0.00390625
      %v5446 = vsub.f32 %v5216, %v5445
      %v5447 = vsub.f32 %v5217, %v5445
      %v5448 = vsub.f32 %v5218, %v5445
      %v5449 = vsub.f32 %v5219, %v5445
      %v5450 = vsub.f32 %v5220, %v5445
      %v5451 = vsub.f32 %v5221, %v5445
      %v5452 = vsub.f32 %v5222, %v5445
      %v5453 = vsub.f32 %v5223, %v5445
      %v5454 = vsub.f32 %v5224, %v5445
      %v5455 = vsub.f32 %v5225, %v5445
      %v5456 = vsub.f32 %v5226, %v5445
      %v5457 = vsub.f32 %v5227, %v5445
      %v5458 = vsub.f32 %v5228, %v5445
      %v5459 = vsub.f32 %v5229, %v5445
      %v5460 = vsub.f32 %v5230, %v5445
      %v5461 = vsub.f32 %v5231, %v5445
      %v5462 = vsub.f32 %v5232, %v5445
      %v5463 = vsub.f32 %v5233, %v5445
      %v5464 = vsub.f32 %v5234, %v5445
      %v5465 = vsub.f32 %v5235, %v5445
      %v5466 = vsub.f32 %v5236, %v5445
      %v5467 = vsub.f32 %v5237, %v5445
      %v5468 = vsub.f32 %v5238, %v5445
      %v5469 = vsub.f32 %v5239, %v5445
      %v5470 = vsub.f32 %v5240, %v5445
      %v5471 = vsub.f32 %v5241, %v5445
      %v5472 = vsub.f32 %v5242, %v5445
      %v5473 = vsub.f32 %v5243, %v5445
      %v5474 = vsub.f32 %v5244, %v5445
      %v5475 = vsub.f32 %v5245, %v5445
      %v5476 = vsub.f32 %v5246, %v5445
      %v5477 = vsub.f32 %v5247, %v5445
      %v5478 = vmul.f32 %v5446, %v5446
      %v5479 = vmul.f32 %v5447, %v5447
      %v5480 = vmul.f32 %v5448, %v5448
      %v5481 = vmul.f32 %v5449, %v5449
      %v5482 = vmul.f32 %v5450, %v5450
      %v5483 = vmul.f32 %v5451, %v5451
      %v5484 = vmul.f32 %v5452, %v5452
      %v5485 = vmul.f32 %v5453, %v5453
      %v5486 = vmul.f32 %v5454, %v5454
      %v5487 = vmul.f32 %v5455, %v5455
      %v5488 = vmul.f32 %v5456, %v5456
      %v5489 = vmul.f32 %v5457, %v5457
      %v5490 = vmul.f32 %v5458, %v5458
      %v5491 = vmul.f32 %v5459, %v5459
      %v5492 = vmul.f32 %v5460, %v5460
      %v5493 = vmul.f32 %v5461, %v5461
      %v5494 = vmul.f32 %v5462, %v5462
      %v5495 = vmul.f32 %v5463, %v5463
      %v5496 = vmul.f32 %v5464, %v5464
      %v5497 = vmul.f32 %v5465, %v5465
      %v5498 = vmul.f32 %v5466, %v5466
      %v5499 = vmul.f32 %v5467, %v5467
      %v5500 = vmul.f32 %v5468, %v5468
      %v5501 = vmul.f32 %v5469, %v5469
      %v5502 = vmul.f32 %v5470, %v5470
      %v5503 = vmul.f32 %v5471, %v5471
      %v5504 = vmul.f32 %v5472, %v5472
      %v5505 = vmul.f32 %v5473, %v5473
      %v5506 = vmul.f32 %v5474, %v5474
      %v5507 = vmul.f32 %v5475, %v5475
      %v5508 = vmul.f32 %v5476, %v5476
      %v5509 = vmul.f32 %v5477, %v5477
      %v5510 = vadd.f32 %v5478, %v5479
      %v5511 = vadd.f32 %v5510, %v5480
      %v5512 = vadd.f32 %v5511, %v5481
      %v5513 = vadd.f32 %v5512, %v5482
      %v5514 = vadd.f32 %v5513, %v5483
      %v5515 = vadd.f32 %v5514, %v5484
      %v5516 = vadd.f32 %v5515, %v5485
      %v5517 = vadd.f32 %v5516, %v5486
      %v5518 = vadd.f32 %v5517, %v5487
      %v5519 = vadd.f32 %v5518, %v5488
      %v5520 = vadd.f32 %v5519, %v5489
      %v5521 = vadd.f32 %v5520, %v5490
      %v5522 = vadd.f32 %v5521, %v5491
      %v5523 = vadd.f32 %v5522, %v5492
      %v5524 = vadd.f32 %v5523, %v5493
      %v5525 = vadd.f32 %v5524, %v5494
      %v5526 = vadd.f32 %v5525, %v5495
      %v5527 = vadd.f32 %v5526, %v5496
      %v5528 = vadd.f32 %v5527, %v5497
      %v5529 = vadd.f32 %v5528, %v5498
      %v5530 = vadd.f32 %v5529, %v5499
      %v5531 = vadd.f32 %v5530, %v5500
      %v5532 = vadd.f32 %v5531, %v5501
      %v5533 = vadd.f32 %v5532, %v5502
      %v5534 = vadd.f32 %v5533, %v5503
      %v5535 = vadd.f32 %v5534, %v5504
      %v5536 = vadd.f32 %v5535, %v5505
      %v5537 = vadd.f32 %v5536, %v5506
      %v5538 = vadd.f32 %v5537, %v5507
      %v5539 = vadd.f32 %v5538, %v5508
      %v5540 = vadd.f32 %v5539, %v5509
      %v5541 = vrot.slane %v5540, 4
      %v5542 = vadd.f32 %v5540, %v5541
      %v5543 = vrot.slane %v5542, 2
      %v5544 = vadd.f32 %v5542, %v5543
      %v5545 = vrot.slane %v5544, 1
      %v5546 = vadd.f32 %v5544, %v5545
      %vm5547 = vcmask 1040384
      %v5548 = vsel %vm5547, %v5444, %v5546
      %5549 = vst [vmem:[%s268] sm:$0x3] %v5548
      %s5550 = smul.u32 16, %s22
      %p5551 = scmp.lt.s32.totalorder %s21, 1
      %s5552 = scalar_select %p5551, %s21, 1
      %p5553 = scmp.lt.s32.totalorder %s5550, 15
      %s5554 = scalar_select %p5553, %s5550, 15
      %s5555 = smul.addr %s5554, 2
      %s5556 = smul.addr %s5552, 32
      %s5557 = sadd.s32 %s5555, %s5556
      %s5558 = smul.addr %s5557, 4
      %s5559 = scalar_lea.vmem %s4, %s5558
      %p5560 = scmp.lt.s32.totalorder %s21, 1
      %s5561 = scalar_select %p5560, %s21, 1
      %p5562 = scmp.lt.s32.totalorder %s22, 0
      %s5563 = scalar_select %p5562, %s22, 0
      %s5564 = sadd.s32 %s5563, %s5561
      %s5565 = smul.addr %s5564, 2
      %s5566 = scalar_lea.vmem %s5, %s5565
      // Predicated region
      $region37: #{double_conv.4} parent=35 // pred_check
        %p5567 = pneg %p138
      $region38: #{double_conv.4} parent=35 // pred_check_branch
        %5569 = sbr.rel (%p5567) target = $region40
      $region39: #{double_conv.4} parent=35 // pred_region
        %s5570 = smul.u32 16, %s22
      $region40: #{double_conv.4} parent=35 // pred_fallthru
        _
      // Predicated region
      $region41: #{double_conv.4} parent=35 // pred_check
        %p5571 = pneg %p166
      $region42: #{double_conv.4} parent=35 // pred_check_branch
        %5573 = sbr.rel (%p5571) target = $region44
      $region43: #{double_conv.4} parent=35 // pred_region
        _
      $region44: #{double_conv.4} parent=35 // pred_fallthru
        _
    $region36: #{double_conv.4} parent=5 // pred_fallthru
      _
    %p5574 = scmp.le.s32.totalorder 2, %s12
    // Predicated region
    $region45: #{double_conv.4} parent=5 // pred_check
      %p5575 = pneg %p5574
    $region46: #{double_conv.4} parent=5 // pred_check_branch
      %5577 = sbr.rel (%p5575) target = $region48
    $region47: #{double_conv.4} parent=5 // pred_region
      %s5578 = ssub.s32 %s12, 2
      // Predicated region
      $region49: #{double_conv.4} parent=47 // pred_check
        %p5579 = pneg %p144
      $region50: #{double_conv.4} parent=47 // pred_check_branch
        %5581 = sbr.rel (%p5579) target = $region52
      $region51: #{double_conv.4} parent=47 // pred_region
        %s5582 = smul.u32 16, %s24
        %p5583 = scmp.lt.s32.totalorder %s23, 1
        %s5584 = scalar_select %p5583, %s23, 1
        %p5585 = scmp.lt.s32.totalorder %s5582, 15
        %s5586 = scalar_select %p5585, %s5582, 15
        %s5587 = smul.addr %s5586, 2
        %s5588 = smul.addr %s5584, 32
        %s5589 = sadd.s32 %s5587, %s5588
        %s5590 = smul.addr %s5589, 4
        %s5591 = scalar_lea.vmem %s4, %s5590
      $region52: #{double_conv.4} parent=47 // pred_fallthru
        _
      // Predicated region
      $region53: #{double_conv.4} parent=47 // pred_check
        %p5592 = pneg %p172
      $region54: #{double_conv.4} parent=47 // pred_check_branch
        %5594 = sbr.rel (%p5592) target = $region56
      $region55: #{double_conv.4} parent=47 // pred_region
        %p5595 = scmp.lt.s32.totalorder %s23, 1
        %s5596 = scalar_select %p5595, %s23, 1
        %p5597 = scmp.lt.s32.totalorder %s24, 0
        %s5598 = scalar_select %p5597, %s24, 0
        %s5599 = sadd.s32 %s5598, %s5596
        %s5600 = smul.addr %s5599, 2
        %s5601 = scalar_lea.vmem %s5, %s5600
      $region56: #{double_conv.4} parent=47 // pred_fallthru
        _
    $region48: #{double_conv.4} parent=5 // pred_fallthru
      _
  $region6: #{double_conv.4} parent=0 // loop_footer
    %s16 = sadd.s32 1, %s12
  $region7: #{double_conv.4} parent=0 // loop_footer_branch
    %11 = sbr.rel target = $region3
  $region8: #{double_conv.4} parent=0 // loop_exit
    _

// kernel: double_conv.3
$region0: #{double_conv.3}
  #allocation0 [shape = 'u32[]', space=smem, size = 0x4, offset = 0x4, fixed_abs, tag = 'smem constant byte address 0x4 - core index']
  #allocation1 [shape = 'u32[144,128]{1,0:T(1,128)}', space=vmem, size = 0x12000, scoped, tag = 'internal scratch']
  #allocation2 [shape = 'bf16[18,18,128]{2,1,0:T(8,128)(2,1)}', space=vmem, size = 0x1b000, scoped, tag = 'scratch operand']
  %s0 = inlined_call_operand.vmem [shape: bf16[2,16,16,128], index: 0, kind: input, shape index: {}]
  %s1 = inlined_call_operand.vmem [shape: f32[1,128], index: 1, kind: input, shape index: {}]
  %s2 = inlined_call_operand.vmem [shape: f32[1,128], index: 2, kind: input, shape index: {}]
  %s3 = inlined_call_operand.vmem [shape: bf16[3,384,128], index: 3, kind: input, shape index: {}]
  %s4 = inlined_call_operand.vmem [shape: bf16[2,16,16,128], index: 4, kind: output, shape index: {0}]
  %s5 = inlined_call_operand.vmem [shape: f32[2,1,2,128], index: 5, kind: output, shape index: {1}]
  %6 = xla_tuple %s4, %s5
  %s7 = sld [smem:[#allocation0]]
  $region57: #{double_conv.3} parent=0
    _
  %s9 = ssub.s32 1, %s7
  %s10 = scalar_select 0, %s9, %s7
  loop: start=0, step=1, limit=4
  $region2: #{double_conv.3} parent=0 // loop_pre_header
    _
  $region3: #{double_conv.3} parent=0 // loop_header
    %s12 = sphi 0, %s16
    %p13 = scmp.ge.s32.totalorder %s12, 4
    %s19 = sphi 0, %s31
    %s20 = sphi 0, %s27
    %s21 = sphi 0, %s19
    %s22 = sphi 0, %s20
    %s23 = sphi 0, %s21
    %s24 = sphi 0, %s22
    %s34 = sphi 0, %s36
    %s37 = sphi 0, %s34
    %s38 = sphi 0, %s37
    %s54 = sphi 0, %s38
    %s58 = sphi 0, %s58
    %s60 = sphi 0, %s58
    %s61 = sphi 0, %s60
    %s75 = sphi 0, %s61
    %s79 = sphi 0, %s79
    %s81 = sphi 0, %s79
    %s82 = sphi 0, %s81
    %s96 = sphi 0, %s82
    %s100 = sphi 0, %s100
    %s102 = sphi 0, %s100
    %s103 = sphi 0, %s102
    %s117 = sphi 0, %s103
    %s125 = sphi 0, %s127
    %s128 = sphi 0, %s125
    %s129 = sphi 0, %s128
    %s145 = sphi 0, %s129
    %s153 = sphi 0, %s155
    %s156 = sphi 0, %s153
    %s157 = sphi 0, %s156
    %s173 = sphi 0, %s157
  $region4: #{double_conv.3} parent=0 // loop_header_branch
    %15 = sbr.rel (%p13) target = $region8
  $region5: #{double_conv.3} parent=0 // loop_body
    %s17 = ssub.s32 %s12, 1
    %s18 = ssub.s32 %s12, 2
    %s25 = sadd.s32 1, %s20
    %p26 = scmp.ge.s32.totalorder %s25, 1
    %s27 = scalar_select %p26, 0, %s25
    %s28 = sadd.s32 1, %s19
    %s29 = scalar_select %p26, %s28, %s19
    %p30 = scmp.ge.s32.totalorder %s29, 2
    %s31 = scalar_select %p30, 0, %s29
    %s32 = ssub.s32 %s19, %s31
    %p33 = scmp.eq.s32.totalorder %s32, 0
    %s35 = sadd.s32 %s34, 1
    %s36 = scalar_select %p33, %s34, %s35
    %p39 = pneg %p33
    %p40 = scmp.eq.s32.totalorder %s12, 1
    %p41 = por %p39, %p40
    %p42 = scmp.ne.s32.totalorder %s34, %s37
    %p43 = scmp.eq.s32.totalorder %s12, 0
    %p44 = por %p42, %p43
    %p45 = scmp.ne.s32.totalorder %s34, %s37
    %p46 = scmp.eq.s32.totalorder %s17, 1
    %p47 = por %p45, %p46
    %p48 = scmp.ne.s32.totalorder %s37, %s38
    %p49 = scmp.eq.s32.totalorder %s17, 0
    %p50 = por %p48, %p49
    %p51 = scmp.ne.s32.totalorder %s37, %s38
    %p52 = scmp.eq.s32.totalorder %s18, 1
    %p53 = por %p51, %p52
    %p55 = scmp.ne.s32.totalorder %s38, %s54
    %p56 = scmp.eq.s32.totalorder %s18, 0
    %p57 = por %p55, %p56
    %s59 = sadd.s32 %s58, 1
    %p62 = scmp.eq.s32.totalorder %s12, 1
    %p63 = scmp.ne.s32.totalorder %s58, %s60
    %p64 = scmp.eq.s32.totalorder %s12, 0
    %p65 = por %p63, %p64
    %p66 = scmp.ne.s32.totalorder %s58, %s60
    %p67 = scmp.eq.s32.totalorder %s17, 1
    %p68 = por %p66, %p67
    %p69 = scmp.ne.s32.totalorder %s60, %s61
    %p70 = scmp.eq.s32.totalorder %s17, 0
    %p71 = por %p69, %p70
    %p72 = scmp.ne.s32.totalorder %s60, %s61
    %p73 = scmp.eq.s32.totalorder %s18, 1
    %p74 = por %p72, %p73
    %p76 = scmp.ne.s32.totalorder %s61, %s75
    %p77 = scmp.eq.s32.totalorder %s18, 0
    %p78 = por %p76, %p77
    %s80 = sadd.s32 %s79, 1
    %p83 = scmp.eq.s32.totalorder %s12, 1
    %p84 = scmp.ne.s32.totalorder %s79, %s81
    %p85 = scmp.eq.s32.totalorder %s12, 0
    %p86 = por %p84, %p85
    %p87 = scmp.ne.s32.totalorder %s79, %s81
    %p88 = scmp.eq.s32.totalorder %s17, 1
    %p89 = por %p87, %p88
    %p90 = scmp.ne.s32.totalorder %s81, %s82
    %p91 = scmp.eq.s32.totalorder %s17, 0
    %p92 = por %p90, %p91
    %p93 = scmp.ne.s32.totalorder %s81, %s82
    %p94 = scmp.eq.s32.totalorder %s18, 1
    %p95 = por %p93, %p94
    %p97 = scmp.ne.s32.totalorder %s82, %s96
    %p98 = scmp.eq.s32.totalorder %s18, 0
    %p99 = por %p97, %p98
    %s101 = sadd.s32 %s100, 1
    %p104 = scmp.eq.s32.totalorder %s12, 1
    %p105 = scmp.ne.s32.totalorder %s100, %s102
    %p106 = scmp.eq.s32.totalorder %s12, 0
    %p107 = por %p105, %p106
    %p108 = scmp.ne.s32.totalorder %s100, %s102
    %p109 = scmp.eq.s32.totalorder %s17, 1
    %p110 = por %p108, %p109
    %p111 = scmp.ne.s32.totalorder %s102, %s103
    %p112 = scmp.eq.s32.totalorder %s17, 0
    %p113 = por %p111, %p112
    %p114 = scmp.ne.s32.totalorder %s102, %s103
    %p115 = scmp.eq.s32.totalorder %s18, 1
    %p116 = por %p114, %p115
    %p118 = scmp.ne.s32.totalorder %s103, %s117
    %p119 = scmp.eq.s32.totalorder %s18, 0
    %p120 = por %p118, %p119
    %s121 = ssub.s32 %s19, %s31
    %s122 = ssub.s32 %s20, %s27
    %s123 = sor.u32 %s121, %s122
    %p124 = scmp.eq.s32.totalorder %s123, 0
    %s126 = sadd.s32 %s125, 1
    %s127 = scalar_select %p124, %s125, %s126
    %p130 = pneg %p124
    %p131 = scmp.eq.s32.totalorder %s12, 1
    %p132 = por %p130, %p131
    %p133 = scmp.ne.s32.totalorder %s125, %s128
    %p134 = scmp.eq.s32.totalorder %s12, 0
    %p135 = por %p133, %p134
    %p136 = scmp.ne.s32.totalorder %s125, %s128
    %p137 = scmp.eq.s32.totalorder %s17, 1
    %p138 = por %p136, %p137
    %p139 = scmp.ne.s32.totalorder %s128, %s129
    %p140 = scmp.eq.s32.totalorder %s17, 0
    %p141 = por %p139, %p140
    %p142 = scmp.ne.s32.totalorder %s128, %s129
    %p143 = scmp.eq.s32.totalorder %s18, 1
    %p144 = por %p142, %p143
    %p146 = scmp.ne.s32.totalorder %s129, %s145
    %p147 = scmp.eq.s32.totalorder %s18, 0
    %p148 = por %p146, %p147
    %s149 = ssub.s32 %s19, %s31
    %s150 = ssub.s32 %s20, %s27
    %s151 = sor.u32 %s149, %s150
    %p152 = scmp.eq.s32.totalorder %s151, 0
    %s154 = sadd.s32 %s153, 1
    %s155 = scalar_select %p152, %s153, %s154
    %p158 = pneg %p152
    %p159 = scmp.eq.s32.totalorder %s12, 1
    %p160 = por %p158, %p159
    %p161 = scmp.ne.s32.totalorder %s153, %s156
    %p162 = scmp.eq.s32.totalorder %s12, 0
    %p163 = por %p161, %p162
    %p164 = scmp.ne.s32.totalorder %s153, %s156
    %p165 = scmp.eq.s32.totalorder %s17, 1
    %p166 = por %p164, %p165
    %p167 = scmp.ne.s32.totalorder %s156, %s157
    %p168 = scmp.eq.s32.totalorder %s17, 0
    %p169 = por %p167, %p168
    %p170 = scmp.ne.s32.totalorder %s156, %s157
    %p171 = scmp.eq.s32.totalorder %s18, 1
    %p172 = por %p170, %p171
    %p174 = scmp.ne.s32.totalorder %s157, %s173
    %p175 = scmp.eq.s32.totalorder %s18, 0
    %p176 = por %p174, %p175
    %p177 = scmp.le.s32.totalorder 1, %s12
    %p178 = scmp.lt.s32.totalorder %s12, 3
    %p179 = pnand %p177, %p178
    %p180 = pneg %p179
    // Predicated region
    $region9: #{double_conv.3} parent=5 // pred_check
      _
    $region10: #{double_conv.3} parent=5 // pred_check_branch
      %182 = sbr.rel (%p179) target = $region12
    $region11: #{double_conv.3} parent=5 // pred_region
      %s183 = ssub.s32 %s12, 1
      // Predicated region
      $region13: #{double_conv.3} parent=11 // pred_check
        %p184 = pneg %p71
      $region14: #{double_conv.3} parent=11 // pred_check_branch
        %186 = sbr.rel (%p184) target = $region16
      $region15: #{double_conv.3} parent=11 // pred_region
        _
      $region16: #{double_conv.3} parent=11 // pred_fallthru
        _
      // Predicated region
      $region17: #{double_conv.3} parent=11 // pred_check
        %p187 = pneg %p92
      $region18: #{double_conv.3} parent=11 // pred_check_branch
        %189 = sbr.rel (%p187) target = $region20
      $region19: #{double_conv.3} parent=11 // pred_region
        _
      $region20: #{double_conv.3} parent=11 // pred_fallthru
        _
      // Predicated region
      $region21: #{double_conv.3} parent=11 // pred_check
        %p190 = pneg %p113
      $region22: #{double_conv.3} parent=11 // pred_check_branch
        %192 = sbr.rel (%p190) target = $region24
      $region23: #{double_conv.3} parent=11 // pred_region
        _
      $region24: #{double_conv.3} parent=11 // pred_fallthru
        _
    $region12: #{double_conv.3} parent=5 // pred_fallthru
      _
    %p193 = scmp.lt.s32.totalorder %s12, 2
    // Predicated region
    $region25: #{double_conv.3} parent=5 // pred_check
      %p194 = pneg %p193
    $region26: #{double_conv.3} parent=5 // pred_check_branch
      %196 = sbr.rel (%p194) target = $region28
    $region27: #{double_conv.3} parent=5 // pred_region
      // Predicated region
      $region29: #{double_conv.3} parent=27 // pred_check
        %p197 = pneg %p44
      $region30: #{double_conv.3} parent=27 // pred_check_branch
        %199 = sbr.rel (%p197) target = $region32
      $region31: #{double_conv.3} parent=27 // pred_region
        %p200 = scmp.lt.s32.totalorder %s19, 1
        %s201 = scalar_select %p200, %s19, 1
        %s202 = smul.addr %s201, 32
        %s203 = smul.addr %s202, 4
        %s204 = scalar_lea.vmem %s0, %s203
      $region32: #{double_conv.3} parent=27 // pred_fallthru
        _
    $region28: #{double_conv.3} parent=5 // pred_fallthru
      _
    %p205 = scmp.le.s32.totalorder 1, %s12
    %p206 = scmp.lt.s32.totalorder %s12, 3
    %p207 = pnand %p205, %p206
    %p208 = pneg %p207
    // Predicated region
    $region33: #{double_conv.3} parent=5 // pred_check
      _
    $region34: #{double_conv.3} parent=5 // pred_check_branch
      %210 = sbr.rel (%p207) target = $region36
    $region35: #{double_conv.3} parent=5 // pred_region
      %s211 = ssub.s32 %s12, 1
      %p212 = scmp.lt.s32.totalorder %s21, 1
      %s213 = scalar_select %p212, %s21, 1
      %s214 = smul.addr %s213, 32
      %s215 = smul.addr %s214, 4
      %s216 = scalar_lea.vmem %s0, %s215
      %p217 = pneg %p50
      %p218 = pneg %p47
      %p219 = pneg %p71
      %p220 = pneg %p68
      %p221 = pneg %p92
      %p222 = pneg %p89
      %p223 = pneg %p113
      %p224 = pneg %p110
      %p225 = pneg %p141
      %p226 = pneg %p138
      %s227 = smul.u32 16, %s22
      %p228 = scmp.lt.s32.totalorder %s21, 1
      %s229 = scalar_select %p228, %s21, 1
      %p230 = scmp.lt.s32.totalorder %s227, 15
      %s231 = scalar_select %p230, %s227, 15
      %s232 = smul.addr %s231, 2
      %s233 = smul.addr %s229, 32
      %s234 = sadd.s32 %s232, %s233
      %s235 = smul.addr %s234, 4
      %s236 = scalar_lea.vmem %s4, %s235
      %p237 = pneg %p169
      %p238 = pneg %p166
      %p239 = scmp.lt.s32.totalorder %s21, 1
      %s240 = scalar_select %p239, %s21, 1
      %p241 = scmp.lt.s32.totalorder %s22, 0
      %s242 = scalar_select %p241, %s22, 0
      %s243 = sadd.s32 %s242, %s240
      %s244 = smul.addr %s243, 2
      %s245 = scalar_lea.vmem %s5, %s244
      %p246 = scmp.lt.s32.totalorder %s21, 1
      %s247 = scalar_select %p246, %s21, 1
      %s248 = smul.addr %s247, 32
      %s249 = smul.addr %s248, 4
      %s250 = scalar_lea.vmem %s0, %s249
      %s251 = smul.u32 16, %s22
      %p252 = scmp.lt.s32.totalorder %s21, 1
      %s253 = scalar_select %p252, %s21, 1
      %p254 = scmp.lt.s32.totalorder %s251, 15
      %s255 = scalar_select %p254, %s251, 15
      %s256 = smul.addr %s255, 2
      %s257 = smul.addr %s253, 32
      %s258 = sadd.s32 %s256, %s257
      %s259 = smul.addr %s258, 4
      %s260 = scalar_lea.vmem %s4, %s259
      %s261 = smul.u32 16, %s22
      %p262 = scmp.lt.s32.totalorder %s21, 1
      %s263 = scalar_select %p262, %s21, 1
      %p264 = scmp.lt.s32.totalorder %s22, 0
      %s265 = scalar_select %p264, %s22, 0
      %s266 = sadd.s32 %s265, %s263
      %s267 = smul.addr %s266, 2
      %s268 = scalar_lea.vmem %s5, %s267
      %s270 = smul.u32 %s22, 16
      %vm271 = vcmask 1040384
      %vm272 = vsmask.f32 256
      %vm273 = vmand %vm271, %vm272
      %v274 = vld [vmem:[#allocation2] sm:$0x1]
      %v275 = vsel %vm273, 0, %v274
      %276 = vst [vmem:[#allocation2] sm:$0x1] %v275
      %v277 = vld [vmem:[#allocation2 + $0xc] sm:$0x1]
      %v278 = vsel %vm273, 0, %v277
      %279 = vst [vmem:[#allocation2 + $0xc] sm:$0x1] %v278
      %v280 = vld [vmem:[#allocation2 + $0x18] sm:$0x1]
      %v281 = vsel %vm273, 0, %v280
      %282 = vst [vmem:[#allocation2 + $0x18] sm:$0x1] %v281
      %v283 = vld [vmem:[#allocation2 + $0x24] sm:$0x1]
      %v284 = vsel %vm273, 0, %v283
      %285 = vst [vmem:[#allocation2 + $0x24] sm:$0x1] %v284
      %v286 = vld [vmem:[#allocation2 + $0x30] sm:$0x1]
      %v287 = vsel %vm273, 0, %v286
      %288 = vst [vmem:[#allocation2 + $0x30] sm:$0x1] %v287
      %v289 = vld [vmem:[#allocation2 + $0x3c] sm:$0x1]
      %v290 = vsel %vm273, 0, %v289
      %291 = vst [vmem:[#allocation2 + $0x3c] sm:$0x1] %v290
      %v292 = vld [vmem:[#allocation2 + $0x48] sm:$0x1]
      %v293 = vsel %vm273, 0, %v292
      %294 = vst [vmem:[#allocation2 + $0x48] sm:$0x1] %v293
      %v295 = vld [vmem:[#allocation2 + $0x54] sm:$0x1]
      %v296 = vsel %vm273, 0, %v295
      %297 = vst [vmem:[#allocation2 + $0x54] sm:$0x1] %v296
      %v298 = vld [vmem:[#allocation2 + $0x60] sm:$0x1]
      %v299 = vsel %vm273, 0, %v298
      %300 = vst [vmem:[#allocation2 + $0x60] sm:$0x1] %v299
      %v301 = vld [vmem:[#allocation2 + $0x6c] sm:$0x1]
      %v302 = vsel %vm273, 0, %v301
      %303 = vst [vmem:[#allocation2 + $0x6c] sm:$0x1] %v302
      %v304 = vld [vmem:[#allocation2 + $0x78] sm:$0x1]
      %v305 = vsel %vm273, 0, %v304
      %306 = vst [vmem:[#allocation2 + $0x78] sm:$0x1] %v305
      %v307 = vld [vmem:[#allocation2 + $0x84] sm:$0x1]
      %v308 = vsel %vm273, 0, %v307
      %309 = vst [vmem:[#allocation2 + $0x84] sm:$0x1] %v308
      %v310 = vld [vmem:[#allocation2 + $0x90] sm:$0x1]
      %v311 = vsel %vm273, 0, %v310
      %312 = vst [vmem:[#allocation2 + $0x90] sm:$0x1] %v311
      %v313 = vld [vmem:[#allocation2 + $0x9c] sm:$0x1]
      %v314 = vsel %vm273, 0, %v313
      %315 = vst [vmem:[#allocation2 + $0x9c] sm:$0x1] %v314
      %v316 = vld [vmem:[#allocation2 + $0xa8] sm:$0x1]
      %v317 = vsel %vm273, 0, %v316
      %318 = vst [vmem:[#allocation2 + $0xa8] sm:$0x1] %v317
      %v319 = vld [vmem:[#allocation2 + $0xb4] sm:$0x1]
      %v320 = vsel %vm273, 0, %v319
      %321 = vst [vmem:[#allocation2 + $0xb4] sm:$0x1] %v320
      %v322 = vld [vmem:[#allocation2 + $0xc0] sm:$0x1]
      %v323 = vsel %vm273, 0, %v322
      %324 = vst [vmem:[#allocation2 + $0xc0] sm:$0x1] %v323
      %v325 = vld [vmem:[#allocation2 + $0xcc] sm:$0x1]
      %v326 = vsel %vm273, 0, %v325
      %327 = vst [vmem:[#allocation2 + $0xcc] sm:$0x1] %v326
      %vm328 = vsmask.f32 7938
      %vm329 = vmand %vm271, %vm328
      %v330 = vld [vmem:[#allocation2 + $0x8] sm:$0x1]
      %v331 = vsel %vm329, 0, %v330
      %332 = vst [vmem:[#allocation2 + $0x8] sm:$0x1] %v331
      %v333 = vld [vmem:[#allocation2 + $0x14] sm:$0x1]
      %v334 = vsel %vm329, 0, %v333
      %335 = vst [vmem:[#allocation2 + $0x14] sm:$0x1] %v334
      %v336 = vld [vmem:[#allocation2 + $0x20] sm:$0x1]
      %v337 = vsel %vm329, 0, %v336
      %338 = vst [vmem:[#allocation2 + $0x20] sm:$0x1] %v337
      %v339 = vld [vmem:[#allocation2 + $0x2c] sm:$0x1]
      %v340 = vsel %vm329, 0, %v339
      %341 = vst [vmem:[#allocation2 + $0x2c] sm:$0x1] %v340
      %v342 = vld [vmem:[#allocation2 + $0x38] sm:$0x1]
      %v343 = vsel %vm329, 0, %v342
      %344 = vst [vmem:[#allocation2 + $0x38] sm:$0x1] %v343
      %v345 = vld [vmem:[#allocation2 + $0x44] sm:$0x1]
      %v346 = vsel %vm329, 0, %v345
      %347 = vst [vmem:[#allocation2 + $0x44] sm:$0x1] %v346
      %v348 = vld [vmem:[#allocation2 + $0x50] sm:$0x1]
      %v349 = vsel %vm329, 0, %v348
      %350 = vst [vmem:[#allocation2 + $0x50] sm:$0x1] %v349
      %v351 = vld [vmem:[#allocation2 + $0x5c] sm:$0x1]
      %v352 = vsel %vm329, 0, %v351
      %353 = vst [vmem:[#allocation2 + $0x5c] sm:$0x1] %v352
      %v354 = vld [vmem:[#allocation2 + $0x68] sm:$0x1]
      %v355 = vsel %vm329, 0, %v354
      %356 = vst [vmem:[#allocation2 + $0x68] sm:$0x1] %v355
      %v357 = vld [vmem:[#allocation2 + $0x74] sm:$0x1]
      %v358 = vsel %vm329, 0, %v357
      %359 = vst [vmem:[#allocation2 + $0x74] sm:$0x1] %v358
      %v360 = vld [vmem:[#allocation2 + $0x80] sm:$0x1]
      %v361 = vsel %vm329, 0, %v360
      %362 = vst [vmem:[#allocation2 + $0x80] sm:$0x1] %v361
      %v363 = vld [vmem:[#allocation2 + $0x8c] sm:$0x1]
      %v364 = vsel %vm329, 0, %v363
      %365 = vst [vmem:[#allocation2 + $0x8c] sm:$0x1] %v364
      %v366 = vld [vmem:[#allocation2 + $0x98] sm:$0x1]
      %v367 = vsel %vm329, 0, %v366
      %368 = vst [vmem:[#allocation2 + $0x98] sm:$0x1] %v367
      %v369 = vld [vmem:[#allocation2 + $0xa4] sm:$0x1]
      %v370 = vsel %vm329, 0, %v369
      %371 = vst [vmem:[#allocation2 + $0xa4] sm:$0x1] %v370
      %v372 = vld [vmem:[#allocation2 + $0xb0] sm:$0x1]
      %v373 = vsel %vm329, 0, %v372
      %374 = vst [vmem:[#allocation2 + $0xb0] sm:$0x1] %v373
      %v375 = vld [vmem:[#allocation2 + $0xbc] sm:$0x1]
      %v376 = vsel %vm329, 0, %v375
      %377 = vst [vmem:[#allocation2 + $0xbc] sm:$0x1] %v376
      %v378 = vld [vmem:[#allocation2 + $0xc8] sm:$0x1]
      %v379 = vsel %vm329, 0, %v378
      %380 = vst [vmem:[#allocation2 + $0xc8] sm:$0x1] %v379
      %v381 = vld [vmem:[#allocation2 + $0xd4] sm:$0x1]
      %v382 = vsel %vm329, 0, %v381
      %383 = vst [vmem:[#allocation2 + $0xd4] sm:$0x1] %v382
      %s384 = smul.u32 %s270, 2
      %s385 = smul.addr %s384, 4
      %s386 = scalar_lea.vmem %s250, %s385
      %v387 = vld [vmem:[%s386] sm:$0xf]
      %v388 = vld [vmem:[%s386 + $0x4] sm:$0xf]
      %v389 = vld [vmem:[%s386 + $0x8] sm:$0xf]
      %v390 = vld [vmem:[%s386 + $0xc] sm:$0xf]
      %v391 = vld [vmem:[%s386 + $0x10] sm:$0xf]
      %v392 = vld [vmem:[%s386 + $0x14] sm:$0xf]
      %v393 = vld [vmem:[%s386 + $0x18] sm:$0xf]
      %v394 = vld [vmem:[%s386 + $0x1c] sm:$0xf]
      %v395 = vld [vmem:[%s386 + $0x20] sm:$0xf]
      %v396 = vld [vmem:[%s386 + $0x24] sm:$0xf]
      %v397 = vld [vmem:[%s386 + $0x28] sm:$0xf]
      %v398 = vld [vmem:[%s386 + $0x2c] sm:$0xf]
      %v399 = vld [vmem:[%s386 + $0x30] sm:$0xf]
      %v400 = vld [vmem:[%s386 + $0x34] sm:$0xf]
      %v401 = vld [vmem:[%s386 + $0x38] sm:$0xf]
      %v402 = vld [vmem:[%s386 + $0x3c] sm:$0xf]
      %v403 = vld [vmem:[%s386 + $0x40] sm:$0xf]
      %v404 = vld [vmem:[%s386 + $0x44] sm:$0xf]
      %v405 = vld [vmem:[%s386 + $0x48] sm:$0xf]
      %v406 = vld [vmem:[%s386 + $0x4c] sm:$0xf]
      %v407 = vld [vmem:[%s386 + $0x50] sm:$0xf]
      %v408 = vld [vmem:[%s386 + $0x54] sm:$0xf]
      %v409 = vld [vmem:[%s386 + $0x58] sm:$0xf]
      %v410 = vld [vmem:[%s386 + $0x5c] sm:$0xf]
      %v411 = vld [vmem:[%s386 + $0x60] sm:$0xf]
      %v412 = vld [vmem:[%s386 + $0x64] sm:$0xf]
      %v413 = vld [vmem:[%s386 + $0x68] sm:$0xf]
      %v414 = vld [vmem:[%s386 + $0x6c] sm:$0xf]
      %v415 = vld [vmem:[%s386 + $0x70] sm:$0xf]
      %v416 = vld [vmem:[%s386 + $0x74] sm:$0xf]
      %v417 = vld [vmem:[%s386 + $0x78] sm:$0xf]
      %v418 = vld [vmem:[%s386 + $0x7c] sm:$0xf]
      %vm419 = vsmask.f32 4368
      %vm420 = vmor %vm272, %vm419
      %v422 = vshrl.u32 %v387, 16
      %v424 = vrot.slane %v422, 7
      %v425 = vshll.u32 %v387, 16
      %v427 = vor.u32 %v424, %v425
      %v428 = vrot.slane %v424, 4
      %v430 = vshrl.u32 %v388, 16
      %v432 = vrot.slane %v430, 7
      %v433 = vshll.u32 %v388, 16
      %v435 = vor.u32 %v432, %v433
      %v436 = vsel %vm420, %v428, %v435
      %v437 = vrot.slane %v432, 4
      %v439 = vshrl.u32 %v389, 16
      %v441 = vrot.slane %v439, 7
      %v442 = vshll.u32 %v389, 16
      %v444 = vor.u32 %v441, %v442
      %v445 = vrot.slane %v441, 4
      %v447 = vshrl.u32 %v390, 16
      %v449 = vrot.slane %v447, 7
      %v450 = vshll.u32 %v390, 16
      %v452 = vor.u32 %v449, %v450
      %v453 = vsel %vm420, %v445, %v452
      %v454 = vrot.slane %v449, 4
      %v456 = vshrl.u32 %v391, 16
      %v458 = vrot.slane %v456, 7
      %v459 = vshll.u32 %v391, 16
      %v461 = vor.u32 %v458, %v459
      %v462 = vrot.slane %v458, 4
      %v464 = vshrl.u32 %v392, 16
      %v466 = vrot.slane %v464, 7
      %v467 = vshll.u32 %v392, 16
      %v469 = vor.u32 %v466, %v467
      %v470 = vsel %vm420, %v462, %v469
      %v471 = vrot.slane %v466, 4
      %v473 = vshrl.u32 %v393, 16
      %v475 = vrot.slane %v473, 7
      %v476 = vshll.u32 %v393, 16
      %v478 = vor.u32 %v475, %v476
      %v479 = vrot.slane %v475, 4
      %v481 = vshrl.u32 %v394, 16
      %v483 = vrot.slane %v481, 7
      %v484 = vshll.u32 %v394, 16
      %v486 = vor.u32 %v483, %v484
      %v487 = vsel %vm420, %v479, %v486
      %v488 = vrot.slane %v483, 4
      %v490 = vshrl.u32 %v395, 16
      %v492 = vrot.slane %v490, 7
      %v493 = vshll.u32 %v395, 16
      %v495 = vor.u32 %v492, %v493
      %v496 = vrot.slane %v492, 4
      %v498 = vshrl.u32 %v396, 16
      %v500 = vrot.slane %v498, 7
      %v501 = vshll.u32 %v396, 16
      %v503 = vor.u32 %v500, %v501
      %v504 = vsel %vm420, %v496, %v503
      %v505 = vrot.slane %v500, 4
      %v507 = vshrl.u32 %v397, 16
      %v509 = vrot.slane %v507, 7
      %v510 = vshll.u32 %v397, 16
      %v512 = vor.u32 %v509, %v510
      %v513 = vrot.slane %v509, 4
      %v515 = vshrl.u32 %v398, 16
      %v517 = vrot.slane %v515, 7
      %v518 = vshll.u32 %v398, 16
      %v520 = vor.u32 %v517, %v518
      %v521 = vsel %vm420, %v513, %v520
      %v522 = vrot.slane %v517, 4
      %v524 = vshrl.u32 %v399, 16
      %v526 = vrot.slane %v524, 7
      %v527 = vshll.u32 %v399, 16
      %v529 = vor.u32 %v526, %v527
      %v530 = vrot.slane %v526, 4
      %v532 = vshrl.u32 %v400, 16
      %v534 = vrot.slane %v532, 7
      %v535 = vshll.u32 %v400, 16
      %v537 = vor.u32 %v534, %v535
      %v538 = vsel %vm420, %v530, %v537
      %v539 = vrot.slane %v534, 4
      %v541 = vshrl.u32 %v401, 16
      %v543 = vrot.slane %v541, 7
      %v544 = vshll.u32 %v401, 16
      %v546 = vor.u32 %v543, %v544
      %v547 = vrot.slane %v543, 4
      %v549 = vshrl.u32 %v402, 16
      %v551 = vrot.slane %v549, 7
      %v552 = vshll.u32 %v402, 16
      %v554 = vor.u32 %v551, %v552
      %v555 = vsel %vm420, %v547, %v554
      %v556 = vrot.slane %v551, 4
      %v558 = vshrl.u32 %v403, 16
      %v560 = vrot.slane %v558, 7
      %v561 = vshll.u32 %v403, 16
      %v563 = vor.u32 %v560, %v561
      %v564 = vrot.slane %v560, 4
      %v566 = vshrl.u32 %v404, 16
      %v568 = vrot.slane %v566, 7
      %v569 = vshll.u32 %v404, 16
      %v571 = vor.u32 %v568, %v569
      %v572 = vsel %vm420, %v564, %v571
      %v573 = vrot.slane %v568, 4
      %v575 = vshrl.u32 %v405, 16
      %v577 = vrot.slane %v575, 7
      %v578 = vshll.u32 %v405, 16
      %v580 = vor.u32 %v577, %v578
      %v581 = vrot.slane %v577, 4
      %v583 = vshrl.u32 %v406, 16
      %v585 = vrot.slane %v583, 7
      %v586 = vshll.u32 %v406, 16
      %v588 = vor.u32 %v585, %v586
      %v589 = vsel %vm420, %v581, %v588
      %v590 = vrot.slane %v585, 4
      %v592 = vshrl.u32 %v407, 16
      %v594 = vrot.slane %v592, 7
      %v595 = vshll.u32 %v407, 16
      %v597 = vor.u32 %v594, %v595
      %v598 = vrot.slane %v594, 4
      %v600 = vshrl.u32 %v408, 16
      %v602 = vrot.slane %v600, 7
      %v603 = vshll.u32 %v408, 16
      %v605 = vor.u32 %v602, %v603
      %v606 = vsel %vm420, %v598, %v605
      %v607 = vrot.slane %v602, 4
      %v609 = vshrl.u32 %v409, 16
      %v611 = vrot.slane %v609, 7
      %v612 = vshll.u32 %v409, 16
      %v614 = vor.u32 %v611, %v612
      %v615 = vrot.slane %v611, 4
      %v617 = vshrl.u32 %v410, 16
      %v619 = vrot.slane %v617, 7
      %v620 = vshll.u32 %v410, 16
      %v622 = vor.u32 %v619, %v620
      %v623 = vsel %vm420, %v615, %v622
      %v624 = vrot.slane %v619, 4
      %v626 = vshrl.u32 %v411, 16
      %v628 = vrot.slane %v626, 7
      %v629 = vshll.u32 %v411, 16
      %v631 = vor.u32 %v628, %v629
      %v632 = vrot.slane %v628, 4
      %v634 = vshrl.u32 %v412, 16
      %v636 = vrot.slane %v634, 7
      %v637 = vshll.u32 %v412, 16
      %v639 = vor.u32 %v636, %v637
      %v640 = vsel %vm420, %v632, %v639
      %v641 = vrot.slane %v636, 4
      %v643 = vshrl.u32 %v413, 16
      %v645 = vrot.slane %v643, 7
      %v646 = vshll.u32 %v413, 16
      %v648 = vor.u32 %v645, %v646
      %v649 = vrot.slane %v645, 4
      %v651 = vshrl.u32 %v414, 16
      %v653 = vrot.slane %v651, 7
      %v654 = vshll.u32 %v414, 16
      %v656 = vor.u32 %v653, %v654
      %v657 = vsel %vm420, %v649, %v656
      %v658 = vrot.slane %v653, 4
      %v660 = vshrl.u32 %v415, 16
      %v662 = vrot.slane %v660, 7
      %v663 = vshll.u32 %v415, 16
      %v665 = vor.u32 %v662, %v663
      %v666 = vrot.slane %v662, 4
      %v668 = vshrl.u32 %v416, 16
      %v670 = vrot.slane %v668, 7
      %v671 = vshll.u32 %v416, 16
      %v673 = vor.u32 %v670, %v671
      %v674 = vsel %vm420, %v666, %v673
      %v675 = vrot.slane %v670, 4
      %v677 = vshrl.u32 %v417, 16
      %v679 = vrot.slane %v677, 7
      %v680 = vshll.u32 %v417, 16
      %v682 = vor.u32 %v679, %v680
      %v683 = vrot.slane %v679, 4
      %v685 = vshrl.u32 %v418, 16
      %v687 = vrot.slane %v685, 7
      %v688 = vshll.u32 %v418, 16
      %v690 = vor.u32 %v687, %v688
      %v691 = vsel %vm420, %v683, %v690
      %v692 = vrot.slane %v687, 4
      %s741 = scalar_lea.vmem [#allocation2], 12
      %vm742 = vcmask 1043456
      %vm743 = vmand %vm742, %vm328
      %v744 = vld [vmem:[%s741] sm:$0xf]
      %v745 = vsel %vm743, %v427, %v744
      %746 = vst [vmem:[%s741] sm:$0xf] %v745
      %747 = vst [vmem:[%s741 + $0x4] sm:$0xf] %v436
      %v748 = vld [vmem:[%s741 + $0x8] sm:$0x1]
      %v749 = vsel %vm273, %v437, %v748
      %750 = vst [vmem:[%s741 + $0x8] sm:$0x1] %v749
      %v751 = vld [vmem:[%s741 + $0xc] sm:$0xf]
      %v752 = vsel %vm743, %v444, %v751
      %753 = vst [vmem:[%s741 + $0xc] sm:$0xf] %v752
      %754 = vst [vmem:[%s741 + $0x10] sm:$0xf] %v453
      %v755 = vld [vmem:[%s741 + $0x14] sm:$0x1]
      %v756 = vsel %vm273, %v454, %v755
      %757 = vst [vmem:[%s741 + $0x14] sm:$0x1] %v756
      %v758 = vld [vmem:[%s741 + $0x18] sm:$0xf]
      %v759 = vsel %vm743, %v461, %v758
      %760 = vst [vmem:[%s741 + $0x18] sm:$0xf] %v759
      %761 = vst [vmem:[%s741 + $0x1c] sm:$0xf] %v470
      %v762 = vld [vmem:[%s741 + $0x20] sm:$0x1]
      %v763 = vsel %vm273, %v471, %v762
      %764 = vst [vmem:[%s741 + $0x20] sm:$0x1] %v763
      %v765 = vld [vmem:[%s741 + $0x24] sm:$0xf]
      %v766 = vsel %vm743, %v478, %v765
      %767 = vst [vmem:[%s741 + $0x24] sm:$0xf] %v766
      %768 = vst [vmem:[%s741 + $0x28] sm:$0xf] %v487
      %v769 = vld [vmem:[%s741 + $0x2c] sm:$0x1]
      %v770 = vsel %vm273, %v488, %v769
      %771 = vst [vmem:[%s741 + $0x2c] sm:$0x1] %v770
      %v772 = vld [vmem:[%s741 + $0x30] sm:$0xf]
      %v773 = vsel %vm743, %v495, %v772
      %774 = vst [vmem:[%s741 + $0x30] sm:$0xf] %v773
      %775 = vst [vmem:[%s741 + $0x34] sm:$0xf] %v504
      %v776 = vld [vmem:[%s741 + $0x38] sm:$0x1]
      %v777 = vsel %vm273, %v505, %v776
      %778 = vst [vmem:[%s741 + $0x38] sm:$0x1] %v777
      %v779 = vld [vmem:[%s741 + $0x3c] sm:$0xf]
      %v780 = vsel %vm743, %v512, %v779
      %781 = vst [vmem:[%s741 + $0x3c] sm:$0xf] %v780
      %782 = vst [vmem:[%s741 + $0x40] sm:$0xf] %v521
      %v783 = vld [vmem:[%s741 + $0x44] sm:$0x1]
      %v784 = vsel %vm273, %v522, %v783
      %785 = vst [vmem:[%s741 + $0x44] sm:$0x1] %v784
      %v786 = vld [vmem:[%s741 + $0x48] sm:$0xf]
      %v787 = vsel %vm743, %v529, %v786
      %788 = vst [vmem:[%s741 + $0x48] sm:$0xf] %v787
      %789 = vst [vmem:[%s741 + $0x4c] sm:$0xf] %v538
      %v790 = vld [vmem:[%s741 + $0x50] sm:$0x1]
      %v791 = vsel %vm273, %v539, %v790
      %792 = vst [vmem:[%s741 + $0x50] sm:$0x1] %v791
      %v793 = vld [vmem:[%s741 + $0x54] sm:$0xf]
      %v794 = vsel %vm743, %v546, %v793
      %795 = vst [vmem:[%s741 + $0x54] sm:$0xf] %v794
      %796 = vst [vmem:[%s741 + $0x58] sm:$0xf] %v555
      %v797 = vld [vmem:[%s741 + $0x5c] sm:$0x1]
      %v798 = vsel %vm273, %v556, %v797
      %799 = vst [vmem:[%s741 + $0x5c] sm:$0x1] %v798
      %v800 = vld [vmem:[%s741 + $0x60] sm:$0xf]
      %v801 = vsel %vm743, %v563, %v800
      %802 = vst [vmem:[%s741 + $0x60] sm:$0xf] %v801
      %803 = vst [vmem:[%s741 + $0x64] sm:$0xf] %v572
      %v804 = vld [vmem:[%s741 + $0x68] sm:$0x1]
      %v805 = vsel %vm273, %v573, %v804
      %806 = vst [vmem:[%s741 + $0x68] sm:$0x1] %v805
      %v807 = vld [vmem:[%s741 + $0x6c] sm:$0xf]
      %v808 = vsel %vm743, %v580, %v807
      %809 = vst [vmem:[%s741 + $0x6c] sm:$0xf] %v808
      %810 = vst [vmem:[%s741 + $0x70] sm:$0xf] %v589
      %v811 = vld [vmem:[%s741 + $0x74] sm:$0x1]
      %v812 = vsel %vm273, %v590, %v811
      %813 = vst [vmem:[%s741 + $0x74] sm:$0x1] %v812
      %v814 = vld [vmem:[%s741 + $0x78] sm:$0xf]
      %v815 = vsel %vm743, %v597, %v814
      %816 = vst [vmem:[%s741 + $0x78] sm:$0xf] %v815
      %817 = vst [vmem:[%s741 + $0x7c] sm:$0xf] %v606
      %v818 = vld [vmem:[%s741 + $0x80] sm:$0x1]
      %v819 = vsel %vm273, %v607, %v818
      %820 = vst [vmem:[%s741 + $0x80] sm:$0x1] %v819
      %v821 = vld [vmem:[%s741 + $0x84] sm:$0xf]
      %v822 = vsel %vm743, %v614, %v821
      %823 = vst [vmem:[%s741 + $0x84] sm:$0xf] %v822
      %824 = vst [vmem:[%s741 + $0x88] sm:$0xf] %v623
      %v825 = vld [vmem:[%s741 + $0x8c] sm:$0x1]
      %v826 = vsel %vm273, %v624, %v825
      %827 = vst [vmem:[%s741 + $0x8c] sm:$0x1] %v826
      %v828 = vld [vmem:[%s741 + $0x90] sm:$0xf]
      %v829 = vsel %vm743, %v631, %v828
      %830 = vst [vmem:[%s741 + $0x90] sm:$0xf] %v829
      %831 = vst [vmem:[%s741 + $0x94] sm:$0xf] %v640
      %v832 = vld [vmem:[%s741 + $0x98] sm:$0x1]
      %v833 = vsel %vm273, %v641, %v832
      %834 = vst [vmem:[%s741 + $0x98] sm:$0x1] %v833
      %v835 = vld [vmem:[%s741 + $0x9c] sm:$0xf]
      %v836 = vsel %vm743, %v648, %v835
      %837 = vst [vmem:[%s741 + $0x9c] sm:$0xf] %v836
      %838 = vst [vmem:[%s741 + $0xa0] sm:$0xf] %v657
      %v839 = vld [vmem:[%s741 + $0xa4] sm:$0x1]
      %v840 = vsel %vm273, %v658, %v839
      %841 = vst [vmem:[%s741 + $0xa4] sm:$0x1] %v840
      %v842 = vld [vmem:[%s741 + $0xa8] sm:$0xf]
      %v843 = vsel %vm743, %v665, %v842
      %844 = vst [vmem:[%s741 + $0xa8] sm:$0xf] %v843
      %845 = vst [vmem:[%s741 + $0xac] sm:$0xf] %v674
      %v846 = vld [vmem:[%s741 + $0xb0] sm:$0x1]
      %v847 = vsel %vm273, %v675, %v846
      %848 = vst [vmem:[%s741 + $0xb0] sm:$0x1] %v847
      %v849 = vld [vmem:[%s741 + $0xb4] sm:$0xf]
      %v850 = vsel %vm743, %v682, %v849
      %851 = vst [vmem:[%s741 + $0xb4] sm:$0xf] %v850
      %852 = vst [vmem:[%s741 + $0xb8] sm:$0xf] %v691
      %v853 = vld [vmem:[%s741 + $0xbc] sm:$0x1]
      %v854 = vsel %vm273, %v692, %v853
      %855 = vst [vmem:[%s741 + $0xbc] sm:$0x1] %v854
      %s856 = ssub.s32 %s270, 1
      %p857 = scmp.gt.s32.totalorder %s856, 0
      %s858 = scalar_select %p857, %s856, 0
      %s859 = smul.u32 %s858, 2
      %s860 = smul.addr %s859, 4
      %s861 = scalar_lea.vmem %s250, %s860
      %v862 = vld [vmem:[%s861] sm:$0xf]
      %v863 = vld [vmem:[%s861 + $0x4] sm:$0xf]
      %s864 = sadd.s32 %s270, 16
      %p865 = scmp.lt.s32.totalorder %s864, 15
      %s866 = scalar_select %p865, %s864, 15
      %s867 = smul.u32 %s866, 2
      %s868 = smul.addr %s867, 4
      %s869 = scalar_lea.vmem %s250, %s868
      %v870 = vld [vmem:[%s869] sm:$0xf]
      %v871 = vld [vmem:[%s869 + $0x4] sm:$0xf]
      %p872 = scmp.gt.s32.totalorder %s270, 0
      %s873 = scalar_select %p872, 1, 0
      %v874 = vstv %s873
      %vm875 = vcmp.eq.s32.totalorder %v874, 1
      %v876 = vsel %vm875, %v862, 0
      %v877 = vsel %vm875, %v863, 0
      %v879 = vshrl.u32 %v876, 16
      %v881 = vrot.slane %v879, 7
      %v882 = vshll.u32 %v876, 16
      %v884 = vor.u32 %v881, %v882
      %v885 = vrot.slane %v881, 4
      %v887 = vshrl.u32 %v877, 16
      %v889 = vrot.slane %v887, 7
      %v890 = vshll.u32 %v877, 16
      %v892 = vor.u32 %v889, %v890
      %v893 = vsel %vm420, %v885, %v892
      %v894 = vrot.slane %v889, 4
      %v898 = vld [vmem:[#allocation2] sm:$0xf]
      %v899 = vsel %vm743, %v884, %v898
      %900 = vst [vmem:[#allocation2] sm:$0xf] %v899
      %901 = vst [vmem:[#allocation2 + $0x4] sm:$0xf] %v893
      %v902 = vld [vmem:[#allocation2 + $0x8] sm:$0x1]
      %v903 = vsel %vm273, %v894, %v902
      %904 = vst [vmem:[#allocation2 + $0x8] sm:$0x1] %v903
      %p905 = scmp.lt.s32.totalorder %s864, 16
      %s906 = scalar_select %p905, 1, 0
      %v907 = vstv %s906
      %vm908 = vcmp.eq.s32.totalorder %v907, 1
      %v909 = vsel %vm908, %v870, 0
      %v910 = vsel %vm908, %v871, 0
      %v912 = vshrl.u32 %v909, 16
      %v914 = vrot.slane %v912, 7
      %v915 = vshll.u32 %v909, 16
      %v917 = vor.u32 %v914, %v915
      %v918 = vrot.slane %v914, 4
      %v920 = vshrl.u32 %v910, 16
      %v922 = vrot.slane %v920, 7
      %v923 = vshll.u32 %v910, 16
      %v925 = vor.u32 %v922, %v923
      %v926 = vsel %vm420, %v918, %v925
      %v927 = vrot.slane %v922, 4
      %s931 = scalar_lea.vmem [#allocation2], 204
      %v932 = vld [vmem:[%s931] sm:$0xf]
      %v933 = vsel %vm743, %v917, %v932
      %934 = vst [vmem:[%s931] sm:$0xf] %v933
      %935 = vst [vmem:[%s931 + $0x4] sm:$0xf] %v926
      %v936 = vld [vmem:[%s931 + $0x8] sm:$0x1]
      %v937 = vsel %vm273, %v927, %v936
      %938 = vst [vmem:[%s931 + $0x8] sm:$0x1] %v937
      %v939 = vld [vmem:[#allocation2] sm:$0xf]
      %v940 = vld [vmem:[#allocation2 + $0x4] sm:$0xf]
      %v941 = vld [vmem:[#allocation2 + $0xc] sm:$0xf]
      %v942 = vld [vmem:[#allocation2 + $0x10] sm:$0xf]
      %v943 = vld [vmem:[#allocation2 + $0x18] sm:$0xf]
      %v944 = vld [vmem:[#allocation2 + $0x1c] sm:$0xf]
      %v945 = vld [vmem:[#allocation2 + $0x24] sm:$0xf]
      %v946 = vld [vmem:[#allocation2 + $0x28] sm:$0xf]
      %v947 = vld [vmem:[#allocation2 + $0x30] sm:$0xf]
      %v948 = vld [vmem:[#allocation2 + $0x34] sm:$0xf]
      %v949 = vld [vmem:[#allocation2 + $0x3c] sm:$0xf]
      %v950 = vld [vmem:[#allocation2 + $0x40] sm:$0xf]
      %v951 = vld [vmem:[#allocation2 + $0x48] sm:$0xf]
      %v952 = vld [vmem:[#allocation2 + $0x4c] sm:$0xf]
      %v953 = vld [vmem:[#allocation2 + $0x54] sm:$0xf]
      %v954 = vld [vmem:[#allocation2 + $0x58] sm:$0xf]
      %v955 = vld [vmem:[#allocation2 + $0x60] sm:$0xf]
      %v956 = vld [vmem:[#allocation2 + $0x64] sm:$0xf]
      %v957 = vld [vmem:[#allocation2 + $0x6c] sm:$0xf]
      %v958 = vld [vmem:[#allocation2 + $0x70] sm:$0xf]
      %v959 = vld [vmem:[#allocation2 + $0x78] sm:$0xf]
      %v960 = vld [vmem:[#allocation2 + $0x7c] sm:$0xf]
      %v961 = vld [vmem:[#allocation2 + $0x84] sm:$0xf]
      %v962 = vld [vmem:[#allocation2 + $0x88] sm:$0xf]
      %v963 = vld [vmem:[#allocation2 + $0x90] sm:$0xf]
      %v964 = vld [vmem:[#allocation2 + $0x94] sm:$0xf]
      %v965 = vld [vmem:[#allocation2 + $0x9c] sm:$0xf]
      %v966 = vld [vmem:[#allocation2 + $0xa0] sm:$0xf]
      %v967 = vld [vmem:[#allocation2 + $0xa8] sm:$0xf]
      %v968 = vld [vmem:[#allocation2 + $0xac] sm:$0xf]
      %v969 = vld [vmem:[#allocation2 + $0xb4] sm:$0xf]
      %v970 = vld [vmem:[#allocation2 + $0xb8] sm:$0xf]
      %v971 = vld [vmem:[#allocation2 + $0x8] sm:$0x1]
      %v972 = vld [vmem:[#allocation2 + $0x14] sm:$0x1]
      %v973 = vld [vmem:[#allocation2 + $0x20] sm:$0x1]
      %v974 = vld [vmem:[#allocation2 + $0x2c] sm:$0x1]
      %v975 = vld [vmem:[#allocation2 + $0x38] sm:$0x1]
      %v976 = vld [vmem:[#allocation2 + $0x44] sm:$0x1]
      %v977 = vld [vmem:[#allocation2 + $0x50] sm:$0x1]
      %v978 = vld [vmem:[#allocation2 + $0x5c] sm:$0x1]
      %v979 = vld [vmem:[#allocation2 + $0x68] sm:$0x1]
      %v980 = vld [vmem:[#allocation2 + $0x74] sm:$0x1]
      %v981 = vld [vmem:[#allocation2 + $0x80] sm:$0x1]
      %v982 = vld [vmem:[#allocation2 + $0x8c] sm:$0x1]
      %v983 = vld [vmem:[#allocation2 + $0x98] sm:$0x1]
      %v984 = vld [vmem:[#allocation2 + $0xa4] sm:$0x1]
      %v985 = vld [vmem:[#allocation2 + $0xb0] sm:$0x1]
      %v986 = vld [vmem:[#allocation2 + $0xbc] sm:$0x1]
      %vm987 = vsmask.f32 3328
      %vm988 = vsmask.f32 7440
      %vm989 = vmor %vm987, %vm988
      %v991 = vshrl.u32 %v939, 16
      %v993 = vrot.slane %v991, 4
      %v994 = vshll.u32 %v939, 16
      %v996 = vrot.slane %v994, 5
      %v997 = vor.u32 %v993, %v996
      %v998 = vrot.slane %v997, 4
      %v1000 = vshll.u32 %v940, 16
      %v1002 = vrot.slane %v1000, 5
      %v1003 = vsel %vm989, %v998, %v1002
      %v1004 = vshrl.u32 %v940, 16
      %v1006 = vrot.slane %v1004, 4
      %v1007 = vor.u32 %v1006, %v1002
      %v1008 = vrot.slane %v1007, 4
      %v1010 = vshll.u32 %v971, 16
      %v1012 = vrot.slane %v1010, 5
      %v1013 = vsel %vm989, %v1008, %v1012
      %v1015 = vshrl.u32 %v941, 16
      %v1017 = vrot.slane %v1015, 4
      %v1018 = vshll.u32 %v941, 16
      %v1020 = vrot.slane %v1018, 5
      %v1021 = vor.u32 %v1017, %v1020
      %v1022 = vrot.slane %v1021, 4
      %v1024 = vshll.u32 %v942, 16
      %v1026 = vrot.slane %v1024, 5
      %v1027 = vsel %vm989, %v1022, %v1026
      %v1028 = vshrl.u32 %v942, 16
      %v1030 = vrot.slane %v1028, 4
      %v1031 = vor.u32 %v1030, %v1026
      %v1032 = vrot.slane %v1031, 4
      %v1034 = vshll.u32 %v972, 16
      %v1036 = vrot.slane %v1034, 5
      %v1037 = vsel %vm989, %v1032, %v1036
      %v1039 = vshrl.u32 %v943, 16
      %v1041 = vrot.slane %v1039, 4
      %v1042 = vshll.u32 %v943, 16
      %v1044 = vrot.slane %v1042, 5
      %v1045 = vor.u32 %v1041, %v1044
      %v1046 = vrot.slane %v1045, 4
      %v1048 = vshll.u32 %v944, 16
      %v1050 = vrot.slane %v1048, 5
      %v1051 = vsel %vm989, %v1046, %v1050
      %v1052 = vshrl.u32 %v944, 16
      %v1054 = vrot.slane %v1052, 4
      %v1055 = vor.u32 %v1054, %v1050
      %v1056 = vrot.slane %v1055, 4
      %v1058 = vshll.u32 %v973, 16
      %v1060 = vrot.slane %v1058, 5
      %v1061 = vsel %vm989, %v1056, %v1060
      %v1063 = vshrl.u32 %v945, 16
      %v1065 = vrot.slane %v1063, 4
      %v1066 = vshll.u32 %v945, 16
      %v1068 = vrot.slane %v1066, 5
      %v1069 = vor.u32 %v1065, %v1068
      %v1070 = vrot.slane %v1069, 4
      %v1072 = vshll.u32 %v946, 16
      %v1074 = vrot.slane %v1072, 5
      %v1075 = vsel %vm989, %v1070, %v1074
      %v1076 = vshrl.u32 %v946, 16
      %v1078 = vrot.slane %v1076, 4
      %v1079 = vor.u32 %v1078, %v1074
      %v1080 = vrot.slane %v1079, 4
      %v1082 = vshll.u32 %v974, 16
      %v1084 = vrot.slane %v1082, 5
      %v1085 = vsel %vm989, %v1080, %v1084
      %v1087 = vshrl.u32 %v947, 16
      %v1089 = vrot.slane %v1087, 4
      %v1090 = vshll.u32 %v947, 16
      %v1092 = vrot.slane %v1090, 5
      %v1093 = vor.u32 %v1089, %v1092
      %v1094 = vrot.slane %v1093, 4
      %v1096 = vshll.u32 %v948, 16
      %v1098 = vrot.slane %v1096, 5
      %v1099 = vsel %vm989, %v1094, %v1098
      %v1100 = vshrl.u32 %v948, 16
      %v1102 = vrot.slane %v1100, 4
      %v1103 = vor.u32 %v1102, %v1098
      %v1104 = vrot.slane %v1103, 4
      %v1106 = vshll.u32 %v975, 16
      %v1108 = vrot.slane %v1106, 5
      %v1109 = vsel %vm989, %v1104, %v1108
      %v1111 = vshrl.u32 %v949, 16
      %v1113 = vrot.slane %v1111, 4
      %v1114 = vshll.u32 %v949, 16
      %v1116 = vrot.slane %v1114, 5
      %v1117 = vor.u32 %v1113, %v1116
      %v1118 = vrot.slane %v1117, 4
      %v1120 = vshll.u32 %v950, 16
      %v1122 = vrot.slane %v1120, 5
      %v1123 = vsel %vm989, %v1118, %v1122
      %v1124 = vshrl.u32 %v950, 16
      %v1126 = vrot.slane %v1124, 4
      %v1127 = vor.u32 %v1126, %v1122
      %v1128 = vrot.slane %v1127, 4
      %v1130 = vshll.u32 %v976, 16
      %v1132 = vrot.slane %v1130, 5
      %v1133 = vsel %vm989, %v1128, %v1132
      %v1135 = vshrl.u32 %v951, 16
      %v1137 = vrot.slane %v1135, 4
      %v1138 = vshll.u32 %v951, 16
      %v1140 = vrot.slane %v1138, 5
      %v1141 = vor.u32 %v1137, %v1140
      %v1142 = vrot.slane %v1141, 4
      %v1144 = vshll.u32 %v952, 16
      %v1146 = vrot.slane %v1144, 5
      %v1147 = vsel %vm989, %v1142, %v1146
      %v1148 = vshrl.u32 %v952, 16
      %v1150 = vrot.slane %v1148, 4
      %v1151 = vor.u32 %v1150, %v1146
      %v1152 = vrot.slane %v1151, 4
      %v1154 = vshll.u32 %v977, 16
      %v1156 = vrot.slane %v1154, 5
      %v1157 = vsel %vm989, %v1152, %v1156
      %v1159 = vshrl.u32 %v953, 16
      %v1161 = vrot.slane %v1159, 4
      %v1162 = vshll.u32 %v953, 16
      %v1164 = vrot.slane %v1162, 5
      %v1165 = vor.u32 %v1161, %v1164
      %v1166 = vrot.slane %v1165, 4
      %v1168 = vshll.u32 %v954, 16
      %v1170 = vrot.slane %v1168, 5
      %v1171 = vsel %vm989, %v1166, %v1170
      %v1172 = vshrl.u32 %v954, 16
      %v1174 = vrot.slane %v1172, 4
      %v1175 = vor.u32 %v1174, %v1170
      %v1176 = vrot.slane %v1175, 4
      %v1178 = vshll.u32 %v978, 16
      %v1180 = vrot.slane %v1178, 5
      %v1181 = vsel %vm989, %v1176, %v1180
      %v1183 = vshrl.u32 %v955, 16
      %v1185 = vrot.slane %v1183, 4
      %v1186 = vshll.u32 %v955, 16
      %v1188 = vrot.slane %v1186, 5
      %v1189 = vor.u32 %v1185, %v1188
      %v1190 = vrot.slane %v1189, 4
      %v1192 = vshll.u32 %v956, 16
      %v1194 = vrot.slane %v1192, 5
      %v1195 = vsel %vm989, %v1190, %v1194
      %v1196 = vshrl.u32 %v956, 16
      %v1198 = vrot.slane %v1196, 4
      %v1199 = vor.u32 %v1198, %v1194
      %v1200 = vrot.slane %v1199, 4
      %v1202 = vshll.u32 %v979, 16
      %v1204 = vrot.slane %v1202, 5
      %v1205 = vsel %vm989, %v1200, %v1204
      %v1207 = vshrl.u32 %v957, 16
      %v1209 = vrot.slane %v1207, 4
      %v1210 = vshll.u32 %v957, 16
      %v1212 = vrot.slane %v1210, 5
      %v1213 = vor.u32 %v1209, %v1212
      %v1214 = vrot.slane %v1213, 4
      %v1216 = vshll.u32 %v958, 16
      %v1218 = vrot.slane %v1216, 5
      %v1219 = vsel %vm989, %v1214, %v1218
      %v1220 = vshrl.u32 %v958, 16
      %v1222 = vrot.slane %v1220, 4
      %v1223 = vor.u32 %v1222, %v1218
      %v1224 = vrot.slane %v1223, 4
      %v1226 = vshll.u32 %v980, 16
      %v1228 = vrot.slane %v1226, 5
      %v1229 = vsel %vm989, %v1224, %v1228
      %v1231 = vshrl.u32 %v959, 16
      %v1233 = vrot.slane %v1231, 4
      %v1234 = vshll.u32 %v959, 16
      %v1236 = vrot.slane %v1234, 5
      %v1237 = vor.u32 %v1233, %v1236
      %v1238 = vrot.slane %v1237, 4
      %v1240 = vshll.u32 %v960, 16
      %v1242 = vrot.slane %v1240, 5
      %v1243 = vsel %vm989, %v1238, %v1242
      %v1244 = vshrl.u32 %v960, 16
      %v1246 = vrot.slane %v1244, 4
      %v1247 = vor.u32 %v1246, %v1242
      %v1248 = vrot.slane %v1247, 4
      %v1250 = vshll.u32 %v981, 16
      %v1252 = vrot.slane %v1250, 5
      %v1253 = vsel %vm989, %v1248, %v1252
      %v1255 = vshrl.u32 %v961, 16
      %v1257 = vrot.slane %v1255, 4
      %v1258 = vshll.u32 %v961, 16
      %v1260 = vrot.slane %v1258, 5
      %v1261 = vor.u32 %v1257, %v1260
      %v1262 = vrot.slane %v1261, 4
      %v1264 = vshll.u32 %v962, 16
      %v1266 = vrot.slane %v1264, 5
      %v1267 = vsel %vm989, %v1262, %v1266
      %v1268 = vshrl.u32 %v962, 16
      %v1270 = vrot.slane %v1268, 4
      %v1271 = vor.u32 %v1270, %v1266
      %v1272 = vrot.slane %v1271, 4
      %v1274 = vshll.u32 %v982, 16
      %v1276 = vrot.slane %v1274, 5
      %v1277 = vsel %vm989, %v1272, %v1276
      %v1279 = vshrl.u32 %v963, 16
      %v1281 = vrot.slane %v1279, 4
      %v1282 = vshll.u32 %v963, 16
      %v1284 = vrot.slane %v1282, 5
      %v1285 = vor.u32 %v1281, %v1284
      %v1286 = vrot.slane %v1285, 4
      %v1288 = vshll.u32 %v964, 16
      %v1290 = vrot.slane %v1288, 5
      %v1291 = vsel %vm989, %v1286, %v1290
      %v1292 = vshrl.u32 %v964, 16
      %v1294 = vrot.slane %v1292, 4
      %v1295 = vor.u32 %v1294, %v1290
      %v1296 = vrot.slane %v1295, 4
      %v1298 = vshll.u32 %v983, 16
      %v1300 = vrot.slane %v1298, 5
      %v1301 = vsel %vm989, %v1296, %v1300
      %v1303 = vshrl.u32 %v965, 16
      %v1305 = vrot.slane %v1303, 4
      %v1306 = vshll.u32 %v965, 16
      %v1308 = vrot.slane %v1306, 5
      %v1309 = vor.u32 %v1305, %v1308
      %v1310 = vrot.slane %v1309, 4
      %v1312 = vshll.u32 %v966, 16
      %v1314 = vrot.slane %v1312, 5
      %v1315 = vsel %vm989, %v1310, %v1314
      %v1316 = vshrl.u32 %v966, 16
      %v1318 = vrot.slane %v1316, 4
      %v1319 = vor.u32 %v1318, %v1314
      %v1320 = vrot.slane %v1319, 4
      %v1322 = vshll.u32 %v984, 16
      %v1324 = vrot.slane %v1322, 5
      %v1325 = vsel %vm989, %v1320, %v1324
      %v1327 = vshrl.u32 %v967, 16
      %v1329 = vrot.slane %v1327, 4
      %v1330 = vshll.u32 %v967, 16
      %v1332 = vrot.slane %v1330, 5
      %v1333 = vor.u32 %v1329, %v1332
      %v1334 = vrot.slane %v1333, 4
      %v1336 = vshll.u32 %v968, 16
      %v1338 = vrot.slane %v1336, 5
      %v1339 = vsel %vm989, %v1334, %v1338
      %v1340 = vshrl.u32 %v968, 16
      %v1342 = vrot.slane %v1340, 4
      %v1343 = vor.u32 %v1342, %v1338
      %v1344 = vrot.slane %v1343, 4
      %v1346 = vshll.u32 %v985, 16
      %v1348 = vrot.slane %v1346, 5
      %v1349 = vsel %vm989, %v1344, %v1348
      %v1351 = vshrl.u32 %v969, 16
      %v1353 = vrot.slane %v1351, 4
      %v1354 = vshll.u32 %v969, 16
      %v1356 = vrot.slane %v1354, 5
      %v1357 = vor.u32 %v1353, %v1356
      %v1358 = vrot.slane %v1357, 4
      %v1360 = vshll.u32 %v970, 16
      %v1362 = vrot.slane %v1360, 5
      %v1363 = vsel %vm989, %v1358, %v1362
      %v1364 = vshrl.u32 %v970, 16
      %v1366 = vrot.slane %v1364, 4
      %v1367 = vor.u32 %v1366, %v1362
      %v1368 = vrot.slane %v1367, 4
      %v1370 = vshll.u32 %v986, 16
      %v1372 = vrot.slane %v1370, 5
      %v1373 = vsel %vm989, %v1368, %v1372
      %v1374 = vld [vmem:[#allocation2] sm:$0xe]
      %v1375 = vld [vmem:[#allocation2 + $0xc] sm:$0xe]
      %v1376 = vld [vmem:[#allocation2 + $0x18] sm:$0xe]
      %v1377 = vld [vmem:[#allocation2 + $0x24] sm:$0xe]
      %v1378 = vld [vmem:[#allocation2 + $0x30] sm:$0xe]
      %v1379 = vld [vmem:[#allocation2 + $0x3c] sm:$0xe]
      %v1380 = vld [vmem:[#allocation2 + $0x48] sm:$0xe]
      %v1381 = vld [vmem:[#allocation2 + $0x54] sm:$0xe]
      %v1382 = vld [vmem:[#allocation2 + $0x60] sm:$0xe]
      %v1383 = vld [vmem:[#allocation2 + $0x6c] sm:$0xe]
      %v1384 = vld [vmem:[#allocation2 + $0x78] sm:$0xe]
      %v1385 = vld [vmem:[#allocation2 + $0x84] sm:$0xe]
      %v1386 = vld [vmem:[#allocation2 + $0x90] sm:$0xe]
      %v1387 = vld [vmem:[#allocation2 + $0x9c] sm:$0xe]
      %v1388 = vld [vmem:[#allocation2 + $0xa8] sm:$0xe]
      %v1389 = vld [vmem:[#allocation2 + $0xb4] sm:$0xe]
      %vm1438 = vcmask 1042432
      %vm1439 = vcmask 1046532
      %vm1440 = vmor %vm1438, %vm1439
      %v1441 = vrot.slane %v1374, 5
      %v1442 = vrot.slane %v1441, 4
      %v1443 = vrot.slane %v940, 5
      %v1444 = vsel %vm1440, %v1442, %v1443
      %v1445 = vrot.slane %v1443, 4
      %v1446 = vrot.slane %v971, 5
      %v1447 = vsel %vm1440, %v1445, %v1446
      %v1448 = vrot.slane %v1375, 5
      %v1449 = vrot.slane %v1448, 4
      %v1450 = vrot.slane %v942, 5
      %v1451 = vsel %vm1440, %v1449, %v1450
      %v1452 = vrot.slane %v1450, 4
      %v1453 = vrot.slane %v972, 5
      %v1454 = vsel %vm1440, %v1452, %v1453
      %v1455 = vrot.slane %v1376, 5
      %v1456 = vrot.slane %v1455, 4
      %v1457 = vrot.slane %v944, 5
      %v1458 = vsel %vm1440, %v1456, %v1457
      %v1459 = vrot.slane %v1457, 4
      %v1460 = vrot.slane %v973, 5
      %v1461 = vsel %vm1440, %v1459, %v1460
      %v1462 = vrot.slane %v1377, 5
      %v1463 = vrot.slane %v1462, 4
      %v1464 = vrot.slane %v946, 5
      %v1465 = vsel %vm1440, %v1463, %v1464
      %v1466 = vrot.slane %v1464, 4
      %v1467 = vrot.slane %v974, 5
      %v1468 = vsel %vm1440, %v1466, %v1467
      %v1469 = vrot.slane %v1378, 5
      %v1470 = vrot.slane %v1469, 4
      %v1471 = vrot.slane %v948, 5
      %v1472 = vsel %vm1440, %v1470, %v1471
      %v1473 = vrot.slane %v1471, 4
      %v1474 = vrot.slane %v975, 5
      %v1475 = vsel %vm1440, %v1473, %v1474
      %v1476 = vrot.slane %v1379, 5
      %v1477 = vrot.slane %v1476, 4
      %v1478 = vrot.slane %v950, 5
      %v1479 = vsel %vm1440, %v1477, %v1478
      %v1480 = vrot.slane %v1478, 4
      %v1481 = vrot.slane %v976, 5
      %v1482 = vsel %vm1440, %v1480, %v1481
      %v1483 = vrot.slane %v1380, 5
      %v1484 = vrot.slane %v1483, 4
      %v1485 = vrot.slane %v952, 5
      %v1486 = vsel %vm1440, %v1484, %v1485
      %v1487 = vrot.slane %v1485, 4
      %v1488 = vrot.slane %v977, 5
      %v1489 = vsel %vm1440, %v1487, %v1488
      %v1490 = vrot.slane %v1381, 5
      %v1491 = vrot.slane %v1490, 4
      %v1492 = vrot.slane %v954, 5
      %v1493 = vsel %vm1440, %v1491, %v1492
      %v1494 = vrot.slane %v1492, 4
      %v1495 = vrot.slane %v978, 5
      %v1496 = vsel %vm1440, %v1494, %v1495
      %v1497 = vrot.slane %v1382, 5
      %v1498 = vrot.slane %v1497, 4
      %v1499 = vrot.slane %v956, 5
      %v1500 = vsel %vm1440, %v1498, %v1499
      %v1501 = vrot.slane %v1499, 4
      %v1502 = vrot.slane %v979, 5
      %v1503 = vsel %vm1440, %v1501, %v1502
      %v1504 = vrot.slane %v1383, 5
      %v1505 = vrot.slane %v1504, 4
      %v1506 = vrot.slane %v958, 5
      %v1507 = vsel %vm1440, %v1505, %v1506
      %v1508 = vrot.slane %v1506, 4
      %v1509 = vrot.slane %v980, 5
      %v1510 = vsel %vm1440, %v1508, %v1509
      %v1511 = vrot.slane %v1384, 5
      %v1512 = vrot.slane %v1511, 4
      %v1513 = vrot.slane %v960, 5
      %v1514 = vsel %vm1440, %v1512, %v1513
      %v1515 = vrot.slane %v1513, 4
      %v1516 = vrot.slane %v981, 5
      %v1517 = vsel %vm1440, %v1515, %v1516
      %v1518 = vrot.slane %v1385, 5
      %v1519 = vrot.slane %v1518, 4
      %v1520 = vrot.slane %v962, 5
      %v1521 = vsel %vm1440, %v1519, %v1520
      %v1522 = vrot.slane %v1520, 4
      %v1523 = vrot.slane %v982, 5
      %v1524 = vsel %vm1440, %v1522, %v1523
      %v1525 = vrot.slane %v1386, 5
      %v1526 = vrot.slane %v1525, 4
      %v1527 = vrot.slane %v964, 5
      %v1528 = vsel %vm1440, %v1526, %v1527
      %v1529 = vrot.slane %v1527, 4
      %v1530 = vrot.slane %v983, 5
      %v1531 = vsel %vm1440, %v1529, %v1530
      %v1532 = vrot.slane %v1387, 5
      %v1533 = vrot.slane %v1532, 4
      %v1534 = vrot.slane %v966, 5
      %v1535 = vsel %vm1440, %v1533, %v1534
      %v1536 = vrot.slane %v1534, 4
      %v1537 = vrot.slane %v984, 5
      %v1538 = vsel %vm1440, %v1536, %v1537
      %v1539 = vrot.slane %v1388, 5
      %v1540 = vrot.slane %v1539, 4
      %v1541 = vrot.slane %v968, 5
      %v1542 = vsel %vm1440, %v1540, %v1541
      %v1543 = vrot.slane %v1541, 4
      %v1544 = vrot.slane %v985, 5
      %v1545 = vsel %vm1440, %v1543, %v1544
      %v1546 = vrot.slane %v1389, 5
      %v1547 = vrot.slane %v1546, 4
      %v1548 = vrot.slane %v970, 5
      %v1549 = vsel %vm1440, %v1547, %v1548
      %v1550 = vrot.slane %v1548, 4
      %v1551 = vrot.slane %v986, 5
      %v1552 = vsel %vm1440, %v1550, %v1551
      %v1569 = vunpack.c.l.b16 %v939
      %v1570 = vunpack.c.l.b16 %v940
      %v1571 = vunpack.c.l.b16 %v941
      %v1572 = vunpack.c.l.b16 %v942
      %v1573 = vunpack.c.l.b16 %v943
      %v1574 = vunpack.c.l.b16 %v944
      %v1575 = vunpack.c.l.b16 %v945
      %v1576 = vunpack.c.l.b16 %v946
      %v1577 = vunpack.c.l.b16 %v947
      %v1578 = vunpack.c.l.b16 %v948
      %v1579 = vunpack.c.l.b16 %v949
      %v1580 = vunpack.c.l.b16 %v950
      %v1581 = vunpack.c.l.b16 %v951
      %v1582 = vunpack.c.l.b16 %v952
      %v1583 = vunpack.c.l.b16 %v953
      %v1584 = vunpack.c.l.b16 %v954
      %v1585 = vunpack.c.l.b16 %v955
      %v1586 = vunpack.c.l.b16 %v956
      %v1587 = vunpack.c.l.b16 %v957
      %v1588 = vunpack.c.l.b16 %v958
      %v1589 = vunpack.c.l.b16 %v959
      %v1590 = vunpack.c.l.b16 %v960
      %v1591 = vunpack.c.l.b16 %v961
      %v1592 = vunpack.c.l.b16 %v962
      %v1593 = vunpack.c.l.b16 %v963
      %v1594 = vunpack.c.l.b16 %v964
      %v1595 = vunpack.c.l.b16 %v965
      %v1596 = vunpack.c.l.b16 %v966
      %v1597 = vunpack.c.l.b16 %v967
      %v1598 = vunpack.c.l.b16 %v968
      %v1599 = vunpack.c.l.b16 %v969
      %v1600 = vunpack.c.l.b16 %v970
      %v1601 = vpack.c.b16 %v1570, %v1569
      %v1602 = vpack.c.b16 %v1572, %v1571
      %v1603 = vpack.c.b16 %v1574, %v1573
      %v1604 = vpack.c.b16 %v1576, %v1575
      %v1605 = vpack.c.b16 %v1578, %v1577
      %v1606 = vpack.c.b16 %v1580, %v1579
      %v1607 = vpack.c.b16 %v1582, %v1581
      %v1608 = vpack.c.b16 %v1584, %v1583
      %v1609 = vpack.c.b16 %v1586, %v1585
      %v1610 = vpack.c.b16 %v1588, %v1587
      %v1611 = vpack.c.b16 %v1590, %v1589
      %v1612 = vpack.c.b16 %v1592, %v1591
      %v1613 = vpack.c.b16 %v1594, %v1593
      %v1614 = vpack.c.b16 %v1596, %v1595
      %v1615 = vpack.c.b16 %v1598, %v1597
      %v1616 = vpack.c.b16 %v1600, %v1599
      %v1633 = vunpack.c.l.b16 %v1003
      %v1634 = vunpack.c.l.b16 %v1013
      %v1635 = vunpack.c.l.b16 %v1027
      %v1636 = vunpack.c.l.b16 %v1037
      %v1637 = vunpack.c.l.b16 %v1051
      %v1638 = vunpack.c.l.b16 %v1061
      %v1639 = vunpack.c.l.b16 %v1075
      %v1640 = vunpack.c.l.b16 %v1085
      %v1641 = vunpack.c.l.b16 %v1099
      %v1642 = vunpack.c.l.b16 %v1109
      %v1643 = vunpack.c.l.b16 %v1123
      %v1644 = vunpack.c.l.b16 %v1133
      %v1645 = vunpack.c.l.b16 %v1147
      %v1646 = vunpack.c.l.b16 %v1157
      %v1647 = vunpack.c.l.b16 %v1171
      %v1648 = vunpack.c.l.b16 %v1181
      %v1649 = vunpack.c.l.b16 %v1195
      %v1650 = vunpack.c.l.b16 %v1205
      %v1651 = vunpack.c.l.b16 %v1219
      %v1652 = vunpack.c.l.b16 %v1229
      %v1653 = vunpack.c.l.b16 %v1243
      %v1654 = vunpack.c.l.b16 %v1253
      %v1655 = vunpack.c.l.b16 %v1267
      %v1656 = vunpack.c.l.b16 %v1277
      %v1657 = vunpack.c.l.b16 %v1291
      %v1658 = vunpack.c.l.b16 %v1301
      %v1659 = vunpack.c.l.b16 %v1315
      %v1660 = vunpack.c.l.b16 %v1325
      %v1661 = vunpack.c.l.b16 %v1339
      %v1662 = vunpack.c.l.b16 %v1349
      %v1663 = vunpack.c.l.b16 %v1363
      %v1664 = vunpack.c.l.b16 %v1373
      %v1665 = vpack.c.b16 %v1634, %v1633
      %v1666 = vpack.c.b16 %v1636, %v1635
      %v1667 = vpack.c.b16 %v1638, %v1637
      %v1668 = vpack.c.b16 %v1640, %v1639
      %v1669 = vpack.c.b16 %v1642, %v1641
      %v1670 = vpack.c.b16 %v1644, %v1643
      %v1671 = vpack.c.b16 %v1646, %v1645
      %v1672 = vpack.c.b16 %v1648, %v1647
      %v1673 = vpack.c.b16 %v1650, %v1649
      %v1674 = vpack.c.b16 %v1652, %v1651
      %v1675 = vpack.c.b16 %v1654, %v1653
      %v1676 = vpack.c.b16 %v1656, %v1655
      %v1677 = vpack.c.b16 %v1658, %v1657
      %v1678 = vpack.c.b16 %v1660, %v1659
      %v1679 = vpack.c.b16 %v1662, %v1661
      %v1680 = vpack.c.b16 %v1664, %v1663
      %v1697 = vunpack.c.l.b16 %v1444
      %v1698 = vunpack.c.l.b16 %v1447
      %v1699 = vunpack.c.l.b16 %v1451
      %v1700 = vunpack.c.l.b16 %v1454
      %v1701 = vunpack.c.l.b16 %v1458
      %v1702 = vunpack.c.l.b16 %v1461
      %v1703 = vunpack.c.l.b16 %v1465
      %v1704 = vunpack.c.l.b16 %v1468
      %v1705 = vunpack.c.l.b16 %v1472
      %v1706 = vunpack.c.l.b16 %v1475
      %v1707 = vunpack.c.l.b16 %v1479
      %v1708 = vunpack.c.l.b16 %v1482
      %v1709 = vunpack.c.l.b16 %v1486
      %v1710 = vunpack.c.l.b16 %v1489
      %v1711 = vunpack.c.l.b16 %v1493
      %v1712 = vunpack.c.l.b16 %v1496
      %v1713 = vunpack.c.l.b16 %v1500
      %v1714 = vunpack.c.l.b16 %v1503
      %v1715 = vunpack.c.l.b16 %v1507
      %v1716 = vunpack.c.l.b16 %v1510
      %v1717 = vunpack.c.l.b16 %v1514
      %v1718 = vunpack.c.l.b16 %v1517
      %v1719 = vunpack.c.l.b16 %v1521
      %v1720 = vunpack.c.l.b16 %v1524
      %v1721 = vunpack.c.l.b16 %v1528
      %v1722 = vunpack.c.l.b16 %v1531
      %v1723 = vunpack.c.l.b16 %v1535
      %v1724 = vunpack.c.l.b16 %v1538
      %v1725 = vunpack.c.l.b16 %v1542
      %v1726 = vunpack.c.l.b16 %v1545
      %v1727 = vunpack.c.l.b16 %v1549
      %v1728 = vunpack.c.l.b16 %v1552
      %v1729 = vpack.c.b16 %v1698, %v1697
      %v1730 = vpack.c.b16 %v1700, %v1699
      %v1731 = vpack.c.b16 %v1702, %v1701
      %v1732 = vpack.c.b16 %v1704, %v1703
      %v1733 = vpack.c.b16 %v1706, %v1705
      %v1734 = vpack.c.b16 %v1708, %v1707
      %v1735 = vpack.c.b16 %v1710, %v1709
      %v1736 = vpack.c.b16 %v1712, %v1711
      %v1737 = vpack.c.b16 %v1714, %v1713
      %v1738 = vpack.c.b16 %v1716, %v1715
      %v1739 = vpack.c.b16 %v1718, %v1717
      %v1740 = vpack.c.b16 %v1720, %v1719
      %v1741 = vpack.c.b16 %v1722, %v1721
      %v1742 = vpack.c.b16 %v1724, %v1723
      %v1743 = vpack.c.b16 %v1726, %v1725
      %v1744 = vpack.c.b16 %v1728, %v1727
      %v1761 = vld [vmem:[%s3] sm:$0xf]
      %v1762 = vld [vmem:[%s3 + $0x4] sm:$0xf]
      %v1763 = vld [vmem:[%s3 + $0x8] sm:$0xf]
      %v1764 = vld [vmem:[%s3 + $0xc] sm:$0xf]
      %v1765 = vld [vmem:[%s3 + $0x10] sm:$0xf]
      %v1766 = vld [vmem:[%s3 + $0x14] sm:$0xf]
      %v1767 = vld [vmem:[%s3 + $0x18] sm:$0xf]
      %v1768 = vld [vmem:[%s3 + $0x1c] sm:$0xf]
      %v1769 = vld [vmem:[%s3 + $0x20] sm:$0xf]
      %v1770 = vld [vmem:[%s3 + $0x24] sm:$0xf]
      %v1771 = vld [vmem:[%s3 + $0x28] sm:$0xf]
      %v1772 = vld [vmem:[%s3 + $0x2c] sm:$0xf]
      %v1773 = vld [vmem:[%s3 + $0x30] sm:$0xf]
      %v1774 = vld [vmem:[%s3 + $0x34] sm:$0xf]
      %v1775 = vld [vmem:[%s3 + $0x38] sm:$0xf]
      %v1776 = vld [vmem:[%s3 + $0x3c] sm:$0xf]
      %v1777 = vld [vmem:[%s3 + $0x40] sm:$0xf]
      %v1778 = vld [vmem:[%s3 + $0x44] sm:$0xf]
      %v1779 = vld [vmem:[%s3 + $0x48] sm:$0xf]
      %v1780 = vld [vmem:[%s3 + $0x4c] sm:$0xf]
      %v1781 = vld [vmem:[%s3 + $0x50] sm:$0xf]
      %v1782 = vld [vmem:[%s3 + $0x54] sm:$0xf]
      %v1783 = vld [vmem:[%s3 + $0x58] sm:$0xf]
      %v1784 = vld [vmem:[%s3 + $0x5c] sm:$0xf]
      %v1785 = vld [vmem:[%s3 + $0x60] sm:$0xf]
      %v1786 = vld [vmem:[%s3 + $0x64] sm:$0xf]
      %v1787 = vld [vmem:[%s3 + $0x68] sm:$0xf]
      %v1788 = vld [vmem:[%s3 + $0x6c] sm:$0xf]
      %v1789 = vld [vmem:[%s3 + $0x70] sm:$0xf]
      %v1790 = vld [vmem:[%s3 + $0x74] sm:$0xf]
      %v1791 = vld [vmem:[%s3 + $0x78] sm:$0xf]
      %v1792 = vld [vmem:[%s3 + $0x7c] sm:$0xf]
      %v1793 = vld [vmem:[%s3 + $0x80] sm:$0xf]
      %v1794 = vld [vmem:[%s3 + $0x84] sm:$0xf]
      %v1795 = vld [vmem:[%s3 + $0x88] sm:$0xf]
      %v1796 = vld [vmem:[%s3 + $0x8c] sm:$0xf]
      %v1797 = vld [vmem:[%s3 + $0x90] sm:$0xf]
      %v1798 = vld [vmem:[%s3 + $0x94] sm:$0xf]
      %v1799 = vld [vmem:[%s3 + $0x98] sm:$0xf]
      %v1800 = vld [vmem:[%s3 + $0x9c] sm:$0xf]
      %v1801 = vld [vmem:[%s3 + $0xa0] sm:$0xf]
      %v1802 = vld [vmem:[%s3 + $0xa4] sm:$0xf]
      %v1803 = vld [vmem:[%s3 + $0xa8] sm:$0xf]
      %v1804 = vld [vmem:[%s3 + $0xac] sm:$0xf]
      %v1805 = vld [vmem:[%s3 + $0xb0] sm:$0xf]
      %v1806 = vld [vmem:[%s3 + $0xb4] sm:$0xf]
      %v1807 = vld [vmem:[%s3 + $0xb8] sm:$0xf]
      %v1808 = vld [vmem:[%s3 + $0xbc] sm:$0xf]
      %v1809 = vld [vmem:[%s741] sm:$0xf]
      %v1810 = vld [vmem:[%s741 + $0x4] sm:$0xf]
      %v1811 = vld [vmem:[%s741 + $0xc] sm:$0xf]
      %v1812 = vld [vmem:[%s741 + $0x10] sm:$0xf]
      %v1813 = vld [vmem:[%s741 + $0x18] sm:$0xf]
      %v1814 = vld [vmem:[%s741 + $0x1c] sm:$0xf]
      %v1815 = vld [vmem:[%s741 + $0x24] sm:$0xf]
      %v1816 = vld [vmem:[%s741 + $0x28] sm:$0xf]
      %v1817 = vld [vmem:[%s741 + $0x30] sm:$0xf]
      %v1818 = vld [vmem:[%s741 + $0x34] sm:$0xf]
      %v1819 = vld [vmem:[%s741 + $0x3c] sm:$0xf]
      %v1820 = vld [vmem:[%s741 + $0x40] sm:$0xf]
      %v1821 = vld [vmem:[%s741 + $0x48] sm:$0xf]
      %v1822 = vld [vmem:[%s741 + $0x4c] sm:$0xf]
      %v1823 = vld [vmem:[%s741 + $0x54] sm:$0xf]
      %v1824 = vld [vmem:[%s741 + $0x58] sm:$0xf]
      %v1825 = vld [vmem:[%s741 + $0x60] sm:$0xf]
      %v1826 = vld [vmem:[%s741 + $0x64] sm:$0xf]
      %v1827 = vld [vmem:[%s741 + $0x6c] sm:$0xf]
      %v1828 = vld [vmem:[%s741 + $0x70] sm:$0xf]
      %v1829 = vld [vmem:[%s741 + $0x78] sm:$0xf]
      %v1830 = vld [vmem:[%s741 + $0x7c] sm:$0xf]
      %v1831 = vld [vmem:[%s741 + $0x84] sm:$0xf]
      %v1832 = vld [vmem:[%s741 + $0x88] sm:$0xf]
      %v1833 = vld [vmem:[%s741 + $0x90] sm:$0xf]
      %v1834 = vld [vmem:[%s741 + $0x94] sm:$0xf]
      %v1835 = vld [vmem:[%s741 + $0x9c] sm:$0xf]
      %v1836 = vld [vmem:[%s741 + $0xa0] sm:$0xf]
      %v1837 = vld [vmem:[%s741 + $0xa8] sm:$0xf]
      %v1838 = vld [vmem:[%s741 + $0xac] sm:$0xf]
      %v1839 = vld [vmem:[%s741 + $0xb4] sm:$0xf]
      %v1840 = vld [vmem:[%s741 + $0xb8] sm:$0xf]
      %v1841 = vld [vmem:[%s741 + $0x8] sm:$0x1]
      %v1842 = vld [vmem:[%s741 + $0x14] sm:$0x1]
      %v1843 = vld [vmem:[%s741 + $0x20] sm:$0x1]
      %v1844 = vld [vmem:[%s741 + $0x2c] sm:$0x1]
      %v1845 = vld [vmem:[%s741 + $0x38] sm:$0x1]
      %v1846 = vld [vmem:[%s741 + $0x44] sm:$0x1]
      %v1847 = vld [vmem:[%s741 + $0x50] sm:$0x1]
      %v1848 = vld [vmem:[%s741 + $0x5c] sm:$0x1]
      %v1849 = vld [vmem:[%s741 + $0x68] sm:$0x1]
      %v1850 = vld [vmem:[%s741 + $0x74] sm:$0x1]
      %v1851 = vld [vmem:[%s741 + $0x80] sm:$0x1]
      %v1852 = vld [vmem:[%s741 + $0x8c] sm:$0x1]
      %v1853 = vld [vmem:[%s741 + $0x98] sm:$0x1]
      %v1854 = vld [vmem:[%s741 + $0xa4] sm:$0x1]
      %v1855 = vld [vmem:[%s741 + $0xb0] sm:$0x1]
      %v1856 = vld [vmem:[%s741 + $0xbc] sm:$0x1]
      %v1858 = vshrl.u32 %v1809, 16
      %v1860 = vrot.slane %v1858, 4
      %v1861 = vshll.u32 %v1809, 16
      %v1863 = vrot.slane %v1861, 5
      %v1864 = vor.u32 %v1860, %v1863
      %v1865 = vrot.slane %v1864, 4
      %v1867 = vshll.u32 %v1810, 16
      %v1869 = vrot.slane %v1867, 5
      %v1870 = vsel %vm989, %v1865, %v1869
      %v1871 = vshrl.u32 %v1810, 16
      %v1873 = vrot.slane %v1871, 4
      %v1874 = vor.u32 %v1873, %v1869
      %v1875 = vrot.slane %v1874, 4
      %v1877 = vshll.u32 %v1841, 16
      %v1879 = vrot.slane %v1877, 5
      %v1880 = vsel %vm989, %v1875, %v1879
      %v1882 = vshrl.u32 %v1811, 16
      %v1884 = vrot.slane %v1882, 4
      %v1885 = vshll.u32 %v1811, 16
      %v1887 = vrot.slane %v1885, 5
      %v1888 = vor.u32 %v1884, %v1887
      %v1889 = vrot.slane %v1888, 4
      %v1891 = vshll.u32 %v1812, 16
      %v1893 = vrot.slane %v1891, 5
      %v1894 = vsel %vm989, %v1889, %v1893
      %v1895 = vshrl.u32 %v1812, 16
      %v1897 = vrot.slane %v1895, 4
      %v1898 = vor.u32 %v1897, %v1893
      %v1899 = vrot.slane %v1898, 4
      %v1901 = vshll.u32 %v1842, 16
      %v1903 = vrot.slane %v1901, 5
      %v1904 = vsel %vm989, %v1899, %v1903
      %v1906 = vshrl.u32 %v1813, 16
      %v1908 = vrot.slane %v1906, 4
      %v1909 = vshll.u32 %v1813, 16
      %v1911 = vrot.slane %v1909, 5
      %v1912 = vor.u32 %v1908, %v1911
      %v1913 = vrot.slane %v1912, 4
      %v1915 = vshll.u32 %v1814, 16
      %v1917 = vrot.slane %v1915, 5
      %v1918 = vsel %vm989, %v1913, %v1917
      %v1919 = vshrl.u32 %v1814, 16
      %v1921 = vrot.slane %v1919, 4
      %v1922 = vor.u32 %v1921, %v1917
      %v1923 = vrot.slane %v1922, 4
      %v1925 = vshll.u32 %v1843, 16
      %v1927 = vrot.slane %v1925, 5
      %v1928 = vsel %vm989, %v1923, %v1927
      %v1930 = vshrl.u32 %v1815, 16
      %v1932 = vrot.slane %v1930, 4
      %v1933 = vshll.u32 %v1815, 16
      %v1935 = vrot.slane %v1933, 5
      %v1936 = vor.u32 %v1932, %v1935
      %v1937 = vrot.slane %v1936, 4
      %v1939 = vshll.u32 %v1816, 16
      %v1941 = vrot.slane %v1939, 5
      %v1942 = vsel %vm989, %v1937, %v1941
      %v1943 = vshrl.u32 %v1816, 16
      %v1945 = vrot.slane %v1943, 4
      %v1946 = vor.u32 %v1945, %v1941
      %v1947 = vrot.slane %v1946, 4
      %v1949 = vshll.u32 %v1844, 16
      %v1951 = vrot.slane %v1949, 5
      %v1952 = vsel %vm989, %v1947, %v1951
      %v1954 = vshrl.u32 %v1817, 16
      %v1956 = vrot.slane %v1954, 4
      %v1957 = vshll.u32 %v1817, 16
      %v1959 = vrot.slane %v1957, 5
      %v1960 = vor.u32 %v1956, %v1959
      %v1961 = vrot.slane %v1960, 4
      %v1963 = vshll.u32 %v1818, 16
      %v1965 = vrot.slane %v1963, 5
      %v1966 = vsel %vm989, %v1961, %v1965
      %v1967 = vshrl.u32 %v1818, 16
      %v1969 = vrot.slane %v1967, 4
      %v1970 = vor.u32 %v1969, %v1965
      %v1971 = vrot.slane %v1970, 4
      %v1973 = vshll.u32 %v1845, 16
      %v1975 = vrot.slane %v1973, 5
      %v1976 = vsel %vm989, %v1971, %v1975
      %v1978 = vshrl.u32 %v1819, 16
      %v1980 = vrot.slane %v1978, 4
      %v1981 = vshll.u32 %v1819, 16
      %v1983 = vrot.slane %v1981, 5
      %v1984 = vor.u32 %v1980, %v1983
      %v1985 = vrot.slane %v1984, 4
      %v1987 = vshll.u32 %v1820, 16
      %v1989 = vrot.slane %v1987, 5
      %v1990 = vsel %vm989, %v1985, %v1989
      %v1991 = vshrl.u32 %v1820, 16
      %v1993 = vrot.slane %v1991, 4
      %v1994 = vor.u32 %v1993, %v1989
      %v1995 = vrot.slane %v1994, 4
      %v1997 = vshll.u32 %v1846, 16
      %v1999 = vrot.slane %v1997, 5
      %v2000 = vsel %vm989, %v1995, %v1999
      %v2002 = vshrl.u32 %v1821, 16
      %v2004 = vrot.slane %v2002, 4
      %v2005 = vshll.u32 %v1821, 16
      %v2007 = vrot.slane %v2005, 5
      %v2008 = vor.u32 %v2004, %v2007
      %v2009 = vrot.slane %v2008, 4
      %v2011 = vshll.u32 %v1822, 16
      %v2013 = vrot.slane %v2011, 5
      %v2014 = vsel %vm989, %v2009, %v2013
      %v2015 = vshrl.u32 %v1822, 16
      %v2017 = vrot.slane %v2015, 4
      %v2018 = vor.u32 %v2017, %v2013
      %v2019 = vrot.slane %v2018, 4
      %v2021 = vshll.u32 %v1847, 16
      %v2023 = vrot.slane %v2021, 5
      %v2024 = vsel %vm989, %v2019, %v2023
      %v2026 = vshrl.u32 %v1823, 16
      %v2028 = vrot.slane %v2026, 4
      %v2029 = vshll.u32 %v1823, 16
      %v2031 = vrot.slane %v2029, 5
      %v2032 = vor.u32 %v2028, %v2031
      %v2033 = vrot.slane %v2032, 4
      %v2035 = vshll.u32 %v1824, 16
      %v2037 = vrot.slane %v2035, 5
      %v2038 = vsel %vm989, %v2033, %v2037
      %v2039 = vshrl.u32 %v1824, 16
      %v2041 = vrot.slane %v2039, 4
      %v2042 = vor.u32 %v2041, %v2037
      %v2043 = vrot.slane %v2042, 4
      %v2045 = vshll.u32 %v1848, 16
      %v2047 = vrot.slane %v2045, 5
      %v2048 = vsel %vm989, %v2043, %v2047
      %v2050 = vshrl.u32 %v1825, 16
      %v2052 = vrot.slane %v2050, 4
      %v2053 = vshll.u32 %v1825, 16
      %v2055 = vrot.slane %v2053, 5
      %v2056 = vor.u32 %v2052, %v2055
      %v2057 = vrot.slane %v2056, 4
      %v2059 = vshll.u32 %v1826, 16
      %v2061 = vrot.slane %v2059, 5
      %v2062 = vsel %vm989, %v2057, %v2061
      %v2063 = vshrl.u32 %v1826, 16
      %v2065 = vrot.slane %v2063, 4
      %v2066 = vor.u32 %v2065, %v2061
      %v2067 = vrot.slane %v2066, 4
      %v2069 = vshll.u32 %v1849, 16
      %v2071 = vrot.slane %v2069, 5
      %v2072 = vsel %vm989, %v2067, %v2071
      %v2074 = vshrl.u32 %v1827, 16
      %v2076 = vrot.slane %v2074, 4
      %v2077 = vshll.u32 %v1827, 16
      %v2079 = vrot.slane %v2077, 5
      %v2080 = vor.u32 %v2076, %v2079
      %v2081 = vrot.slane %v2080, 4
      %v2083 = vshll.u32 %v1828, 16
      %v2085 = vrot.slane %v2083, 5
      %v2086 = vsel %vm989, %v2081, %v2085
      %v2087 = vshrl.u32 %v1828, 16
      %v2089 = vrot.slane %v2087, 4
      %v2090 = vor.u32 %v2089, %v2085
      %v2091 = vrot.slane %v2090, 4
      %v2093 = vshll.u32 %v1850, 16
      %v2095 = vrot.slane %v2093, 5
      %v2096 = vsel %vm989, %v2091, %v2095
      %v2098 = vshrl.u32 %v1829, 16
      %v2100 = vrot.slane %v2098, 4
      %v2101 = vshll.u32 %v1829, 16
      %v2103 = vrot.slane %v2101, 5
      %v2104 = vor.u32 %v2100, %v2103
      %v2105 = vrot.slane %v2104, 4
      %v2107 = vshll.u32 %v1830, 16
      %v2109 = vrot.slane %v2107, 5
      %v2110 = vsel %vm989, %v2105, %v2109
      %v2111 = vshrl.u32 %v1830, 16
      %v2113 = vrot.slane %v2111, 4
      %v2114 = vor.u32 %v2113, %v2109
      %v2115 = vrot.slane %v2114, 4
      %v2117 = vshll.u32 %v1851, 16
      %v2119 = vrot.slane %v2117, 5
      %v2120 = vsel %vm989, %v2115, %v2119
      %v2122 = vshrl.u32 %v1831, 16
      %v2124 = vrot.slane %v2122, 4
      %v2125 = vshll.u32 %v1831, 16
      %v2127 = vrot.slane %v2125, 5
      %v2128 = vor.u32 %v2124, %v2127
      %v2129 = vrot.slane %v2128, 4
      %v2131 = vshll.u32 %v1832, 16
      %v2133 = vrot.slane %v2131, 5
      %v2134 = vsel %vm989, %v2129, %v2133
      %v2135 = vshrl.u32 %v1832, 16
      %v2137 = vrot.slane %v2135, 4
      %v2138 = vor.u32 %v2137, %v2133
      %v2139 = vrot.slane %v2138, 4
      %v2141 = vshll.u32 %v1852, 16
      %v2143 = vrot.slane %v2141, 5
      %v2144 = vsel %vm989, %v2139, %v2143
      %v2146 = vshrl.u32 %v1833, 16
      %v2148 = vrot.slane %v2146, 4
      %v2149 = vshll.u32 %v1833, 16
      %v2151 = vrot.slane %v2149, 5
      %v2152 = vor.u32 %v2148, %v2151
      %v2153 = vrot.slane %v2152, 4
      %v2155 = vshll.u32 %v1834, 16
      %v2157 = vrot.slane %v2155, 5
      %v2158 = vsel %vm989, %v2153, %v2157
      %v2159 = vshrl.u32 %v1834, 16
      %v2161 = vrot.slane %v2159, 4
      %v2162 = vor.u32 %v2161, %v2157
      %v2163 = vrot.slane %v2162, 4
      %v2165 = vshll.u32 %v1853, 16
      %v2167 = vrot.slane %v2165, 5
      %v2168 = vsel %vm989, %v2163, %v2167
      %v2170 = vshrl.u32 %v1835, 16
      %v2172 = vrot.slane %v2170, 4
      %v2173 = vshll.u32 %v1835, 16
      %v2175 = vrot.slane %v2173, 5
      %v2176 = vor.u32 %v2172, %v2175
      %v2177 = vrot.slane %v2176, 4
      %v2179 = vshll.u32 %v1836, 16
      %v2181 = vrot.slane %v2179, 5
      %v2182 = vsel %vm989, %v2177, %v2181
      %v2183 = vshrl.u32 %v1836, 16
      %v2185 = vrot.slane %v2183, 4
      %v2186 = vor.u32 %v2185, %v2181
      %v2187 = vrot.slane %v2186, 4
      %v2189 = vshll.u32 %v1854, 16
      %v2191 = vrot.slane %v2189, 5
      %v2192 = vsel %vm989, %v2187, %v2191
      %v2194 = vshrl.u32 %v1837, 16
      %v2196 = vrot.slane %v2194, 4
      %v2197 = vshll.u32 %v1837, 16
      %v2199 = vrot.slane %v2197, 5
      %v2200 = vor.u32 %v2196, %v2199
      %v2201 = vrot.slane %v2200, 4
      %v2203 = vshll.u32 %v1838, 16
      %v2205 = vrot.slane %v2203, 5
      %v2206 = vsel %vm989, %v2201, %v2205
      %v2207 = vshrl.u32 %v1838, 16
      %v2209 = vrot.slane %v2207, 4
      %v2210 = vor.u32 %v2209, %v2205
      %v2211 = vrot.slane %v2210, 4
      %v2213 = vshll.u32 %v1855, 16
      %v2215 = vrot.slane %v2213, 5
      %v2216 = vsel %vm989, %v2211, %v2215
      %v2218 = vshrl.u32 %v1839, 16
      %v2220 = vrot.slane %v2218, 4
      %v2221 = vshll.u32 %v1839, 16
      %v2223 = vrot.slane %v2221, 5
      %v2224 = vor.u32 %v2220, %v2223
      %v2225 = vrot.slane %v2224, 4
      %v2227 = vshll.u32 %v1840, 16
      %v2229 = vrot.slane %v2227, 5
      %v2230 = vsel %vm989, %v2225, %v2229
      %v2231 = vshrl.u32 %v1840, 16
      %v2233 = vrot.slane %v2231, 4
      %v2234 = vor.u32 %v2233, %v2229
      %v2235 = vrot.slane %v2234, 4
      %v2237 = vshll.u32 %v1856, 16
      %v2239 = vrot.slane %v2237, 5
      %v2240 = vsel %vm989, %v2235, %v2239
      %v2241 = vld [vmem:[%s741] sm:$0xe]
      %v2242 = vld [vmem:[%s741 + $0xc] sm:$0xe]
      %v2243 = vld [vmem:[%s741 + $0x18] sm:$0xe]
      %v2244 = vld [vmem:[%s741 + $0x24] sm:$0xe]
      %v2245 = vld [vmem:[%s741 + $0x30] sm:$0xe]
      %v2246 = vld [vmem:[%s741 + $0x3c] sm:$0xe]
      %v2247 = vld [vmem:[%s741 + $0x48] sm:$0xe]
      %v2248 = vld [vmem:[%s741 + $0x54] sm:$0xe]
      %v2249 = vld [vmem:[%s741 + $0x60] sm:$0xe]
      %v2250 = vld [vmem:[%s741 + $0x6c] sm:$0xe]
      %v2251 = vld [vmem:[%s741 + $0x78] sm:$0xe]
      %v2252 = vld [vmem:[%s741 + $0x84] sm:$0xe]
      %v2253 = vld [vmem:[%s741 + $0x90] sm:$0xe]
      %v2254 = vld [vmem:[%s741 + $0x9c] sm:$0xe]
      %v2255 = vld [vmem:[%s741 + $0xa8] sm:$0xe]
      %v2256 = vld [vmem:[%s741 + $0xb4] sm:$0xe]
      %v2305 = vrot.slane %v2241, 5
      %v2306 = vrot.slane %v2305, 4
      %v2307 = vrot.slane %v1810, 5
      %v2308 = vsel %vm1440, %v2306, %v2307
      %v2309 = vrot.slane %v2307, 4
      %v2310 = vrot.slane %v1841, 5
      %v2311 = vsel %vm1440, %v2309, %v2310
      %v2312 = vrot.slane %v2242, 5
      %v2313 = vrot.slane %v2312, 4
      %v2314 = vrot.slane %v1812, 5
      %v2315 = vsel %vm1440, %v2313, %v2314
      %v2316 = vrot.slane %v2314, 4
      %v2317 = vrot.slane %v1842, 5
      %v2318 = vsel %vm1440, %v2316, %v2317
      %v2319 = vrot.slane %v2243, 5
      %v2320 = vrot.slane %v2319, 4
      %v2321 = vrot.slane %v1814, 5
      %v2322 = vsel %vm1440, %v2320, %v2321
      %v2323 = vrot.slane %v2321, 4
      %v2324 = vrot.slane %v1843, 5
      %v2325 = vsel %vm1440, %v2323, %v2324
      %v2326 = vrot.slane %v2244, 5
      %v2327 = vrot.slane %v2326, 4
      %v2328 = vrot.slane %v1816, 5
      %v2329 = vsel %vm1440, %v2327, %v2328
      %v2330 = vrot.slane %v2328, 4
      %v2331 = vrot.slane %v1844, 5
      %v2332 = vsel %vm1440, %v2330, %v2331
      %v2333 = vrot.slane %v2245, 5
      %v2334 = vrot.slane %v2333, 4
      %v2335 = vrot.slane %v1818, 5
      %v2336 = vsel %vm1440, %v2334, %v2335
      %v2337 = vrot.slane %v2335, 4
      %v2338 = vrot.slane %v1845, 5
      %v2339 = vsel %vm1440, %v2337, %v2338
      %v2340 = vrot.slane %v2246, 5
      %v2341 = vrot.slane %v2340, 4
      %v2342 = vrot.slane %v1820, 5
      %v2343 = vsel %vm1440, %v2341, %v2342
      %v2344 = vrot.slane %v2342, 4
      %v2345 = vrot.slane %v1846, 5
      %v2346 = vsel %vm1440, %v2344, %v2345
      %v2347 = vrot.slane %v2247, 5
      %v2348 = vrot.slane %v2347, 4
      %v2349 = vrot.slane %v1822, 5
      %v2350 = vsel %vm1440, %v2348, %v2349
      %v2351 = vrot.slane %v2349, 4
      %v2352 = vrot.slane %v1847, 5
      %v2353 = vsel %vm1440, %v2351, %v2352
      %v2354 = vrot.slane %v2248, 5
      %v2355 = vrot.slane %v2354, 4
      %v2356 = vrot.slane %v1824, 5
      %v2357 = vsel %vm1440, %v2355, %v2356
      %v2358 = vrot.slane %v2356, 4
      %v2359 = vrot.slane %v1848, 5
      %v2360 = vsel %vm1440, %v2358, %v2359
      %v2361 = vrot.slane %v2249, 5
      %v2362 = vrot.slane %v2361, 4
      %v2363 = vrot.slane %v1826, 5
      %v2364 = vsel %vm1440, %v2362, %v2363
      %v2365 = vrot.slane %v2363, 4
      %v2366 = vrot.slane %v1849, 5
      %v2367 = vsel %vm1440, %v2365, %v2366
      %v2368 = vrot.slane %v2250, 5
      %v2369 = vrot.slane %v2368, 4
      %v2370 = vrot.slane %v1828, 5
      %v2371 = vsel %vm1440, %v2369, %v2370
      %v2372 = vrot.slane %v2370, 4
      %v2373 = vrot.slane %v1850, 5
      %v2374 = vsel %vm1440, %v2372, %v2373
      %v2375 = vrot.slane %v2251, 5
      %v2376 = vrot.slane %v2375, 4
      %v2377 = vrot.slane %v1830, 5
      %v2378 = vsel %vm1440, %v2376, %v2377
      %v2379 = vrot.slane %v2377, 4
      %v2380 = vrot.slane %v1851, 5
      %v2381 = vsel %vm1440, %v2379, %v2380
      %v2382 = vrot.slane %v2252, 5
      %v2383 = vrot.slane %v2382, 4
      %v2384 = vrot.slane %v1832, 5
      %v2385 = vsel %vm1440, %v2383, %v2384
      %v2386 = vrot.slane %v2384, 4
      %v2387 = vrot.slane %v1852, 5
      %v2388 = vsel %vm1440, %v2386, %v2387
      %v2389 = vrot.slane %v2253, 5
      %v2390 = vrot.slane %v2389, 4
      %v2391 = vrot.slane %v1834, 5
      %v2392 = vsel %vm1440, %v2390, %v2391
      %v2393 = vrot.slane %v2391, 4
      %v2394 = vrot.slane %v1853, 5
      %v2395 = vsel %vm1440, %v2393, %v2394
      %v2396 = vrot.slane %v2254, 5
      %v2397 = vrot.slane %v2396, 4
      %v2398 = vrot.slane %v1836, 5
      %v2399 = vsel %vm1440, %v2397, %v2398
      %v2400 = vrot.slane %v2398, 4
      %v2401 = vrot.slane %v1854, 5
      %v2402 = vsel %vm1440, %v2400, %v2401
      %v2403 = vrot.slane %v2255, 5
      %v2404 = vrot.slane %v2403, 4
      %v2405 = vrot.slane %v1838, 5
      %v2406 = vsel %vm1440, %v2404, %v2405
      %v2407 = vrot.slane %v2405, 4
      %v2408 = vrot.slane %v1855, 5
      %v2409 = vsel %vm1440, %v2407, %v2408
      %v2410 = vrot.slane %v2256, 5
      %v2411 = vrot.slane %v2410, 4
      %v2412 = vrot.slane %v1840, 5
      %v2413 = vsel %vm1440, %v2411, %v2412
      %v2414 = vrot.slane %v2412, 4
      %v2415 = vrot.slane %v1856, 5
      %v2416 = vsel %vm1440, %v2414, %v2415
      %v2433 = vunpack.c.l.b16 %v1809
      %v2434 = vunpack.c.l.b16 %v1810
      %v2435 = vunpack.c.l.b16 %v1811
      %v2436 = vunpack.c.l.b16 %v1812
      %v2437 = vunpack.c.l.b16 %v1813
      %v2438 = vunpack.c.l.b16 %v1814
      %v2439 = vunpack.c.l.b16 %v1815
      %v2440 = vunpack.c.l.b16 %v1816
      %v2441 = vunpack.c.l.b16 %v1817
      %v2442 = vunpack.c.l.b16 %v1818
      %v2443 = vunpack.c.l.b16 %v1819
      %v2444 = vunpack.c.l.b16 %v1820
      %v2445 = vunpack.c.l.b16 %v1821
      %v2446 = vunpack.c.l.b16 %v1822
      %v2447 = vunpack.c.l.b16 %v1823
      %v2448 = vunpack.c.l.b16 %v1824
      %v2449 = vunpack.c.l.b16 %v1825
      %v2450 = vunpack.c.l.b16 %v1826
      %v2451 = vunpack.c.l.b16 %v1827
      %v2452 = vunpack.c.l.b16 %v1828
      %v2453 = vunpack.c.l.b16 %v1829
      %v2454 = vunpack.c.l.b16 %v1830
      %v2455 = vunpack.c.l.b16 %v1831
      %v2456 = vunpack.c.l.b16 %v1832
      %v2457 = vunpack.c.l.b16 %v1833
      %v2458 = vunpack.c.l.b16 %v1834
      %v2459 = vunpack.c.l.b16 %v1835
      %v2460 = vunpack.c.l.b16 %v1836
      %v2461 = vunpack.c.l.b16 %v1837
      %v2462 = vunpack.c.l.b16 %v1838
      %v2463 = vunpack.c.l.b16 %v1839
      %v2464 = vunpack.c.l.b16 %v1840
      %v2465 = vpack.c.b16 %v2434, %v2433
      %v2466 = vpack.c.b16 %v2436, %v2435
      %v2467 = vpack.c.b16 %v2438, %v2437
      %v2468 = vpack.c.b16 %v2440, %v2439
      %v2469 = vpack.c.b16 %v2442, %v2441
      %v2470 = vpack.c.b16 %v2444, %v2443
      %v2471 = vpack.c.b16 %v2446, %v2445
      %v2472 = vpack.c.b16 %v2448, %v2447
      %v2473 = vpack.c.b16 %v2450, %v2449
      %v2474 = vpack.c.b16 %v2452, %v2451
      %v2475 = vpack.c.b16 %v2454, %v2453
      %v2476 = vpack.c.b16 %v2456, %v2455
      %v2477 = vpack.c.b16 %v2458, %v2457
      %v2478 = vpack.c.b16 %v2460, %v2459
      %v2479 = vpack.c.b16 %v2462, %v2461
      %v2480 = vpack.c.b16 %v2464, %v2463
      %v2497 = vunpack.c.l.b16 %v1870
      %v2498 = vunpack.c.l.b16 %v1880
      %v2499 = vunpack.c.l.b16 %v1894
      %v2500 = vunpack.c.l.b16 %v1904
      %v2501 = vunpack.c.l.b16 %v1918
      %v2502 = vunpack.c.l.b16 %v1928
      %v2503 = vunpack.c.l.b16 %v1942
      %v2504 = vunpack.c.l.b16 %v1952
      %v2505 = vunpack.c.l.b16 %v1966
      %v2506 = vunpack.c.l.b16 %v1976
      %v2507 = vunpack.c.l.b16 %v1990
      %v2508 = vunpack.c.l.b16 %v2000
      %v2509 = vunpack.c.l.b16 %v2014
      %v2510 = vunpack.c.l.b16 %v2024
      %v2511 = vunpack.c.l.b16 %v2038
      %v2512 = vunpack.c.l.b16 %v2048
      %v2513 = vunpack.c.l.b16 %v2062
      %v2514 = vunpack.c.l.b16 %v2072
      %v2515 = vunpack.c.l.b16 %v2086
      %v2516 = vunpack.c.l.b16 %v2096
      %v2517 = vunpack.c.l.b16 %v2110
      %v2518 = vunpack.c.l.b16 %v2120
      %v2519 = vunpack.c.l.b16 %v2134
      %v2520 = vunpack.c.l.b16 %v2144
      %v2521 = vunpack.c.l.b16 %v2158
      %v2522 = vunpack.c.l.b16 %v2168
      %v2523 = vunpack.c.l.b16 %v2182
      %v2524 = vunpack.c.l.b16 %v2192
      %v2525 = vunpack.c.l.b16 %v2206
      %v2526 = vunpack.c.l.b16 %v2216
      %v2527 = vunpack.c.l.b16 %v2230
      %v2528 = vunpack.c.l.b16 %v2240
      %v2529 = vpack.c.b16 %v2498, %v2497
      %v2530 = vpack.c.b16 %v2500, %v2499
      %v2531 = vpack.c.b16 %v2502, %v2501
      %v2532 = vpack.c.b16 %v2504, %v2503
      %v2533 = vpack.c.b16 %v2506, %v2505
      %v2534 = vpack.c.b16 %v2508, %v2507
      %v2535 = vpack.c.b16 %v2510, %v2509
      %v2536 = vpack.c.b16 %v2512, %v2511
      %v2537 = vpack.c.b16 %v2514, %v2513
      %v2538 = vpack.c.b16 %v2516, %v2515
      %v2539 = vpack.c.b16 %v2518, %v2517
      %v2540 = vpack.c.b16 %v2520, %v2519
      %v2541 = vpack.c.b16 %v2522, %v2521
      %v2542 = vpack.c.b16 %v2524, %v2523
      %v2543 = vpack.c.b16 %v2526, %v2525
      %v2544 = vpack.c.b16 %v2528, %v2527
      %v2561 = vunpack.c.l.b16 %v2308
      %v2562 = vunpack.c.l.b16 %v2311
      %v2563 = vunpack.c.l.b16 %v2315
      %v2564 = vunpack.c.l.b16 %v2318
      %v2565 = vunpack.c.l.b16 %v2322
      %v2566 = vunpack.c.l.b16 %v2325
      %v2567 = vunpack.c.l.b16 %v2329
      %v2568 = vunpack.c.l.b16 %v2332
      %v2569 = vunpack.c.l.b16 %v2336
      %v2570 = vunpack.c.l.b16 %v2339
      %v2571 = vunpack.c.l.b16 %v2343
      %v2572 = vunpack.c.l.b16 %v2346
      %v2573 = vunpack.c.l.b16 %v2350
      %v2574 = vunpack.c.l.b16 %v2353
      %v2575 = vunpack.c.l.b16 %v2357
      %v2576 = vunpack.c.l.b16 %v2360
      %v2577 = vunpack.c.l.b16 %v2364
      %v2578 = vunpack.c.l.b16 %v2367
      %v2579 = vunpack.c.l.b16 %v2371
      %v2580 = vunpack.c.l.b16 %v2374
      %v2581 = vunpack.c.l.b16 %v2378
      %v2582 = vunpack.c.l.b16 %v2381
      %v2583 = vunpack.c.l.b16 %v2385
      %v2584 = vunpack.c.l.b16 %v2388
      %v2585 = vunpack.c.l.b16 %v2392
      %v2586 = vunpack.c.l.b16 %v2395
      %v2587 = vunpack.c.l.b16 %v2399
      %v2588 = vunpack.c.l.b16 %v2402
      %v2589 = vunpack.c.l.b16 %v2406
      %v2590 = vunpack.c.l.b16 %v2409
      %v2591 = vunpack.c.l.b16 %v2413
      %v2592 = vunpack.c.l.b16 %v2416
      %v2593 = vpack.c.b16 %v2562, %v2561
      %v2594 = vpack.c.b16 %v2564, %v2563
      %v2595 = vpack.c.b16 %v2566, %v2565
      %v2596 = vpack.c.b16 %v2568, %v2567
      %v2597 = vpack.c.b16 %v2570, %v2569
      %v2598 = vpack.c.b16 %v2572, %v2571
      %v2599 = vpack.c.b16 %v2574, %v2573
      %v2600 = vpack.c.b16 %v2576, %v2575
      %v2601 = vpack.c.b16 %v2578, %v2577
      %v2602 = vpack.c.b16 %v2580, %v2579
      %v2603 = vpack.c.b16 %v2582, %v2581
      %v2604 = vpack.c.b16 %v2584, %v2583
      %v2605 = vpack.c.b16 %v2586, %v2585
      %v2606 = vpack.c.b16 %v2588, %v2587
      %v2607 = vpack.c.b16 %v2590, %v2589
      %v2608 = vpack.c.b16 %v2592, %v2591
      %s2625 = scalar_lea.vmem %s3, 192
      %v2626 = vld [vmem:[%s2625] sm:$0xf]
      %v2627 = vld [vmem:[%s2625 + $0x4] sm:$0xf]
      %v2628 = vld [vmem:[%s2625 + $0x8] sm:$0xf]
      %v2629 = vld [vmem:[%s2625 + $0xc] sm:$0xf]
      %v2630 = vld [vmem:[%s2625 + $0x10] sm:$0xf]
      %v2631 = vld [vmem:[%s2625 + $0x14] sm:$0xf]
      %v2632 = vld [vmem:[%s2625 + $0x18] sm:$0xf]
      %v2633 = vld [vmem:[%s2625 + $0x1c] sm:$0xf]
      %v2634 = vld [vmem:[%s2625 + $0x20] sm:$0xf]
      %v2635 = vld [vmem:[%s2625 + $0x24] sm:$0xf]
      %v2636 = vld [vmem:[%s2625 + $0x28] sm:$0xf]
      %v2637 = vld [vmem:[%s2625 + $0x2c] sm:$0xf]
      %v2638 = vld [vmem:[%s2625 + $0x30] sm:$0xf]
      %v2639 = vld [vmem:[%s2625 + $0x34] sm:$0xf]
      %v2640 = vld [vmem:[%s2625 + $0x38] sm:$0xf]
      %v2641 = vld [vmem:[%s2625 + $0x3c] sm:$0xf]
      %v2642 = vld [vmem:[%s2625 + $0x40] sm:$0xf]
      %v2643 = vld [vmem:[%s2625 + $0x44] sm:$0xf]
      %v2644 = vld [vmem:[%s2625 + $0x48] sm:$0xf]
      %v2645 = vld [vmem:[%s2625 + $0x4c] sm:$0xf]
      %v2646 = vld [vmem:[%s2625 + $0x50] sm:$0xf]
      %v2647 = vld [vmem:[%s2625 + $0x54] sm:$0xf]
      %v2648 = vld [vmem:[%s2625 + $0x58] sm:$0xf]
      %v2649 = vld [vmem:[%s2625 + $0x5c] sm:$0xf]
      %v2650 = vld [vmem:[%s2625 + $0x60] sm:$0xf]
      %v2651 = vld [vmem:[%s2625 + $0x64] sm:$0xf]
      %v2652 = vld [vmem:[%s2625 + $0x68] sm:$0xf]
      %v2653 = vld [vmem:[%s2625 + $0x6c] sm:$0xf]
      %v2654 = vld [vmem:[%s2625 + $0x70] sm:$0xf]
      %v2655 = vld [vmem:[%s2625 + $0x74] sm:$0xf]
      %v2656 = vld [vmem:[%s2625 + $0x78] sm:$0xf]
      %v2657 = vld [vmem:[%s2625 + $0x7c] sm:$0xf]
      %v2658 = vld [vmem:[%s2625 + $0x80] sm:$0xf]
      %v2659 = vld [vmem:[%s2625 + $0x84] sm:$0xf]
      %v2660 = vld [vmem:[%s2625 + $0x88] sm:$0xf]
      %v2661 = vld [vmem:[%s2625 + $0x8c] sm:$0xf]
      %v2662 = vld [vmem:[%s2625 + $0x90] sm:$0xf]
      %v2663 = vld [vmem:[%s2625 + $0x94] sm:$0xf]
      %v2664 = vld [vmem:[%s2625 + $0x98] sm:$0xf]
      %v2665 = vld [vmem:[%s2625 + $0x9c] sm:$0xf]
      %v2666 = vld [vmem:[%s2625 + $0xa0] sm:$0xf]
      %v2667 = vld [vmem:[%s2625 + $0xa4] sm:$0xf]
      %v2668 = vld [vmem:[%s2625 + $0xa8] sm:$0xf]
      %v2669 = vld [vmem:[%s2625 + $0xac] sm:$0xf]
      %v2670 = vld [vmem:[%s2625 + $0xb0] sm:$0xf]
      %v2671 = vld [vmem:[%s2625 + $0xb4] sm:$0xf]
      %v2672 = vld [vmem:[%s2625 + $0xb8] sm:$0xf]
      %v2673 = vld [vmem:[%s2625 + $0xbc] sm:$0xf]
      %v2722 = vunpack.c.l.b16 %v2626
      %v2723 = vunpack.c.l.b16 %v2627
      %v2724 = vunpack.c.l.b16 %v2628
      %v2725 = vunpack.c.l.b16 %v2629
      %v2726 = vunpack.c.l.b16 %v2630
      %v2727 = vunpack.c.l.b16 %v2631
      %v2728 = vunpack.c.l.b16 %v2632
      %v2729 = vunpack.c.l.b16 %v2633
      %v2730 = vunpack.c.l.b16 %v2634
      %v2731 = vunpack.c.l.b16 %v2635
      %v2732 = vunpack.c.l.b16 %v2636
      %v2733 = vunpack.c.l.b16 %v2637
      %v2734 = vunpack.c.l.b16 %v2638
      %v2735 = vunpack.c.l.b16 %v2639
      %v2736 = vunpack.c.l.b16 %v2640
      %v2737 = vunpack.c.l.b16 %v2641
      %v2738 = vunpack.c.l.b16 %v2642
      %v2739 = vunpack.c.l.b16 %v2643
      %v2740 = vunpack.c.l.b16 %v2644
      %v2741 = vunpack.c.l.b16 %v2645
      %v2742 = vunpack.c.l.b16 %v2646
      %v2743 = vunpack.c.l.b16 %v2647
      %v2744 = vunpack.c.l.b16 %v2648
      %v2745 = vunpack.c.l.b16 %v2649
      %v2746 = vunpack.c.l.b16 %v2650
      %v2747 = vunpack.c.l.b16 %v2651
      %v2748 = vunpack.c.l.b16 %v2652
      %v2749 = vunpack.c.l.b16 %v2653
      %v2750 = vunpack.c.l.b16 %v2654
      %v2751 = vunpack.c.l.b16 %v2655
      %v2752 = vunpack.c.l.b16 %v2656
      %v2753 = vunpack.c.l.b16 %v2657
      %v2754 = vunpack.c.l.b16 %v2658
      %v2755 = vunpack.c.l.b16 %v2659
      %v2756 = vunpack.c.l.b16 %v2660
      %v2757 = vunpack.c.l.b16 %v2661
      %v2758 = vunpack.c.l.b16 %v2662
      %v2759 = vunpack.c.l.b16 %v2663
      %v2760 = vunpack.c.l.b16 %v2664
      %v2761 = vunpack.c.l.b16 %v2665
      %v2762 = vunpack.c.l.b16 %v2666
      %v2763 = vunpack.c.l.b16 %v2667
      %v2764 = vunpack.c.l.b16 %v2668
      %v2765 = vunpack.c.l.b16 %v2669
      %v2766 = vunpack.c.l.b16 %v2670
      %v2767 = vunpack.c.l.b16 %v2671
      %v2768 = vunpack.c.l.b16 %v2672
      %v2769 = vunpack.c.l.b16 %v2673
      %v2770 = vpack.c.b16 %v2723, %v2722
      %v2771 = vpack.c.b16 %v2725, %v2724
      %v2772 = vpack.c.b16 %v2727, %v2726
      %v2773 = vpack.c.b16 %v2729, %v2728
      %v2774 = vpack.c.b16 %v2731, %v2730
      %v2775 = vpack.c.b16 %v2733, %v2732
      %v2776 = vpack.c.b16 %v2735, %v2734
      %v2777 = vpack.c.b16 %v2737, %v2736
      %v2778 = vpack.c.b16 %v2739, %v2738
      %v2779 = vpack.c.b16 %v2741, %v2740
      %v2780 = vpack.c.b16 %v2743, %v2742
      %v2781 = vpack.c.b16 %v2745, %v2744
      %v2782 = vpack.c.b16 %v2747, %v2746
      %v2783 = vpack.c.b16 %v2749, %v2748
      %v2784 = vpack.c.b16 %v2751, %v2750
      %v2785 = vpack.c.b16 %v2753, %v2752
      %v2786 = vpack.c.b16 %v2755, %v2754
      %v2787 = vpack.c.b16 %v2757, %v2756
      %v2788 = vpack.c.b16 %v2759, %v2758
      %v2789 = vpack.c.b16 %v2761, %v2760
      %v2790 = vpack.c.b16 %v2763, %v2762
      %v2791 = vpack.c.b16 %v2765, %v2764
      %v2792 = vpack.c.b16 %v2767, %v2766
      %v2793 = vpack.c.b16 %v2769, %v2768
      %2818 = vmatprep.subr.bf16.mxu0 0
      %2819 = vmatpush1.bf16.msra.mxu0 %v2770
      %2820 = vmatprep.subr.bf16.mxu0 0
      %2821 = vmatpush1.bf16.msra.mxu0 %v2771
      %2822 = vmatprep.subr.bf16.mxu0 0
      %2823 = vmatpush1.bf16.msra.mxu0 %v2772
      %2824 = vmatprep.subr.bf16.mxu0 0
      %2825 = vmatpush1.bf16.msra.mxu0 %v2773
      %2826 = vmatprep.subr.bf16.mxu0 0
      %2827 = vmatpush1.bf16.msra.mxu0 %v2774
      %2828 = vmatprep.subr.bf16.mxu0 0
      %2829 = vmatpush1.bf16.msra.mxu0 %v2775
      %2830 = vmatprep.subr.bf16.mxu0 0
      %2831 = vmatpush1.bf16.msra.mxu0 %v2776
      %2832 = vmatprep.subr.bf16.mxu0 0
      %2833 = vmatpush1.bf16.msra.mxu0 %v2777
      %2834 = vmatprep.subr.bf16.mxu0 0
      %2835 = vmatpush1.bf16.msra.mxu0 %v2778
      %2836 = vmatprep.subr.bf16.mxu0 0
      %2837 = vmatpush1.bf16.msra.mxu0 %v2779
      %2838 = vmatprep.subr.bf16.mxu0 0
      %2839 = vmatpush1.bf16.msra.mxu0 %v2780
      %2840 = vmatprep.subr.bf16.mxu0 0
      %2841 = vmatpush1.bf16.msra.mxu0 %v2781
      %2842 = vmatprep.subr.bf16.mxu0 0
      %2843 = vmatpush1.bf16.msra.mxu0 %v2782
      %2844 = vmatprep.subr.bf16.mxu0 0
      %2845 = vmatpush1.bf16.msra.mxu0 %v2783
      %2846 = vmatprep.subr.bf16.mxu0 0
      %2847 = vmatpush1.bf16.msra.mxu0 %v2784
      %2848 = vmatprep.subr.bf16.mxu0 0
      %2849 = vmatpush1.bf16.msra.mxu0 %v2785
      %2850 = vmatprep.mubr.bf16.mxu0 %v2529
      %2851 = vmatmul.mubr.bf16.gmra.mrb[0].mxu0 %v2465
      %v2852 = vpop.f32.mrb[0].mxu0
      %v2853 = vadd.f32 0.0, %v2852
      %v2854 = vpop.f32.mrb[0].mxu0
      %v2855 = vpop.f32.mrb[0].mxu0
      %v2856 = vadd.f32 0.0, %v2855
      %v2857 = vpop.f32.mrb[0].mxu0
      %2858 = vmatprep.mubr.bf16.mxu0 %v2530
      %2859 = vmatmul.mubr.bf16.gmra.mrb[0].mxu0 %v2466
      %v2860 = vpop.f32.mrb[0].mxu0
      %v2861 = vadd.f32 0.0, %v2860
      %v2862 = vpop.f32.mrb[0].mxu0
      %v2863 = vpop.f32.mrb[0].mxu0
      %v2864 = vadd.f32 0.0, %v2863
      %v2865 = vpop.f32.mrb[0].mxu0
      %2866 = vmatprep.mubr.bf16.mxu0 %v2531
      %2867 = vmatmul.mubr.bf16.gmra.mrb[0].mxu0 %v2467
      %v2868 = vpop.f32.mrb[0].mxu0
      %v2869 = vadd.f32 0.0, %v2868
      %v2870 = vpop.f32.mrb[0].mxu0
      %v2871 = vpop.f32.mrb[0].mxu0
      %v2872 = vadd.f32 0.0, %v2871
      %v2873 = vpop.f32.mrb[0].mxu0
      %2874 = vmatprep.mubr.bf16.mxu0 %v2532
      %2875 = vmatmul.mubr.bf16.gmra.mrb[0].mxu0 %v2468
      %v2876 = vpop.f32.mrb[0].mxu0
      %v2877 = vadd.f32 0.0, %v2876
      %v2878 = vpop.f32.mrb[0].mxu0
      %v2879 = vpop.f32.mrb[0].mxu0
      %v2880 = vadd.f32 0.0, %v2879
      %v2881 = vpop.f32.mrb[0].mxu0
      %2882 = vmatprep.mubr.bf16.mxu0 %v2533
      %2883 = vmatmul.mubr.bf16.gmra.mrb[0].mxu0 %v2469
      %v2884 = vpop.f32.mrb[0].mxu0
      %v2885 = vadd.f32 0.0, %v2884
      %v2886 = vpop.f32.mrb[0].mxu0
      %v2887 = vpop.f32.mrb[0].mxu0
      %v2888 = vadd.f32 0.0, %v2887
      %v2889 = vpop.f32.mrb[0].mxu0
      %2890 = vmatprep.mubr.bf16.mxu0 %v2534
      %2891 = vmatmul.mubr.bf16.gmra.mrb[0].mxu0 %v2470
      %v2892 = vpop.f32.mrb[0].mxu0
      %v2893 = vadd.f32 0.0, %v2892
      %v2894 = vpop.f32.mrb[0].mxu0
      %v2895 = vpop.f32.mrb[0].mxu0
      %v2896 = vadd.f32 0.0, %v2895
      %v2897 = vpop.f32.mrb[0].mxu0
      %2898 = vmatprep.mubr.bf16.mxu0 %v2535
      %2899 = vmatmul.mubr.bf16.gmra.mrb[0].mxu0 %v2471
      %v2900 = vpop.f32.mrb[0].mxu0
      %v2901 = vadd.f32 0.0, %v2900
      %v2902 = vpop.f32.mrb[0].mxu0
      %v2903 = vpop.f32.mrb[0].mxu0
      %v2904 = vadd.f32 0.0, %v2903
      %v2905 = vpop.f32.mrb[0].mxu0
      %2906 = vmatprep.mubr.bf16.mxu0 %v2536
      %2907 = vmatmul.mubr.bf16.gmra.mrb[0].mxu0 %v2472
      %v2908 = vpop.f32.mrb[0].mxu0
      %v2909 = vadd.f32 0.0, %v2908
      %v2910 = vpop.f32.mrb[0].mxu0
      %v2911 = vpop.f32.mrb[0].mxu0
      %v2912 = vadd.f32 0.0, %v2911
      %v2913 = vpop.f32.mrb[0].mxu0
      %2914 = vmatprep.mubr.bf16.mxu0 %v2537
      %2915 = vmatmul.mubr.bf16.gmra.mrb[0].mxu0 %v2473
      %v2916 = vpop.f32.mrb[0].mxu0
      %v2917 = vadd.f32 0.0, %v2916
      %v2918 = vpop.f32.mrb[0].mxu0
      %v2919 = vpop.f32.mrb[0].mxu0
      %v2920 = vadd.f32 0.0, %v2919
      %v2921 = vpop.f32.mrb[0].mxu0
      %2922 = vmatprep.mubr.bf16.mxu0 %v2538
      %2923 = vmatmul.mubr.bf16.gmra.mrb[0].mxu0 %v2474
      %v2924 = vpop.f32.mrb[0].mxu0
      %v2925 = vadd.f32 0.0, %v2924
      %v2926 = vpop.f32.mrb[0].mxu0
      %v2927 = vpop.f32.mrb[0].mxu0
      %v2928 = vadd.f32 0.0, %v2927
      %v2929 = vpop.f32.mrb[0].mxu0
      %2930 = vmatprep.mubr.bf16.mxu0 %v2539
      %2931 = vmatmul.mubr.bf16.gmra.mrb[0].mxu0 %v2475
      %v2932 = vpop.f32.mrb[0].mxu0
      %v2933 = vadd.f32 0.0, %v2932
      %v2934 = vpop.f32.mrb[0].mxu0
      %v2935 = vpop.f32.mrb[0].mxu0
      %v2936 = vadd.f32 0.0, %v2935
      %v2937 = vpop.f32.mrb[0].mxu0
      %2938 = vmatprep.mubr.bf16.mxu0 %v2540
      %2939 = vmatmul.mubr.bf16.gmra.mrb[0].mxu0 %v2476
      %v2940 = vpop.f32.mrb[0].mxu0
      %v2941 = vadd.f32 0.0, %v2940
      %v2942 = vpop.f32.mrb[0].mxu0
      %v2943 = vpop.f32.mrb[0].mxu0
      %v2944 = vadd.f32 0.0, %v2943
      %v2945 = vpop.f32.mrb[0].mxu0
      %2946 = vmatprep.mubr.bf16.mxu0 %v2541
      %2947 = vmatmul.mubr.bf16.gmra.mrb[0].mxu0 %v2477
      %v2948 = vpop.f32.mrb[0].mxu0
      %v2949 = vadd.f32 0.0, %v2948
      %v2950 = vpop.f32.mrb[0].mxu0
      %v2951 = vpop.f32.mrb[0].mxu0
      %v2952 = vadd.f32 0.0, %v2951
      %v2953 = vpop.f32.mrb[0].mxu0
      %2954 = vmatprep.mubr.bf16.mxu0 %v2542
      %2955 = vmatmul.mubr.bf16.gmra.mrb[0].mxu0 %v2478
      %v2956 = vpop.f32.mrb[0].mxu0
      %v2957 = vadd.f32 0.0, %v2956
      %v2958 = vpop.f32.mrb[0].mxu0
      %v2959 = vpop.f32.mrb[0].mxu0
      %v2960 = vadd.f32 0.0, %v2959
      %v2961 = vpop.f32.mrb[0].mxu0
      %2962 = vmatprep.mubr.bf16.mxu0 %v2543
      %2963 = vmatmul.mubr.bf16.gmra.mrb[0].mxu0 %v2479
      %v2964 = vpop.f32.mrb[0].mxu0
      %v2965 = vadd.f32 0.0, %v2964
      %v2966 = vpop.f32.mrb[0].mxu0
      %v2967 = vpop.f32.mrb[0].mxu0
      %v2968 = vadd.f32 0.0, %v2967
      %v2969 = vpop.f32.mrb[0].mxu0
      %2970 = vmatprep.mubr.bf16.mxu0 %v2544
      %2971 = vmatmul.mubr.bf16.gmra.mrb[0].mxu0 %v2480
      %v2972 = vpop.f32.mrb[0].mxu0
      %v2973 = vadd.f32 0.0, %v2972
      %v2974 = vpop.f32.mrb[0].mxu0
      %v2975 = vpop.f32.mrb[0].mxu0
      %v2976 = vadd.f32 0.0, %v2975
      %v2977 = vpop.f32.mrb[0].mxu0
      %2978 = vdwg.mxu0
      %2979 = vmatprep.subr.bf16.mxu0 0
      %2980 = vmatpush1.bf16.msra.mxu0 %v2786
      %2981 = vmatprep.subr.bf16.mxu0 0
      %2982 = vmatpush1.bf16.msra.mxu0 %v2787
      %2983 = vmatprep.subr.bf16.mxu0 0
      %2984 = vmatpush1.bf16.msra.mxu0 %v2788
      %2985 = vmatprep.subr.bf16.mxu0 0
      %2986 = vmatpush1.bf16.msra.mxu0 %v2789
      %2987 = vmatprep.subr.bf16.mxu0 0
      %2988 = vmatpush1.bf16.msra.mxu0 %v2790
      %2989 = vmatprep.subr.bf16.mxu0 0
      %2990 = vmatpush1.bf16.msra.mxu0 %v2791
      %2991 = vmatprep.subr.bf16.mxu0 0
      %2992 = vmatpush1.bf16.msra.mxu0 %v2792
      %2993 = vmatprep.subr.bf16.mxu0 0
      %2994 = vmatpush1.bf16.msra.mxu0 %v2793
      %2995 = vmatprep.subr.bf16.mxu0 0
      %2996 = vmatpush1.bf16.msra.mxu0 0
      %2997 = vmatprep.subr.bf16.mxu0 0
      %2998 = vmatpush1.bf16.msra.mxu0 0
      %2999 = vmatprep.subr.bf16.mxu0 0
      %3000 = vmatpush1.bf16.msra.mxu0 0
      %3001 = vmatprep.subr.bf16.mxu0 0
      %3002 = vmatpush1.bf16.msra.mxu0 0
      %3003 = vmatprep.subr.bf16.mxu0 0
      %3004 = vmatpush1.bf16.msra.mxu0 0
      %3005 = vmatprep.subr.bf16.mxu0 0
      %3006 = vmatpush1.bf16.msra.mxu0 0
      %3007 = vmatprep.subr.bf16.mxu0 0
      %3008 = vmatpush1.bf16.msra.mxu0 0
      %3009 = vmatprep.subr.bf16.mxu0 0
      %3010 = vmatpush1.bf16.msra.mxu0 0
      %3011 = vmatprep.mubr.bf16.mxu0 0
      %3012 = vmatmul.mubr.bf16.gmra.mrb[0].mxu0 %v2593
      %v3013 = vpop.f32.mrb[0].mxu0
      %v3014 = vadd.f32 %v2853, %v3013
      %v3015 = vpop.f32.mrb[0].mxu0
      %v3016 = vpop.f32.mrb[0].mxu0
      %v3017 = vadd.f32 %v2856, %v3016
      %v3018 = vpop.f32.mrb[0].mxu0
      %3019 = vmatprep.mubr.bf16.mxu0 0
      %3020 = vmatmul.mubr.bf16.gmra.mrb[0].mxu0 %v2594
      %v3021 = vpop.f32.mrb[0].mxu0
      %v3022 = vadd.f32 %v2861, %v3021
      %v3023 = vpop.f32.mrb[0].mxu0
      %v3024 = vpop.f32.mrb[0].mxu0
      %v3025 = vadd.f32 %v2864, %v3024
      %v3026 = vpop.f32.mrb[0].mxu0
      %3027 = vmatprep.mubr.bf16.mxu0 0
      %3028 = vmatmul.mubr.bf16.gmra.mrb[0].mxu0 %v2595
      %v3029 = vpop.f32.mrb[0].mxu0
      %v3030 = vadd.f32 %v2869, %v3029
      %v3031 = vpop.f32.mrb[0].mxu0
      %v3032 = vpop.f32.mrb[0].mxu0
      %v3033 = vadd.f32 %v2872, %v3032
      %v3034 = vpop.f32.mrb[0].mxu0
      %3035 = vmatprep.mubr.bf16.mxu0 0
      %3036 = vmatmul.mubr.bf16.gmra.mrb[0].mxu0 %v2596
      %v3037 = vpop.f32.mrb[0].mxu0
      %v3038 = vadd.f32 %v2877, %v3037
      %v3039 = vpop.f32.mrb[0].mxu0
      %v3040 = vpop.f32.mrb[0].mxu0
      %v3041 = vadd.f32 %v2880, %v3040
      %v3042 = vpop.f32.mrb[0].mxu0
      %3043 = vmatprep.mubr.bf16.mxu0 0
      %3044 = vmatmul.mubr.bf16.gmra.mrb[0].mxu0 %v2597
      %v3045 = vpop.f32.mrb[0].mxu0
      %v3046 = vadd.f32 %v2885, %v3045
      %v3047 = vpop.f32.mrb[0].mxu0
      %v3048 = vpop.f32.mrb[0].mxu0
      %v3049 = vadd.f32 %v2888, %v3048
      %v3050 = vpop.f32.mrb[0].mxu0
      %3051 = vmatprep.mubr.bf16.mxu0 0
      %3052 = vmatmul.mubr.bf16.gmra.mrb[0].mxu0 %v2598
      %v3053 = vpop.f32.mrb[0].mxu0
      %v3054 = vadd.f32 %v2893, %v3053
      %v3055 = vpop.f32.mrb[0].mxu0
      %v3056 = vpop.f32.mrb[0].mxu0
      %v3057 = vadd.f32 %v2896, %v3056
      %v3058 = vpop.f32.mrb[0].mxu0
      %3059 = vmatprep.mubr.bf16.mxu0 0
      %3060 = vmatmul.mubr.bf16.gmra.mrb[0].mxu0 %v2599
      %v3061 = vpop.f32.mrb[0].mxu0
      %v3062 = vadd.f32 %v2901, %v3061
      %v3063 = vpop.f32.mrb[0].mxu0
      %v3064 = vpop.f32.mrb[0].mxu0
      %v3065 = vadd.f32 %v2904, %v3064
      %v3066 = vpop.f32.mrb[0].mxu0
      %3067 = vmatprep.mubr.bf16.mxu0 0
      %3068 = vmatmul.mubr.bf16.gmra.mrb[0].mxu0 %v2600
      %v3069 = vpop.f32.mrb[0].mxu0
      %v3070 = vadd.f32 %v2909, %v3069
      %v3071 = vpop.f32.mrb[0].mxu0
      %v3072 = vpop.f32.mrb[0].mxu0
      %v3073 = vadd.f32 %v2912, %v3072
      %v3074 = vpop.f32.mrb[0].mxu0
      %3075 = vmatprep.mubr.bf16.mxu0 0
      %3076 = vmatmul.mubr.bf16.gmra.mrb[0].mxu0 %v2601
      %v3077 = vpop.f32.mrb[0].mxu0
      %v3078 = vadd.f32 %v2917, %v3077
      %v3079 = vpop.f32.mrb[0].mxu0
      %v3080 = vpop.f32.mrb[0].mxu0
      %v3081 = vadd.f32 %v2920, %v3080
      %v3082 = vpop.f32.mrb[0].mxu0
      %3083 = vmatprep.mubr.bf16.mxu0 0
      %3084 = vmatmul.mubr.bf16.gmra.mrb[0].mxu0 %v2602
      %v3085 = vpop.f32.mrb[0].mxu0
      %v3086 = vadd.f32 %v2925, %v3085
      %v3087 = vpop.f32.mrb[0].mxu0
      %v3088 = vpop.f32.mrb[0].mxu0
      %v3089 = vadd.f32 %v2928, %v3088
      %v3090 = vpop.f32.mrb[0].mxu0
      %3091 = vmatprep.mubr.bf16.mxu0 0
      %3092 = vmatmul.mubr.bf16.gmra.mrb[0].mxu0 %v2603
      %v3093 = vpop.f32.mrb[0].mxu0
      %v3094 = vadd.f32 %v2933, %v3093
      %v3095 = vpop.f32.mrb[0].mxu0
      %v3096 = vpop.f32.mrb[0].mxu0
      %v3097 = vadd.f32 %v2936, %v3096
      %v3098 = vpop.f32.mrb[0].mxu0
      %3099 = vmatprep.mubr.bf16.mxu0 0
      %3100 = vmatmul.mubr.bf16.gmra.mrb[0].mxu0 %v2604
      %v3101 = vpop.f32.mrb[0].mxu0
      %v3102 = vadd.f32 %v2941, %v3101
      %v3103 = vpop.f32.mrb[0].mxu0
      %v3104 = vpop.f32.mrb[0].mxu0
      %v3105 = vadd.f32 %v2944, %v3104
      %v3106 = vpop.f32.mrb[0].mxu0
      %3107 = vmatprep.mubr.bf16.mxu0 0
      %3108 = vmatmul.mubr.bf16.gmra.mrb[0].mxu0 %v2605
      %v3109 = vpop.f32.mrb[0].mxu0
      %v3110 = vadd.f32 %v2949, %v3109
      %v3111 = vpop.f32.mrb[0].mxu0
      %v3112 = vpop.f32.mrb[0].mxu0
      %v3113 = vadd.f32 %v2952, %v3112
      %v3114 = vpop.f32.mrb[0].mxu0
      %3115 = vmatprep.mubr.bf16.mxu0 0
      %3116 = vmatmul.mubr.bf16.gmra.mrb[0].mxu0 %v2606
      %v3117 = vpop.f32.mrb[0].mxu0
      %v3118 = vadd.f32 %v2957, %v3117
      %v3119 = vpop.f32.mrb[0].mxu0
      %v3120 = vpop.f32.mrb[0].mxu0
      %v3121 = vadd.f32 %v2960, %v3120
      %v3122 = vpop.f32.mrb[0].mxu0
      %3123 = vmatprep.mubr.bf16.mxu0 0
      %3124 = vmatmul.mubr.bf16.gmra.mrb[0].mxu0 %v2607
      %v3125 = vpop.f32.mrb[0].mxu0
      %v3126 = vadd.f32 %v2965, %v3125
      %v3127 = vpop.f32.mrb[0].mxu0
      %v3128 = vpop.f32.mrb[0].mxu0
      %v3129 = vadd.f32 %v2968, %v3128
      %v3130 = vpop.f32.mrb[0].mxu0
      %3131 = vmatprep.mubr.bf16.mxu0 0
      %3132 = vmatmul.mubr.bf16.gmra.mrb[0].mxu0 %v2608
      %v3133 = vpop.f32.mrb[0].mxu0
      %v3134 = vadd.f32 %v2973, %v3133
      %v3135 = vpop.f32.mrb[0].mxu0
      %v3136 = vpop.f32.mrb[0].mxu0
      %v3137 = vadd.f32 %v2976, %v3136
      %v3138 = vpop.f32.mrb[0].mxu0
      %3139 = vdwg.mxu0
      %v3188 = vunpack.c.l.b16 %v1761
      %v3189 = vunpack.c.l.b16 %v1762
      %v3190 = vunpack.c.l.b16 %v1763
      %v3191 = vunpack.c.l.b16 %v1764
      %v3192 = vunpack.c.l.b16 %v1765
      %v3193 = vunpack.c.l.b16 %v1766
      %v3194 = vunpack.c.l.b16 %v1767
      %v3195 = vunpack.c.l.b16 %v1768
      %v3196 = vunpack.c.l.b16 %v1769
      %v3197 = vunpack.c.l.b16 %v1770
      %v3198 = vunpack.c.l.b16 %v1771
      %v3199 = vunpack.c.l.b16 %v1772
      %v3200 = vunpack.c.l.b16 %v1773
      %v3201 = vunpack.c.l.b16 %v1774
      %v3202 = vunpack.c.l.b16 %v1775
      %v3203 = vunpack.c.l.b16 %v1776
      %v3204 = vunpack.c.l.b16 %v1777
      %v3205 = vunpack.c.l.b16 %v1778
      %v3206 = vunpack.c.l.b16 %v1779
      %v3207 = vunpack.c.l.b16 %v1780
      %v3208 = vunpack.c.l.b16 %v1781
      %v3209 = vunpack.c.l.b16 %v1782
      %v3210 = vunpack.c.l.b16 %v1783
      %v3211 = vunpack.c.l.b16 %v1784
      %v3212 = vunpack.c.l.b16 %v1785
      %v3213 = vunpack.c.l.b16 %v1786
      %v3214 = vunpack.c.l.b16 %v1787
      %v3215 = vunpack.c.l.b16 %v1788
      %v3216 = vunpack.c.l.b16 %v1789
      %v3217 = vunpack.c.l.b16 %v1790
      %v3218 = vunpack.c.l.b16 %v1791
      %v3219 = vunpack.c.l.b16 %v1792
      %v3220 = vunpack.c.l.b16 %v1793
      %v3221 = vunpack.c.l.b16 %v1794
      %v3222 = vunpack.c.l.b16 %v1795
      %v3223 = vunpack.c.l.b16 %v1796
      %v3224 = vunpack.c.l.b16 %v1797
      %v3225 = vunpack.c.l.b16 %v1798
      %v3226 = vunpack.c.l.b16 %v1799
      %v3227 = vunpack.c.l.b16 %v1800
      %v3228 = vunpack.c.l.b16 %v1801
      %v3229 = vunpack.c.l.b16 %v1802
      %v3230 = vunpack.c.l.b16 %v1803
      %v3231 = vunpack.c.l.b16 %v1804
      %v3232 = vunpack.c.l.b16 %v1805
      %v3233 = vunpack.c.l.b16 %v1806
      %v3234 = vunpack.c.l.b16 %v1807
      %v3235 = vunpack.c.l.b16 %v1808
      %v3236 = vpack.c.b16 %v3189, %v3188
      %v3237 = vpack.c.b16 %v3191, %v3190
      %v3238 = vpack.c.b16 %v3193, %v3192
      %v3239 = vpack.c.b16 %v3195, %v3194
      %v3240 = vpack.c.b16 %v3197, %v3196
      %v3241 = vpack.c.b16 %v3199, %v3198
      %v3242 = vpack.c.b16 %v3201, %v3200
      %v3243 = vpack.c.b16 %v3203, %v3202
      %v3244 = vpack.c.b16 %v3205, %v3204
      %v3245 = vpack.c.b16 %v3207, %v3206
      %v3246 = vpack.c.b16 %v3209, %v3208
      %v3247 = vpack.c.b16 %v3211, %v3210
      %v3248 = vpack.c.b16 %v3213, %v3212
      %v3249 = vpack.c.b16 %v3215, %v3214
      %v3250 = vpack.c.b16 %v3217, %v3216
      %v3251 = vpack.c.b16 %v3219, %v3218
      %v3252 = vpack.c.b16 %v3221, %v3220
      %v3253 = vpack.c.b16 %v3223, %v3222
      %v3254 = vpack.c.b16 %v3225, %v3224
      %v3255 = vpack.c.b16 %v3227, %v3226
      %v3256 = vpack.c.b16 %v3229, %v3228
      %v3257 = vpack.c.b16 %v3231, %v3230
      %v3258 = vpack.c.b16 %v3233, %v3232
      %v3259 = vpack.c.b16 %v3235, %v3234
      %3284 = vmatprep.subr.bf16.mxu0 0
      %3285 = vmatpush1.bf16.msra.mxu0 %v3236
      %3286 = vmatprep.subr.bf16.mxu0 0
      %3287 = vmatpush1.bf16.msra.mxu0 %v3237
      %3288 = vmatprep.subr.bf16.mxu0 0
      %3289 = vmatpush1.bf16.msra.mxu0 %v3238
      %3290 = vmatprep.subr.bf16.mxu0 0
      %3291 = vmatpush1.bf16.msra.mxu0 %v3239
      %3292 = vmatprep.subr.bf16.mxu0 0
      %3293 = vmatpush1.bf16.msra.mxu0 %v3240
      %3294 = vmatprep.subr.bf16.mxu0 0
      %3295 = vmatpush1.bf16.msra.mxu0 %v3241
      %3296 = vmatprep.subr.bf16.mxu0 0
      %3297 = vmatpush1.bf16.msra.mxu0 %v3242
      %3298 = vmatprep.subr.bf16.mxu0 0
      %3299 = vmatpush1.bf16.msra.mxu0 %v3243
      %3300 = vmatprep.subr.bf16.mxu0 0
      %3301 = vmatpush1.bf16.msra.mxu0 %v3244
      %3302 = vmatprep.subr.bf16.mxu0 0
      %3303 = vmatpush1.bf16.msra.mxu0 %v3245
      %3304 = vmatprep.subr.bf16.mxu0 0
      %3305 = vmatpush1.bf16.msra.mxu0 %v3246
      %3306 = vmatprep.subr.bf16.mxu0 0
      %3307 = vmatpush1.bf16.msra.mxu0 %v3247
      %3308 = vmatprep.subr.bf16.mxu0 0
      %3309 = vmatpush1.bf16.msra.mxu0 %v3248
      %3310 = vmatprep.subr.bf16.mxu0 0
      %3311 = vmatpush1.bf16.msra.mxu0 %v3249
      %3312 = vmatprep.subr.bf16.mxu0 0
      %3313 = vmatpush1.bf16.msra.mxu0 %v3250
      %3314 = vmatprep.subr.bf16.mxu0 0
      %3315 = vmatpush1.bf16.msra.mxu0 %v3251
      %3316 = vmatprep.mubr.bf16.mxu0 %v1665
      %3317 = vmatmul.mubr.bf16.gmra.mrb[0].mxu0 %v1601
      %v3318 = vpop.f32.mrb[0].mxu0
      %v3319 = vadd.f32 %v3014, %v3318
      %v3320 = vpop.f32.mrb[0].mxu0
      %v3321 = vpop.f32.mrb[0].mxu0
      %v3322 = vadd.f32 %v3017, %v3321
      %v3323 = vpop.f32.mrb[0].mxu0
      %3324 = vmatprep.mubr.bf16.mxu0 %v1666
      %3325 = vmatmul.mubr.bf16.gmra.mrb[0].mxu0 %v1602
      %v3326 = vpop.f32.mrb[0].mxu0
      %v3327 = vadd.f32 %v3022, %v3326
      %v3328 = vpop.f32.mrb[0].mxu0
      %v3329 = vpop.f32.mrb[0].mxu0
      %v3330 = vadd.f32 %v3025, %v3329
      %v3331 = vpop.f32.mrb[0].mxu0
      %3332 = vmatprep.mubr.bf16.mxu0 %v1667
      %3333 = vmatmul.mubr.bf16.gmra.mrb[0].mxu0 %v1603
      %v3334 = vpop.f32.mrb[0].mxu0
      %v3335 = vadd.f32 %v3030, %v3334
      %v3336 = vpop.f32.mrb[0].mxu0
      %v3337 = vpop.f32.mrb[0].mxu0
      %v3338 = vadd.f32 %v3033, %v3337
      %v3339 = vpop.f32.mrb[0].mxu0
      %3340 = vmatprep.mubr.bf16.mxu0 %v1668
      %3341 = vmatmul.mubr.bf16.gmra.mrb[0].mxu0 %v1604
      %v3342 = vpop.f32.mrb[0].mxu0
      %v3343 = vadd.f32 %v3038, %v3342
      %v3344 = vpop.f32.mrb[0].mxu0
      %v3345 = vpop.f32.mrb[0].mxu0
      %v3346 = vadd.f32 %v3041, %v3345
      %v3347 = vpop.f32.mrb[0].mxu0
      %3348 = vmatprep.mubr.bf16.mxu0 %v1669
      %3349 = vmatmul.mubr.bf16.gmra.mrb[0].mxu0 %v1605
      %v3350 = vpop.f32.mrb[0].mxu0
      %v3351 = vadd.f32 %v3046, %v3350
      %v3352 = vpop.f32.mrb[0].mxu0
      %v3353 = vpop.f32.mrb[0].mxu0
      %v3354 = vadd.f32 %v3049, %v3353
      %v3355 = vpop.f32.mrb[0].mxu0
      %3356 = vmatprep.mubr.bf16.mxu0 %v1670
      %3357 = vmatmul.mubr.bf16.gmra.mrb[0].mxu0 %v1606
      %v3358 = vpop.f32.mrb[0].mxu0
      %v3359 = vadd.f32 %v3054, %v3358
      %v3360 = vpop.f32.mrb[0].mxu0
      %v3361 = vpop.f32.mrb[0].mxu0
      %v3362 = vadd.f32 %v3057, %v3361
      %v3363 = vpop.f32.mrb[0].mxu0
      %3364 = vmatprep.mubr.bf16.mxu0 %v1671
      %3365 = vmatmul.mubr.bf16.gmra.mrb[0].mxu0 %v1607
      %v3366 = vpop.f32.mrb[0].mxu0
      %v3367 = vadd.f32 %v3062, %v3366
      %v3368 = vpop.f32.mrb[0].mxu0
      %v3369 = vpop.f32.mrb[0].mxu0
      %v3370 = vadd.f32 %v3065, %v3369
      %v3371 = vpop.f32.mrb[0].mxu0
      %3372 = vmatprep.mubr.bf16.mxu0 %v1672
      %3373 = vmatmul.mubr.bf16.gmra.mrb[0].mxu0 %v1608
      %v3374 = vpop.f32.mrb[0].mxu0
      %v3375 = vadd.f32 %v3070, %v3374
      %v3376 = vpop.f32.mrb[0].mxu0
      %v3377 = vpop.f32.mrb[0].mxu0
      %v3378 = vadd.f32 %v3073, %v3377
      %v3379 = vpop.f32.mrb[0].mxu0
      %3380 = vmatprep.mubr.bf16.mxu0 %v1673
      %3381 = vmatmul.mubr.bf16.gmra.mrb[0].mxu0 %v1609
      %v3382 = vpop.f32.mrb[0].mxu0
      %v3383 = vadd.f32 %v3078, %v3382
      %v3384 = vpop.f32.mrb[0].mxu0
      %v3385 = vpop.f32.mrb[0].mxu0
      %v3386 = vadd.f32 %v3081, %v3385
      %v3387 = vpop.f32.mrb[0].mxu0
      %3388 = vmatprep.mubr.bf16.mxu0 %v1674
      %3389 = vmatmul.mubr.bf16.gmra.mrb[0].mxu0 %v1610
      %v3390 = vpop.f32.mrb[0].mxu0
      %v3391 = vadd.f32 %v3086, %v3390
      %v3392 = vpop.f32.mrb[0].mxu0
      %v3393 = vpop.f32.mrb[0].mxu0
      %v3394 = vadd.f32 %v3089, %v3393
      %v3395 = vpop.f32.mrb[0].mxu0
      %3396 = vmatprep.mubr.bf16.mxu0 %v1675
      %3397 = vmatmul.mubr.bf16.gmra.mrb[0].mxu0 %v1611
      %v3398 = vpop.f32.mrb[0].mxu0
      %v3399 = vadd.f32 %v3094, %v3398
      %v3400 = vpop.f32.mrb[0].mxu0
      %v3401 = vpop.f32.mrb[0].mxu0
      %v3402 = vadd.f32 %v3097, %v3401
      %v3403 = vpop.f32.mrb[0].mxu0
      %3404 = vmatprep.mubr.bf16.mxu0 %v1676
      %3405 = vmatmul.mubr.bf16.gmra.mrb[0].mxu0 %v1612
      %v3406 = vpop.f32.mrb[0].mxu0
      %v3407 = vadd.f32 %v3102, %v3406
      %v3408 = vpop.f32.mrb[0].mxu0
      %v3409 = vpop.f32.mrb[0].mxu0
      %v3410 = vadd.f32 %v3105, %v3409
      %v3411 = vpop.f32.mrb[0].mxu0
      %3412 = vmatprep.mubr.bf16.mxu0 %v1677
      %3413 = vmatmul.mubr.bf16.gmra.mrb[0].mxu0 %v1613
      %v3414 = vpop.f32.mrb[0].mxu0
      %v3415 = vadd.f32 %v3110, %v3414
      %v3416 = vpop.f32.mrb[0].mxu0
      %v3417 = vpop.f32.mrb[0].mxu0
      %v3418 = vadd.f32 %v3113, %v3417
      %v3419 = vpop.f32.mrb[0].mxu0
      %3420 = vmatprep.mubr.bf16.mxu0 %v1678
      %3421 = vmatmul.mubr.bf16.gmra.mrb[0].mxu0 %v1614
      %v3422 = vpop.f32.mrb[0].mxu0
      %v3423 = vadd.f32 %v3118, %v3422
      %v3424 = vpop.f32.mrb[0].mxu0
      %v3425 = vpop.f32.mrb[0].mxu0
      %v3426 = vadd.f32 %v3121, %v3425
      %v3427 = vpop.f32.mrb[0].mxu0
      %3428 = vmatprep.mubr.bf16.mxu0 %v1679
      %3429 = vmatmul.mubr.bf16.gmra.mrb[0].mxu0 %v1615
      %v3430 = vpop.f32.mrb[0].mxu0
      %v3431 = vadd.f32 %v3126, %v3430
      %v3432 = vpop.f32.mrb[0].mxu0
      %v3433 = vpop.f32.mrb[0].mxu0
      %v3434 = vadd.f32 %v3129, %v3433
      %v3435 = vpop.f32.mrb[0].mxu0
      %3436 = vmatprep.mubr.bf16.mxu0 %v1680
      %3437 = vmatmul.mubr.bf16.gmra.mrb[0].mxu0 %v1616
      %v3438 = vpop.f32.mrb[0].mxu0
      %v3439 = vadd.f32 %v3134, %v3438
      %v3440 = vpop.f32.mrb[0].mxu0
      %v3441 = vpop.f32.mrb[0].mxu0
      %v3442 = vadd.f32 %v3137, %v3441
      %v3443 = vpop.f32.mrb[0].mxu0
      %3444 = vdwg.mxu0
      %3445 = vmatprep.subr.bf16.mxu0 0
      %3446 = vmatpush1.bf16.msra.mxu0 %v3252
      %3447 = vmatprep.subr.bf16.mxu0 0
      %3448 = vmatpush1.bf16.msra.mxu0 %v3253
      %3449 = vmatprep.subr.bf16.mxu0 0
      %3450 = vmatpush1.bf16.msra.mxu0 %v3254
      %3451 = vmatprep.subr.bf16.mxu0 0
      %3452 = vmatpush1.bf16.msra.mxu0 %v3255
      %3453 = vmatprep.subr.bf16.mxu0 0
      %3454 = vmatpush1.bf16.msra.mxu0 %v3256
      %3455 = vmatprep.subr.bf16.mxu0 0
      %3456 = vmatpush1.bf16.msra.mxu0 %v3257
      %3457 = vmatprep.subr.bf16.mxu0 0
      %3458 = vmatpush1.bf16.msra.mxu0 %v3258
      %3459 = vmatprep.subr.bf16.mxu0 0
      %3460 = vmatpush1.bf16.msra.mxu0 %v3259
      %3461 = vmatprep.subr.bf16.mxu0 0
      %3462 = vmatpush1.bf16.msra.mxu0 0
      %3463 = vmatprep.subr.bf16.mxu0 0
      %3464 = vmatpush1.bf16.msra.mxu0 0
      %3465 = vmatprep.subr.bf16.mxu0 0
      %3466 = vmatpush1.bf16.msra.mxu0 0
      %3467 = vmatprep.subr.bf16.mxu0 0
      %3468 = vmatpush1.bf16.msra.mxu0 0
      %3469 = vmatprep.subr.bf16.mxu0 0
      %3470 = vmatpush1.bf16.msra.mxu0 0
      %3471 = vmatprep.subr.bf16.mxu0 0
      %3472 = vmatpush1.bf16.msra.mxu0 0
      %3473 = vmatprep.subr.bf16.mxu0 0
      %3474 = vmatpush1.bf16.msra.mxu0 0
      %3475 = vmatprep.subr.bf16.mxu0 0
      %3476 = vmatpush1.bf16.msra.mxu0 0
      %3477 = vmatprep.mubr.bf16.mxu0 0
      %3478 = vmatmul.mubr.bf16.gmra.mrb[0].mxu0 %v1729
      %v3479 = vpop.f32.mrb[0].mxu0
      %v3480 = vadd.f32 %v3319, %v3479
      %v3481 = vpop.f32.mrb[0].mxu0
      %v3482 = vpop.f32.mrb[0].mxu0
      %v3483 = vadd.f32 %v3322, %v3482
      %v3484 = vpop.f32.mrb[0].mxu0
      %3485 = vmatprep.mubr.bf16.mxu0 0
      %3486 = vmatmul.mubr.bf16.gmra.mrb[0].mxu0 %v1730
      %v3487 = vpop.f32.mrb[0].mxu0
      %v3488 = vadd.f32 %v3327, %v3487
      %v3489 = vpop.f32.mrb[0].mxu0
      %v3490 = vpop.f32.mrb[0].mxu0
      %v3491 = vadd.f32 %v3330, %v3490
      %v3492 = vpop.f32.mrb[0].mxu0
      %3493 = vmatprep.mubr.bf16.mxu0 0
      %3494 = vmatmul.mubr.bf16.gmra.mrb[0].mxu0 %v1731
      %v3495 = vpop.f32.mrb[0].mxu0
      %v3496 = vadd.f32 %v3335, %v3495
      %v3497 = vpop.f32.mrb[0].mxu0
      %v3498 = vpop.f32.mrb[0].mxu0
      %v3499 = vadd.f32 %v3338, %v3498
      %v3500 = vpop.f32.mrb[0].mxu0
      %3501 = vmatprep.mubr.bf16.mxu0 0
      %3502 = vmatmul.mubr.bf16.gmra.mrb[0].mxu0 %v1732
      %v3503 = vpop.f32.mrb[0].mxu0
      %v3504 = vadd.f32 %v3343, %v3503
      %v3505 = vpop.f32.mrb[0].mxu0
      %v3506 = vpop.f32.mrb[0].mxu0
      %v3507 = vadd.f32 %v3346, %v3506
      %v3508 = vpop.f32.mrb[0].mxu0
      %3509 = vmatprep.mubr.bf16.mxu0 0
      %3510 = vmatmul.mubr.bf16.gmra.mrb[0].mxu0 %v1733
      %v3511 = vpop.f32.mrb[0].mxu0
      %v3512 = vadd.f32 %v3351, %v3511
      %v3513 = vpop.f32.mrb[0].mxu0
      %v3514 = vpop.f32.mrb[0].mxu0
      %v3515 = vadd.f32 %v3354, %v3514
      %v3516 = vpop.f32.mrb[0].mxu0
      %3517 = vmatprep.mubr.bf16.mxu0 0
      %3518 = vmatmul.mubr.bf16.gmra.mrb[0].mxu0 %v1734
      %v3519 = vpop.f32.mrb[0].mxu0
      %v3520 = vadd.f32 %v3359, %v3519
      %v3521 = vpop.f32.mrb[0].mxu0
      %v3522 = vpop.f32.mrb[0].mxu0
      %v3523 = vadd.f32 %v3362, %v3522
      %v3524 = vpop.f32.mrb[0].mxu0
      %3525 = vmatprep.mubr.bf16.mxu0 0
      %3526 = vmatmul.mubr.bf16.gmra.mrb[0].mxu0 %v1735
      %v3527 = vpop.f32.mrb[0].mxu0
      %v3528 = vadd.f32 %v3367, %v3527
      %v3529 = vpop.f32.mrb[0].mxu0
      %v3530 = vpop.f32.mrb[0].mxu0
      %v3531 = vadd.f32 %v3370, %v3530
      %v3532 = vpop.f32.mrb[0].mxu0
      %3533 = vmatprep.mubr.bf16.mxu0 0
      %3534 = vmatmul.mubr.bf16.gmra.mrb[0].mxu0 %v1736
      %v3535 = vpop.f32.mrb[0].mxu0
      %v3536 = vadd.f32 %v3375, %v3535
      %v3537 = vpop.f32.mrb[0].mxu0
      %v3538 = vpop.f32.mrb[0].mxu0
      %v3539 = vadd.f32 %v3378, %v3538
      %v3540 = vpop.f32.mrb[0].mxu0
      %3541 = vmatprep.mubr.bf16.mxu0 0
      %3542 = vmatmul.mubr.bf16.gmra.mrb[0].mxu0 %v1737
      %v3543 = vpop.f32.mrb[0].mxu0
      %v3544 = vadd.f32 %v3383, %v3543
      %v3545 = vpop.f32.mrb[0].mxu0
      %v3546 = vpop.f32.mrb[0].mxu0
      %v3547 = vadd.f32 %v3386, %v3546
      %v3548 = vpop.f32.mrb[0].mxu0
      %3549 = vmatprep.mubr.bf16.mxu0 0
      %3550 = vmatmul.mubr.bf16.gmra.mrb[0].mxu0 %v1738
      %v3551 = vpop.f32.mrb[0].mxu0
      %v3552 = vadd.f32 %v3391, %v3551
      %v3553 = vpop.f32.mrb[0].mxu0
      %v3554 = vpop.f32.mrb[0].mxu0
      %v3555 = vadd.f32 %v3394, %v3554
      %v3556 = vpop.f32.mrb[0].mxu0
      %3557 = vmatprep.mubr.bf16.mxu0 0
      %3558 = vmatmul.mubr.bf16.gmra.mrb[0].mxu0 %v1739
      %v3559 = vpop.f32.mrb[0].mxu0
      %v3560 = vadd.f32 %v3399, %v3559
      %v3561 = vpop.f32.mrb[0].mxu0
      %v3562 = vpop.f32.mrb[0].mxu0
      %v3563 = vadd.f32 %v3402, %v3562
      %v3564 = vpop.f32.mrb[0].mxu0
      %3565 = vmatprep.mubr.bf16.mxu0 0
      %3566 = vmatmul.mubr.bf16.gmra.mrb[0].mxu0 %v1740
      %v3567 = vpop.f32.mrb[0].mxu0
      %v3568 = vadd.f32 %v3407, %v3567
      %v3569 = vpop.f32.mrb[0].mxu0
      %v3570 = vpop.f32.mrb[0].mxu0
      %v3571 = vadd.f32 %v3410, %v3570
      %v3572 = vpop.f32.mrb[0].mxu0
      %3573 = vmatprep.mubr.bf16.mxu0 0
      %3574 = vmatmul.mubr.bf16.gmra.mrb[0].mxu0 %v1741
      %v3575 = vpop.f32.mrb[0].mxu0
      %v3576 = vadd.f32 %v3415, %v3575
      %v3577 = vpop.f32.mrb[0].mxu0
      %v3578 = vpop.f32.mrb[0].mxu0
      %v3579 = vadd.f32 %v3418, %v3578
      %v3580 = vpop.f32.mrb[0].mxu0
      %3581 = vmatprep.mubr.bf16.mxu0 0
      %3582 = vmatmul.mubr.bf16.gmra.mrb[0].mxu0 %v1742
      %v3583 = vpop.f32.mrb[0].mxu0
      %v3584 = vadd.f32 %v3423, %v3583
      %v3585 = vpop.f32.mrb[0].mxu0
      %v3586 = vpop.f32.mrb[0].mxu0
      %v3587 = vadd.f32 %v3426, %v3586
      %v3588 = vpop.f32.mrb[0].mxu0
      %3589 = vmatprep.mubr.bf16.mxu0 0
      %3590 = vmatmul.mubr.bf16.gmra.mrb[0].mxu0 %v1743
      %v3591 = vpop.f32.mrb[0].mxu0
      %v3592 = vadd.f32 %v3431, %v3591
      %v3593 = vpop.f32.mrb[0].mxu0
      %v3594 = vpop.f32.mrb[0].mxu0
      %v3595 = vadd.f32 %v3434, %v3594
      %v3596 = vpop.f32.mrb[0].mxu0
      %3597 = vmatprep.mubr.bf16.mxu0 0
      %3598 = vmatmul.mubr.bf16.gmra.mrb[0].mxu0 %v1744
      %v3599 = vpop.f32.mrb[0].mxu0
      %v3600 = vadd.f32 %v3439, %v3599
      %v3601 = vpop.f32.mrb[0].mxu0
      %v3602 = vpop.f32.mrb[0].mxu0
      %v3603 = vadd.f32 %v3442, %v3602
      %v3604 = vpop.f32.mrb[0].mxu0
      %3605 = vdwg.mxu0
      %s3606 = scalar_lea.vmem [#allocation2], 24
      %v3607 = vld [vmem:[%s3606] sm:$0xf]
      %v3608 = vld [vmem:[%s3606 + $0x4] sm:$0xf]
      %v3609 = vld [vmem:[%s3606 + $0xc] sm:$0xf]
      %v3610 = vld [vmem:[%s3606 + $0x10] sm:$0xf]
      %v3611 = vld [vmem:[%s3606 + $0x18] sm:$0xf]
      %v3612 = vld [vmem:[%s3606 + $0x1c] sm:$0xf]
      %v3613 = vld [vmem:[%s3606 + $0x24] sm:$0xf]
      %v3614 = vld [vmem:[%s3606 + $0x28] sm:$0xf]
      %v3615 = vld [vmem:[%s3606 + $0x30] sm:$0xf]
      %v3616 = vld [vmem:[%s3606 + $0x34] sm:$0xf]
      %v3617 = vld [vmem:[%s3606 + $0x3c] sm:$0xf]
      %v3618 = vld [vmem:[%s3606 + $0x40] sm:$0xf]
      %v3619 = vld [vmem:[%s3606 + $0x48] sm:$0xf]
      %v3620 = vld [vmem:[%s3606 + $0x4c] sm:$0xf]
      %v3621 = vld [vmem:[%s3606 + $0x54] sm:$0xf]
      %v3622 = vld [vmem:[%s3606 + $0x58] sm:$0xf]
      %v3623 = vld [vmem:[%s3606 + $0x60] sm:$0xf]
      %v3624 = vld [vmem:[%s3606 + $0x64] sm:$0xf]
      %v3625 = vld [vmem:[%s3606 + $0x6c] sm:$0xf]
      %v3626 = vld [vmem:[%s3606 + $0x70] sm:$0xf]
      %v3627 = vld [vmem:[%s3606 + $0x78] sm:$0xf]
      %v3628 = vld [vmem:[%s3606 + $0x7c] sm:$0xf]
      %v3629 = vld [vmem:[%s3606 + $0x84] sm:$0xf]
      %v3630 = vld [vmem:[%s3606 + $0x88] sm:$0xf]
      %v3631 = vld [vmem:[%s3606 + $0x90] sm:$0xf]
      %v3632 = vld [vmem:[%s3606 + $0x94] sm:$0xf]
      %v3633 = vld [vmem:[%s3606 + $0x9c] sm:$0xf]
      %v3634 = vld [vmem:[%s3606 + $0xa0] sm:$0xf]
      %v3635 = vld [vmem:[%s3606 + $0xa8] sm:$0xf]
      %v3636 = vld [vmem:[%s3606 + $0xac] sm:$0xf]
      %v3637 = vld [vmem:[%s3606 + $0xb4] sm:$0xf]
      %v3638 = vld [vmem:[%s3606 + $0xb8] sm:$0xf]
      %v3639 = vld [vmem:[%s3606 + $0x8] sm:$0x1]
      %v3640 = vld [vmem:[%s3606 + $0x14] sm:$0x1]
      %v3641 = vld [vmem:[%s3606 + $0x20] sm:$0x1]
      %v3642 = vld [vmem:[%s3606 + $0x2c] sm:$0x1]
      %v3643 = vld [vmem:[%s3606 + $0x38] sm:$0x1]
      %v3644 = vld [vmem:[%s3606 + $0x44] sm:$0x1]
      %v3645 = vld [vmem:[%s3606 + $0x50] sm:$0x1]
      %v3646 = vld [vmem:[%s3606 + $0x5c] sm:$0x1]
      %v3647 = vld [vmem:[%s3606 + $0x68] sm:$0x1]
      %v3648 = vld [vmem:[%s3606 + $0x74] sm:$0x1]
      %v3649 = vld [vmem:[%s3606 + $0x80] sm:$0x1]
      %v3650 = vld [vmem:[%s3606 + $0x8c] sm:$0x1]
      %v3651 = vld [vmem:[%s3606 + $0x98] sm:$0x1]
      %v3652 = vld [vmem:[%s3606 + $0xa4] sm:$0x1]
      %v3653 = vld [vmem:[%s3606 + $0xb0] sm:$0x1]
      %v3654 = vld [vmem:[%s3606 + $0xbc] sm:$0x1]
      %v3656 = vshrl.u32 %v3607, 16
      %v3658 = vrot.slane %v3656, 4
      %v3659 = vshll.u32 %v3607, 16
      %v3661 = vrot.slane %v3659, 5
      %v3662 = vor.u32 %v3658, %v3661
      %v3663 = vrot.slane %v3662, 4
      %v3665 = vshll.u32 %v3608, 16
      %v3667 = vrot.slane %v3665, 5
      %v3668 = vsel %vm989, %v3663, %v3667
      %v3669 = vshrl.u32 %v3608, 16
      %v3671 = vrot.slane %v3669, 4
      %v3672 = vor.u32 %v3671, %v3667
      %v3673 = vrot.slane %v3672, 4
      %v3675 = vshll.u32 %v3639, 16
      %v3677 = vrot.slane %v3675, 5
      %v3678 = vsel %vm989, %v3673, %v3677
      %v3680 = vshrl.u32 %v3609, 16
      %v3682 = vrot.slane %v3680, 4
      %v3683 = vshll.u32 %v3609, 16
      %v3685 = vrot.slane %v3683, 5
      %v3686 = vor.u32 %v3682, %v3685
      %v3687 = vrot.slane %v3686, 4
      %v3689 = vshll.u32 %v3610, 16
      %v3691 = vrot.slane %v3689, 5
      %v3692 = vsel %vm989, %v3687, %v3691
      %v3693 = vshrl.u32 %v3610, 16
      %v3695 = vrot.slane %v3693, 4
      %v3696 = vor.u32 %v3695, %v3691
      %v3697 = vrot.slane %v3696, 4
      %v3699 = vshll.u32 %v3640, 16
      %v3701 = vrot.slane %v3699, 5
      %v3702 = vsel %vm989, %v3697, %v3701
      %v3704 = vshrl.u32 %v3611, 16
      %v3706 = vrot.slane %v3704, 4
      %v3707 = vshll.u32 %v3611, 16
      %v3709 = vrot.slane %v3707, 5
      %v3710 = vor.u32 %v3706, %v3709
      %v3711 = vrot.slane %v3710, 4
      %v3713 = vshll.u32 %v3612, 16
      %v3715 = vrot.slane %v3713, 5
      %v3716 = vsel %vm989, %v3711, %v3715
      %v3717 = vshrl.u32 %v3612, 16
      %v3719 = vrot.slane %v3717, 4
      %v3720 = vor.u32 %v3719, %v3715
      %v3721 = vrot.slane %v3720, 4
      %v3723 = vshll.u32 %v3641, 16
      %v3725 = vrot.slane %v3723, 5
      %v3726 = vsel %vm989, %v3721, %v3725
      %v3728 = vshrl.u32 %v3613, 16
      %v3730 = vrot.slane %v3728, 4
      %v3731 = vshll.u32 %v3613, 16
      %v3733 = vrot.slane %v3731, 5
      %v3734 = vor.u32 %v3730, %v3733
      %v3735 = vrot.slane %v3734, 4
      %v3737 = vshll.u32 %v3614, 16
      %v3739 = vrot.slane %v3737, 5
      %v3740 = vsel %vm989, %v3735, %v3739
      %v3741 = vshrl.u32 %v3614, 16
      %v3743 = vrot.slane %v3741, 4
      %v3744 = vor.u32 %v3743, %v3739
      %v3745 = vrot.slane %v3744, 4
      %v3747 = vshll.u32 %v3642, 16
      %v3749 = vrot.slane %v3747, 5
      %v3750 = vsel %vm989, %v3745, %v3749
      %v3752 = vshrl.u32 %v3615, 16
      %v3754 = vrot.slane %v3752, 4
      %v3755 = vshll.u32 %v3615, 16
      %v3757 = vrot.slane %v3755, 5
      %v3758 = vor.u32 %v3754, %v3757
      %v3759 = vrot.slane %v3758, 4
      %v3761 = vshll.u32 %v3616, 16
      %v3763 = vrot.slane %v3761, 5
      %v3764 = vsel %vm989, %v3759, %v3763
      %v3765 = vshrl.u32 %v3616, 16
      %v3767 = vrot.slane %v3765, 4
      %v3768 = vor.u32 %v3767, %v3763
      %v3769 = vrot.slane %v3768, 4
      %v3771 = vshll.u32 %v3643, 16
      %v3773 = vrot.slane %v3771, 5
      %v3774 = vsel %vm989, %v3769, %v3773
      %v3776 = vshrl.u32 %v3617, 16
      %v3778 = vrot.slane %v3776, 4
      %v3779 = vshll.u32 %v3617, 16
      %v3781 = vrot.slane %v3779, 5
      %v3782 = vor.u32 %v3778, %v3781
      %v3783 = vrot.slane %v3782, 4
      %v3785 = vshll.u32 %v3618, 16
      %v3787 = vrot.slane %v3785, 5
      %v3788 = vsel %vm989, %v3783, %v3787
      %v3789 = vshrl.u32 %v3618, 16
      %v3791 = vrot.slane %v3789, 4
      %v3792 = vor.u32 %v3791, %v3787
      %v3793 = vrot.slane %v3792, 4
      %v3795 = vshll.u32 %v3644, 16
      %v3797 = vrot.slane %v3795, 5
      %v3798 = vsel %vm989, %v3793, %v3797
      %v3800 = vshrl.u32 %v3619, 16
      %v3802 = vrot.slane %v3800, 4
      %v3803 = vshll.u32 %v3619, 16
      %v3805 = vrot.slane %v3803, 5
      %v3806 = vor.u32 %v3802, %v3805
      %v3807 = vrot.slane %v3806, 4
      %v3809 = vshll.u32 %v3620, 16
      %v3811 = vrot.slane %v3809, 5
      %v3812 = vsel %vm989, %v3807, %v3811
      %v3813 = vshrl.u32 %v3620, 16
      %v3815 = vrot.slane %v3813, 4
      %v3816 = vor.u32 %v3815, %v3811
      %v3817 = vrot.slane %v3816, 4
      %v3819 = vshll.u32 %v3645, 16
      %v3821 = vrot.slane %v3819, 5
      %v3822 = vsel %vm989, %v3817, %v3821
      %v3824 = vshrl.u32 %v3621, 16
      %v3826 = vrot.slane %v3824, 4
      %v3827 = vshll.u32 %v3621, 16
      %v3829 = vrot.slane %v3827, 5
      %v3830 = vor.u32 %v3826, %v3829
      %v3831 = vrot.slane %v3830, 4
      %v3833 = vshll.u32 %v3622, 16
      %v3835 = vrot.slane %v3833, 5
      %v3836 = vsel %vm989, %v3831, %v3835
      %v3837 = vshrl.u32 %v3622, 16
      %v3839 = vrot.slane %v3837, 4
      %v3840 = vor.u32 %v3839, %v3835
      %v3841 = vrot.slane %v3840, 4
      %v3843 = vshll.u32 %v3646, 16
      %v3845 = vrot.slane %v3843, 5
      %v3846 = vsel %vm989, %v3841, %v3845
      %v3848 = vshrl.u32 %v3623, 16
      %v3850 = vrot.slane %v3848, 4
      %v3851 = vshll.u32 %v3623, 16
      %v3853 = vrot.slane %v3851, 5
      %v3854 = vor.u32 %v3850, %v3853
      %v3855 = vrot.slane %v3854, 4
      %v3857 = vshll.u32 %v3624, 16
      %v3859 = vrot.slane %v3857, 5
      %v3860 = vsel %vm989, %v3855, %v3859
      %v3861 = vshrl.u32 %v3624, 16
      %v3863 = vrot.slane %v3861, 4
      %v3864 = vor.u32 %v3863, %v3859
      %v3865 = vrot.slane %v3864, 4
      %v3867 = vshll.u32 %v3647, 16
      %v3869 = vrot.slane %v3867, 5
      %v3870 = vsel %vm989, %v3865, %v3869
      %v3872 = vshrl.u32 %v3625, 16
      %v3874 = vrot.slane %v3872, 4
      %v3875 = vshll.u32 %v3625, 16
      %v3877 = vrot.slane %v3875, 5
      %v3878 = vor.u32 %v3874, %v3877
      %v3879 = vrot.slane %v3878, 4
      %v3881 = vshll.u32 %v3626, 16
      %v3883 = vrot.slane %v3881, 5
      %v3884 = vsel %vm989, %v3879, %v3883
      %v3885 = vshrl.u32 %v3626, 16
      %v3887 = vrot.slane %v3885, 4
      %v3888 = vor.u32 %v3887, %v3883
      %v3889 = vrot.slane %v3888, 4
      %v3891 = vshll.u32 %v3648, 16
      %v3893 = vrot.slane %v3891, 5
      %v3894 = vsel %vm989, %v3889, %v3893
      %v3896 = vshrl.u32 %v3627, 16
      %v3898 = vrot.slane %v3896, 4
      %v3899 = vshll.u32 %v3627, 16
      %v3901 = vrot.slane %v3899, 5
      %v3902 = vor.u32 %v3898, %v3901
      %v3903 = vrot.slane %v3902, 4
      %v3905 = vshll.u32 %v3628, 16
      %v3907 = vrot.slane %v3905, 5
      %v3908 = vsel %vm989, %v3903, %v3907
      %v3909 = vshrl.u32 %v3628, 16
      %v3911 = vrot.slane %v3909, 4
      %v3912 = vor.u32 %v3911, %v3907
      %v3913 = vrot.slane %v3912, 4
      %v3915 = vshll.u32 %v3649, 16
      %v3917 = vrot.slane %v3915, 5
      %v3918 = vsel %vm989, %v3913, %v3917
      %v3920 = vshrl.u32 %v3629, 16
      %v3922 = vrot.slane %v3920, 4
      %v3923 = vshll.u32 %v3629, 16
      %v3925 = vrot.slane %v3923, 5
      %v3926 = vor.u32 %v3922, %v3925
      %v3927 = vrot.slane %v3926, 4
      %v3929 = vshll.u32 %v3630, 16
      %v3931 = vrot.slane %v3929, 5
      %v3932 = vsel %vm989, %v3927, %v3931
      %v3933 = vshrl.u32 %v3630, 16
      %v3935 = vrot.slane %v3933, 4
      %v3936 = vor.u32 %v3935, %v3931
      %v3937 = vrot.slane %v3936, 4
      %v3939 = vshll.u32 %v3650, 16
      %v3941 = vrot.slane %v3939, 5
      %v3942 = vsel %vm989, %v3937, %v3941
      %v3944 = vshrl.u32 %v3631, 16
      %v3946 = vrot.slane %v3944, 4
      %v3947 = vshll.u32 %v3631, 16
      %v3949 = vrot.slane %v3947, 5
      %v3950 = vor.u32 %v3946, %v3949
      %v3951 = vrot.slane %v3950, 4
      %v3953 = vshll.u32 %v3632, 16
      %v3955 = vrot.slane %v3953, 5
      %v3956 = vsel %vm989, %v3951, %v3955
      %v3957 = vshrl.u32 %v3632, 16
      %v3959 = vrot.slane %v3957, 4
      %v3960 = vor.u32 %v3959, %v3955
      %v3961 = vrot.slane %v3960, 4
      %v3963 = vshll.u32 %v3651, 16
      %v3965 = vrot.slane %v3963, 5
      %v3966 = vsel %vm989, %v3961, %v3965
      %v3968 = vshrl.u32 %v3633, 16
      %v3970 = vrot.slane %v3968, 4
      %v3971 = vshll.u32 %v3633, 16
      %v3973 = vrot.slane %v3971, 5
      %v3974 = vor.u32 %v3970, %v3973
      %v3975 = vrot.slane %v3974, 4
      %v3977 = vshll.u32 %v3634, 16
      %v3979 = vrot.slane %v3977, 5
      %v3980 = vsel %vm989, %v3975, %v3979
      %v3981 = vshrl.u32 %v3634, 16
      %v3983 = vrot.slane %v3981, 4
      %v3984 = vor.u32 %v3983, %v3979
      %v3985 = vrot.slane %v3984, 4
      %v3987 = vshll.u32 %v3652, 16
      %v3989 = vrot.slane %v3987, 5
      %v3990 = vsel %vm989, %v3985, %v3989
      %v3992 = vshrl.u32 %v3635, 16
      %v3994 = vrot.slane %v3992, 4
      %v3995 = vshll.u32 %v3635, 16
      %v3997 = vrot.slane %v3995, 5
      %v3998 = vor.u32 %v3994, %v3997
      %v3999 = vrot.slane %v3998, 4
      %v4001 = vshll.u32 %v3636, 16
      %v4003 = vrot.slane %v4001, 5
      %v4004 = vsel %vm989, %v3999, %v4003
      %v4005 = vshrl.u32 %v3636, 16
      %v4007 = vrot.slane %v4005, 4
      %v4008 = vor.u32 %v4007, %v4003
      %v4009 = vrot.slane %v4008, 4
      %v4011 = vshll.u32 %v3653, 16
      %v4013 = vrot.slane %v4011, 5
      %v4014 = vsel %vm989, %v4009, %v4013
      %v4016 = vshrl.u32 %v3637, 16
      %v4018 = vrot.slane %v4016, 4
      %v4019 = vshll.u32 %v3637, 16
      %v4021 = vrot.slane %v4019, 5
      %v4022 = vor.u32 %v4018, %v4021
      %v4023 = vrot.slane %v4022, 4
      %v4025 = vshll.u32 %v3638, 16
      %v4027 = vrot.slane %v4025, 5
      %v4028 = vsel %vm989, %v4023, %v4027
      %v4029 = vshrl.u32 %v3638, 16
      %v4031 = vrot.slane %v4029, 4
      %v4032 = vor.u32 %v4031, %v4027
      %v4033 = vrot.slane %v4032, 4
      %v4035 = vshll.u32 %v3654, 16
      %v4037 = vrot.slane %v4035, 5
      %v4038 = vsel %vm989, %v4033, %v4037
      %v4039 = vld [vmem:[%s3606] sm:$0xe]
      %v4040 = vld [vmem:[%s3606 + $0xc] sm:$0xe]
      %v4041 = vld [vmem:[%s3606 + $0x18] sm:$0xe]
      %v4042 = vld [vmem:[%s3606 + $0x24] sm:$0xe]
      %v4043 = vld [vmem:[%s3606 + $0x30] sm:$0xe]
      %v4044 = vld [vmem:[%s3606 + $0x3c] sm:$0xe]
      %v4045 = vld [vmem:[%s3606 + $0x48] sm:$0xe]
      %v4046 = vld [vmem:[%s3606 + $0x54] sm:$0xe]
      %v4047 = vld [vmem:[%s3606 + $0x60] sm:$0xe]
      %v4048 = vld [vmem:[%s3606 + $0x6c] sm:$0xe]
      %v4049 = vld [vmem:[%s3606 + $0x78] sm:$0xe]
      %v4050 = vld [vmem:[%s3606 + $0x84] sm:$0xe]
      %v4051 = vld [vmem:[%s3606 + $0x90] sm:$0xe]
      %v4052 = vld [vmem:[%s3606 + $0x9c] sm:$0xe]
      %v4053 = vld [vmem:[%s3606 + $0xa8] sm:$0xe]
      %v4054 = vld [vmem:[%s3606 + $0xb4] sm:$0xe]
      %v4103 = vrot.slane %v4039, 5
      %v4104 = vrot.slane %v4103, 4
      %v4105 = vrot.slane %v3608, 5
      %v4106 = vsel %vm1440, %v4104, %v4105
      %v4107 = vrot.slane %v4105, 4
      %v4108 = vrot.slane %v3639, 5
      %v4109 = vsel %vm1440, %v4107, %v4108
      %v4110 = vrot.slane %v4040, 5
      %v4111 = vrot.slane %v4110, 4
      %v4112 = vrot.slane %v3610, 5
      %v4113 = vsel %vm1440, %v4111, %v4112
      %v4114 = vrot.slane %v4112, 4
      %v4115 = vrot.slane %v3640, 5
      %v4116 = vsel %vm1440, %v4114, %v4115
      %v4117 = vrot.slane %v4041, 5
      %v4118 = vrot.slane %v4117, 4
      %v4119 = vrot.slane %v3612, 5
      %v4120 = vsel %vm1440, %v4118, %v4119
      %v4121 = vrot.slane %v4119, 4
      %v4122 = vrot.slane %v3641, 5
      %v4123 = vsel %vm1440, %v4121, %v4122
      %v4124 = vrot.slane %v4042, 5
      %v4125 = vrot.slane %v4124, 4
      %v4126 = vrot.slane %v3614, 5
      %v4127 = vsel %vm1440, %v4125, %v4126
      %v4128 = vrot.slane %v4126, 4
      %v4129 = vrot.slane %v3642, 5
      %v4130 = vsel %vm1440, %v4128, %v4129
      %v4131 = vrot.slane %v4043, 5
      %v4132 = vrot.slane %v4131, 4
      %v4133 = vrot.slane %v3616, 5
      %v4134 = vsel %vm1440, %v4132, %v4133
      %v4135 = vrot.slane %v4133, 4
      %v4136 = vrot.slane %v3643, 5
      %v4137 = vsel %vm1440, %v4135, %v4136
      %v4138 = vrot.slane %v4044, 5
      %v4139 = vrot.slane %v4138, 4
      %v4140 = vrot.slane %v3618, 5
      %v4141 = vsel %vm1440, %v4139, %v4140
      %v4142 = vrot.slane %v4140, 4
      %v4143 = vrot.slane %v3644, 5
      %v4144 = vsel %vm1440, %v4142, %v4143
      %v4145 = vrot.slane %v4045, 5
      %v4146 = vrot.slane %v4145, 4
      %v4147 = vrot.slane %v3620, 5
      %v4148 = vsel %vm1440, %v4146, %v4147
      %v4149 = vrot.slane %v4147, 4
      %v4150 = vrot.slane %v3645, 5
      %v4151 = vsel %vm1440, %v4149, %v4150
      %v4152 = vrot.slane %v4046, 5
      %v4153 = vrot.slane %v4152, 4
      %v4154 = vrot.slane %v3622, 5
      %v4155 = vsel %vm1440, %v4153, %v4154
      %v4156 = vrot.slane %v4154, 4
      %v4157 = vrot.slane %v3646, 5
      %v4158 = vsel %vm1440, %v4156, %v4157
      %v4159 = vrot.slane %v4047, 5
      %v4160 = vrot.slane %v4159, 4
      %v4161 = vrot.slane %v3624, 5
      %v4162 = vsel %vm1440, %v4160, %v4161
      %v4163 = vrot.slane %v4161, 4
      %v4164 = vrot.slane %v3647, 5
      %v4165 = vsel %vm1440, %v4163, %v4164
      %v4166 = vrot.slane %v4048, 5
      %v4167 = vrot.slane %v4166, 4
      %v4168 = vrot.slane %v3626, 5
      %v4169 = vsel %vm1440, %v4167, %v4168
      %v4170 = vrot.slane %v4168, 4
      %v4171 = vrot.slane %v3648, 5
      %v4172 = vsel %vm1440, %v4170, %v4171
      %v4173 = vrot.slane %v4049, 5
      %v4174 = vrot.slane %v4173, 4
      %v4175 = vrot.slane %v3628, 5
      %v4176 = vsel %vm1440, %v4174, %v4175
      %v4177 = vrot.slane %v4175, 4
      %v4178 = vrot.slane %v3649, 5
      %v4179 = vsel %vm1440, %v4177, %v4178
      %v4180 = vrot.slane %v4050, 5
      %v4181 = vrot.slane %v4180, 4
      %v4182 = vrot.slane %v3630, 5
      %v4183 = vsel %vm1440, %v4181, %v4182
      %v4184 = vrot.slane %v4182, 4
      %v4185 = vrot.slane %v3650, 5
      %v4186 = vsel %vm1440, %v4184, %v4185
      %v4187 = vrot.slane %v4051, 5
      %v4188 = vrot.slane %v4187, 4
      %v4189 = vrot.slane %v3632, 5
      %v4190 = vsel %vm1440, %v4188, %v4189
      %v4191 = vrot.slane %v4189, 4
      %v4192 = vrot.slane %v3651, 5
      %v4193 = vsel %vm1440, %v4191, %v4192
      %v4194 = vrot.slane %v4052, 5
      %v4195 = vrot.slane %v4194, 4
      %v4196 = vrot.slane %v3634, 5
      %v4197 = vsel %vm1440, %v4195, %v4196
      %v4198 = vrot.slane %v4196, 4
      %v4199 = vrot.slane %v3652, 5
      %v4200 = vsel %vm1440, %v4198, %v4199
      %v4201 = vrot.slane %v4053, 5
      %v4202 = vrot.slane %v4201, 4
      %v4203 = vrot.slane %v3636, 5
      %v4204 = vsel %vm1440, %v4202, %v4203
      %v4205 = vrot.slane %v4203, 4
      %v4206 = vrot.slane %v3653, 5
      %v4207 = vsel %vm1440, %v4205, %v4206
      %v4208 = vrot.slane %v4054, 5
      %v4209 = vrot.slane %v4208, 4
      %v4210 = vrot.slane %v3638, 5
      %v4211 = vsel %vm1440, %v4209, %v4210
      %v4212 = vrot.slane %v4210, 4
      %v4213 = vrot.slane %v3654, 5
      %v4214 = vsel %vm1440, %v4212, %v4213
      %v4231 = vunpack.c.l.b16 %v3607
      %v4232 = vunpack.c.l.b16 %v3608
      %v4233 = vunpack.c.l.b16 %v3609
      %v4234 = vunpack.c.l.b16 %v3610
      %v4235 = vunpack.c.l.b16 %v3611
      %v4236 = vunpack.c.l.b16 %v3612
      %v4237 = vunpack.c.l.b16 %v3613
      %v4238 = vunpack.c.l.b16 %v3614
      %v4239 = vunpack.c.l.b16 %v3615
      %v4240 = vunpack.c.l.b16 %v3616
      %v4241 = vunpack.c.l.b16 %v3617
      %v4242 = vunpack.c.l.b16 %v3618
      %v4243 = vunpack.c.l.b16 %v3619
      %v4244 = vunpack.c.l.b16 %v3620
      %v4245 = vunpack.c.l.b16 %v3621
      %v4246 = vunpack.c.l.b16 %v3622
      %v4247 = vunpack.c.l.b16 %v3623
      %v4248 = vunpack.c.l.b16 %v3624
      %v4249 = vunpack.c.l.b16 %v3625
      %v4250 = vunpack.c.l.b16 %v3626
      %v4251 = vunpack.c.l.b16 %v3627
      %v4252 = vunpack.c.l.b16 %v3628
      %v4253 = vunpack.c.l.b16 %v3629
      %v4254 = vunpack.c.l.b16 %v3630
      %v4255 = vunpack.c.l.b16 %v3631
      %v4256 = vunpack.c.l.b16 %v3632
      %v4257 = vunpack.c.l.b16 %v3633
      %v4258 = vunpack.c.l.b16 %v3634
      %v4259 = vunpack.c.l.b16 %v3635
      %v4260 = vunpack.c.l.b16 %v3636
      %v4261 = vunpack.c.l.b16 %v3637
      %v4262 = vunpack.c.l.b16 %v3638
      %v4263 = vpack.c.b16 %v4232, %v4231
      %v4264 = vpack.c.b16 %v4234, %v4233
      %v4265 = vpack.c.b16 %v4236, %v4235
      %v4266 = vpack.c.b16 %v4238, %v4237
      %v4267 = vpack.c.b16 %v4240, %v4239
      %v4268 = vpack.c.b16 %v4242, %v4241
      %v4269 = vpack.c.b16 %v4244, %v4243
      %v4270 = vpack.c.b16 %v4246, %v4245
      %v4271 = vpack.c.b16 %v4248, %v4247
      %v4272 = vpack.c.b16 %v4250, %v4249
      %v4273 = vpack.c.b16 %v4252, %v4251
      %v4274 = vpack.c.b16 %v4254, %v4253
      %v4275 = vpack.c.b16 %v4256, %v4255
      %v4276 = vpack.c.b16 %v4258, %v4257
      %v4277 = vpack.c.b16 %v4260, %v4259
      %v4278 = vpack.c.b16 %v4262, %v4261
      %v4295 = vunpack.c.l.b16 %v3668
      %v4296 = vunpack.c.l.b16 %v3678
      %v4297 = vunpack.c.l.b16 %v3692
      %v4298 = vunpack.c.l.b16 %v3702
      %v4299 = vunpack.c.l.b16 %v3716
      %v4300 = vunpack.c.l.b16 %v3726
      %v4301 = vunpack.c.l.b16 %v3740
      %v4302 = vunpack.c.l.b16 %v3750
      %v4303 = vunpack.c.l.b16 %v3764
      %v4304 = vunpack.c.l.b16 %v3774
      %v4305 = vunpack.c.l.b16 %v3788
      %v4306 = vunpack.c.l.b16 %v3798
      %v4307 = vunpack.c.l.b16 %v3812
      %v4308 = vunpack.c.l.b16 %v3822
      %v4309 = vunpack.c.l.b16 %v3836
      %v4310 = vunpack.c.l.b16 %v3846
      %v4311 = vunpack.c.l.b16 %v3860
      %v4312 = vunpack.c.l.b16 %v3870
      %v4313 = vunpack.c.l.b16 %v3884
      %v4314 = vunpack.c.l.b16 %v3894
      %v4315 = vunpack.c.l.b16 %v3908
      %v4316 = vunpack.c.l.b16 %v3918
      %v4317 = vunpack.c.l.b16 %v3932
      %v4318 = vunpack.c.l.b16 %v3942
      %v4319 = vunpack.c.l.b16 %v3956
      %v4320 = vunpack.c.l.b16 %v3966
      %v4321 = vunpack.c.l.b16 %v3980
      %v4322 = vunpack.c.l.b16 %v3990
      %v4323 = vunpack.c.l.b16 %v4004
      %v4324 = vunpack.c.l.b16 %v4014
      %v4325 = vunpack.c.l.b16 %v4028
      %v4326 = vunpack.c.l.b16 %v4038
      %v4327 = vpack.c.b16 %v4296, %v4295
      %v4328 = vpack.c.b16 %v4298, %v4297
      %v4329 = vpack.c.b16 %v4300, %v4299
      %v4330 = vpack.c.b16 %v4302, %v4301
      %v4331 = vpack.c.b16 %v4304, %v4303
      %v4332 = vpack.c.b16 %v4306, %v4305
      %v4333 = vpack.c.b16 %v4308, %v4307
      %v4334 = vpack.c.b16 %v4310, %v4309
      %v4335 = vpack.c.b16 %v4312, %v4311
      %v4336 = vpack.c.b16 %v4314, %v4313
      %v4337 = vpack.c.b16 %v4316, %v4315
      %v4338 = vpack.c.b16 %v4318, %v4317
      %v4339 = vpack.c.b16 %v4320, %v4319
      %v4340 = vpack.c.b16 %v4322, %v4321
      %v4341 = vpack.c.b16 %v4324, %v4323
      %v4342 = vpack.c.b16 %v4326, %v4325
      %v4359 = vunpack.c.l.b16 %v4106
      %v4360 = vunpack.c.l.b16 %v4109
      %v4361 = vunpack.c.l.b16 %v4113
      %v4362 = vunpack.c.l.b16 %v4116
      %v4363 = vunpack.c.l.b16 %v4120
      %v4364 = vunpack.c.l.b16 %v4123
      %v4365 = vunpack.c.l.b16 %v4127
      %v4366 = vunpack.c.l.b16 %v4130
      %v4367 = vunpack.c.l.b16 %v4134
      %v4368 = vunpack.c.l.b16 %v4137
      %v4369 = vunpack.c.l.b16 %v4141
      %v4370 = vunpack.c.l.b16 %v4144
      %v4371 = vunpack.c.l.b16 %v4148
      %v4372 = vunpack.c.l.b16 %v4151
      %v4373 = vunpack.c.l.b16 %v4155
      %v4374 = vunpack.c.l.b16 %v4158
      %v4375 = vunpack.c.l.b16 %v4162
      %v4376 = vunpack.c.l.b16 %v4165
      %v4377 = vunpack.c.l.b16 %v4169
      %v4378 = vunpack.c.l.b16 %v4172
      %v4379 = vunpack.c.l.b16 %v4176
      %v4380 = vunpack.c.l.b16 %v4179
      %v4381 = vunpack.c.l.b16 %v4183
      %v4382 = vunpack.c.l.b16 %v4186
      %v4383 = vunpack.c.l.b16 %v4190
      %v4384 = vunpack.c.l.b16 %v4193
      %v4385 = vunpack.c.l.b16 %v4197
      %v4386 = vunpack.c.l.b16 %v4200
      %v4387 = vunpack.c.l.b16 %v4204
      %v4388 = vunpack.c.l.b16 %v4207
      %v4389 = vunpack.c.l.b16 %v4211
      %v4390 = vunpack.c.l.b16 %v4214
      %v4391 = vpack.c.b16 %v4360, %v4359
      %v4392 = vpack.c.b16 %v4362, %v4361
      %v4393 = vpack.c.b16 %v4364, %v4363
      %v4394 = vpack.c.b16 %v4366, %v4365
      %v4395 = vpack.c.b16 %v4368, %v4367
      %v4396 = vpack.c.b16 %v4370, %v4369
      %v4397 = vpack.c.b16 %v4372, %v4371
      %v4398 = vpack.c.b16 %v4374, %v4373
      %v4399 = vpack.c.b16 %v4376, %v4375
      %v4400 = vpack.c.b16 %v4378, %v4377
      %v4401 = vpack.c.b16 %v4380, %v4379
      %v4402 = vpack.c.b16 %v4382, %v4381
      %v4403 = vpack.c.b16 %v4384, %v4383
      %v4404 = vpack.c.b16 %v4386, %v4385
      %v4405 = vpack.c.b16 %v4388, %v4387
      %v4406 = vpack.c.b16 %v4390, %v4389
      %s4423 = scalar_lea.vmem %s3, 384
      %v4424 = vld [vmem:[%s4423] sm:$0xf]
      %v4425 = vld [vmem:[%s4423 + $0x4] sm:$0xf]
      %v4426 = vld [vmem:[%s4423 + $0x8] sm:$0xf]
      %v4427 = vld [vmem:[%s4423 + $0xc] sm:$0xf]
      %v4428 = vld [vmem:[%s4423 + $0x10] sm:$0xf]
      %v4429 = vld [vmem:[%s4423 + $0x14] sm:$0xf]
      %v4430 = vld [vmem:[%s4423 + $0x18] sm:$0xf]
      %v4431 = vld [vmem:[%s4423 + $0x1c] sm:$0xf]
      %v4432 = vld [vmem:[%s4423 + $0x20] sm:$0xf]
      %v4433 = vld [vmem:[%s4423 + $0x24] sm:$0xf]
      %v4434 = vld [vmem:[%s4423 + $0x28] sm:$0xf]
      %v4435 = vld [vmem:[%s4423 + $0x2c] sm:$0xf]
      %v4436 = vld [vmem:[%s4423 + $0x30] sm:$0xf]
      %v4437 = vld [vmem:[%s4423 + $0x34] sm:$0xf]
      %v4438 = vld [vmem:[%s4423 + $0x38] sm:$0xf]
      %v4439 = vld [vmem:[%s4423 + $0x3c] sm:$0xf]
      %v4440 = vld [vmem:[%s4423 + $0x40] sm:$0xf]
      %v4441 = vld [vmem:[%s4423 + $0x44] sm:$0xf]
      %v4442 = vld [vmem:[%s4423 + $0x48] sm:$0xf]
      %v4443 = vld [vmem:[%s4423 + $0x4c] sm:$0xf]
      %v4444 = vld [vmem:[%s4423 + $0x50] sm:$0xf]
      %v4445 = vld [vmem:[%s4423 + $0x54] sm:$0xf]
      %v4446 = vld [vmem:[%s4423 + $0x58] sm:$0xf]
      %v4447 = vld [vmem:[%s4423 + $0x5c] sm:$0xf]
      %v4448 = vld [vmem:[%s4423 + $0x60] sm:$0xf]
      %v4449 = vld [vmem:[%s4423 + $0x64] sm:$0xf]
      %v4450 = vld [vmem:[%s4423 + $0x68] sm:$0xf]
      %v4451 = vld [vmem:[%s4423 + $0x6c] sm:$0xf]
      %v4452 = vld [vmem:[%s4423 + $0x70] sm:$0xf]
      %v4453 = vld [vmem:[%s4423 + $0x74] sm:$0xf]
      %v4454 = vld [vmem:[%s4423 + $0x78] sm:$0xf]
      %v4455 = vld [vmem:[%s4423 + $0x7c] sm:$0xf]
      %v4456 = vld [vmem:[%s4423 + $0x80] sm:$0xf]
      %v4457 = vld [vmem:[%s4423 + $0x84] sm:$0xf]
      %v4458 = vld [vmem:[%s4423 + $0x88] sm:$0xf]
      %v4459 = vld [vmem:[%s4423 + $0x8c] sm:$0xf]
      %v4460 = vld [vmem:[%s4423 + $0x90] sm:$0xf]
      %v4461 = vld [vmem:[%s4423 + $0x94] sm:$0xf]
      %v4462 = vld [vmem:[%s4423 + $0x98] sm:$0xf]
      %v4463 = vld [vmem:[%s4423 + $0x9c] sm:$0xf]
      %v4464 = vld [vmem:[%s4423 + $0xa0] sm:$0xf]
      %v4465 = vld [vmem:[%s4423 + $0xa4] sm:$0xf]
      %v4466 = vld [vmem:[%s4423 + $0xa8] sm:$0xf]
      %v4467 = vld [vmem:[%s4423 + $0xac] sm:$0xf]
      %v4468 = vld [vmem:[%s4423 + $0xb0] sm:$0xf]
      %v4469 = vld [vmem:[%s4423 + $0xb4] sm:$0xf]
      %v4470 = vld [vmem:[%s4423 + $0xb8] sm:$0xf]
      %v4471 = vld [vmem:[%s4423 + $0xbc] sm:$0xf]
      %v4520 = vunpack.c.l.b16 %v4424
      %v4521 = vunpack.c.l.b16 %v4425
      %v4522 = vunpack.c.l.b16 %v4426
      %v4523 = vunpack.c.l.b16 %v4427
      %v4524 = vunpack.c.l.b16 %v4428
      %v4525 = vunpack.c.l.b16 %v4429
      %v4526 = vunpack.c.l.b16 %v4430
      %v4527 = vunpack.c.l.b16 %v4431
      %v4528 = vunpack.c.l.b16 %v4432
      %v4529 = vunpack.c.l.b16 %v4433
      %v4530 = vunpack.c.l.b16 %v4434
      %v4531 = vunpack.c.l.b16 %v4435
      %v4532 = vunpack.c.l.b16 %v4436
      %v4533 = vunpack.c.l.b16 %v4437
      %v4534 = vunpack.c.l.b16 %v4438
      %v4535 = vunpack.c.l.b16 %v4439
      %v4536 = vunpack.c.l.b16 %v4440
      %v4537 = vunpack.c.l.b16 %v4441
      %v4538 = vunpack.c.l.b16 %v4442
      %v4539 = vunpack.c.l.b16 %v4443
      %v4540 = vunpack.c.l.b16 %v4444
      %v4541 = vunpack.c.l.b16 %v4445
      %v4542 = vunpack.c.l.b16 %v4446
      %v4543 = vunpack.c.l.b16 %v4447
      %v4544 = vunpack.c.l.b16 %v4448
      %v4545 = vunpack.c.l.b16 %v4449
      %v4546 = vunpack.c.l.b16 %v4450
      %v4547 = vunpack.c.l.b16 %v4451
      %v4548 = vunpack.c.l.b16 %v4452
      %v4549 = vunpack.c.l.b16 %v4453
      %v4550 = vunpack.c.l.b16 %v4454
      %v4551 = vunpack.c.l.b16 %v4455
      %v4552 = vunpack.c.l.b16 %v4456
      %v4553 = vunpack.c.l.b16 %v4457
      %v4554 = vunpack.c.l.b16 %v4458
      %v4555 = vunpack.c.l.b16 %v4459
      %v4556 = vunpack.c.l.b16 %v4460
      %v4557 = vunpack.c.l.b16 %v4461
      %v4558 = vunpack.c.l.b16 %v4462
      %v4559 = vunpack.c.l.b16 %v4463
      %v4560 = vunpack.c.l.b16 %v4464
      %v4561 = vunpack.c.l.b16 %v4465
      %v4562 = vunpack.c.l.b16 %v4466
      %v4563 = vunpack.c.l.b16 %v4467
      %v4564 = vunpack.c.l.b16 %v4468
      %v4565 = vunpack.c.l.b16 %v4469
      %v4566 = vunpack.c.l.b16 %v4470
      %v4567 = vunpack.c.l.b16 %v4471
      %v4568 = vpack.c.b16 %v4521, %v4520
      %v4569 = vpack.c.b16 %v4523, %v4522
      %v4570 = vpack.c.b16 %v4525, %v4524
      %v4571 = vpack.c.b16 %v4527, %v4526
      %v4572 = vpack.c.b16 %v4529, %v4528
      %v4573 = vpack.c.b16 %v4531, %v4530
      %v4574 = vpack.c.b16 %v4533, %v4532
      %v4575 = vpack.c.b16 %v4535, %v4534
      %v4576 = vpack.c.b16 %v4537, %v4536
      %v4577 = vpack.c.b16 %v4539, %v4538
      %v4578 = vpack.c.b16 %v4541, %v4540
      %v4579 = vpack.c.b16 %v4543, %v4542
      %v4580 = vpack.c.b16 %v4545, %v4544
      %v4581 = vpack.c.b16 %v4547, %v4546
      %v4582 = vpack.c.b16 %v4549, %v4548
      %v4583 = vpack.c.b16 %v4551, %v4550
      %v4584 = vpack.c.b16 %v4553, %v4552
      %v4585 = vpack.c.b16 %v4555, %v4554
      %v4586 = vpack.c.b16 %v4557, %v4556
      %v4587 = vpack.c.b16 %v4559, %v4558
      %v4588 = vpack.c.b16 %v4561, %v4560
      %v4589 = vpack.c.b16 %v4563, %v4562
      %v4590 = vpack.c.b16 %v4565, %v4564
      %v4591 = vpack.c.b16 %v4567, %v4566
      %4616 = vmatprep.subr.bf16.mxu0 0
      %4617 = vmatpush1.bf16.msra.mxu0 %v4568
      %4618 = vmatprep.subr.bf16.mxu0 0
      %4619 = vmatpush1.bf16.msra.mxu0 %v4569
      %4620 = vmatprep.subr.bf16.mxu0 0
      %4621 = vmatpush1.bf16.msra.mxu0 %v4570
      %4622 = vmatprep.subr.bf16.mxu0 0
      %4623 = vmatpush1.bf16.msra.mxu0 %v4571
      %4624 = vmatprep.subr.bf16.mxu0 0
      %4625 = vmatpush1.bf16.msra.mxu0 %v4572
      %4626 = vmatprep.subr.bf16.mxu0 0
      %4627 = vmatpush1.bf16.msra.mxu0 %v4573
      %4628 = vmatprep.subr.bf16.mxu0 0
      %4629 = vmatpush1.bf16.msra.mxu0 %v4574
      %4630 = vmatprep.subr.bf16.mxu0 0
      %4631 = vmatpush1.bf16.msra.mxu0 %v4575
      %4632 = vmatprep.subr.bf16.mxu0 0
      %4633 = vmatpush1.bf16.msra.mxu0 %v4576
      %4634 = vmatprep.subr.bf16.mxu0 0
      %4635 = vmatpush1.bf16.msra.mxu0 %v4577
      %4636 = vmatprep.subr.bf16.mxu0 0
      %4637 = vmatpush1.bf16.msra.mxu0 %v4578
      %4638 = vmatprep.subr.bf16.mxu0 0
      %4639 = vmatpush1.bf16.msra.mxu0 %v4579
      %4640 = vmatprep.subr.bf16.mxu0 0
      %4641 = vmatpush1.bf16.msra.mxu0 %v4580
      %4642 = vmatprep.subr.bf16.mxu0 0
      %4643 = vmatpush1.bf16.msra.mxu0 %v4581
      %4644 = vmatprep.subr.bf16.mxu0 0
      %4645 = vmatpush1.bf16.msra.mxu0 %v4582
      %4646 = vmatprep.subr.bf16.mxu0 0
      %4647 = vmatpush1.bf16.msra.mxu0 %v4583
      %4648 = vmatprep.mubr.bf16.mxu0 %v4327
      %4649 = vmatmul.mubr.bf16.gmra.mrb[0].mxu0 %v4263
      %v4650 = vpop.f32.mrb[0].mxu0
      %v4651 = vadd.f32 0.0, %v4650
      %v4652 = vpop.f32.mrb[0].mxu0
      %v4653 = vpop.f32.mrb[0].mxu0
      %v4654 = vadd.f32 0.0, %v4653
      %v4655 = vpop.f32.mrb[0].mxu0
      %4656 = vmatprep.mubr.bf16.mxu0 %v4328
      %4657 = vmatmul.mubr.bf16.gmra.mrb[0].mxu0 %v4264
      %v4658 = vpop.f32.mrb[0].mxu0
      %v4659 = vadd.f32 0.0, %v4658
      %v4660 = vpop.f32.mrb[0].mxu0
      %v4661 = vpop.f32.mrb[0].mxu0
      %v4662 = vadd.f32 0.0, %v4661
      %v4663 = vpop.f32.mrb[0].mxu0
      %4664 = vmatprep.mubr.bf16.mxu0 %v4329
      %4665 = vmatmul.mubr.bf16.gmra.mrb[0].mxu0 %v4265
      %v4666 = vpop.f32.mrb[0].mxu0
      %v4667 = vadd.f32 0.0, %v4666
      %v4668 = vpop.f32.mrb[0].mxu0
      %v4669 = vpop.f32.mrb[0].mxu0
      %v4670 = vadd.f32 0.0, %v4669
      %v4671 = vpop.f32.mrb[0].mxu0
      %4672 = vmatprep.mubr.bf16.mxu0 %v4330
      %4673 = vmatmul.mubr.bf16.gmra.mrb[0].mxu0 %v4266
      %v4674 = vpop.f32.mrb[0].mxu0
      %v4675 = vadd.f32 0.0, %v4674
      %v4676 = vpop.f32.mrb[0].mxu0
      %v4677 = vpop.f32.mrb[0].mxu0
      %v4678 = vadd.f32 0.0, %v4677
      %v4679 = vpop.f32.mrb[0].mxu0
      %4680 = vmatprep.mubr.bf16.mxu0 %v4331
      %4681 = vmatmul.mubr.bf16.gmra.mrb[0].mxu0 %v4267
      %v4682 = vpop.f32.mrb[0].mxu0
      %v4683 = vadd.f32 0.0, %v4682
      %v4684 = vpop.f32.mrb[0].mxu0
      %v4685 = vpop.f32.mrb[0].mxu0
      %v4686 = vadd.f32 0.0, %v4685
      %v4687 = vpop.f32.mrb[0].mxu0
      %4688 = vmatprep.mubr.bf16.mxu0 %v4332
      %4689 = vmatmul.mubr.bf16.gmra.mrb[0].mxu0 %v4268
      %v4690 = vpop.f32.mrb[0].mxu0
      %v4691 = vadd.f32 0.0, %v4690
      %v4692 = vpop.f32.mrb[0].mxu0
      %v4693 = vpop.f32.mrb[0].mxu0
      %v4694 = vadd.f32 0.0, %v4693
      %v4695 = vpop.f32.mrb[0].mxu0
      %4696 = vmatprep.mubr.bf16.mxu0 %v4333
      %4697 = vmatmul.mubr.bf16.gmra.mrb[0].mxu0 %v4269
      %v4698 = vpop.f32.mrb[0].mxu0
      %v4699 = vadd.f32 0.0, %v4698
      %v4700 = vpop.f32.mrb[0].mxu0
      %v4701 = vpop.f32.mrb[0].mxu0
      %v4702 = vadd.f32 0.0, %v4701
      %v4703 = vpop.f32.mrb[0].mxu0
      %4704 = vmatprep.mubr.bf16.mxu0 %v4334
      %4705 = vmatmul.mubr.bf16.gmra.mrb[0].mxu0 %v4270
      %v4706 = vpop.f32.mrb[0].mxu0
      %v4707 = vadd.f32 0.0, %v4706
      %v4708 = vpop.f32.mrb[0].mxu0
      %v4709 = vpop.f32.mrb[0].mxu0
      %v4710 = vadd.f32 0.0, %v4709
      %v4711 = vpop.f32.mrb[0].mxu0
      %4712 = vmatprep.mubr.bf16.mxu0 %v4335
      %4713 = vmatmul.mubr.bf16.gmra.mrb[0].mxu0 %v4271
      %v4714 = vpop.f32.mrb[0].mxu0
      %v4715 = vadd.f32 0.0, %v4714
      %v4716 = vpop.f32.mrb[0].mxu0
      %v4717 = vpop.f32.mrb[0].mxu0
      %v4718 = vadd.f32 0.0, %v4717
      %v4719 = vpop.f32.mrb[0].mxu0
      %4720 = vmatprep.mubr.bf16.mxu0 %v4336
      %4721 = vmatmul.mubr.bf16.gmra.mrb[0].mxu0 %v4272
      %v4722 = vpop.f32.mrb[0].mxu0
      %v4723 = vadd.f32 0.0, %v4722
      %v4724 = vpop.f32.mrb[0].mxu0
      %v4725 = vpop.f32.mrb[0].mxu0
      %v4726 = vadd.f32 0.0, %v4725
      %v4727 = vpop.f32.mrb[0].mxu0
      %4728 = vmatprep.mubr.bf16.mxu0 %v4337
      %4729 = vmatmul.mubr.bf16.gmra.mrb[0].mxu0 %v4273
      %v4730 = vpop.f32.mrb[0].mxu0
      %v4731 = vadd.f32 0.0, %v4730
      %v4732 = vpop.f32.mrb[0].mxu0
      %v4733 = vpop.f32.mrb[0].mxu0
      %v4734 = vadd.f32 0.0, %v4733
      %v4735 = vpop.f32.mrb[0].mxu0
      %4736 = vmatprep.mubr.bf16.mxu0 %v4338
      %4737 = vmatmul.mubr.bf16.gmra.mrb[0].mxu0 %v4274
      %v4738 = vpop.f32.mrb[0].mxu0
      %v4739 = vadd.f32 0.0, %v4738
      %v4740 = vpop.f32.mrb[0].mxu0
      %v4741 = vpop.f32.mrb[0].mxu0
      %v4742 = vadd.f32 0.0, %v4741
      %v4743 = vpop.f32.mrb[0].mxu0
      %4744 = vmatprep.mubr.bf16.mxu0 %v4339
      %4745 = vmatmul.mubr.bf16.gmra.mrb[0].mxu0 %v4275
      %v4746 = vpop.f32.mrb[0].mxu0
      %v4747 = vadd.f32 0.0, %v4746
      %v4748 = vpop.f32.mrb[0].mxu0
      %v4749 = vpop.f32.mrb[0].mxu0
      %v4750 = vadd.f32 0.0, %v4749
      %v4751 = vpop.f32.mrb[0].mxu0
      %4752 = vmatprep.mubr.bf16.mxu0 %v4340
      %4753 = vmatmul.mubr.bf16.gmra.mrb[0].mxu0 %v4276
      %v4754 = vpop.f32.mrb[0].mxu0
      %v4755 = vadd.f32 0.0, %v4754
      %v4756 = vpop.f32.mrb[0].mxu0
      %v4757 = vpop.f32.mrb[0].mxu0
      %v4758 = vadd.f32 0.0, %v4757
      %v4759 = vpop.f32.mrb[0].mxu0
      %4760 = vmatprep.mubr.bf16.mxu0 %v4341
      %4761 = vmatmul.mubr.bf16.gmra.mrb[0].mxu0 %v4277
      %v4762 = vpop.f32.mrb[0].mxu0
      %v4763 = vadd.f32 0.0, %v4762
      %v4764 = vpop.f32.mrb[0].mxu0
      %v4765 = vpop.f32.mrb[0].mxu0
      %v4766 = vadd.f32 0.0, %v4765
      %v4767 = vpop.f32.mrb[0].mxu0
      %4768 = vmatprep.mubr.bf16.mxu0 %v4342
      %4769 = vmatmul.mubr.bf16.gmra.mrb[0].mxu0 %v4278
      %v4770 = vpop.f32.mrb[0].mxu0
      %v4771 = vadd.f32 0.0, %v4770
      %v4772 = vpop.f32.mrb[0].mxu0
      %v4773 = vpop.f32.mrb[0].mxu0
      %v4774 = vadd.f32 0.0, %v4773
      %v4775 = vpop.f32.mrb[0].mxu0
      %4776 = vdwg.mxu0
      %4777 = vmatprep.subr.bf16.mxu0 0
      %4778 = vmatpush1.bf16.msra.mxu0 %v4584
      %4779 = vmatprep.subr.bf16.mxu0 0
      %4780 = vmatpush1.bf16.msra.mxu0 %v4585
      %4781 = vmatprep.subr.bf16.mxu0 0
      %4782 = vmatpush1.bf16.msra.mxu0 %v4586
      %4783 = vmatprep.subr.bf16.mxu0 0
      %4784 = vmatpush1.bf16.msra.mxu0 %v4587
      %4785 = vmatprep.subr.bf16.mxu0 0
      %4786 = vmatpush1.bf16.msra.mxu0 %v4588
      %4787 = vmatprep.subr.bf16.mxu0 0
      %4788 = vmatpush1.bf16.msra.mxu0 %v4589
      %4789 = vmatprep.subr.bf16.mxu0 0
      %4790 = vmatpush1.bf16.msra.mxu0 %v4590
      %4791 = vmatprep.subr.bf16.mxu0 0
      %4792 = vmatpush1.bf16.msra.mxu0 %v4591
      %4793 = vmatprep.subr.bf16.mxu0 0
      %4794 = vmatpush1.bf16.msra.mxu0 0
      %4795 = vmatprep.subr.bf16.mxu0 0
      %4796 = vmatpush1.bf16.msra.mxu0 0
      %4797 = vmatprep.subr.bf16.mxu0 0
      %4798 = vmatpush1.bf16.msra.mxu0 0
      %4799 = vmatprep.subr.bf16.mxu0 0
      %4800 = vmatpush1.bf16.msra.mxu0 0
      %4801 = vmatprep.subr.bf16.mxu0 0
      %4802 = vmatpush1.bf16.msra.mxu0 0
      %4803 = vmatprep.subr.bf16.mxu0 0
      %4804 = vmatpush1.bf16.msra.mxu0 0
      %4805 = vmatprep.subr.bf16.mxu0 0
      %4806 = vmatpush1.bf16.msra.mxu0 0
      %4807 = vmatprep.subr.bf16.mxu0 0
      %4808 = vmatpush1.bf16.msra.mxu0 0
      %4809 = vmatprep.mubr.bf16.mxu0 0
      %4810 = vmatmul.mubr.bf16.gmra.mrb[0].mxu0 %v4391
      %v4811 = vpop.f32.mrb[0].mxu0
      %v4812 = vadd.f32 %v4651, %v4811
      %v4813 = vpop.f32.mrb[0].mxu0
      %v4814 = vpop.f32.mrb[0].mxu0
      %v4815 = vadd.f32 %v4654, %v4814
      %v4816 = vpop.f32.mrb[0].mxu0
      %4817 = vmatprep.mubr.bf16.mxu0 0
      %4818 = vmatmul.mubr.bf16.gmra.mrb[0].mxu0 %v4392
      %v4819 = vpop.f32.mrb[0].mxu0
      %v4820 = vadd.f32 %v4659, %v4819
      %v4821 = vpop.f32.mrb[0].mxu0
      %v4822 = vpop.f32.mrb[0].mxu0
      %v4823 = vadd.f32 %v4662, %v4822
      %v4824 = vpop.f32.mrb[0].mxu0
      %4825 = vmatprep.mubr.bf16.mxu0 0
      %4826 = vmatmul.mubr.bf16.gmra.mrb[0].mxu0 %v4393
      %v4827 = vpop.f32.mrb[0].mxu0
      %v4828 = vadd.f32 %v4667, %v4827
      %v4829 = vpop.f32.mrb[0].mxu0
      %v4830 = vpop.f32.mrb[0].mxu0
      %v4831 = vadd.f32 %v4670, %v4830
      %v4832 = vpop.f32.mrb[0].mxu0
      %4833 = vmatprep.mubr.bf16.mxu0 0
      %4834 = vmatmul.mubr.bf16.gmra.mrb[0].mxu0 %v4394
      %v4835 = vpop.f32.mrb[0].mxu0
      %v4836 = vadd.f32 %v4675, %v4835
      %v4837 = vpop.f32.mrb[0].mxu0
      %v4838 = vpop.f32.mrb[0].mxu0
      %v4839 = vadd.f32 %v4678, %v4838
      %v4840 = vpop.f32.mrb[0].mxu0
      %4841 = vmatprep.mubr.bf16.mxu0 0
      %4842 = vmatmul.mubr.bf16.gmra.mrb[0].mxu0 %v4395
      %v4843 = vpop.f32.mrb[0].mxu0
      %v4844 = vadd.f32 %v4683, %v4843
      %v4845 = vpop.f32.mrb[0].mxu0
      %v4846 = vpop.f32.mrb[0].mxu0
      %v4847 = vadd.f32 %v4686, %v4846
      %v4848 = vpop.f32.mrb[0].mxu0
      %4849 = vmatprep.mubr.bf16.mxu0 0
      %4850 = vmatmul.mubr.bf16.gmra.mrb[0].mxu0 %v4396
      %v4851 = vpop.f32.mrb[0].mxu0
      %v4852 = vadd.f32 %v4691, %v4851
      %v4853 = vpop.f32.mrb[0].mxu0
      %v4854 = vpop.f32.mrb[0].mxu0
      %v4855 = vadd.f32 %v4694, %v4854
      %v4856 = vpop.f32.mrb[0].mxu0
      %4857 = vmatprep.mubr.bf16.mxu0 0
      %4858 = vmatmul.mubr.bf16.gmra.mrb[0].mxu0 %v4397
      %v4859 = vpop.f32.mrb[0].mxu0
      %v4860 = vadd.f32 %v4699, %v4859
      %v4861 = vpop.f32.mrb[0].mxu0
      %v4862 = vpop.f32.mrb[0].mxu0
      %v4863 = vadd.f32 %v4702, %v4862
      %v4864 = vpop.f32.mrb[0].mxu0
      %4865 = vmatprep.mubr.bf16.mxu0 0
      %4866 = vmatmul.mubr.bf16.gmra.mrb[0].mxu0 %v4398
      %v4867 = vpop.f32.mrb[0].mxu0
      %v4868 = vadd.f32 %v4707, %v4867
      %v4869 = vpop.f32.mrb[0].mxu0
      %v4870 = vpop.f32.mrb[0].mxu0
      %v4871 = vadd.f32 %v4710, %v4870
      %v4872 = vpop.f32.mrb[0].mxu0
      %4873 = vmatprep.mubr.bf16.mxu0 0
      %4874 = vmatmul.mubr.bf16.gmra.mrb[0].mxu0 %v4399
      %v4875 = vpop.f32.mrb[0].mxu0
      %v4876 = vadd.f32 %v4715, %v4875
      %v4877 = vpop.f32.mrb[0].mxu0
      %v4878 = vpop.f32.mrb[0].mxu0
      %v4879 = vadd.f32 %v4718, %v4878
      %v4880 = vpop.f32.mrb[0].mxu0
      %4881 = vmatprep.mubr.bf16.mxu0 0
      %4882 = vmatmul.mubr.bf16.gmra.mrb[0].mxu0 %v4400
      %v4883 = vpop.f32.mrb[0].mxu0
      %v4884 = vadd.f32 %v4723, %v4883
      %v4885 = vpop.f32.mrb[0].mxu0
      %v4886 = vpop.f32.mrb[0].mxu0
      %v4887 = vadd.f32 %v4726, %v4886
      %v4888 = vpop.f32.mrb[0].mxu0
      %4889 = vmatprep.mubr.bf16.mxu0 0
      %4890 = vmatmul.mubr.bf16.gmra.mrb[0].mxu0 %v4401
      %v4891 = vpop.f32.mrb[0].mxu0
      %v4892 = vadd.f32 %v4731, %v4891
      %v4893 = vpop.f32.mrb[0].mxu0
      %v4894 = vpop.f32.mrb[0].mxu0
      %v4895 = vadd.f32 %v4734, %v4894
      %v4896 = vpop.f32.mrb[0].mxu0
      %4897 = vmatprep.mubr.bf16.mxu0 0
      %4898 = vmatmul.mubr.bf16.gmra.mrb[0].mxu0 %v4402
      %v4899 = vpop.f32.mrb[0].mxu0
      %v4900 = vadd.f32 %v4739, %v4899
      %v4901 = vpop.f32.mrb[0].mxu0
      %v4902 = vpop.f32.mrb[0].mxu0
      %v4903 = vadd.f32 %v4742, %v4902
      %v4904 = vpop.f32.mrb[0].mxu0
      %4905 = vmatprep.mubr.bf16.mxu0 0
      %4906 = vmatmul.mubr.bf16.gmra.mrb[0].mxu0 %v4403
      %v4907 = vpop.f32.mrb[0].mxu0
      %v4908 = vadd.f32 %v4747, %v4907
      %v4909 = vpop.f32.mrb[0].mxu0
      %v4910 = vpop.f32.mrb[0].mxu0
      %v4911 = vadd.f32 %v4750, %v4910
      %v4912 = vpop.f32.mrb[0].mxu0
      %4913 = vmatprep.mubr.bf16.mxu0 0
      %4914 = vmatmul.mubr.bf16.gmra.mrb[0].mxu0 %v4404
      %v4915 = vpop.f32.mrb[0].mxu0
      %v4916 = vadd.f32 %v4755, %v4915
      %v4917 = vpop.f32.mrb[0].mxu0
      %v4918 = vpop.f32.mrb[0].mxu0
      %v4919 = vadd.f32 %v4758, %v4918
      %v4920 = vpop.f32.mrb[0].mxu0
      %4921 = vmatprep.mubr.bf16.mxu0 0
      %4922 = vmatmul.mubr.bf16.gmra.mrb[0].mxu0 %v4405
      %v4923 = vpop.f32.mrb[0].mxu0
      %v4924 = vadd.f32 %v4763, %v4923
      %v4925 = vpop.f32.mrb[0].mxu0
      %v4926 = vpop.f32.mrb[0].mxu0
      %v4927 = vadd.f32 %v4766, %v4926
      %v4928 = vpop.f32.mrb[0].mxu0
      %4929 = vmatprep.mubr.bf16.mxu0 0
      %4930 = vmatmul.mubr.bf16.gmra.mrb[0].mxu0 %v4406
      %v4931 = vpop.f32.mrb[0].mxu0
      %v4932 = vadd.f32 %v4771, %v4931
      %v4933 = vpop.f32.mrb[0].mxu0
      %v4934 = vpop.f32.mrb[0].mxu0
      %v4935 = vadd.f32 %v4774, %v4934
      %v4936 = vpop.f32.mrb[0].mxu0
      %4937 = vdwg.mxu0
      %v4938 = vadd.f32 %v3480, %v4812
      %v4939 = vadd.f32 %v3483, %v4815
      %v4940 = vadd.f32 %v3488, %v4820
      %v4941 = vadd.f32 %v3491, %v4823
      %v4942 = vadd.f32 %v3496, %v4828
      %v4943 = vadd.f32 %v3499, %v4831
      %v4944 = vadd.f32 %v3504, %v4836
      %v4945 = vadd.f32 %v3507, %v4839
      %v4946 = vadd.f32 %v3512, %v4844
      %v4947 = vadd.f32 %v3515, %v4847
      %v4948 = vadd.f32 %v3520, %v4852
      %v4949 = vadd.f32 %v3523, %v4855
      %v4950 = vadd.f32 %v3528, %v4860
      %v4951 = vadd.f32 %v3531, %v4863
      %v4952 = vadd.f32 %v3536, %v4868
      %v4953 = vadd.f32 %v3539, %v4871
      %v4954 = vadd.f32 %v3544, %v4876
      %v4955 = vadd.f32 %v3547, %v4879
      %v4956 = vadd.f32 %v3552, %v4884
      %v4957 = vadd.f32 %v3555, %v4887
      %v4958 = vadd.f32 %v3560, %v4892
      %v4959 = vadd.f32 %v3563, %v4895
      %v4960 = vadd.f32 %v3568, %v4900
      %v4961 = vadd.f32 %v3571, %v4903
      %v4962 = vadd.f32 %v3576, %v4908
      %v4963 = vadd.f32 %v3579, %v4911
      %v4964 = vadd.f32 %v3584, %v4916
      %v4965 = vadd.f32 %v3587, %v4919
      %v4966 = vadd.f32 %v3592, %v4924
      %v4967 = vadd.f32 %v3595, %v4927
      %v4968 = vadd.f32 %v3600, %v4932
      %v4969 = vadd.f32 %v3603, %v4935
      %v4970 = vpack.c.bf16 %v4939, %v4938
      %v4971 = vpack.c.bf16 %v4941, %v4940
      %v4972 = vpack.c.bf16 %v4943, %v4942
      %v4973 = vpack.c.bf16 %v4945, %v4944
      %v4974 = vpack.c.bf16 %v4947, %v4946
      %v4975 = vpack.c.bf16 %v4949, %v4948
      %v4976 = vpack.c.bf16 %v4951, %v4950
      %v4977 = vpack.c.bf16 %v4953, %v4952
      %v4978 = vpack.c.bf16 %v4955, %v4954
      %v4979 = vpack.c.bf16 %v4957, %v4956
      %v4980 = vpack.c.bf16 %v4959, %v4958
      %v4981 = vpack.c.bf16 %v4961, %v4960
      %v4982 = vpack.c.bf16 %v4963, %v4962
      %v4983 = vpack.c.bf16 %v4965, %v4964
      %v4984 = vpack.c.bf16 %v4967, %v4966
      %v4985 = vpack.c.bf16 %v4969, %v4968
      %v5002 = vunpack.c.l.b16 %v4970
      %v5003 = vunpack.c.h.b16 %v4970
      %v5004 = vunpack.c.l.b16 %v4971
      %v5005 = vunpack.c.h.b16 %v4971
      %v5006 = vunpack.c.l.b16 %v4972
      %v5007 = vunpack.c.h.b16 %v4972
      %v5008 = vunpack.c.l.b16 %v4973
      %v5009 = vunpack.c.h.b16 %v4973
      %v5010 = vunpack.c.l.b16 %v4974
      %v5011 = vunpack.c.h.b16 %v4974
      %v5012 = vunpack.c.l.b16 %v4975
      %v5013 = vunpack.c.h.b16 %v4975
      %v5014 = vunpack.c.l.b16 %v4976
      %v5015 = vunpack.c.h.b16 %v4976
      %v5016 = vunpack.c.l.b16 %v4977
      %v5017 = vunpack.c.h.b16 %v4977
      %v5018 = vunpack.c.l.b16 %v4978
      %v5019 = vunpack.c.h.b16 %v4978
      %v5020 = vunpack.c.l.b16 %v4979
      %v5021 = vunpack.c.h.b16 %v4979
      %v5022 = vunpack.c.l.b16 %v4980
      %v5023 = vunpack.c.h.b16 %v4980
      %v5024 = vunpack.c.l.b16 %v4981
      %v5025 = vunpack.c.h.b16 %v4981
      %v5026 = vunpack.c.l.b16 %v4982
      %v5027 = vunpack.c.h.b16 %v4982
      %v5028 = vunpack.c.l.b16 %v4983
      %v5029 = vunpack.c.h.b16 %v4983
      %v5030 = vunpack.c.l.b16 %v4984
      %v5031 = vunpack.c.h.b16 %v4984
      %v5032 = vunpack.c.l.b16 %v4985
      %v5033 = vunpack.c.h.b16 %v4985
      %v5034 = vpack.c.b16 %v5002, %v5002
      %v5035 = vpack.c.b16 %v5003, %v5003
      %v5036 = vpack.c.b16 %v5004, %v5004
      %v5037 = vpack.c.b16 %v5005, %v5005
      %v5038 = vpack.c.b16 %v5006, %v5006
      %v5039 = vpack.c.b16 %v5007, %v5007
      %v5040 = vpack.c.b16 %v5008, %v5008
      %v5041 = vpack.c.b16 %v5009, %v5009
      %v5042 = vpack.c.b16 %v5010, %v5010
      %v5043 = vpack.c.b16 %v5011, %v5011
      %v5044 = vpack.c.b16 %v5012, %v5012
      %v5045 = vpack.c.b16 %v5013, %v5013
      %v5046 = vpack.c.b16 %v5014, %v5014
      %v5047 = vpack.c.b16 %v5015, %v5015
      %v5048 = vpack.c.b16 %v5016, %v5016
      %v5049 = vpack.c.b16 %v5017, %v5017
      %v5050 = vpack.c.b16 %v5018, %v5018
      %v5051 = vpack.c.b16 %v5019, %v5019
      %v5052 = vpack.c.b16 %v5020, %v5020
      %v5053 = vpack.c.b16 %v5021, %v5021
      %v5054 = vpack.c.b16 %v5022, %v5022
      %v5055 = vpack.c.b16 %v5023, %v5023
      %v5056 = vpack.c.b16 %v5024, %v5024
      %v5057 = vpack.c.b16 %v5025, %v5025
      %v5058 = vpack.c.b16 %v5026, %v5026
      %v5059 = vpack.c.b16 %v5027, %v5027
      %v5060 = vpack.c.b16 %v5028, %v5028
      %v5061 = vpack.c.b16 %v5029, %v5029
      %v5062 = vpack.c.b16 %v5030, %v5030
      %v5063 = vpack.c.b16 %v5031, %v5031
      %v5064 = vpack.c.b16 %v5032, %v5032
      %v5065 = vpack.c.b16 %v5033, %v5033
      %5098 = vst [vmem:[%s260] sm:$0xf] %v5034
      %5099 = vst [vmem:[%s260 + $0x4] sm:$0xf] %v5035
      %5100 = vst [vmem:[%s260 + $0x8] sm:$0xf] %v5036
      %5101 = vst [vmem:[%s260 + $0xc] sm:$0xf] %v5037
      %5102 = vst [vmem:[%s260 + $0x10] sm:$0xf] %v5038
      %5103 = vst [vmem:[%s260 + $0x14] sm:$0xf] %v5039
      %5104 = vst [vmem:[%s260 + $0x18] sm:$0xf] %v5040
      %5105 = vst [vmem:[%s260 + $0x1c] sm:$0xf] %v5041
      %5106 = vst [vmem:[%s260 + $0x20] sm:$0xf] %v5042
      %5107 = vst [vmem:[%s260 + $0x24] sm:$0xf] %v5043
      %5108 = vst [vmem:[%s260 + $0x28] sm:$0xf] %v5044
      %5109 = vst [vmem:[%s260 + $0x2c] sm:$0xf] %v5045
      %5110 = vst [vmem:[%s260 + $0x30] sm:$0xf] %v5046
      %5111 = vst [vmem:[%s260 + $0x34] sm:$0xf] %v5047
      %5112 = vst [vmem:[%s260 + $0x38] sm:$0xf] %v5048
      %5113 = vst [vmem:[%s260 + $0x3c] sm:$0xf] %v5049
      %5114 = vst [vmem:[%s260 + $0x40] sm:$0xf] %v5050
      %5115 = vst [vmem:[%s260 + $0x44] sm:$0xf] %v5051
      %5116 = vst [vmem:[%s260 + $0x48] sm:$0xf] %v5052
      %5117 = vst [vmem:[%s260 + $0x4c] sm:$0xf] %v5053
      %5118 = vst [vmem:[%s260 + $0x50] sm:$0xf] %v5054
      %5119 = vst [vmem:[%s260 + $0x54] sm:$0xf] %v5055
      %5120 = vst [vmem:[%s260 + $0x58] sm:$0xf] %v5056
      %5121 = vst [vmem:[%s260 + $0x5c] sm:$0xf] %v5057
      %5122 = vst [vmem:[%s260 + $0x60] sm:$0xf] %v5058
      %5123 = vst [vmem:[%s260 + $0x64] sm:$0xf] %v5059
      %5124 = vst [vmem:[%s260 + $0x68] sm:$0xf] %v5060
      %5125 = vst [vmem:[%s260 + $0x6c] sm:$0xf] %v5061
      %5126 = vst [vmem:[%s260 + $0x70] sm:$0xf] %v5062
      %5127 = vst [vmem:[%s260 + $0x74] sm:$0xf] %v5063
      %5128 = vst [vmem:[%s260 + $0x78] sm:$0xf] %v5064
      %5129 = vst [vmem:[%s260 + $0x7c] sm:$0xf] %v5065
      %v5130 = vadd.f32 %v4938, %v4939
      %v5131 = vadd.f32 %v5130, %v4940
      %v5132 = vadd.f32 %v5131, %v4941
      %v5133 = vadd.f32 %v5132, %v4942
      %v5134 = vadd.f32 %v5133, %v4943
      %v5135 = vadd.f32 %v5134, %v4944
      %v5136 = vadd.f32 %v5135, %v4945
      %v5137 = vadd.f32 %v5136, %v4946
      %v5138 = vadd.f32 %v5137, %v4947
      %v5139 = vadd.f32 %v5138, %v4948
      %v5140 = vadd.f32 %v5139, %v4949
      %v5141 = vadd.f32 %v5140, %v4950
      %v5142 = vadd.f32 %v5141, %v4951
      %v5143 = vadd.f32 %v5142, %v4952
      %v5144 = vadd.f32 %v5143, %v4953
      %v5145 = vadd.f32 %v5144, %v4954
      %v5146 = vadd.f32 %v5145, %v4955
      %v5147 = vadd.f32 %v5146, %v4956
      %v5148 = vadd.f32 %v5147, %v4957
      %v5149 = vadd.f32 %v5148, %v4958
      %v5150 = vadd.f32 %v5149, %v4959
      %v5151 = vadd.f32 %v5150, %v4960
      %v5152 = vadd.f32 %v5151, %v4961
      %v5153 = vadd.f32 %v5152, %v4962
      %v5154 = vadd.f32 %v5153, %v4963
      %v5155 = vadd.f32 %v5154, %v4964
      %v5156 = vadd.f32 %v5155, %v4965
      %v5157 = vadd.f32 %v5156, %v4966
      %v5158 = vadd.f32 %v5157, %v4967
      %v5159 = vadd.f32 %v5158, %v4968
      %v5160 = vadd.f32 %v5159, %v4969
      %v5161 = vrot.slane %v5160, 4
      %v5162 = vadd.f32 %v5160, %v5161
      %v5163 = vrot.slane %v5162, 2
      %v5164 = vadd.f32 %v5162, %v5163
      %v5165 = vrot.slane %v5164, 1
      %v5166 = vadd.f32 %v5164, %v5165
      %v5167 = vmul.f32 %v5166, 0.00390625
      %v5168 = vsub.f32 %v4938, %v5167
      %v5169 = vsub.f32 %v4939, %v5167
      %v5170 = vsub.f32 %v4940, %v5167
      %v5171 = vsub.f32 %v4941, %v5167
      %v5172 = vsub.f32 %v4942, %v5167
      %v5173 = vsub.f32 %v4943, %v5167
      %v5174 = vsub.f32 %v4944, %v5167
      %v5175 = vsub.f32 %v4945, %v5167
      %v5176 = vsub.f32 %v4946, %v5167
      %v5177 = vsub.f32 %v4947, %v5167
      %v5178 = vsub.f32 %v4948, %v5167
      %v5179 = vsub.f32 %v4949, %v5167
      %v5180 = vsub.f32 %v4950, %v5167
      %v5181 = vsub.f32 %v4951, %v5167
      %v5182 = vsub.f32 %v4952, %v5167
      %v5183 = vsub.f32 %v4953, %v5167
      %v5184 = vsub.f32 %v4954, %v5167
      %v5185 = vsub.f32 %v4955, %v5167
      %v5186 = vsub.f32 %v4956, %v5167
      %v5187 = vsub.f32 %v4957, %v5167
      %v5188 = vsub.f32 %v4958, %v5167
      %v5189 = vsub.f32 %v4959, %v5167
      %v5190 = vsub.f32 %v4960, %v5167
      %v5191 = vsub.f32 %v4961, %v5167
      %v5192 = vsub.f32 %v4962, %v5167
      %v5193 = vsub.f32 %v4963, %v5167
      %v5194 = vsub.f32 %v4964, %v5167
      %v5195 = vsub.f32 %v4965, %v5167
      %v5196 = vsub.f32 %v4966, %v5167
      %v5197 = vsub.f32 %v4967, %v5167
      %v5198 = vsub.f32 %v4968, %v5167
      %v5199 = vsub.f32 %v4969, %v5167
      %v5200 = vmul.f32 %v5168, %v5168
      %v5201 = vmul.f32 %v5169, %v5169
      %v5202 = vmul.f32 %v5170, %v5170
      %v5203 = vmul.f32 %v5171, %v5171
      %v5204 = vmul.f32 %v5172, %v5172
      %v5205 = vmul.f32 %v5173, %v5173
      %v5206 = vmul.f32 %v5174, %v5174
      %v5207 = vmul.f32 %v5175, %v5175
      %v5208 = vmul.f32 %v5176, %v5176
      %v5209 = vmul.f32 %v5177, %v5177
      %v5210 = vmul.f32 %v5178, %v5178
      %v5211 = vmul.f32 %v5179, %v5179
      %v5212 = vmul.f32 %v5180, %v5180
      %v5213 = vmul.f32 %v5181, %v5181
      %v5214 = vmul.f32 %v5182, %v5182
      %v5215 = vmul.f32 %v5183, %v5183
      %v5216 = vmul.f32 %v5184, %v5184
      %v5217 = vmul.f32 %v5185, %v5185
      %v5218 = vmul.f32 %v5186, %v5186
      %v5219 = vmul.f32 %v5187, %v5187
      %v5220 = vmul.f32 %v5188, %v5188
      %v5221 = vmul.f32 %v5189, %v5189
      %v5222 = vmul.f32 %v5190, %v5190
      %v5223 = vmul.f32 %v5191, %v5191
      %v5224 = vmul.f32 %v5192, %v5192
      %v5225 = vmul.f32 %v5193, %v5193
      %v5226 = vmul.f32 %v5194, %v5194
      %v5227 = vmul.f32 %v5195, %v5195
      %v5228 = vmul.f32 %v5196, %v5196
      %v5229 = vmul.f32 %v5197, %v5197
      %v5230 = vmul.f32 %v5198, %v5198
      %v5231 = vmul.f32 %v5199, %v5199
      %v5232 = vadd.f32 %v5200, %v5201
      %v5233 = vadd.f32 %v5232, %v5202
      %v5234 = vadd.f32 %v5233, %v5203
      %v5235 = vadd.f32 %v5234, %v5204
      %v5236 = vadd.f32 %v5235, %v5205
      %v5237 = vadd.f32 %v5236, %v5206
      %v5238 = vadd.f32 %v5237, %v5207
      %v5239 = vadd.f32 %v5238, %v5208
      %v5240 = vadd.f32 %v5239, %v5209
      %v5241 = vadd.f32 %v5240, %v5210
      %v5242 = vadd.f32 %v5241, %v5211
      %v5243 = vadd.f32 %v5242, %v5212
      %v5244 = vadd.f32 %v5243, %v5213
      %v5245 = vadd.f32 %v5244, %v5214
      %v5246 = vadd.f32 %v5245, %v5215
      %v5247 = vadd.f32 %v5246, %v5216
      %v5248 = vadd.f32 %v5247, %v5217
      %v5249 = vadd.f32 %v5248, %v5218
      %v5250 = vadd.f32 %v5249, %v5219
      %v5251 = vadd.f32 %v5250, %v5220
      %v5252 = vadd.f32 %v5251, %v5221
      %v5253 = vadd.f32 %v5252, %v5222
      %v5254 = vadd.f32 %v5253, %v5223
      %v5255 = vadd.f32 %v5254, %v5224
      %v5256 = vadd.f32 %v5255, %v5225
      %v5257 = vadd.f32 %v5256, %v5226
      %v5258 = vadd.f32 %v5257, %v5227
      %v5259 = vadd.f32 %v5258, %v5228
      %v5260 = vadd.f32 %v5259, %v5229
      %v5261 = vadd.f32 %v5260, %v5230
      %v5262 = vadd.f32 %v5261, %v5231
      %v5263 = vrot.slane %v5262, 4
      %v5264 = vadd.f32 %v5262, %v5263
      %v5265 = vrot.slane %v5264, 2
      %v5266 = vadd.f32 %v5264, %v5265
      %v5267 = vrot.slane %v5266, 1
      %v5268 = vadd.f32 %v5266, %v5267
      %vm5269 = vcmask 1040384
      %v5270 = vsel %vm5269, %v5166, %v5268
      %5271 = vst [vmem:[%s268] sm:$0x3] %v5270
      %s5272 = smul.u32 16, %s22
      %p5273 = scmp.lt.s32.totalorder %s21, 1
      %s5274 = scalar_select %p5273, %s21, 1
      %p5275 = scmp.lt.s32.totalorder %s5272, 15
      %s5276 = scalar_select %p5275, %s5272, 15
      %s5277 = smul.addr %s5276, 2
      %s5278 = smul.addr %s5274, 32
      %s5279 = sadd.s32 %s5277, %s5278
      %s5280 = smul.addr %s5279, 4
      %s5281 = scalar_lea.vmem %s4, %s5280
      %p5282 = scmp.lt.s32.totalorder %s21, 1
      %s5283 = scalar_select %p5282, %s21, 1
      %p5284 = scmp.lt.s32.totalorder %s22, 0
      %s5285 = scalar_select %p5284, %s22, 0
      %s5286 = sadd.s32 %s5285, %s5283
      %s5287 = smul.addr %s5286, 2
      %s5288 = scalar_lea.vmem %s5, %s5287
      // Predicated region
      $region37: #{double_conv.3} parent=35 // pred_check
        %p5289 = pneg %p138
      $region38: #{double_conv.3} parent=35 // pred_check_branch
        %5291 = sbr.rel (%p5289) target = $region40
      $region39: #{double_conv.3} parent=35 // pred_region
        %s5292 = smul.u32 16, %s22
      $region40: #{double_conv.3} parent=35 // pred_fallthru
        _
      // Predicated region
      $region41: #{double_conv.3} parent=35 // pred_check
        %p5293 = pneg %p166
      $region42: #{double_conv.3} parent=35 // pred_check_branch
        %5295 = sbr.rel (%p5293) target = $region44
      $region43: #{double_conv.3} parent=35 // pred_region
        _
      $region44: #{double_conv.3} parent=35 // pred_fallthru
        _
    $region36: #{double_conv.3} parent=5 // pred_fallthru
      _
    %p5296 = scmp.le.s32.totalorder 2, %s12
    // Predicated region
    $region45: #{double_conv.3} parent=5 // pred_check
      %p5297 = pneg %p5296
    $region46: #{double_conv.3} parent=5 // pred_check_branch
      %5299 = sbr.rel (%p5297) target = $region48
    $region47: #{double_conv.3} parent=5 // pred_region
      %s5300 = ssub.s32 %s12, 2
      // Predicated region
      $region49: #{double_conv.3} parent=47 // pred_check
        %p5301 = pneg %p144
      $region50: #{double_conv.3} parent=47 // pred_check_branch
        %5303 = sbr.rel (%p5301) target = $region52
      $region51: #{double_conv.3} parent=47 // pred_region
        %s5304 = smul.u32 16, %s24
        %p5305 = scmp.lt.s32.totalorder %s23, 1
        %s5306 = scalar_select %p5305, %s23, 1
        %p5307 = scmp.lt.s32.totalorder %s5304, 15
        %s5308 = scalar_select %p5307, %s5304, 15
        %s5309 = smul.addr %s5308, 2
        %s5310 = smul.addr %s5306, 32
        %s5311 = sadd.s32 %s5309, %s5310
        %s5312 = smul.addr %s5311, 4
        %s5313 = scalar_lea.vmem %s4, %s5312
      $region52: #{double_conv.3} parent=47 // pred_fallthru
        _
      // Predicated region
      $region53: #{double_conv.3} parent=47 // pred_check
        %p5314 = pneg %p172
      $region54: #{double_conv.3} parent=47 // pred_check_branch
        %5316 = sbr.rel (%p5314) target = $region56
      $region55: #{double_conv.3} parent=47 // pred_region
        %p5317 = scmp.lt.s32.totalorder %s23, 1
        %s5318 = scalar_select %p5317, %s23, 1
        %p5319 = scmp.lt.s32.totalorder %s24, 0
        %s5320 = scalar_select %p5319, %s24, 0
        %s5321 = sadd.s32 %s5320, %s5318
        %s5322 = smul.addr %s5321, 2
        %s5323 = scalar_lea.vmem %s5, %s5322
      $region56: #{double_conv.3} parent=47 // pred_fallthru
        _
    $region48: #{double_conv.3} parent=5 // pred_fallthru
      _
  $region6: #{double_conv.3} parent=0 // loop_footer
    %s16 = sadd.s32 1, %s12
  $region7: #{double_conv.3} parent=0 // loop_footer_branch
    %11 = sbr.rel target = $region3
  $region8: #{double_conv.3} parent=0 // loop_exit
    _

</llo_original>
